<compile_context>
chip_gen: v7x
topology: tpu7x:2x2x1
jax: 0.10.0
libtpu: 0.0.40
codegen_flags: <defaults>
</compile_context>

<pallas_src>
import jax
import jax.numpy as jnp
import numpy as np
from jax import lax
from jax.experimental import pallas as pl
from jax.experimental.pallas import tpu as pltpu

HALF = 256  # padded lane width of one pooling half (>= 12*20 for conv1, >= 4*50 for conv2)


# ------------------------------- Pallas kernels ------------------------------ #

def _conv_stack_kernel(x4_ref, m1_ref, b1t_ref, m2_ref, b2t_ref, out_ref):
    """Per-sample conv1+ReLU+pool + conv2+ReLU+pool, all resident in VMEM.

    x4_ref : (1, 4, 7, 28) f32   image rows grouped by (row mod 4): x4[m, t] = img[4t+m]
    m1_ref : (5, 28, 512)  bf16  conv1 banded matrices (one per kernel row ki); output
                                 lane = (ow%2)*256 + (ow//2)*20 + cout
    m2_ref : (5, 256, 512) bf16  conv2 banded matrices; input lane = w*20 + cin,
                                 output lane = (ow2%2)*256 + (ow2//2)*50 + cout
    out_ref: (1, 4, 256)   f32   pooled conv2 features, lane = w*50 + c (200 used, 256 padded)
    """
    # ---- conv1: output rows oh = 4*t + r (t = 0..5), grouped by r = oh % 4 ----
    acc1 = [None] * 4
    for ki in range(5):
        m1k = m1_ref[ki]                                     # (28, 512) bf16
        for r in range(4):
            a = r + ki                                       # needed image row = 4*t + a
            xs = x4_ref[0, a % 4, pl.ds(a // 4, 6), :]       # (6, 28) f32, contiguous
            part = jnp.dot(xs.astype(jnp.bfloat16), m1k,
                           preferred_element_type=jnp.float32)
            acc1[r] = part if acc1[r] is None else acc1[r] + part
    b1 = b1t_ref[...]                                        # (1, 512) f32
    r1 = [jnp.maximum(a + b1, 0.0) for a in acc1]            # (6, 512) each
    # 2x2 max pool: width parity lives in the two 256-lane halves; height pairs are
    # row groups (r=0, r=1) -> even pooled rows and (r=2, r=3) -> odd pooled rows.
    wp = [jnp.maximum(t[:, :HALF], t[:, HALF:]) for t in r1]           # (6, 256)
    p1 = [jnp.maximum(wp[0], wp[1]),                                   # pooled rows 0,2,...,10
          jnp.maximum(wp[2], wp[3])]                                   # pooled rows 1,3,...,11

    # ---- conv2: output rows oh2 = 2*s + q (s = 0..3), grouped by q = oh2 % 2 ----
    acc2 = [None] * 2
    for ki in range(5):
        m2k = m2_ref[ki]                                     # (256, 512) bf16
        for q in range(2):
            a = q + ki                                       # needed pooled1 row = 2*s + a
            lhs = p1[a % 2][a // 2:a // 2 + 4, :]            # (4, 256) f32, contiguous
            part = jnp.dot(lhs.astype(jnp.bfloat16), m2k,
                           preferred_element_type=jnp.float32)
            acc2[q] = part if acc2[q] is None else acc2[q] + part
    b2 = b2t_ref[...]                                        # (1, 512) f32
    r2 = [jnp.maximum(a + b2, 0.0) for a in acc2]            # (4, 512) each
    hp = [jnp.maximum(t[:, :HALF], t[:, HALF:]) for t in r2]           # width pool  (4, 256)
    out_ref[0] = jnp.maximum(hp[0], hp[1]).astype(out_ref.dtype)       # height pool (4, 256)


def _fc_kernel(f_ref, w1_ref, b1_ref, w2_ref, b2_ref, o_ref):
    """fc1 + ReLU + fc2 for one tile of batch rows (bf16 MXU matmuls, f32 accumulate)."""
    h = jnp.dot(f_ref[...].astype(jnp.bfloat16), w1_ref[...],
                preferred_element_type=jnp.float32)
    h = jnp.maximum(h + b1_ref[...], 0.0)
    o = jnp.dot(h.astype(jnp.bfloat16), w2_ref[...],
                preferred_element_type=jnp.float32)
    o_ref[...] = (o + b2_ref[...]).astype(o_ref.dtype)


# ------------------------- init-time weight preparation ----------------------- #

def prepare_params(params):
    """Lower PyTorch-layout weights (once, at init) into kernel-ready matrices."""
    w1 = np.asarray(params["conv1_w"], np.float32)    # (20, 1, 5, 5)
    b1 = np.asarray(params["conv1_b"], np.float32)    # (20,)
    w2 = np.asarray(params["conv2_w"], np.float32)    # (50, 20, 5, 5)
    b2 = np.asarray(params["conv2_b"], np.float32)    # (50,)
    fw1 = np.asarray(params["fc1_w"], np.float32)     # (500, 800)
    fb1 = np.asarray(params["fc1_b"], np.float32)     # (500,)
    fw2 = np.asarray(params["fc2_w"], np.float32)     # (10, 500)
    fb2 = np.asarray(params["fc2_b"], np.float32)     # (10,)

    # conv1 banded matrices: rows = input image column w (0..27),
    # output lane = (ow % 2)*HALF + (ow // 2)*20 + cout.
    m1 = np.zeros((5, 28, 2 * HALF), np.float32)
    b1t = np.zeros((1, 2 * HALF), np.float32)
    for ow in range(24):
        base = (ow % 2) * HALF + (ow // 2) * 20
        b1t[0, base:base + 20] = b1
        for ki in range(5):
            for kj in range(5):
                m1[ki, ow + kj, base:base + 20] = w1[:, 0, ki, kj]

    # conv2 banded matrices: rows = pooled1 lane (w*20 + cin, 0..239, padded to 256),
    # output lane = (ow2 % 2)*HALF + (ow2 // 2)*50 + cout.
    m2 = np.zeros((5, HALF, 2 * HALF), np.float32)
    b2t = np.zeros((1, 2 * HALF), np.float32)
    for ow2 in range(8):
        base = (ow2 % 2) * HALF + (ow2 // 2) * 50
        b2t[0, base:base + 50] = b2
        for ki in range(5):
            for kj in range(5):
                j = ow2 + kj                               # pooled1 width index (0..11)
                m2[ki, j * 20:(j + 1) * 20, base:base + 50] = w2[:, :, ki, kj].T

    # fc1: reorder torch's (c, h, w) flatten of the (50,4,4) map to the kernel's
    # (h, w*50 + c) layout, with each h-row padded from 200 to HALF lanes.
    wr = fw1.reshape(500, 50, 4, 4).transpose(2, 3, 1, 0).reshape(800, 500)
    fc1 = np.zeros((4 * HALF, 500), np.float32)
    for h in range(4):
        fc1[h * HALF:h * HALF + 200, :] = wr[h * 200:(h + 1) * 200, :]

    bf16 = jnp.bfloat16
    return dict(
        m1=jnp.asarray(m1, bf16), b1t=jnp.asarray(b1t, jnp.float32),
        m2=jnp.asarray(m2, bf16), b2t=jnp.asarray(b2t, jnp.float32),
        fc1_w=jnp.asarray(fc1, bf16), fc1_b=jnp.asarray(fb1.reshape(1, 500), jnp.float32),
        fc2_w=jnp.asarray(fw2.T, bf16), fc2_b=jnp.asarray(fb2.reshape(1, 10), jnp.float32),
    )


# ----------------------------------- forward ---------------------------------- #

@jax.jit
def forward(prepped, x_nchw):
    n = x_nchw.shape[0]
    x = x_nchw.reshape(n, 28, 28).astype(jnp.float32)
    # Split image rows by (row mod 4) so both pooling stages need only contiguous
    # slices inside the kernel:  x4[b, m, t, :] = x[b, 4*t + m, :].
    x4 = jnp.transpose(x.reshape(n, 7, 4, 28), (0, 2, 1, 3))          # (n, 4, 7, 28)

    feats = pl.pallas_call(
        _conv_stack_kernel,
        out_shape=jax.ShapeDtypeStruct((n, 4, HALF), jnp.float32),
        grid=(n,),
        in_specs=[pl.BlockSpec((1, 4, 7, 28), lambda b: (b, 0, 0, 0)),
                  pl.BlockSpec((5, 28, 2 * HALF), lambda b: (0, 0, 0)),
                  pl.BlockSpec((1, 2 * HALF), lambda b: (0, 0)),
                  pl.BlockSpec((5, HALF, 2 * HALF), lambda b: (0, 0, 0)),
                  pl.BlockSpec((1, 2 * HALF), lambda b: (0, 0))],
        out_specs=pl.BlockSpec((1, 4, HALF), lambda b: (b, 0, 0)),
        compiler_params=pltpu.CompilerParams(dimension_semantics=("parallel",)),
    )(x4, prepped["m1"], prepped["b1t"], prepped["m2"], prepped["b2t"])

    feats = feats.reshape(n, 4 * HALF)                                # (n, 1024), free
    tb = n if n <= 256 else 256
    return pl.pallas_call(
        _fc_kernel,
        out_shape=jax.ShapeDtypeStruct((n, 10), jnp.float32),
        grid=(pl.cdiv(n, tb),),
        in_specs=[pl.BlockSpec((tb, 4 * HALF), lambda i: (i, 0)),
                  pl.BlockSpec((4 * HALF, 500), lambda i: (0, 0)),
                  pl.BlockSpec((1, 500), lambda i: (0, 0)),
                  pl.BlockSpec((500, 10), lambda i: (0, 0)),
                  pl.BlockSpec((1, 10), lambda i: (0, 0))],
        out_specs=pl.BlockSpec((tb, 10), lambda i: (i, 0)),
        compiler_params=pltpu.CompilerParams(dimension_semantics=("parallel",)),
    )(feats, prepped["fc1_w"], prepped["fc1_b"], prepped["fc2_w"], prepped["fc2_b"])


# ------------------------------ reference & init ------------------------------ #

def init_params(key):
    """Deterministic PyTorch-default-like uniform(-1/sqrt(fan_in), +) init."""
    ks = jax.random.split(key, 8)

    def u(k, shape, fan_in):
        bound = 1.0 / jnp.sqrt(jnp.float32(fan_in))
        return jax.random.uniform(k, shape, jnp.float32, -bound, bound)

    return dict(
        conv1_w=u(ks[0], (20, 1, 5, 5), 1 * 5 * 5),
        conv1_b=u(ks[1], (20,), 1 * 5 * 5),
        conv2_w=u(ks[2], (50, 20, 5, 5), 20 * 5 * 5),
        conv2_b=u(ks[3], (50,), 20 * 5 * 5),
        fc1_w=u(ks[4], (500, 800), 800),        # PyTorch Linear: (out, in)
        fc1_b=u(ks[5], (500,), 800),
        fc2_w=u(ks[6], (10, 500), 500),
        fc2_b=u(ks[7], (10,), 500),
    )


def reference_forward(params, x_nchw):
    """Pure-JAX f32 reference matching the PyTorch module exactly."""
    dn = ("NCHW", "OIHW", "NCHW")
    y = lax.conv_general_dilated(x_nchw.astype(jnp.float32), params["conv1_w"],
                                 (1, 1), "VALID", dimension_numbers=dn)
    y = jax.nn.relu(y + params["conv1_b"][None, :, None, None])
    y = lax.reduce_window(y, -jnp.inf, lax.max, (1, 1, 2, 2), (1, 1, 2, 2), "VALID")
    y = lax.conv_general_dilated(y, params["conv2_w"], (1, 1), "VALID",
                                 dimension_numbers=dn)
    y = jax.nn.relu(y + params["conv2_b"][None, :, None, None])
    y = lax.reduce_window(y, -jnp.inf, lax.max, (1, 1, 2, 2), (1, 1, 2, 2), "VALID")
    y = y.reshape(y.shape[0], -1)                             # torch view(-1, 800), NCHW order
    y = jax.nn.relu(y @ params["fc1_w"].T + params["fc1_b"])
    return y @ params["fc2_w"].T + params["fc2_b"]


if __name__ == "__main__":
    key = jax.random.PRNGKey(0)
    pkey, xkey = jax.random.split(key)
    params = init_params(pkey)
    prepped = prepare_params(params)
    # Shapes implied by the module: 28x28 single-channel input (MNIST-style).
    x = jax.random.normal(xkey, (2, 1, 28, 28), dtype=jnp.float32)

    out = forward(prepped, x)
    jax.block_until_ready(out)
    assert out.shape == (2, 10) and out.dtype == jnp.float32

    ref = reference_forward(params, x)
    assert jnp.allclose(out, ref, rtol=5e-2, atol=5e-2), (
        "mismatch vs reference, max abs err = %s" % jnp.max(jnp.abs(out - ref)))
    print("KERNEL_OK")
</pallas_src>

<mosaic_0001>
module attributes {stable_mosaic.version = 11 : i64} {
  func.func @_conv_stack_kernel(%arg0: i32, %arg1: memref<1x4x7x28xf32, #tpu.memory_space<vmem>>, %arg2: memref<5x28x512xbf16, #tpu.memory_space<vmem>>, %arg3: memref<1x512xf32, #tpu.memory_space<vmem>>, %arg4: memref<5x256x512xbf16, #tpu.memory_space<vmem>>, %arg5: memref<1x512xf32, #tpu.memory_space<vmem>>, %arg6: memref<1x4x256xf32, #tpu.memory_space<vmem>>) attributes {dimension_semantics = [#tpu.dimension_semantics<parallel>], iteration_bounds = array<i64: 2>, scalar_prefetch = 0 : i64, scratch_operands = 0 : i64, tpu.core_type = #tpu.core_type<tc>, window_params = [{transform_indices = @transform_0, window_bounds = array<i64: 1, 4, 7, 28>}, {pipeline_mode = #tpu.pipeline_mode<synchronous>, transform_indices = @transform_1, window_bounds = array<i64: 5, 28, 512>}, {pipeline_mode = #tpu.pipeline_mode<synchronous>, transform_indices = @transform_2, window_bounds = array<i64: 1, 512>}, {pipeline_mode = #tpu.pipeline_mode<synchronous>, transform_indices = @transform_3, window_bounds = array<i64: 5, 256, 512>}, {pipeline_mode = #tpu.pipeline_mode<synchronous>, transform_indices = @transform_4, window_bounds = array<i64: 1, 512>}, {transform_indices = @transform_5, window_bounds = array<i64: 1, 4, 256>}]} {
    %c0 = arith.constant 0 : index
    %c0_0 = arith.constant 0 : index
    %c0_1 = arith.constant 0 : index
    %0 = vector.load %arg2[%c0, %c0_0, %c0_1] : memref<5x28x512xbf16, #tpu.memory_space<vmem>>, vector<1x28x512xbf16>
    %1 = vector.shape_cast %0 : vector<1x28x512xbf16> to vector<28x512xbf16>
    %c0_2 = arith.constant 0 : index
    %c0_3 = arith.constant 0 : index
    %c0_4 = arith.constant 0 : index
    %c0_5 = arith.constant 0 : index
    %2 = vector.load %arg1[%c0_2, %c0_3, %c0_4, %c0_5] : memref<1x4x7x28xf32, #tpu.memory_space<vmem>>, vector<1x1x6x28xf32>
    %3 = vector.shape_cast %2 : vector<1x1x6x28xf32> to vector<6x28xf32>
    %4 = arith.truncf %3 : vector<6x28xf32> to vector<6x28xbf16>
    %cst = arith.constant dense<0.000000e+00> : vector<6x512xf32>
    %5 = tpu.matmul %4, %1, %cst {dimension_numbers = #tpu.dot_dimension_numbers<[1], [0], [0], [1], [0, 0, 1, 1], [], []>} : vector<6x28xbf16>, vector<28x512xbf16>, vector<6x512xf32> -> vector<6x512xf32>
    %c0_6 = arith.constant 0 : index
    %c1 = arith.constant 1 : index
    %c0_7 = arith.constant 0 : index
    %c0_8 = arith.constant 0 : index
    %6 = vector.load %arg1[%c0_6, %c1, %c0_7, %c0_8] : memref<1x4x7x28xf32, #tpu.memory_space<vmem>>, vector<1x1x6x28xf32>
    %7 = vector.shape_cast %6 : vector<1x1x6x28xf32> to vector<6x28xf32>
    %8 = arith.truncf %7 : vector<6x28xf32> to vector<6x28xbf16>
    %cst_9 = arith.constant dense<0.000000e+00> : vector<6x512xf32>
    %9 = tpu.matmul %8, %1, %cst_9 {dimension_numbers = #tpu.dot_dimension_numbers<[1], [0], [0], [1], [0, 0, 1, 1], [], []>} : vector<6x28xbf16>, vector<28x512xbf16>, vector<6x512xf32> -> vector<6x512xf32>
    %c0_10 = arith.constant 0 : index
    %c2 = arith.constant 2 : index
    %c0_11 = arith.constant 0 : index
    %c0_12 = arith.constant 0 : index
    %10 = vector.load %arg1[%c0_10, %c2, %c0_11, %c0_12] : memref<1x4x7x28xf32, #tpu.memory_space<vmem>>, vector<1x1x6x28xf32>
    %11 = vector.shape_cast %10 : vector<1x1x6x28xf32> to vector<6x28xf32>
    %12 = arith.truncf %11 : vector<6x28xf32> to vector<6x28xbf16>
    %cst_13 = arith.constant dense<0.000000e+00> : vector<6x512xf32>
    %13 = tpu.matmul %12, %1, %cst_13 {dimension_numbers = #tpu.dot_dimension_numbers<[1], [0], [0], [1], [0, 0, 1, 1], [], []>} : vector<6x28xbf16>, vector<28x512xbf16>, vector<6x512xf32> -> vector<6x512xf32>
    %c0_14 = arith.constant 0 : index
    %c3 = arith.constant 3 : index
    %c0_15 = arith.constant 0 : index
    %c0_16 = arith.constant 0 : index
    %14 = vector.load %arg1[%c0_14, %c3, %c0_15, %c0_16] : memref<1x4x7x28xf32, #tpu.memory_space<vmem>>, vector<1x1x6x28xf32>
    %15 = vector.shape_cast %14 : vector<1x1x6x28xf32> to vector<6x28xf32>
    %16 = arith.truncf %15 : vector<6x28xf32> to vector<6x28xbf16>
    %cst_17 = arith.constant dense<0.000000e+00> : vector<6x512xf32>
    %17 = tpu.matmul %16, %1, %cst_17 {dimension_numbers = #tpu.dot_dimension_numbers<[1], [0], [0], [1], [0, 0, 1, 1], [], []>} : vector<6x28xbf16>, vector<28x512xbf16>, vector<6x512xf32> -> vector<6x512xf32>
    %c1_18 = arith.constant 1 : index
    %c0_19 = arith.constant 0 : index
    %c0_20 = arith.constant 0 : index
    %18 = vector.load %arg2[%c1_18, %c0_19, %c0_20] : memref<5x28x512xbf16, #tpu.memory_space<vmem>>, vector<1x28x512xbf16>
    %19 = vector.shape_cast %18 : vector<1x28x512xbf16> to vector<28x512xbf16>
    %c0_21 = arith.constant 0 : index
    %c1_22 = arith.constant 1 : index
    %c0_23 = arith.constant 0 : index
    %c0_24 = arith.constant 0 : index
    %20 = vector.load %arg1[%c0_21, %c1_22, %c0_23, %c0_24] : memref<1x4x7x28xf32, #tpu.memory_space<vmem>>, vector<1x1x6x28xf32>
    %21 = vector.shape_cast %20 : vector<1x1x6x28xf32> to vector<6x28xf32>
    %22 = arith.truncf %21 : vector<6x28xf32> to vector<6x28xbf16>
    %cst_25 = arith.constant dense<0.000000e+00> : vector<6x512xf32>
    %23 = tpu.matmul %22, %19, %cst_25 {dimension_numbers = #tpu.dot_dimension_numbers<[1], [0], [0], [1], [0, 0, 1, 1], [], []>} : vector<6x28xbf16>, vector<28x512xbf16>, vector<6x512xf32> -> vector<6x512xf32>
    %24 = arith.addf %5, %23 : vector<6x512xf32>
    %c0_26 = arith.constant 0 : index
    %c2_27 = arith.constant 2 : index
    %c0_28 = arith.constant 0 : index
    %c0_29 = arith.constant 0 : index
    %25 = vector.load %arg1[%c0_26, %c2_27, %c0_28, %c0_29] : memref<1x4x7x28xf32, #tpu.memory_space<vmem>>, vector<1x1x6x28xf32>
    %26 = vector.shape_cast %25 : vector<1x1x6x28xf32> to vector<6x28xf32>
    %27 = arith.truncf %26 : vector<6x28xf32> to vector<6x28xbf16>
    %cst_30 = arith.constant dense<0.000000e+00> : vector<6x512xf32>
    %28 = tpu.matmul %27, %19, %cst_30 {dimension_numbers = #tpu.dot_dimension_numbers<[1], [0], [0], [1], [0, 0, 1, 1], [], []>} : vector<6x28xbf16>, vector<28x512xbf16>, vector<6x512xf32> -> vector<6x512xf32>
    %29 = arith.addf %9, %28 : vector<6x512xf32>
    %c0_31 = arith.constant 0 : index
    %c3_32 = arith.constant 3 : index
    %c0_33 = arith.constant 0 : index
    %c0_34 = arith.constant 0 : index
    %30 = vector.load %arg1[%c0_31, %c3_32, %c0_33, %c0_34] : memref<1x4x7x28xf32, #tpu.memory_space<vmem>>, vector<1x1x6x28xf32>
    %31 = vector.shape_cast %30 : vector<1x1x6x28xf32> to vector<6x28xf32>
    %32 = arith.truncf %31 : vector<6x28xf32> to vector<6x28xbf16>
    %cst_35 = arith.constant dense<0.000000e+00> : vector<6x512xf32>
    %33 = tpu.matmul %32, %19, %cst_35 {dimension_numbers = #tpu.dot_dimension_numbers<[1], [0], [0], [1], [0, 0, 1, 1], [], []>} : vector<6x28xbf16>, vector<28x512xbf16>, vector<6x512xf32> -> vector<6x512xf32>
    %34 = arith.addf %13, %33 : vector<6x512xf32>
    %c0_36 = arith.constant 0 : index
    %c0_37 = arith.constant 0 : index
    %c1_38 = arith.constant 1 : index
    %c0_39 = arith.constant 0 : index
    %35 = vector.load %arg1[%c0_36, %c0_37, %c1_38, %c0_39] : memref<1x4x7x28xf32, #tpu.memory_space<vmem>>, vector<1x1x6x28xf32>
    %36 = vector.shape_cast %35 : vector<1x1x6x28xf32> to vector<6x28xf32>
    %37 = arith.truncf %36 : vector<6x28xf32> to vector<6x28xbf16>
    %cst_40 = arith.constant dense<0.000000e+00> : vector<6x512xf32>
    %38 = tpu.matmul %37, %19, %cst_40 {dimension_numbers = #tpu.dot_dimension_numbers<[1], [0], [0], [1], [0, 0, 1, 1], [], []>} : vector<6x28xbf16>, vector<28x512xbf16>, vector<6x512xf32> -> vector<6x512xf32>
    %39 = arith.addf %17, %38 : vector<6x512xf32>
    %c2_41 = arith.constant 2 : index
    %c0_42 = arith.constant 0 : index
    %c0_43 = arith.constant 0 : index
    %40 = vector.load %arg2[%c2_41, %c0_42, %c0_43] : memref<5x28x512xbf16, #tpu.memory_space<vmem>>, vector<1x28x512xbf16>
    %41 = vector.shape_cast %40 : vector<1x28x512xbf16> to vector<28x512xbf16>
    %c0_44 = arith.constant 0 : index
    %c2_45 = arith.constant 2 : index
    %c0_46 = arith.constant 0 : index
    %c0_47 = arith.constant 0 : index
    %42 = vector.load %arg1[%c0_44, %c2_45, %c0_46, %c0_47] : memref<1x4x7x28xf32, #tpu.memory_space<vmem>>, vector<1x1x6x28xf32>
    %43 = vector.shape_cast %42 : vector<1x1x6x28xf32> to vector<6x28xf32>
    %44 = arith.truncf %43 : vector<6x28xf32> to vector<6x28xbf16>
    %cst_48 = arith.constant dense<0.000000e+00> : vector<6x512xf32>
    %45 = tpu.matmul %44, %41, %cst_48 {dimension_numbers = #tpu.dot_dimension_numbers<[1], [0], [0], [1], [0, 0, 1, 1], [], []>} : vector<6x28xbf16>, vector<28x512xbf16>, vector<6x512xf32> -> vector<6x512xf32>
    %46 = arith.addf %24, %45 : vector<6x512xf32>
    %c0_49 = arith.constant 0 : index
    %c3_50 = arith.constant 3 : index
    %c0_51 = arith.constant 0 : index
    %c0_52 = arith.constant 0 : index
    %47 = vector.load %arg1[%c0_49, %c3_50, %c0_51, %c0_52] : memref<1x4x7x28xf32, #tpu.memory_space<vmem>>, vector<1x1x6x28xf32>
    %48 = vector.shape_cast %47 : vector<1x1x6x28xf32> to vector<6x28xf32>
    %49 = arith.truncf %48 : vector<6x28xf32> to vector<6x28xbf16>
    %cst_53 = arith.constant dense<0.000000e+00> : vector<6x512xf32>
    %50 = tpu.matmul %49, %41, %cst_53 {dimension_numbers = #tpu.dot_dimension_numbers<[1], [0], [0], [1], [0, 0, 1, 1], [], []>} : vector<6x28xbf16>, vector<28x512xbf16>, vector<6x512xf32> -> vector<6x512xf32>
    %51 = arith.addf %29, %50 : vector<6x512xf32>
    %c0_54 = arith.constant 0 : index
    %c0_55 = arith.constant 0 : index
    %c1_56 = arith.constant 1 : index
    %c0_57 = arith.constant 0 : index
    %52 = vector.load %arg1[%c0_54, %c0_55, %c1_56, %c0_57] : memref<1x4x7x28xf32, #tpu.memory_space<vmem>>, vector<1x1x6x28xf32>
    %53 = vector.shape_cast %52 : vector<1x1x6x28xf32> to vector<6x28xf32>
    %54 = arith.truncf %53 : vector<6x28xf32> to vector<6x28xbf16>
    %cst_58 = arith.constant dense<0.000000e+00> : vector<6x512xf32>
    %55 = tpu.matmul %54, %41, %cst_58 {dimension_numbers = #tpu.dot_dimension_numbers<[1], [0], [0], [1], [0, 0, 1, 1], [], []>} : vector<6x28xbf16>, vector<28x512xbf16>, vector<6x512xf32> -> vector<6x512xf32>
    %56 = arith.addf %34, %55 : vector<6x512xf32>
    %c0_59 = arith.constant 0 : index
    %c1_60 = arith.constant 1 : index
    %c1_61 = arith.constant 1 : index
    %c0_62 = arith.constant 0 : index
    %57 = vector.load %arg1[%c0_59, %c1_60, %c1_61, %c0_62] : memref<1x4x7x28xf32, #tpu.memory_space<vmem>>, vector<1x1x6x28xf32>
    %58 = vector.shape_cast %57 : vector<1x1x6x28xf32> to vector<6x28xf32>
    %59 = arith.truncf %58 : vector<6x28xf32> to vector<6x28xbf16>
    %cst_63 = arith.constant dense<0.000000e+00> : vector<6x512xf32>
    %60 = tpu.matmul %59, %41, %cst_63 {dimension_numbers = #tpu.dot_dimension_numbers<[1], [0], [0], [1], [0, 0, 1, 1], [], []>} : vector<6x28xbf16>, vector<28x512xbf16>, vector<6x512xf32> -> vector<6x512xf32>
    %61 = arith.addf %39, %60 : vector<6x512xf32>
    %c3_64 = arith.constant 3 : index
    %c0_65 = arith.constant 0 : index
    %c0_66 = arith.constant 0 : index
    %62 = vector.load %arg2[%c3_64, %c0_65, %c0_66] : memref<5x28x512xbf16, #tpu.memory_space<vmem>>, vector<1x28x512xbf16>
    %63 = vector.shape_cast %62 : vector<1x28x512xbf16> to vector<28x512xbf16>
    %c0_67 = arith.constant 0 : index
    %c3_68 = arith.constant 3 : index
    %c0_69 = arith.constant 0 : index
    %c0_70 = arith.constant 0 : index
    %64 = vector.load %arg1[%c0_67, %c3_68, %c0_69, %c0_70] : memref<1x4x7x28xf32, #tpu.memory_space<vmem>>, vector<1x1x6x28xf32>
    %65 = vector.shape_cast %64 : vector<1x1x6x28xf32> to vector<6x28xf32>
    %66 = arith.truncf %65 : vector<6x28xf32> to vector<6x28xbf16>
    %cst_71 = arith.constant dense<0.000000e+00> : vector<6x512xf32>
    %67 = tpu.matmul %66, %63, %cst_71 {dimension_numbers = #tpu.dot_dimension_numbers<[1], [0], [0], [1], [0, 0, 1, 1], [], []>} : vector<6x28xbf16>, vector<28x512xbf16>, vector<6x512xf32> -> vector<6x512xf32>
    %68 = arith.addf %46, %67 : vector<6x512xf32>
    %c0_72 = arith.constant 0 : index
    %c0_73 = arith.constant 0 : index
    %c1_74 = arith.constant 1 : index
    %c0_75 = arith.constant 0 : index
    %69 = vector.load %arg1[%c0_72, %c0_73, %c1_74, %c0_75] : memref<1x4x7x28xf32, #tpu.memory_space<vmem>>, vector<1x1x6x28xf32>
    %70 = vector.shape_cast %69 : vector<1x1x6x28xf32> to vector<6x28xf32>
    %71 = arith.truncf %70 : vector<6x28xf32> to vector<6x28xbf16>
    %cst_76 = arith.constant dense<0.000000e+00> : vector<6x512xf32>
    %72 = tpu.matmul %71, %63, %cst_76 {dimension_numbers = #tpu.dot_dimension_numbers<[1], [0], [0], [1], [0, 0, 1, 1], [], []>} : vector<6x28xbf16>, vector<28x512xbf16>, vector<6x512xf32> -> vector<6x512xf32>
    %73 = arith.addf %51, %72 : vector<6x512xf32>
    %c0_77 = arith.constant 0 : index
    %c1_78 = arith.constant 1 : index
    %c1_79 = arith.constant 1 : index
    %c0_80 = arith.constant 0 : index
    %74 = vector.load %arg1[%c0_77, %c1_78, %c1_79, %c0_80] : memref<1x4x7x28xf32, #tpu.memory_space<vmem>>, vector<1x1x6x28xf32>
    %75 = vector.shape_cast %74 : vector<1x1x6x28xf32> to vector<6x28xf32>
    %76 = arith.truncf %75 : vector<6x28xf32> to vector<6x28xbf16>
    %cst_81 = arith.constant dense<0.000000e+00> : vector<6x512xf32>
    %77 = tpu.matmul %76, %63, %cst_81 {dimension_numbers = #tpu.dot_dimension_numbers<[1], [0], [0], [1], [0, 0, 1, 1], [], []>} : vector<6x28xbf16>, vector<28x512xbf16>, vector<6x512xf32> -> vector<6x512xf32>
    %78 = arith.addf %56, %77 : vector<6x512xf32>
    %c0_82 = arith.constant 0 : index
    %c2_83 = arith.constant 2 : index
    %c1_84 = arith.constant 1 : index
    %c0_85 = arith.constant 0 : index
    %79 = vector.load %arg1[%c0_82, %c2_83, %c1_84, %c0_85] : memref<1x4x7x28xf32, #tpu.memory_space<vmem>>, vector<1x1x6x28xf32>
    %80 = vector.shape_cast %79 : vector<1x1x6x28xf32> to vector<6x28xf32>
    %81 = arith.truncf %80 : vector<6x28xf32> to vector<6x28xbf16>
    %cst_86 = arith.constant dense<0.000000e+00> : vector<6x512xf32>
    %82 = tpu.matmul %81, %63, %cst_86 {dimension_numbers = #tpu.dot_dimension_numbers<[1], [0], [0], [1], [0, 0, 1, 1], [], []>} : vector<6x28xbf16>, vector<28x512xbf16>, vector<6x512xf32> -> vector<6x512xf32>
    %83 = arith.addf %61, %82 : vector<6x512xf32>
    %c4 = arith.constant 4 : index
    %c0_87 = arith.constant 0 : index
    %c0_88 = arith.constant 0 : index
    %84 = vector.load %arg2[%c4, %c0_87, %c0_88] : memref<5x28x512xbf16, #tpu.memory_space<vmem>>, vector<1x28x512xbf16>
    %85 = vector.shape_cast %84 : vector<1x28x512xbf16> to vector<28x512xbf16>
    %c0_89 = arith.constant 0 : index
    %c0_90 = arith.constant 0 : index
    %c1_91 = arith.constant 1 : index
    %c0_92 = arith.constant 0 : index
    %86 = vector.load %arg1[%c0_89, %c0_90, %c1_91, %c0_92] : memref<1x4x7x28xf32, #tpu.memory_space<vmem>>, vector<1x1x6x28xf32>
    %87 = vector.shape_cast %86 : vector<1x1x6x28xf32> to vector<6x28xf32>
    %88 = arith.truncf %87 : vector<6x28xf32> to vector<6x28xbf16>
    %cst_93 = arith.constant dense<0.000000e+00> : vector<6x512xf32>
    %89 = tpu.matmul %88, %85, %cst_93 {dimension_numbers = #tpu.dot_dimension_numbers<[1], [0], [0], [1], [0, 0, 1, 1], [], []>} : vector<6x28xbf16>, vector<28x512xbf16>, vector<6x512xf32> -> vector<6x512xf32>
    %90 = arith.addf %68, %89 : vector<6x512xf32>
    %c0_94 = arith.constant 0 : index
    %c1_95 = arith.constant 1 : index
    %c1_96 = arith.constant 1 : index
    %c0_97 = arith.constant 0 : index
    %91 = vector.load %arg1[%c0_94, %c1_95, %c1_96, %c0_97] : memref<1x4x7x28xf32, #tpu.memory_space<vmem>>, vector<1x1x6x28xf32>
    %92 = vector.shape_cast %91 : vector<1x1x6x28xf32> to vector<6x28xf32>
    %93 = arith.truncf %92 : vector<6x28xf32> to vector<6x28xbf16>
    %cst_98 = arith.constant dense<0.000000e+00> : vector<6x512xf32>
    %94 = tpu.matmul %93, %85, %cst_98 {dimension_numbers = #tpu.dot_dimension_numbers<[1], [0], [0], [1], [0, 0, 1, 1], [], []>} : vector<6x28xbf16>, vector<28x512xbf16>, vector<6x512xf32> -> vector<6x512xf32>
    %95 = arith.addf %73, %94 : vector<6x512xf32>
    %c0_99 = arith.constant 0 : index
    %c2_100 = arith.constant 2 : index
    %c1_101 = arith.constant 1 : index
    %c0_102 = arith.constant 0 : index
    %96 = vector.load %arg1[%c0_99, %c2_100, %c1_101, %c0_102] : memref<1x4x7x28xf32, #tpu.memory_space<vmem>>, vector<1x1x6x28xf32>
    %97 = vector.shape_cast %96 : vector<1x1x6x28xf32> to vector<6x28xf32>
    %98 = arith.truncf %97 : vector<6x28xf32> to vector<6x28xbf16>
    %cst_103 = arith.constant dense<0.000000e+00> : vector<6x512xf32>
    %99 = tpu.matmul %98, %85, %cst_103 {dimension_numbers = #tpu.dot_dimension_numbers<[1], [0], [0], [1], [0, 0, 1, 1], [], []>} : vector<6x28xbf16>, vector<28x512xbf16>, vector<6x512xf32> -> vector<6x512xf32>
    %100 = arith.addf %78, %99 : vector<6x512xf32>
    %c0_104 = arith.constant 0 : index
    %c3_105 = arith.constant 3 : index
    %c1_106 = arith.constant 1 : index
    %c0_107 = arith.constant 0 : index
    %101 = vector.load %arg1[%c0_104, %c3_105, %c1_106, %c0_107] : memref<1x4x7x28xf32, #tpu.memory_space<vmem>>, vector<1x1x6x28xf32>
    %102 = vector.shape_cast %101 : vector<1x1x6x28xf32> to vector<6x28xf32>
    %103 = arith.truncf %102 : vector<6x28xf32> to vector<6x28xbf16>
    %cst_108 = arith.constant dense<0.000000e+00> : vector<6x512xf32>
    %104 = tpu.matmul %103, %85, %cst_108 {dimension_numbers = #tpu.dot_dimension_numbers<[1], [0], [0], [1], [0, 0, 1, 1], [], []>} : vector<6x28xbf16>, vector<28x512xbf16>, vector<6x512xf32> -> vector<6x512xf32>
    %105 = arith.addf %83, %104 : vector<6x512xf32>
    %c0_109 = arith.constant 0 : index
    %c0_110 = arith.constant 0 : index
    %106 = vector.load %arg3[%c0_109, %c0_110] : memref<1x512xf32, #tpu.memory_space<vmem>>, vector<1x512xf32>
    %107 = vector.broadcast %106 : vector<1x512xf32> to vector<6x512xf32>
    %108 = arith.addf %90, %107 : vector<6x512xf32>
    %cst_111 = arith.constant 0.000000e+00 : f32
    %109 = vector.broadcast %cst_111 : f32 to vector<6x512xf32>
    %110 = arith.maximumf %108, %109 : vector<6x512xf32>
    %111 = vector.broadcast %106 : vector<1x512xf32> to vector<6x512xf32>
    %112 = arith.addf %95, %111 : vector<6x512xf32>
    %cst_112 = arith.constant 0.000000e+00 : f32
    %113 = vector.broadcast %cst_112 : f32 to vector<6x512xf32>
    %114 = arith.maximumf %112, %113 : vector<6x512xf32>
    %115 = vector.broadcast %106 : vector<1x512xf32> to vector<6x512xf32>
    %116 = arith.addf %100, %115 : vector<6x512xf32>
    %cst_113 = arith.constant 0.000000e+00 : f32
    %117 = vector.broadcast %cst_113 : f32 to vector<6x512xf32>
    %118 = arith.maximumf %116, %117 : vector<6x512xf32>
    %119 = vector.broadcast %106 : vector<1x512xf32> to vector<6x512xf32>
    %120 = arith.addf %105, %119 : vector<6x512xf32>
    %cst_114 = arith.constant 0.000000e+00 : f32
    %121 = vector.broadcast %cst_114 : f32 to vector<6x512xf32>
    %122 = arith.maximumf %120, %121 : vector<6x512xf32>
    %123 = vector.extract_strided_slice %110 {offsets = [0, 0], sizes = [6, 256], strides = [1, 1]} : vector<6x512xf32> to vector<6x256xf32>
    %124 = vector.extract_strided_slice %110 {offsets = [0, 256], sizes = [6, 256], strides = [1, 1]} : vector<6x512xf32> to vector<6x256xf32>
    %125 = arith.maximumf %123, %124 : vector<6x256xf32>
    %126 = vector.extract_strided_slice %114 {offsets = [0, 0], sizes = [6, 256], strides = [1, 1]} : vector<6x512xf32> to vector<6x256xf32>
    %127 = vector.extract_strided_slice %114 {offsets = [0, 256], sizes = [6, 256], strides = [1, 1]} : vector<6x512xf32> to vector<6x256xf32>
    %128 = arith.maximumf %126, %127 : vector<6x256xf32>
    %129 = vector.extract_strided_slice %118 {offsets = [0, 0], sizes = [6, 256], strides = [1, 1]} : vector<6x512xf32> to vector<6x256xf32>
    %130 = vector.extract_strided_slice %118 {offsets = [0, 256], sizes = [6, 256], strides = [1, 1]} : vector<6x512xf32> to vector<6x256xf32>
    %131 = arith.maximumf %129, %130 : vector<6x256xf32>
    %132 = vector.extract_strided_slice %122 {offsets = [0, 0], sizes = [6, 256], strides = [1, 1]} : vector<6x512xf32> to vector<6x256xf32>
    %133 = vector.extract_strided_slice %122 {offsets = [0, 256], sizes = [6, 256], strides = [1, 1]} : vector<6x512xf32> to vector<6x256xf32>
    %134 = arith.maximumf %132, %133 : vector<6x256xf32>
    %135 = arith.maximumf %125, %128 : vector<6x256xf32>
    %136 = arith.maximumf %131, %134 : vector<6x256xf32>
    %c0_115 = arith.constant 0 : index
    %c0_116 = arith.constant 0 : index
    %c0_117 = arith.constant 0 : index
    %137 = vector.load %arg4[%c0_115, %c0_116, %c0_117] : memref<5x256x512xbf16, #tpu.memory_space<vmem>>, vector<1x256x512xbf16>
    %138 = vector.shape_cast %137 : vector<1x256x512xbf16> to vector<256x512xbf16>
    %139 = vector.extract_strided_slice %135 {offsets = [0, 0], sizes = [4, 256], strides = [1, 1]} : vector<6x256xf32> to vector<4x256xf32>
    %140 = arith.truncf %139 : vector<4x256xf32> to vector<4x256xbf16>
    %cst_118 = arith.constant dense<0.000000e+00> : vector<4x512xf32>
    %141 = tpu.matmul %140, %138, %cst_118 {dimension_numbers = #tpu.dot_dimension_numbers<[1], [0], [0], [1], [0, 0, 1, 1], [], []>} : vector<4x256xbf16>, vector<256x512xbf16>, vector<4x512xf32> -> vector<4x512xf32>
    %142 = vector.extract_strided_slice %136 {offsets = [0, 0], sizes = [4, 256], strides = [1, 1]} : vector<6x256xf32> to vector<4x256xf32>
    %143 = arith.truncf %142 : vector<4x256xf32> to vector<4x256xbf16>
    %cst_119 = arith.constant dense<0.000000e+00> : vector<4x512xf32>
    %144 = tpu.matmul %143, %138, %cst_119 {dimension_numbers = #tpu.dot_dimension_numbers<[1], [0], [0], [1], [0, 0, 1, 1], [], []>} : vector<4x256xbf16>, vector<256x512xbf16>, vector<4x512xf32> -> vector<4x512xf32>
    %c1_120 = arith.constant 1 : index
    %c0_121 = arith.constant 0 : index
    %c0_122 = arith.constant 0 : index
    %145 = vector.load %arg4[%c1_120, %c0_121, %c0_122] : memref<5x256x512xbf16, #tpu.memory_space<vmem>>, vector<1x256x512xbf16>
    %146 = vector.shape_cast %145 : vector<1x256x512xbf16> to vector<256x512xbf16>
    %147 = vector.extract_strided_slice %136 {offsets = [0, 0], sizes = [4, 256], strides = [1, 1]} : vector<6x256xf32> to vector<4x256xf32>
    %148 = arith.truncf %147 : vector<4x256xf32> to vector<4x256xbf16>
    %cst_123 = arith.constant dense<0.000000e+00> : vector<4x512xf32>
    %149 = tpu.matmul %148, %146, %cst_123 {dimension_numbers = #tpu.dot_dimension_numbers<[1], [0], [0], [1], [0, 0, 1, 1], [], []>} : vector<4x256xbf16>, vector<256x512xbf16>, vector<4x512xf32> -> vector<4x512xf32>
    %150 = arith.addf %141, %149 : vector<4x512xf32>
    %151 = vector.extract_strided_slice %135 {offsets = [1, 0], sizes = [4, 256], strides = [1, 1]} : vector<6x256xf32> to vector<4x256xf32>
    %152 = arith.truncf %151 : vector<4x256xf32> to vector<4x256xbf16>
    %cst_124 = arith.constant dense<0.000000e+00> : vector<4x512xf32>
    %153 = tpu.matmul %152, %146, %cst_124 {dimension_numbers = #tpu.dot_dimension_numbers<[1], [0], [0], [1], [0, 0, 1, 1], [], []>} : vector<4x256xbf16>, vector<256x512xbf16>, vector<4x512xf32> -> vector<4x512xf32>
    %154 = arith.addf %144, %153 : vector<4x512xf32>
    %c2_125 = arith.constant 2 : index
    %c0_126 = arith.constant 0 : index
    %c0_127 = arith.constant 0 : index
    %155 = vector.load %arg4[%c2_125, %c0_126, %c0_127] : memref<5x256x512xbf16, #tpu.memory_space<vmem>>, vector<1x256x512xbf16>
    %156 = vector.shape_cast %155 : vector<1x256x512xbf16> to vector<256x512xbf16>
    %157 = vector.extract_strided_slice %135 {offsets = [1, 0], sizes = [4, 256], strides = [1, 1]} : vector<6x256xf32> to vector<4x256xf32>
    %158 = arith.truncf %157 : vector<4x256xf32> to vector<4x256xbf16>
    %cst_128 = arith.constant dense<0.000000e+00> : vector<4x512xf32>
    %159 = tpu.matmul %158, %156, %cst_128 {dimension_numbers = #tpu.dot_dimension_numbers<[1], [0], [0], [1], [0, 0, 1, 1], [], []>} : vector<4x256xbf16>, vector<256x512xbf16>, vector<4x512xf32> -> vector<4x512xf32>
    %160 = arith.addf %150, %159 : vector<4x512xf32>
    %161 = vector.extract_strided_slice %136 {offsets = [1, 0], sizes = [4, 256], strides = [1, 1]} : vector<6x256xf32> to vector<4x256xf32>
    %162 = arith.truncf %161 : vector<4x256xf32> to vector<4x256xbf16>
    %cst_129 = arith.constant dense<0.000000e+00> : vector<4x512xf32>
    %163 = tpu.matmul %162, %156, %cst_129 {dimension_numbers = #tpu.dot_dimension_numbers<[1], [0], [0], [1], [0, 0, 1, 1], [], []>} : vector<4x256xbf16>, vector<256x512xbf16>, vector<4x512xf32> -> vector<4x512xf32>
    %164 = arith.addf %154, %163 : vector<4x512xf32>
    %c3_130 = arith.constant 3 : index
    %c0_131 = arith.constant 0 : index
    %c0_132 = arith.constant 0 : index
    %165 = vector.load %arg4[%c3_130, %c0_131, %c0_132] : memref<5x256x512xbf16, #tpu.memory_space<vmem>>, vector<1x256x512xbf16>
    %166 = vector.shape_cast %165 : vector<1x256x512xbf16> to vector<256x512xbf16>
    %167 = vector.extract_strided_slice %136 {offsets = [1, 0], sizes = [4, 256], strides = [1, 1]} : vector<6x256xf32> to vector<4x256xf32>
    %168 = arith.truncf %167 : vector<4x256xf32> to vector<4x256xbf16>
    %cst_133 = arith.constant dense<0.000000e+00> : vector<4x512xf32>
    %169 = tpu.matmul %168, %166, %cst_133 {dimension_numbers = #tpu.dot_dimension_numbers<[1], [0], [0], [1], [0, 0, 1, 1], [], []>} : vector<4x256xbf16>, vector<256x512xbf16>, vector<4x512xf32> -> vector<4x512xf32>
    %170 = arith.addf %160, %169 : vector<4x512xf32>
    %171 = vector.extract_strided_slice %135 {offsets = [2, 0], sizes = [4, 256], strides = [1, 1]} : vector<6x256xf32> to vector<4x256xf32>
    %172 = arith.truncf %171 : vector<4x256xf32> to vector<4x256xbf16>
    %cst_134 = arith.constant dense<0.000000e+00> : vector<4x512xf32>
    %173 = tpu.matmul %172, %166, %cst_134 {dimension_numbers = #tpu.dot_dimension_numbers<[1], [0], [0], [1], [0, 0, 1, 1], [], []>} : vector<4x256xbf16>, vector<256x512xbf16>, vector<4x512xf32> -> vector<4x512xf32>
    %174 = arith.addf %164, %173 : vector<4x512xf32>
    %c4_135 = arith.constant 4 : index
    %c0_136 = arith.constant 0 : index
    %c0_137 = arith.constant 0 : index
    %175 = vector.load %arg4[%c4_135, %c0_136, %c0_137] : memref<5x256x512xbf16, #tpu.memory_space<vmem>>, vector<1x256x512xbf16>
    %176 = vector.shape_cast %175 : vector<1x256x512xbf16> to vector<256x512xbf16>
    %177 = vector.extract_strided_slice %135 {offsets = [2, 0], sizes = [4, 256], strides = [1, 1]} : vector<6x256xf32> to vector<4x256xf32>
    %178 = arith.truncf %177 : vector<4x256xf32> to vector<4x256xbf16>
    %cst_138 = arith.constant dense<0.000000e+00> : vector<4x512xf32>
    %179 = tpu.matmul %178, %176, %cst_138 {dimension_numbers = #tpu.dot_dimension_numbers<[1], [0], [0], [1], [0, 0, 1, 1], [], []>} : vector<4x256xbf16>, vector<256x512xbf16>, vector<4x512xf32> -> vector<4x512xf32>
    %180 = arith.addf %170, %179 : vector<4x512xf32>
    %181 = vector.extract_strided_slice %136 {offsets = [2, 0], sizes = [4, 256], strides = [1, 1]} : vector<6x256xf32> to vector<4x256xf32>
    %182 = arith.truncf %181 : vector<4x256xf32> to vector<4x256xbf16>
    %cst_139 = arith.constant dense<0.000000e+00> : vector<4x512xf32>
    %183 = tpu.matmul %182, %176, %cst_139 {dimension_numbers = #tpu.dot_dimension_numbers<[1], [0], [0], [1], [0, 0, 1, 1], [], []>} : vector<4x256xbf16>, vector<256x512xbf16>, vector<4x512xf32> -> vector<4x512xf32>
    %184 = arith.addf %174, %183 : vector<4x512xf32>
    %c0_140 = arith.constant 0 : index
    %c0_141 = arith.constant 0 : index
    %185 = vector.load %arg5[%c0_140, %c0_141] : memref<1x512xf32, #tpu.memory_space<vmem>>, vector<1x512xf32>
    %186 = vector.broadcast %185 : vector<1x512xf32> to vector<4x512xf32>
    %187 = arith.addf %180, %186 : vector<4x512xf32>
    %cst_142 = arith.constant 0.000000e+00 : f32
    %188 = vector.broadcast %cst_142 : f32 to vector<4x512xf32>
    %189 = arith.maximumf %187, %188 : vector<4x512xf32>
    %190 = vector.broadcast %185 : vector<1x512xf32> to vector<4x512xf32>
    %191 = arith.addf %184, %190 : vector<4x512xf32>
    %cst_143 = arith.constant 0.000000e+00 : f32
    %192 = vector.broadcast %cst_143 : f32 to vector<4x512xf32>
    %193 = arith.maximumf %191, %192 : vector<4x512xf32>
    %194 = vector.extract_strided_slice %189 {offsets = [0, 0], sizes = [4, 256], strides = [1, 1]} : vector<4x512xf32> to vector<4x256xf32>
    %195 = vector.extract_strided_slice %189 {offsets = [0, 256], sizes = [4, 256], strides = [1, 1]} : vector<4x512xf32> to vector<4x256xf32>
    %196 = arith.maximumf %194, %195 : vector<4x256xf32>
    %197 = vector.extract_strided_slice %193 {offsets = [0, 0], sizes = [4, 256], strides = [1, 1]} : vector<4x512xf32> to vector<4x256xf32>
    %198 = vector.extract_strided_slice %193 {offsets = [0, 256], sizes = [4, 256], strides = [1, 1]} : vector<4x512xf32> to vector<4x256xf32>
    %199 = arith.maximumf %197, %198 : vector<4x256xf32>
    %200 = arith.maximumf %196, %199 : vector<4x256xf32>
    %c0_144 = arith.constant 0 : index
    %c0_145 = arith.constant 0 : index
    %c0_146 = arith.constant 0 : index
    %201 = vector.load %arg6[%c0_144, %c0_145, %c0_146] : memref<1x4x256xf32, #tpu.memory_space<vmem>>, vector<1x4x256xf32>
    %202 = vector.shape_cast %201 : vector<1x4x256xf32> to vector<4x256xf32>
    %203 = vector.shape_cast %200 : vector<4x256xf32> to vector<1x4x256xf32>
    tpu.vector_store %arg6[%c0_144, %c0_145, %c0_146], %203 {strides = array<i32>} : memref<1x4x256xf32, #tpu.memory_space<vmem>>, vector<1x4x256xf32>,
    return
  }
  func.func @transform_0(%arg0: i32) -> (i32, i32, i32, i32) {
    %c0_i32 = arith.constant 0 : i32
    %c0_i32_0 = arith.constant 0 : i32
    %c0_i32_1 = arith.constant 0 : i32
    %c0_i32_2 = arith.constant 0 : i32
    return %arg0, %c0_i32, %c0_i32_0, %c0_i32_1 : i32, i32, i32, i32
  }
  func.func @transform_1(%arg0: i32) -> (i32, i32, i32) {
    %c0_i32 = arith.constant 0 : i32
    %c0_i32_0 = arith.constant 0 : i32
    %c0_i32_1 = arith.constant 0 : i32
    %c0_i32_2 = arith.constant 0 : i32
    return %c0_i32, %c0_i32_0, %c0_i32_1 : i32, i32, i32
  }
  func.func @transform_2(%arg0: i32) -> (i32, i32) {
    %c0_i32 = arith.constant 0 : i32
    %c0_i32_0 = arith.constant 0 : i32
    %c0_i32_1 = arith.constant 0 : i32
    return %c0_i32, %c0_i32_0 : i32, i32
  }
  func.func @transform_3(%arg0: i32) -> (i32, i32, i32) {
    %c0_i32 = arith.constant 0 : i32
    %c0_i32_0 = arith.constant 0 : i32
    %c0_i32_1 = arith.constant 0 : i32
    %c0_i32_2 = arith.constant 0 : i32
    return %c0_i32, %c0_i32_0, %c0_i32_1 : i32, i32, i32
  }
  func.func @transform_4(%arg0: i32) -> (i32, i32) {
    %c0_i32 = arith.constant 0 : i32
    %c0_i32_0 = arith.constant 0 : i32
    %c0_i32_1 = arith.constant 0 : i32
    return %c0_i32, %c0_i32_0 : i32, i32
  }
  func.func @transform_5(%arg0: i32) -> (i32, i32, i32) {
    %c0_i32 = arith.constant 0 : i32
    %c0_i32_0 = arith.constant 0 : i32
    %c0_i32_1 = arith.constant 0 : i32
    return %arg0, %c0_i32, %c0_i32_0 : i32, i32, i32
  }
}

module attributes {stable_mosaic.version = 11 : i64} {
  func.func @_fc_kernel(%arg0: i32, %arg1: memref<2x1024xf32, #tpu.memory_space<vmem>>, %arg2: memref<1024x500xbf16, #tpu.memory_space<vmem>>, %arg3: memref<1x500xf32, #tpu.memory_space<vmem>>, %arg4: memref<500x10xbf16, #tpu.memory_space<vmem>>, %arg5: memref<1x10xf32, #tpu.memory_space<vmem>>, %arg6: memref<2x10xf32, #tpu.memory_space<vmem>>) attributes {dimension_semantics = [#tpu.dimension_semantics<parallel>], iteration_bounds = array<i64: 1>, scalar_prefetch = 0 : i64, scratch_operands = 0 : i64, tpu.core_type = #tpu.core_type<tc>, window_params = [{transform_indices = @transform_0, window_bounds = array<i64: 2, 1024>}, {pipeline_mode = #tpu.pipeline_mode<synchronous>, transform_indices = @transform_1, window_bounds = array<i64: 1024, 500>}, {pipeline_mode = #tpu.pipeline_mode<synchronous>, transform_indices = @transform_2, window_bounds = array<i64: 1, 500>}, {pipeline_mode = #tpu.pipeline_mode<synchronous>, transform_indices = @transform_3, window_bounds = array<i64: 500, 10>}, {pipeline_mode = #tpu.pipeline_mode<synchronous>, transform_indices = @transform_4, window_bounds = array<i64: 1, 10>}, {transform_indices = @transform_5, window_bounds = array<i64: 2, 10>}]} {
    %c0 = arith.constant 0 : index
    %c0_0 = arith.constant 0 : index
    %0 = vector.load %arg1[%c0, %c0_0] : memref<2x1024xf32, #tpu.memory_space<vmem>>, vector<2x1024xf32>
    %1 = arith.truncf %0 : vector<2x1024xf32> to vector<2x1024xbf16>
    %c0_1 = arith.constant 0 : index
    %c0_2 = arith.constant 0 : index
    %2 = vector.load %arg2[%c0_1, %c0_2] : memref<1024x500xbf16, #tpu.memory_space<vmem>>, vector<1024x500xbf16>
    %cst = arith.constant dense<0.000000e+00> : vector<2x500xf32>
    %3 = tpu.matmul %1, %2, %cst {dimension_numbers = #tpu.dot_dimension_numbers<[1], [0], [0], [1], [0, 0, 1, 1], [], []>} : vector<2x1024xbf16>, vector<1024x500xbf16>, vector<2x500xf32> -> vector<2x500xf32>
    %c0_3 = arith.constant 0 : index
    %c0_4 = arith.constant 0 : index
    %4 = vector.load %arg3[%c0_3, %c0_4] : memref<1x500xf32, #tpu.memory_space<vmem>>, vector<1x500xf32>
    %5 = vector.broadcast %4 : vector<1x500xf32> to vector<2x500xf32>
    %6 = arith.addf %3, %5 : vector<2x500xf32>
    %cst_5 = arith.constant 0.000000e+00 : f32
    %7 = vector.broadcast %cst_5 : f32 to vector<2x500xf32>
    %8 = arith.maximumf %6, %7 : vector<2x500xf32>
    %9 = arith.truncf %8 : vector<2x500xf32> to vector<2x500xbf16>
    %c0_6 = arith.constant 0 : index
    %c0_7 = arith.constant 0 : index
    %10 = vector.load %arg4[%c0_6, %c0_7] : memref<500x10xbf16, #tpu.memory_space<vmem>>, vector<500x10xbf16>
    %cst_8 = arith.constant dense<0.000000e+00> : vector<2x10xf32>
    %11 = tpu.matmul %9, %10, %cst_8 {dimension_numbers = #tpu.dot_dimension_numbers<[1], [0], [0], [1], [0, 0, 1, 1], [], []>} : vector<2x500xbf16>, vector<500x10xbf16>, vector<2x10xf32> -> vector<2x10xf32>
    %c0_9 = arith.constant 0 : index
    %c0_10 = arith.constant 0 : index
    %12 = vector.load %arg5[%c0_9, %c0_10] : memref<1x10xf32, #tpu.memory_space<vmem>>, vector<1x10xf32>
    %13 = vector.broadcast %12 : vector<1x10xf32> to vector<2x10xf32>
    %14 = arith.addf %11, %13 : vector<2x10xf32>
    %c0_11 = arith.constant 0 : index
    %c0_12 = arith.constant 0 : index
    %15 = vector.load %arg6[%c0_11, %c0_12] : memref<2x10xf32, #tpu.memory_space<vmem>>, vector<2x10xf32>
    tpu.vector_store %arg6[%c0_11, %c0_12], %14 {strides = array<i32>} : memref<2x10xf32, #tpu.memory_space<vmem>>, vector<2x10xf32>,
    return
  }
  func.func @transform_0(%arg0: i32) -> (i32, i32) {
    %c0_i32 = arith.constant 0 : i32
    %c0_i32_0 = arith.constant 0 : i32
    return %arg0, %c0_i32 : i32, i32
  }
  func.func @transform_1(%arg0: i32) -> (i32, i32) {
    %c0_i32 = arith.constant 0 : i32
    %c0_i32_0 = arith.constant 0 : i32
    %c0_i32_1 = arith.constant 0 : i32
    return %c0_i32, %c0_i32_0 : i32, i32
  }
  func.func @transform_2(%arg0: i32) -> (i32, i32) {
    %c0_i32 = arith.constant 0 : i32
    %c0_i32_0 = arith.constant 0 : i32
    %c0_i32_1 = arith.constant 0 : i32
    return %c0_i32, %c0_i32_0 : i32, i32
  }
  func.func @transform_3(%arg0: i32) -> (i32, i32) {
    %c0_i32 = arith.constant 0 : i32
    %c0_i32_0 = arith.constant 0 : i32
    %c0_i32_1 = arith.constant 0 : i32
    return %c0_i32, %c0_i32_0 : i32, i32
  }
  func.func @transform_4(%arg0: i32) -> (i32, i32) {
    %c0_i32 = arith.constant 0 : i32
    %c0_i32_0 = arith.constant 0 : i32
    %c0_i32_1 = arith.constant 0 : i32
    return %c0_i32, %c0_i32_0 : i32, i32
  }
  func.func @transform_5(%arg0: i32) -> (i32, i32) {
    %c0_i32 = arith.constant 0 : i32
    %c0_i32_0 = arith.constant 0 : i32
    return %arg0, %c0_i32 : i32, i32
  }
}

</mosaic_0001>

<llo_original>
// kernel: forward.3
$region0: #{forward.3}
  #allocation0 [shape = 'u32[]', space=smem, size = 0x4, offset = 0x4, fixed_abs, tag = 'smem constant byte address 0x4 - core index']
  #allocation1 [shape = 'u32[144,128]{1,0:T(1,128)}', space=vmem, size = 0x12000, scoped, tag = 'internal scratch']
  %s0 = inlined_call_operand.vmem [shape: f32[2,1024], index: 0, kind: input, shape index: {}]
  %s1 = inlined_call_operand.vmem [shape: bf16[1024,500], index: 1, kind: input, shape index: {}]
  %s2 = inlined_call_operand.vmem [shape: f32[1,500], index: 2, kind: input, shape index: {}]
  %s3 = inlined_call_operand.vmem [shape: bf16[500,10], index: 3, kind: input, shape index: {}]
  %s4 = inlined_call_operand.vmem [shape: f32[1,10], index: 4, kind: input, shape index: {}]
  %s5 = inlined_call_operand.hbm [shape: f32[2,10], index: 5, kind: output, shape index: {}]
  %s6 = sld [smem:[#allocation0]]
  $region30: #{forward.3} parent=0
    _
  %s8 = ssub.s32 1, %s6
  %s9 = scalar_select 0, %s8, %s6
  $region1: #{forward.3} parent=0
    #allocation2 [shape = 'u8[1024]{0}', space=vmem, size = 0x400, scoped, tag = 'output window, operand 0, single buffered']
    #allocation3 [shape = 's32[1]{0}', space=sflag, size = 0x4, scoped, tag = 'scoped memory for forward.3']
    %10 = vsyncpa [#allocation3], 0
    // Predicated region
    $region2: #{forward.3} parent=1 // pred_check
      _
    $region3: #{forward.3} parent=1 // pred_check_branch
      %12 = sbr.rel (0) target = $region5
    $region4: #{forward.3} parent=1 // pred_region
      _
    $region5: #{forward.3} parent=1 // pred_fallthru
      _
    // Predicated region
    $region6: #{forward.3} parent=1 // pred_check
      _
    $region7: #{forward.3} parent=1 // pred_check_branch
      %14 = sbr.rel (0) target = $region9
    $region8: #{forward.3} parent=1 // pred_region
      _
    $region9: #{forward.3} parent=1 // pred_fallthru
      _
    // Predicated region
    $region10: #{forward.3} parent=1 // pred_check
      _
    $region11: #{forward.3} parent=1 // pred_check_branch
      %16 = sbr.rel (0) target = $region13
    $region12: #{forward.3} parent=1 // pred_region
      _
    $region13: #{forward.3} parent=1 // pred_fallthru
      _
    // Predicated region
    $region14: #{forward.3} parent=1 // pred_check
      _
    $region15: #{forward.3} parent=1 // pred_check_branch
      %18 = sbr.rel (0) target = $region17
    $region16: #{forward.3} parent=1 // pred_region
      _
    $region17: #{forward.3} parent=1 // pred_fallthru
      _
    // Predicated region
    $region18: #{forward.3} parent=1 // pred_check
      _
    $region19: #{forward.3} parent=1 // pred_check_branch
      %20 = sbr.rel (0) target = $region21
    $region20: #{forward.3} parent=1 // pred_region
      _
    $region21: #{forward.3} parent=1 // pred_fallthru
      _
    %v22 = vld [vmem:[%s0] sm:$0xff]
    %v23 = vld [vmem:[%s0 + $0x8] sm:$0xff]
    %v26 = vcombine.high %v22, %v22
    %v28 = vunpack.c.l.s4 1983009808
    %v29 = vunpack.c.0.s8 %v28
    %v30 = vlaneseq
    %v31 = vshrl.u32 %v30, 7
    %v32 = vsub.s32 %v29, %v31
    %v33 = vrot.slane %v22, %v32
    %v35 = vunpack.c.l.s4 1983009808
    %v36 = vunpack.c.0.s8 %v35
    %v37 = vlaneseq
    %v38 = vshrl.u32 %v37, 7
    %v39 = vsub.s32 %v36, %v38
    %v40 = vrot.slane %v26, %v39
    %v41 = vcombine.high %v33, %v33
    %v42 = vcombine.high %v40, %v40
    %v43 = vcombine.high %v23, %v23
    %v45 = vunpack.c.l.s4 1983009808
    %v46 = vunpack.c.0.s8 %v45
    %v47 = vlaneseq
    %v48 = vshrl.u32 %v47, 7
    %v49 = vsub.s32 %v46, %v48
    %v50 = vrot.slane %v23, %v49
    %v52 = vunpack.c.l.s4 1983009808
    %v53 = vunpack.c.0.s8 %v52
    %v54 = vlaneseq
    %v55 = vshrl.u32 %v54, 7
    %v56 = vsub.s32 %v53, %v55
    %v57 = vrot.slane %v43, %v56
    %v58 = vcombine.high %v50, %v50
    %v59 = vcombine.high %v57, %v57
    %v68 = vpack.c.bf16 %v33, %v33
    %v69 = vpack.c.bf16 %v41, %v41
    %v70 = vpack.c.bf16 %v40, %v40
    %v71 = vpack.c.bf16 %v42, %v42
    %v72 = vpack.c.bf16 %v50, %v50
    %v73 = vpack.c.bf16 %v58, %v58
    %v74 = vpack.c.bf16 %v57, %v57
    %v75 = vpack.c.bf16 %v59, %v59
    %v76 = vld [vmem:[%s1] sm:$0xff]
    %v77 = vld [vmem:[%s1 + $0x8] sm:$0xff]
    %v78 = vld [vmem:[%s1 + $0x10] sm:$0xff]
    %v79 = vld [vmem:[%s1 + $0x18] sm:$0xff]
    %v80 = vld [vmem:[%s1 + $0x20] sm:$0xff]
    %v81 = vld [vmem:[%s1 + $0x28] sm:$0xff]
    %v82 = vld [vmem:[%s1 + $0x30] sm:$0xff]
    %v83 = vld [vmem:[%s1 + $0x38] sm:$0xff]
    %v84 = vld [vmem:[%s1 + $0x40] sm:$0xff]
    %v85 = vld [vmem:[%s1 + $0x48] sm:$0xff]
    %v86 = vld [vmem:[%s1 + $0x50] sm:$0xff]
    %v87 = vld [vmem:[%s1 + $0x58] sm:$0xff]
    %v88 = vld [vmem:[%s1 + $0x60] sm:$0xff]
    %v89 = vld [vmem:[%s1 + $0x68] sm:$0xff]
    %v90 = vld [vmem:[%s1 + $0x70] sm:$0xff]
    %v91 = vld [vmem:[%s1 + $0x78] sm:$0xff]
    %v92 = vld [vmem:[%s1 + $0x80] sm:$0xff]
    %v93 = vld [vmem:[%s1 + $0x88] sm:$0xff]
    %v94 = vld [vmem:[%s1 + $0x90] sm:$0xff]
    %v95 = vld [vmem:[%s1 + $0x98] sm:$0xff]
    %v96 = vld [vmem:[%s1 + $0xa0] sm:$0xff]
    %v97 = vld [vmem:[%s1 + $0xa8] sm:$0xff]
    %v98 = vld [vmem:[%s1 + $0xb0] sm:$0xff]
    %v99 = vld [vmem:[%s1 + $0xb8] sm:$0xff]
    %v100 = vld [vmem:[%s1 + $0xc0] sm:$0xff]
    %v101 = vld [vmem:[%s1 + $0xc8] sm:$0xff]
    %v102 = vld [vmem:[%s1 + $0xd0] sm:$0xff]
    %v103 = vld [vmem:[%s1 + $0xd8] sm:$0xff]
    %v104 = vld [vmem:[%s1 + $0xe0] sm:$0xff]
    %v105 = vld [vmem:[%s1 + $0xe8] sm:$0xff]
    %v106 = vld [vmem:[%s1 + $0xf0] sm:$0xff]
    %v107 = vld [vmem:[%s1 + $0xf8] sm:$0xff]
    %v108 = vld [vmem:[%s1 + $0x100] sm:$0xff]
    %v109 = vld [vmem:[%s1 + $0x108] sm:$0xff]
    %v110 = vld [vmem:[%s1 + $0x110] sm:$0xff]
    %v111 = vld [vmem:[%s1 + $0x118] sm:$0xff]
    %v112 = vld [vmem:[%s1 + $0x120] sm:$0xff]
    %v113 = vld [vmem:[%s1 + $0x128] sm:$0xff]
    %v114 = vld [vmem:[%s1 + $0x130] sm:$0xff]
    %v115 = vld [vmem:[%s1 + $0x138] sm:$0xff]
    %v116 = vld [vmem:[%s1 + $0x140] sm:$0xff]
    %v117 = vld [vmem:[%s1 + $0x148] sm:$0xff]
    %v118 = vld [vmem:[%s1 + $0x150] sm:$0xff]
    %v119 = vld [vmem:[%s1 + $0x158] sm:$0xff]
    %v120 = vld [vmem:[%s1 + $0x160] sm:$0xff]
    %v121 = vld [vmem:[%s1 + $0x168] sm:$0xff]
    %v122 = vld [vmem:[%s1 + $0x170] sm:$0xff]
    %v123 = vld [vmem:[%s1 + $0x178] sm:$0xff]
    %v124 = vld [vmem:[%s1 + $0x180] sm:$0xff]
    %v125 = vld [vmem:[%s1 + $0x188] sm:$0xff]
    %v126 = vld [vmem:[%s1 + $0x190] sm:$0xff]
    %v127 = vld [vmem:[%s1 + $0x198] sm:$0xff]
    %v128 = vld [vmem:[%s1 + $0x1a0] sm:$0xff]
    %v129 = vld [vmem:[%s1 + $0x1a8] sm:$0xff]
    %v130 = vld [vmem:[%s1 + $0x1b0] sm:$0xff]
    %v131 = vld [vmem:[%s1 + $0x1b8] sm:$0xff]
    %v132 = vld [vmem:[%s1 + $0x1c0] sm:$0xff]
    %v133 = vld [vmem:[%s1 + $0x1c8] sm:$0xff]
    %v134 = vld [vmem:[%s1 + $0x1d0] sm:$0xff]
    %v135 = vld [vmem:[%s1 + $0x1d8] sm:$0xff]
    %v136 = vld [vmem:[%s1 + $0x1e0] sm:$0xff]
    %v137 = vld [vmem:[%s1 + $0x1e8] sm:$0xff]
    %v138 = vld [vmem:[%s1 + $0x1f0] sm:$0xff]
    %v139 = vld [vmem:[%s1 + $0x1f8] sm:$0xff]
    %v140 = vld [vmem:[%s1 + $0x200] sm:$0xff]
    %v141 = vld [vmem:[%s1 + $0x208] sm:$0xff]
    %v142 = vld [vmem:[%s1 + $0x210] sm:$0xff]
    %v143 = vld [vmem:[%s1 + $0x218] sm:$0xff]
    %v144 = vld [vmem:[%s1 + $0x220] sm:$0xff]
    %v145 = vld [vmem:[%s1 + $0x228] sm:$0xff]
    %v146 = vld [vmem:[%s1 + $0x230] sm:$0xff]
    %v147 = vld [vmem:[%s1 + $0x238] sm:$0xff]
    %v148 = vld [vmem:[%s1 + $0x240] sm:$0xff]
    %v149 = vld [vmem:[%s1 + $0x248] sm:$0xff]
    %v150 = vld [vmem:[%s1 + $0x250] sm:$0xff]
    %v151 = vld [vmem:[%s1 + $0x258] sm:$0xff]
    %v152 = vld [vmem:[%s1 + $0x260] sm:$0xff]
    %v153 = vld [vmem:[%s1 + $0x268] sm:$0xff]
    %v154 = vld [vmem:[%s1 + $0x270] sm:$0xff]
    %v155 = vld [vmem:[%s1 + $0x278] sm:$0xff]
    %v156 = vld [vmem:[%s1 + $0x280] sm:$0xff]
    %v157 = vld [vmem:[%s1 + $0x288] sm:$0xff]
    %v158 = vld [vmem:[%s1 + $0x290] sm:$0xff]
    %v159 = vld [vmem:[%s1 + $0x298] sm:$0xff]
    %v160 = vld [vmem:[%s1 + $0x2a0] sm:$0xff]
    %v161 = vld [vmem:[%s1 + $0x2a8] sm:$0xff]
    %v162 = vld [vmem:[%s1 + $0x2b0] sm:$0xff]
    %v163 = vld [vmem:[%s1 + $0x2b8] sm:$0xff]
    %v164 = vld [vmem:[%s1 + $0x2c0] sm:$0xff]
    %v165 = vld [vmem:[%s1 + $0x2c8] sm:$0xff]
    %v166 = vld [vmem:[%s1 + $0x2d0] sm:$0xff]
    %v167 = vld [vmem:[%s1 + $0x2d8] sm:$0xff]
    %v168 = vld [vmem:[%s1 + $0x2e0] sm:$0xff]
    %v169 = vld [vmem:[%s1 + $0x2e8] sm:$0xff]
    %v170 = vld [vmem:[%s1 + $0x2f0] sm:$0xff]
    %v171 = vld [vmem:[%s1 + $0x2f8] sm:$0xff]
    %v172 = vld [vmem:[%s1 + $0x300] sm:$0xff]
    %v173 = vld [vmem:[%s1 + $0x308] sm:$0xff]
    %v174 = vld [vmem:[%s1 + $0x310] sm:$0xff]
    %v175 = vld [vmem:[%s1 + $0x318] sm:$0xff]
    %v176 = vld [vmem:[%s1 + $0x320] sm:$0xff]
    %v177 = vld [vmem:[%s1 + $0x328] sm:$0xff]
    %v178 = vld [vmem:[%s1 + $0x330] sm:$0xff]
    %v179 = vld [vmem:[%s1 + $0x338] sm:$0xff]
    %v180 = vld [vmem:[%s1 + $0x340] sm:$0xff]
    %v181 = vld [vmem:[%s1 + $0x348] sm:$0xff]
    %v182 = vld [vmem:[%s1 + $0x350] sm:$0xff]
    %v183 = vld [vmem:[%s1 + $0x358] sm:$0xff]
    %v184 = vld [vmem:[%s1 + $0x360] sm:$0xff]
    %v185 = vld [vmem:[%s1 + $0x368] sm:$0xff]
    %v186 = vld [vmem:[%s1 + $0x370] sm:$0xff]
    %v187 = vld [vmem:[%s1 + $0x378] sm:$0xff]
    %v188 = vld [vmem:[%s1 + $0x380] sm:$0xff]
    %v189 = vld [vmem:[%s1 + $0x388] sm:$0xff]
    %v190 = vld [vmem:[%s1 + $0x390] sm:$0xff]
    %v191 = vld [vmem:[%s1 + $0x398] sm:$0xff]
    %v192 = vld [vmem:[%s1 + $0x3a0] sm:$0xff]
    %v193 = vld [vmem:[%s1 + $0x3a8] sm:$0xff]
    %v194 = vld [vmem:[%s1 + $0x3b0] sm:$0xff]
    %v195 = vld [vmem:[%s1 + $0x3b8] sm:$0xff]
    %v196 = vld [vmem:[%s1 + $0x3c0] sm:$0xff]
    %v197 = vld [vmem:[%s1 + $0x3c8] sm:$0xff]
    %v198 = vld [vmem:[%s1 + $0x3d0] sm:$0xff]
    %v199 = vld [vmem:[%s1 + $0x3d8] sm:$0xff]
    %v200 = vld [vmem:[%s1 + $0x3e0] sm:$0xff]
    %v201 = vld [vmem:[%s1 + $0x3e8] sm:$0xff]
    %v202 = vld [vmem:[%s1 + $0x3f0] sm:$0xff]
    %v203 = vld [vmem:[%s1 + $0x3f8] sm:$0xff]
    %v204 = vld [vmem:[%s1 + $0x400] sm:$0xff]
    %v205 = vld [vmem:[%s1 + $0x408] sm:$0xff]
    %v206 = vld [vmem:[%s1 + $0x410] sm:$0xff]
    %v207 = vld [vmem:[%s1 + $0x418] sm:$0xff]
    %v208 = vld [vmem:[%s1 + $0x420] sm:$0xff]
    %v209 = vld [vmem:[%s1 + $0x428] sm:$0xff]
    %v210 = vld [vmem:[%s1 + $0x430] sm:$0xff]
    %v211 = vld [vmem:[%s1 + $0x438] sm:$0xff]
    %v212 = vld [vmem:[%s1 + $0x440] sm:$0xff]
    %v213 = vld [vmem:[%s1 + $0x448] sm:$0xff]
    %v214 = vld [vmem:[%s1 + $0x450] sm:$0xff]
    %v215 = vld [vmem:[%s1 + $0x458] sm:$0xff]
    %v216 = vld [vmem:[%s1 + $0x460] sm:$0xff]
    %v217 = vld [vmem:[%s1 + $0x468] sm:$0xff]
    %v218 = vld [vmem:[%s1 + $0x470] sm:$0xff]
    %v219 = vld [vmem:[%s1 + $0x478] sm:$0xff]
    %v220 = vld [vmem:[%s1 + $0x480] sm:$0xff]
    %v221 = vld [vmem:[%s1 + $0x488] sm:$0xff]
    %v222 = vld [vmem:[%s1 + $0x490] sm:$0xff]
    %v223 = vld [vmem:[%s1 + $0x498] sm:$0xff]
    %v224 = vld [vmem:[%s1 + $0x4a0] sm:$0xff]
    %v225 = vld [vmem:[%s1 + $0x4a8] sm:$0xff]
    %v226 = vld [vmem:[%s1 + $0x4b0] sm:$0xff]
    %v227 = vld [vmem:[%s1 + $0x4b8] sm:$0xff]
    %v228 = vld [vmem:[%s1 + $0x4c0] sm:$0xff]
    %v229 = vld [vmem:[%s1 + $0x4c8] sm:$0xff]
    %v230 = vld [vmem:[%s1 + $0x4d0] sm:$0xff]
    %v231 = vld [vmem:[%s1 + $0x4d8] sm:$0xff]
    %v232 = vld [vmem:[%s1 + $0x4e0] sm:$0xff]
    %v233 = vld [vmem:[%s1 + $0x4e8] sm:$0xff]
    %v234 = vld [vmem:[%s1 + $0x4f0] sm:$0xff]
    %v235 = vld [vmem:[%s1 + $0x4f8] sm:$0xff]
    %v236 = vld [vmem:[%s1 + $0x500] sm:$0xff]
    %v237 = vld [vmem:[%s1 + $0x508] sm:$0xff]
    %v238 = vld [vmem:[%s1 + $0x510] sm:$0xff]
    %v239 = vld [vmem:[%s1 + $0x518] sm:$0xff]
    %v240 = vld [vmem:[%s1 + $0x520] sm:$0xff]
    %v241 = vld [vmem:[%s1 + $0x528] sm:$0xff]
    %v242 = vld [vmem:[%s1 + $0x530] sm:$0xff]
    %v243 = vld [vmem:[%s1 + $0x538] sm:$0xff]
    %v244 = vld [vmem:[%s1 + $0x540] sm:$0xff]
    %v245 = vld [vmem:[%s1 + $0x548] sm:$0xff]
    %v246 = vld [vmem:[%s1 + $0x550] sm:$0xff]
    %v247 = vld [vmem:[%s1 + $0x558] sm:$0xff]
    %v248 = vld [vmem:[%s1 + $0x560] sm:$0xff]
    %v249 = vld [vmem:[%s1 + $0x568] sm:$0xff]
    %v250 = vld [vmem:[%s1 + $0x570] sm:$0xff]
    %v251 = vld [vmem:[%s1 + $0x578] sm:$0xff]
    %v252 = vld [vmem:[%s1 + $0x580] sm:$0xff]
    %v253 = vld [vmem:[%s1 + $0x588] sm:$0xff]
    %v254 = vld [vmem:[%s1 + $0x590] sm:$0xff]
    %v255 = vld [vmem:[%s1 + $0x598] sm:$0xff]
    %v256 = vld [vmem:[%s1 + $0x5a0] sm:$0xff]
    %v257 = vld [vmem:[%s1 + $0x5a8] sm:$0xff]
    %v258 = vld [vmem:[%s1 + $0x5b0] sm:$0xff]
    %v259 = vld [vmem:[%s1 + $0x5b8] sm:$0xff]
    %v260 = vld [vmem:[%s1 + $0x5c0] sm:$0xff]
    %v261 = vld [vmem:[%s1 + $0x5c8] sm:$0xff]
    %v262 = vld [vmem:[%s1 + $0x5d0] sm:$0xff]
    %v263 = vld [vmem:[%s1 + $0x5d8] sm:$0xff]
    %v264 = vld [vmem:[%s1 + $0x5e0] sm:$0xff]
    %v265 = vld [vmem:[%s1 + $0x5e8] sm:$0xff]
    %v266 = vld [vmem:[%s1 + $0x5f0] sm:$0xff]
    %v267 = vld [vmem:[%s1 + $0x5f8] sm:$0xff]
    %v268 = vld [vmem:[%s1 + $0x600] sm:$0xff]
    %v269 = vld [vmem:[%s1 + $0x608] sm:$0xff]
    %v270 = vld [vmem:[%s1 + $0x610] sm:$0xff]
    %v271 = vld [vmem:[%s1 + $0x618] sm:$0xff]
    %v272 = vld [vmem:[%s1 + $0x620] sm:$0xff]
    %v273 = vld [vmem:[%s1 + $0x628] sm:$0xff]
    %v274 = vld [vmem:[%s1 + $0x630] sm:$0xff]
    %v275 = vld [vmem:[%s1 + $0x638] sm:$0xff]
    %v276 = vld [vmem:[%s1 + $0x640] sm:$0xff]
    %v277 = vld [vmem:[%s1 + $0x648] sm:$0xff]
    %v278 = vld [vmem:[%s1 + $0x650] sm:$0xff]
    %v279 = vld [vmem:[%s1 + $0x658] sm:$0xff]
    %v280 = vld [vmem:[%s1 + $0x660] sm:$0xff]
    %v281 = vld [vmem:[%s1 + $0x668] sm:$0xff]
    %v282 = vld [vmem:[%s1 + $0x670] sm:$0xff]
    %v283 = vld [vmem:[%s1 + $0x678] sm:$0xff]
    %v284 = vld [vmem:[%s1 + $0x680] sm:$0xff]
    %v285 = vld [vmem:[%s1 + $0x688] sm:$0xff]
    %v286 = vld [vmem:[%s1 + $0x690] sm:$0xff]
    %v287 = vld [vmem:[%s1 + $0x698] sm:$0xff]
    %v288 = vld [vmem:[%s1 + $0x6a0] sm:$0xff]
    %v289 = vld [vmem:[%s1 + $0x6a8] sm:$0xff]
    %v290 = vld [vmem:[%s1 + $0x6b0] sm:$0xff]
    %v291 = vld [vmem:[%s1 + $0x6b8] sm:$0xff]
    %v292 = vld [vmem:[%s1 + $0x6c0] sm:$0xff]
    %v293 = vld [vmem:[%s1 + $0x6c8] sm:$0xff]
    %v294 = vld [vmem:[%s1 + $0x6d0] sm:$0xff]
    %v295 = vld [vmem:[%s1 + $0x6d8] sm:$0xff]
    %v296 = vld [vmem:[%s1 + $0x6e0] sm:$0xff]
    %v297 = vld [vmem:[%s1 + $0x6e8] sm:$0xff]
    %v298 = vld [vmem:[%s1 + $0x6f0] sm:$0xff]
    %v299 = vld [vmem:[%s1 + $0x6f8] sm:$0xff]
    %v300 = vld [vmem:[%s1 + $0x700] sm:$0xff]
    %v301 = vld [vmem:[%s1 + $0x708] sm:$0xff]
    %v302 = vld [vmem:[%s1 + $0x710] sm:$0xff]
    %v303 = vld [vmem:[%s1 + $0x718] sm:$0xff]
    %v304 = vld [vmem:[%s1 + $0x720] sm:$0xff]
    %v305 = vld [vmem:[%s1 + $0x728] sm:$0xff]
    %v306 = vld [vmem:[%s1 + $0x730] sm:$0xff]
    %v307 = vld [vmem:[%s1 + $0x738] sm:$0xff]
    %v308 = vld [vmem:[%s1 + $0x740] sm:$0xff]
    %v309 = vld [vmem:[%s1 + $0x748] sm:$0xff]
    %v310 = vld [vmem:[%s1 + $0x750] sm:$0xff]
    %v311 = vld [vmem:[%s1 + $0x758] sm:$0xff]
    %v312 = vld [vmem:[%s1 + $0x760] sm:$0xff]
    %v313 = vld [vmem:[%s1 + $0x768] sm:$0xff]
    %v314 = vld [vmem:[%s1 + $0x770] sm:$0xff]
    %v315 = vld [vmem:[%s1 + $0x778] sm:$0xff]
    %v316 = vld [vmem:[%s1 + $0x780] sm:$0xff]
    %v317 = vld [vmem:[%s1 + $0x788] sm:$0xff]
    %v318 = vld [vmem:[%s1 + $0x790] sm:$0xff]
    %v319 = vld [vmem:[%s1 + $0x798] sm:$0xff]
    %v320 = vld [vmem:[%s1 + $0x7a0] sm:$0xff]
    %v321 = vld [vmem:[%s1 + $0x7a8] sm:$0xff]
    %v322 = vld [vmem:[%s1 + $0x7b0] sm:$0xff]
    %v323 = vld [vmem:[%s1 + $0x7b8] sm:$0xff]
    %v324 = vld [vmem:[%s1 + $0x7c0] sm:$0xff]
    %v325 = vld [vmem:[%s1 + $0x7c8] sm:$0xff]
    %v326 = vld [vmem:[%s1 + $0x7d0] sm:$0xff]
    %v327 = vld [vmem:[%s1 + $0x7d8] sm:$0xff]
    %v328 = vld [vmem:[%s1 + $0x7e0] sm:$0xff]
    %v329 = vld [vmem:[%s1 + $0x7e8] sm:$0xff]
    %v330 = vld [vmem:[%s1 + $0x7f0] sm:$0xff]
    %v331 = vld [vmem:[%s1 + $0x7f8] sm:$0xff]
    %v332 = vld [vmem:[%s2] sm:$0xf]
    %v334 = vlaneseq
    %v335 = vshrl.u32 %v334, 7
    %v336 = vsub.s32 0, %v335
    %v337 = vrot.slane %v332, %v336
    %v338 = vlaneseq
    %v339 = vshrl.u32 %v338, 7
    %v340 = vsub.s32 1, %v339
    %v341 = vrot.slane %v332, %v340
    %v342 = vlaneseq
    %v343 = vshrl.u32 %v342, 7
    %v344 = vsub.s32 2, %v343
    %v345 = vrot.slane %v332, %v344
    %v346 = vlaneseq
    %v347 = vshrl.u32 %v346, 7
    %v348 = vsub.s32 3, %v347
    %v349 = vrot.slane %v332, %v348
    %v610 = vunpack.c.l.b16 %v76
    %v611 = vunpack.c.h.b16 %v76
    %v612 = vunpack.c.l.b16 %v77
    %v613 = vunpack.c.h.b16 %v77
    %v614 = vunpack.c.l.b16 %v78
    %v615 = vunpack.c.h.b16 %v78
    %v616 = vunpack.c.l.b16 %v79
    %v617 = vunpack.c.h.b16 %v79
    %v618 = vunpack.c.l.b16 %v80
    %v619 = vunpack.c.h.b16 %v80
    %v620 = vunpack.c.l.b16 %v81
    %v621 = vunpack.c.h.b16 %v81
    %v622 = vunpack.c.l.b16 %v82
    %v623 = vunpack.c.h.b16 %v82
    %v624 = vunpack.c.l.b16 %v83
    %v625 = vunpack.c.h.b16 %v83
    %v626 = vunpack.c.l.b16 %v84
    %v627 = vunpack.c.h.b16 %v84
    %v628 = vunpack.c.l.b16 %v85
    %v629 = vunpack.c.h.b16 %v85
    %v630 = vunpack.c.l.b16 %v86
    %v631 = vunpack.c.h.b16 %v86
    %v632 = vunpack.c.l.b16 %v87
    %v633 = vunpack.c.h.b16 %v87
    %v634 = vunpack.c.l.b16 %v88
    %v635 = vunpack.c.h.b16 %v88
    %v636 = vunpack.c.l.b16 %v89
    %v637 = vunpack.c.h.b16 %v89
    %v638 = vunpack.c.l.b16 %v90
    %v639 = vunpack.c.h.b16 %v90
    %v640 = vunpack.c.l.b16 %v91
    %v641 = vunpack.c.h.b16 %v91
    %v642 = vunpack.c.l.b16 %v92
    %v643 = vunpack.c.h.b16 %v92
    %v644 = vunpack.c.l.b16 %v93
    %v645 = vunpack.c.h.b16 %v93
    %v646 = vunpack.c.l.b16 %v94
    %v647 = vunpack.c.h.b16 %v94
    %v648 = vunpack.c.l.b16 %v95
    %v649 = vunpack.c.h.b16 %v95
    %v650 = vunpack.c.l.b16 %v96
    %v651 = vunpack.c.h.b16 %v96
    %v652 = vunpack.c.l.b16 %v97
    %v653 = vunpack.c.h.b16 %v97
    %v654 = vunpack.c.l.b16 %v98
    %v655 = vunpack.c.h.b16 %v98
    %v656 = vunpack.c.l.b16 %v99
    %v657 = vunpack.c.h.b16 %v99
    %v658 = vunpack.c.l.b16 %v100
    %v659 = vunpack.c.h.b16 %v100
    %v660 = vunpack.c.l.b16 %v101
    %v661 = vunpack.c.h.b16 %v101
    %v662 = vunpack.c.l.b16 %v102
    %v663 = vunpack.c.h.b16 %v102
    %v664 = vunpack.c.l.b16 %v103
    %v665 = vunpack.c.h.b16 %v103
    %v666 = vunpack.c.l.b16 %v104
    %v667 = vunpack.c.h.b16 %v104
    %v668 = vunpack.c.l.b16 %v105
    %v669 = vunpack.c.h.b16 %v105
    %v670 = vunpack.c.l.b16 %v106
    %v671 = vunpack.c.h.b16 %v106
    %v672 = vunpack.c.l.b16 %v107
    %v673 = vunpack.c.h.b16 %v107
    %v674 = vunpack.c.l.b16 %v108
    %v675 = vunpack.c.h.b16 %v108
    %v676 = vunpack.c.l.b16 %v109
    %v677 = vunpack.c.h.b16 %v109
    %v678 = vunpack.c.l.b16 %v110
    %v679 = vunpack.c.h.b16 %v110
    %v680 = vunpack.c.l.b16 %v111
    %v681 = vunpack.c.h.b16 %v111
    %v682 = vunpack.c.l.b16 %v112
    %v683 = vunpack.c.h.b16 %v112
    %v684 = vunpack.c.l.b16 %v113
    %v685 = vunpack.c.h.b16 %v113
    %v686 = vunpack.c.l.b16 %v114
    %v687 = vunpack.c.h.b16 %v114
    %v688 = vunpack.c.l.b16 %v115
    %v689 = vunpack.c.h.b16 %v115
    %v690 = vunpack.c.l.b16 %v116
    %v691 = vunpack.c.h.b16 %v116
    %v692 = vunpack.c.l.b16 %v117
    %v693 = vunpack.c.h.b16 %v117
    %v694 = vunpack.c.l.b16 %v118
    %v695 = vunpack.c.h.b16 %v118
    %v696 = vunpack.c.l.b16 %v119
    %v697 = vunpack.c.h.b16 %v119
    %v698 = vunpack.c.l.b16 %v120
    %v699 = vunpack.c.h.b16 %v120
    %v700 = vunpack.c.l.b16 %v121
    %v701 = vunpack.c.h.b16 %v121
    %v702 = vunpack.c.l.b16 %v122
    %v703 = vunpack.c.h.b16 %v122
    %v704 = vunpack.c.l.b16 %v123
    %v705 = vunpack.c.h.b16 %v123
    %v706 = vunpack.c.l.b16 %v124
    %v707 = vunpack.c.h.b16 %v124
    %v708 = vunpack.c.l.b16 %v125
    %v709 = vunpack.c.h.b16 %v125
    %v710 = vunpack.c.l.b16 %v126
    %v711 = vunpack.c.h.b16 %v126
    %v712 = vunpack.c.l.b16 %v127
    %v713 = vunpack.c.h.b16 %v127
    %v714 = vunpack.c.l.b16 %v128
    %v715 = vunpack.c.h.b16 %v128
    %v716 = vunpack.c.l.b16 %v129
    %v717 = vunpack.c.h.b16 %v129
    %v718 = vunpack.c.l.b16 %v130
    %v719 = vunpack.c.h.b16 %v130
    %v720 = vunpack.c.l.b16 %v131
    %v721 = vunpack.c.h.b16 %v131
    %v722 = vunpack.c.l.b16 %v132
    %v723 = vunpack.c.h.b16 %v132
    %v724 = vunpack.c.l.b16 %v133
    %v725 = vunpack.c.h.b16 %v133
    %v726 = vunpack.c.l.b16 %v134
    %v727 = vunpack.c.h.b16 %v134
    %v728 = vunpack.c.l.b16 %v135
    %v729 = vunpack.c.h.b16 %v135
    %v730 = vunpack.c.l.b16 %v136
    %v731 = vunpack.c.h.b16 %v136
    %v732 = vunpack.c.l.b16 %v137
    %v733 = vunpack.c.h.b16 %v137
    %v734 = vunpack.c.l.b16 %v138
    %v735 = vunpack.c.h.b16 %v138
    %v736 = vunpack.c.l.b16 %v139
    %v737 = vunpack.c.h.b16 %v139
    %v738 = vunpack.c.l.b16 %v140
    %v739 = vunpack.c.h.b16 %v140
    %v740 = vunpack.c.l.b16 %v141
    %v741 = vunpack.c.h.b16 %v141
    %v742 = vunpack.c.l.b16 %v142
    %v743 = vunpack.c.h.b16 %v142
    %v744 = vunpack.c.l.b16 %v143
    %v745 = vunpack.c.h.b16 %v143
    %v746 = vunpack.c.l.b16 %v144
    %v747 = vunpack.c.h.b16 %v144
    %v748 = vunpack.c.l.b16 %v145
    %v749 = vunpack.c.h.b16 %v145
    %v750 = vunpack.c.l.b16 %v146
    %v751 = vunpack.c.h.b16 %v146
    %v752 = vunpack.c.l.b16 %v147
    %v753 = vunpack.c.h.b16 %v147
    %v754 = vunpack.c.l.b16 %v148
    %v755 = vunpack.c.h.b16 %v148
    %v756 = vunpack.c.l.b16 %v149
    %v757 = vunpack.c.h.b16 %v149
    %v758 = vunpack.c.l.b16 %v150
    %v759 = vunpack.c.h.b16 %v150
    %v760 = vunpack.c.l.b16 %v151
    %v761 = vunpack.c.h.b16 %v151
    %v762 = vunpack.c.l.b16 %v152
    %v763 = vunpack.c.h.b16 %v152
    %v764 = vunpack.c.l.b16 %v153
    %v765 = vunpack.c.h.b16 %v153
    %v766 = vunpack.c.l.b16 %v154
    %v767 = vunpack.c.h.b16 %v154
    %v768 = vunpack.c.l.b16 %v155
    %v769 = vunpack.c.h.b16 %v155
    %v770 = vunpack.c.l.b16 %v156
    %v771 = vunpack.c.h.b16 %v156
    %v772 = vunpack.c.l.b16 %v157
    %v773 = vunpack.c.h.b16 %v157
    %v774 = vunpack.c.l.b16 %v158
    %v775 = vunpack.c.h.b16 %v158
    %v776 = vunpack.c.l.b16 %v159
    %v777 = vunpack.c.h.b16 %v159
    %v778 = vunpack.c.l.b16 %v160
    %v779 = vunpack.c.h.b16 %v160
    %v780 = vunpack.c.l.b16 %v161
    %v781 = vunpack.c.h.b16 %v161
    %v782 = vunpack.c.l.b16 %v162
    %v783 = vunpack.c.h.b16 %v162
    %v784 = vunpack.c.l.b16 %v163
    %v785 = vunpack.c.h.b16 %v163
    %v786 = vunpack.c.l.b16 %v164
    %v787 = vunpack.c.h.b16 %v164
    %v788 = vunpack.c.l.b16 %v165
    %v789 = vunpack.c.h.b16 %v165
    %v790 = vunpack.c.l.b16 %v166
    %v791 = vunpack.c.h.b16 %v166
    %v792 = vunpack.c.l.b16 %v167
    %v793 = vunpack.c.h.b16 %v167
    %v794 = vunpack.c.l.b16 %v168
    %v795 = vunpack.c.h.b16 %v168
    %v796 = vunpack.c.l.b16 %v169
    %v797 = vunpack.c.h.b16 %v169
    %v798 = vunpack.c.l.b16 %v170
    %v799 = vunpack.c.h.b16 %v170
    %v800 = vunpack.c.l.b16 %v171
    %v801 = vunpack.c.h.b16 %v171
    %v802 = vunpack.c.l.b16 %v172
    %v803 = vunpack.c.h.b16 %v172
    %v804 = vunpack.c.l.b16 %v173
    %v805 = vunpack.c.h.b16 %v173
    %v806 = vunpack.c.l.b16 %v174
    %v807 = vunpack.c.h.b16 %v174
    %v808 = vunpack.c.l.b16 %v175
    %v809 = vunpack.c.h.b16 %v175
    %v810 = vunpack.c.l.b16 %v176
    %v811 = vunpack.c.h.b16 %v176
    %v812 = vunpack.c.l.b16 %v177
    %v813 = vunpack.c.h.b16 %v177
    %v814 = vunpack.c.l.b16 %v178
    %v815 = vunpack.c.h.b16 %v178
    %v816 = vunpack.c.l.b16 %v179
    %v817 = vunpack.c.h.b16 %v179
    %v818 = vunpack.c.l.b16 %v180
    %v819 = vunpack.c.h.b16 %v180
    %v820 = vunpack.c.l.b16 %v181
    %v821 = vunpack.c.h.b16 %v181
    %v822 = vunpack.c.l.b16 %v182
    %v823 = vunpack.c.h.b16 %v182
    %v824 = vunpack.c.l.b16 %v183
    %v825 = vunpack.c.h.b16 %v183
    %v826 = vunpack.c.l.b16 %v184
    %v827 = vunpack.c.h.b16 %v184
    %v828 = vunpack.c.l.b16 %v185
    %v829 = vunpack.c.h.b16 %v185
    %v830 = vunpack.c.l.b16 %v186
    %v831 = vunpack.c.h.b16 %v186
    %v832 = vunpack.c.l.b16 %v187
    %v833 = vunpack.c.h.b16 %v187
    %v834 = vunpack.c.l.b16 %v188
    %v835 = vunpack.c.h.b16 %v188
    %v836 = vunpack.c.l.b16 %v189
    %v837 = vunpack.c.h.b16 %v189
    %v838 = vunpack.c.l.b16 %v190
    %v839 = vunpack.c.h.b16 %v190
    %v840 = vunpack.c.l.b16 %v191
    %v841 = vunpack.c.h.b16 %v191
    %v842 = vunpack.c.l.b16 %v192
    %v843 = vunpack.c.h.b16 %v192
    %v844 = vunpack.c.l.b16 %v193
    %v845 = vunpack.c.h.b16 %v193
    %v846 = vunpack.c.l.b16 %v194
    %v847 = vunpack.c.h.b16 %v194
    %v848 = vunpack.c.l.b16 %v195
    %v849 = vunpack.c.h.b16 %v195
    %v850 = vunpack.c.l.b16 %v196
    %v851 = vunpack.c.h.b16 %v196
    %v852 = vunpack.c.l.b16 %v197
    %v853 = vunpack.c.h.b16 %v197
    %v854 = vunpack.c.l.b16 %v198
    %v855 = vunpack.c.h.b16 %v198
    %v856 = vunpack.c.l.b16 %v199
    %v857 = vunpack.c.h.b16 %v199
    %v858 = vunpack.c.l.b16 %v200
    %v859 = vunpack.c.h.b16 %v200
    %v860 = vunpack.c.l.b16 %v201
    %v861 = vunpack.c.h.b16 %v201
    %v862 = vunpack.c.l.b16 %v202
    %v863 = vunpack.c.h.b16 %v202
    %v864 = vunpack.c.l.b16 %v203
    %v865 = vunpack.c.h.b16 %v203
    %v866 = vunpack.c.l.b16 %v204
    %v867 = vunpack.c.h.b16 %v204
    %v868 = vunpack.c.l.b16 %v205
    %v869 = vunpack.c.h.b16 %v205
    %v870 = vunpack.c.l.b16 %v206
    %v871 = vunpack.c.h.b16 %v206
    %v872 = vunpack.c.l.b16 %v207
    %v873 = vunpack.c.h.b16 %v207
    %v874 = vunpack.c.l.b16 %v208
    %v875 = vunpack.c.h.b16 %v208
    %v876 = vunpack.c.l.b16 %v209
    %v877 = vunpack.c.h.b16 %v209
    %v878 = vunpack.c.l.b16 %v210
    %v879 = vunpack.c.h.b16 %v210
    %v880 = vunpack.c.l.b16 %v211
    %v881 = vunpack.c.h.b16 %v211
    %v882 = vunpack.c.l.b16 %v212
    %v883 = vunpack.c.h.b16 %v212
    %v884 = vunpack.c.l.b16 %v213
    %v885 = vunpack.c.h.b16 %v213
    %v886 = vunpack.c.l.b16 %v214
    %v887 = vunpack.c.h.b16 %v214
    %v888 = vunpack.c.l.b16 %v215
    %v889 = vunpack.c.h.b16 %v215
    %v890 = vunpack.c.l.b16 %v216
    %v891 = vunpack.c.h.b16 %v216
    %v892 = vunpack.c.l.b16 %v217
    %v893 = vunpack.c.h.b16 %v217
    %v894 = vunpack.c.l.b16 %v218
    %v895 = vunpack.c.h.b16 %v218
    %v896 = vunpack.c.l.b16 %v219
    %v897 = vunpack.c.h.b16 %v219
    %v898 = vunpack.c.l.b16 %v220
    %v899 = vunpack.c.h.b16 %v220
    %v900 = vunpack.c.l.b16 %v221
    %v901 = vunpack.c.h.b16 %v221
    %v902 = vunpack.c.l.b16 %v222
    %v903 = vunpack.c.h.b16 %v222
    %v904 = vunpack.c.l.b16 %v223
    %v905 = vunpack.c.h.b16 %v223
    %v906 = vunpack.c.l.b16 %v224
    %v907 = vunpack.c.h.b16 %v224
    %v908 = vunpack.c.l.b16 %v225
    %v909 = vunpack.c.h.b16 %v225
    %v910 = vunpack.c.l.b16 %v226
    %v911 = vunpack.c.h.b16 %v226
    %v912 = vunpack.c.l.b16 %v227
    %v913 = vunpack.c.h.b16 %v227
    %v914 = vunpack.c.l.b16 %v228
    %v915 = vunpack.c.h.b16 %v228
    %v916 = vunpack.c.l.b16 %v229
    %v917 = vunpack.c.h.b16 %v229
    %v918 = vunpack.c.l.b16 %v230
    %v919 = vunpack.c.h.b16 %v230
    %v920 = vunpack.c.l.b16 %v231
    %v921 = vunpack.c.h.b16 %v231
    %v922 = vunpack.c.l.b16 %v232
    %v923 = vunpack.c.h.b16 %v232
    %v924 = vunpack.c.l.b16 %v233
    %v925 = vunpack.c.h.b16 %v233
    %v926 = vunpack.c.l.b16 %v234
    %v927 = vunpack.c.h.b16 %v234
    %v928 = vunpack.c.l.b16 %v235
    %v929 = vunpack.c.h.b16 %v235
    %v930 = vunpack.c.l.b16 %v236
    %v931 = vunpack.c.h.b16 %v236
    %v932 = vunpack.c.l.b16 %v237
    %v933 = vunpack.c.h.b16 %v237
    %v934 = vunpack.c.l.b16 %v238
    %v935 = vunpack.c.h.b16 %v238
    %v936 = vunpack.c.l.b16 %v239
    %v937 = vunpack.c.h.b16 %v239
    %v938 = vunpack.c.l.b16 %v240
    %v939 = vunpack.c.h.b16 %v240
    %v940 = vunpack.c.l.b16 %v241
    %v941 = vunpack.c.h.b16 %v241
    %v942 = vunpack.c.l.b16 %v242
    %v943 = vunpack.c.h.b16 %v242
    %v944 = vunpack.c.l.b16 %v243
    %v945 = vunpack.c.h.b16 %v243
    %v946 = vunpack.c.l.b16 %v244
    %v947 = vunpack.c.h.b16 %v244
    %v948 = vunpack.c.l.b16 %v245
    %v949 = vunpack.c.h.b16 %v245
    %v950 = vunpack.c.l.b16 %v246
    %v951 = vunpack.c.h.b16 %v246
    %v952 = vunpack.c.l.b16 %v247
    %v953 = vunpack.c.h.b16 %v247
    %v954 = vunpack.c.l.b16 %v248
    %v955 = vunpack.c.h.b16 %v248
    %v956 = vunpack.c.l.b16 %v249
    %v957 = vunpack.c.h.b16 %v249
    %v958 = vunpack.c.l.b16 %v250
    %v959 = vunpack.c.h.b16 %v250
    %v960 = vunpack.c.l.b16 %v251
    %v961 = vunpack.c.h.b16 %v251
    %v962 = vunpack.c.l.b16 %v252
    %v963 = vunpack.c.h.b16 %v252
    %v964 = vunpack.c.l.b16 %v253
    %v965 = vunpack.c.h.b16 %v253
    %v966 = vunpack.c.l.b16 %v254
    %v967 = vunpack.c.h.b16 %v254
    %v968 = vunpack.c.l.b16 %v255
    %v969 = vunpack.c.h.b16 %v255
    %v970 = vunpack.c.l.b16 %v256
    %v971 = vunpack.c.h.b16 %v256
    %v972 = vunpack.c.l.b16 %v257
    %v973 = vunpack.c.h.b16 %v257
    %v974 = vunpack.c.l.b16 %v258
    %v975 = vunpack.c.h.b16 %v258
    %v976 = vunpack.c.l.b16 %v259
    %v977 = vunpack.c.h.b16 %v259
    %v978 = vunpack.c.l.b16 %v260
    %v979 = vunpack.c.h.b16 %v260
    %v980 = vunpack.c.l.b16 %v261
    %v981 = vunpack.c.h.b16 %v261
    %v982 = vunpack.c.l.b16 %v262
    %v983 = vunpack.c.h.b16 %v262
    %v984 = vunpack.c.l.b16 %v263
    %v985 = vunpack.c.h.b16 %v263
    %v986 = vunpack.c.l.b16 %v264
    %v987 = vunpack.c.h.b16 %v264
    %v988 = vunpack.c.l.b16 %v265
    %v989 = vunpack.c.h.b16 %v265
    %v990 = vunpack.c.l.b16 %v266
    %v991 = vunpack.c.h.b16 %v266
    %v992 = vunpack.c.l.b16 %v267
    %v993 = vunpack.c.h.b16 %v267
    %v994 = vunpack.c.l.b16 %v268
    %v995 = vunpack.c.h.b16 %v268
    %v996 = vunpack.c.l.b16 %v269
    %v997 = vunpack.c.h.b16 %v269
    %v998 = vunpack.c.l.b16 %v270
    %v999 = vunpack.c.h.b16 %v270
    %v1000 = vunpack.c.l.b16 %v271
    %v1001 = vunpack.c.h.b16 %v271
    %v1002 = vunpack.c.l.b16 %v272
    %v1003 = vunpack.c.h.b16 %v272
    %v1004 = vunpack.c.l.b16 %v273
    %v1005 = vunpack.c.h.b16 %v273
    %v1006 = vunpack.c.l.b16 %v274
    %v1007 = vunpack.c.h.b16 %v274
    %v1008 = vunpack.c.l.b16 %v275
    %v1009 = vunpack.c.h.b16 %v275
    %v1010 = vunpack.c.l.b16 %v276
    %v1011 = vunpack.c.h.b16 %v276
    %v1012 = vunpack.c.l.b16 %v277
    %v1013 = vunpack.c.h.b16 %v277
    %v1014 = vunpack.c.l.b16 %v278
    %v1015 = vunpack.c.h.b16 %v278
    %v1016 = vunpack.c.l.b16 %v279
    %v1017 = vunpack.c.h.b16 %v279
    %v1018 = vunpack.c.l.b16 %v280
    %v1019 = vunpack.c.h.b16 %v280
    %v1020 = vunpack.c.l.b16 %v281
    %v1021 = vunpack.c.h.b16 %v281
    %v1022 = vunpack.c.l.b16 %v282
    %v1023 = vunpack.c.h.b16 %v282
    %v1024 = vunpack.c.l.b16 %v283
    %v1025 = vunpack.c.h.b16 %v283
    %v1026 = vunpack.c.l.b16 %v284
    %v1027 = vunpack.c.h.b16 %v284
    %v1028 = vunpack.c.l.b16 %v285
    %v1029 = vunpack.c.h.b16 %v285
    %v1030 = vunpack.c.l.b16 %v286
    %v1031 = vunpack.c.h.b16 %v286
    %v1032 = vunpack.c.l.b16 %v287
    %v1033 = vunpack.c.h.b16 %v287
    %v1034 = vunpack.c.l.b16 %v288
    %v1035 = vunpack.c.h.b16 %v288
    %v1036 = vunpack.c.l.b16 %v289
    %v1037 = vunpack.c.h.b16 %v289
    %v1038 = vunpack.c.l.b16 %v290
    %v1039 = vunpack.c.h.b16 %v290
    %v1040 = vunpack.c.l.b16 %v291
    %v1041 = vunpack.c.h.b16 %v291
    %v1042 = vunpack.c.l.b16 %v292
    %v1043 = vunpack.c.h.b16 %v292
    %v1044 = vunpack.c.l.b16 %v293
    %v1045 = vunpack.c.h.b16 %v293
    %v1046 = vunpack.c.l.b16 %v294
    %v1047 = vunpack.c.h.b16 %v294
    %v1048 = vunpack.c.l.b16 %v295
    %v1049 = vunpack.c.h.b16 %v295
    %v1050 = vunpack.c.l.b16 %v296
    %v1051 = vunpack.c.h.b16 %v296
    %v1052 = vunpack.c.l.b16 %v297
    %v1053 = vunpack.c.h.b16 %v297
    %v1054 = vunpack.c.l.b16 %v298
    %v1055 = vunpack.c.h.b16 %v298
    %v1056 = vunpack.c.l.b16 %v299
    %v1057 = vunpack.c.h.b16 %v299
    %v1058 = vunpack.c.l.b16 %v300
    %v1059 = vunpack.c.h.b16 %v300
    %v1060 = vunpack.c.l.b16 %v301
    %v1061 = vunpack.c.h.b16 %v301
    %v1062 = vunpack.c.l.b16 %v302
    %v1063 = vunpack.c.h.b16 %v302
    %v1064 = vunpack.c.l.b16 %v303
    %v1065 = vunpack.c.h.b16 %v303
    %v1066 = vunpack.c.l.b16 %v304
    %v1067 = vunpack.c.h.b16 %v304
    %v1068 = vunpack.c.l.b16 %v305
    %v1069 = vunpack.c.h.b16 %v305
    %v1070 = vunpack.c.l.b16 %v306
    %v1071 = vunpack.c.h.b16 %v306
    %v1072 = vunpack.c.l.b16 %v307
    %v1073 = vunpack.c.h.b16 %v307
    %v1074 = vunpack.c.l.b16 %v308
    %v1075 = vunpack.c.h.b16 %v308
    %v1076 = vunpack.c.l.b16 %v309
    %v1077 = vunpack.c.h.b16 %v309
    %v1078 = vunpack.c.l.b16 %v310
    %v1079 = vunpack.c.h.b16 %v310
    %v1080 = vunpack.c.l.b16 %v311
    %v1081 = vunpack.c.h.b16 %v311
    %v1082 = vunpack.c.l.b16 %v312
    %v1083 = vunpack.c.h.b16 %v312
    %v1084 = vunpack.c.l.b16 %v313
    %v1085 = vunpack.c.h.b16 %v313
    %v1086 = vunpack.c.l.b16 %v314
    %v1087 = vunpack.c.h.b16 %v314
    %v1088 = vunpack.c.l.b16 %v315
    %v1089 = vunpack.c.h.b16 %v315
    %v1090 = vunpack.c.l.b16 %v316
    %v1091 = vunpack.c.h.b16 %v316
    %v1092 = vunpack.c.l.b16 %v317
    %v1093 = vunpack.c.h.b16 %v317
    %v1094 = vunpack.c.l.b16 %v318
    %v1095 = vunpack.c.h.b16 %v318
    %v1096 = vunpack.c.l.b16 %v319
    %v1097 = vunpack.c.h.b16 %v319
    %v1098 = vunpack.c.l.b16 %v320
    %v1099 = vunpack.c.h.b16 %v320
    %v1100 = vunpack.c.l.b16 %v321
    %v1101 = vunpack.c.h.b16 %v321
    %v1102 = vunpack.c.l.b16 %v322
    %v1103 = vunpack.c.h.b16 %v322
    %v1104 = vunpack.c.l.b16 %v323
    %v1105 = vunpack.c.h.b16 %v323
    %v1106 = vunpack.c.l.b16 %v324
    %v1107 = vunpack.c.h.b16 %v324
    %v1108 = vunpack.c.l.b16 %v325
    %v1109 = vunpack.c.h.b16 %v325
    %v1110 = vunpack.c.l.b16 %v326
    %v1111 = vunpack.c.h.b16 %v326
    %v1112 = vunpack.c.l.b16 %v327
    %v1113 = vunpack.c.h.b16 %v327
    %v1114 = vunpack.c.l.b16 %v328
    %v1115 = vunpack.c.h.b16 %v328
    %v1116 = vunpack.c.l.b16 %v329
    %v1117 = vunpack.c.h.b16 %v329
    %v1118 = vunpack.c.l.b16 %v330
    %v1119 = vunpack.c.h.b16 %v330
    %v1120 = vunpack.c.l.b16 %v331
    %v1121 = vunpack.c.h.b16 %v331
    %v1122 = vpack.c.b16 %v614, %v610
    %v1123 = vpack.c.b16 %v615, %v611
    %v1124 = vpack.c.b16 %v616, %v612
    %v1125 = vpack.c.b16 %v617, %v613
    %v1126 = vpack.c.b16 %v622, %v618
    %v1127 = vpack.c.b16 %v623, %v619
    %v1128 = vpack.c.b16 %v624, %v620
    %v1129 = vpack.c.b16 %v625, %v621
    %v1130 = vpack.c.b16 %v630, %v626
    %v1131 = vpack.c.b16 %v631, %v627
    %v1132 = vpack.c.b16 %v632, %v628
    %v1133 = vpack.c.b16 %v633, %v629
    %v1134 = vpack.c.b16 %v638, %v634
    %v1135 = vpack.c.b16 %v639, %v635
    %v1136 = vpack.c.b16 %v640, %v636
    %v1137 = vpack.c.b16 %v641, %v637
    %v1138 = vpack.c.b16 %v646, %v642
    %v1139 = vpack.c.b16 %v647, %v643
    %v1140 = vpack.c.b16 %v648, %v644
    %v1141 = vpack.c.b16 %v649, %v645
    %v1142 = vpack.c.b16 %v654, %v650
    %v1143 = vpack.c.b16 %v655, %v651
    %v1144 = vpack.c.b16 %v656, %v652
    %v1145 = vpack.c.b16 %v657, %v653
    %v1146 = vpack.c.b16 %v662, %v658
    %v1147 = vpack.c.b16 %v663, %v659
    %v1148 = vpack.c.b16 %v664, %v660
    %v1149 = vpack.c.b16 %v665, %v661
    %v1150 = vpack.c.b16 %v670, %v666
    %v1151 = vpack.c.b16 %v671, %v667
    %v1152 = vpack.c.b16 %v672, %v668
    %v1153 = vpack.c.b16 %v673, %v669
    %v1154 = vpack.c.b16 %v678, %v674
    %v1155 = vpack.c.b16 %v679, %v675
    %v1156 = vpack.c.b16 %v680, %v676
    %v1157 = vpack.c.b16 %v681, %v677
    %v1158 = vpack.c.b16 %v686, %v682
    %v1159 = vpack.c.b16 %v687, %v683
    %v1160 = vpack.c.b16 %v688, %v684
    %v1161 = vpack.c.b16 %v689, %v685
    %v1162 = vpack.c.b16 %v694, %v690
    %v1163 = vpack.c.b16 %v695, %v691
    %v1164 = vpack.c.b16 %v696, %v692
    %v1165 = vpack.c.b16 %v697, %v693
    %v1166 = vpack.c.b16 %v702, %v698
    %v1167 = vpack.c.b16 %v703, %v699
    %v1168 = vpack.c.b16 %v704, %v700
    %v1169 = vpack.c.b16 %v705, %v701
    %v1170 = vpack.c.b16 %v710, %v706
    %v1171 = vpack.c.b16 %v711, %v707
    %v1172 = vpack.c.b16 %v712, %v708
    %v1173 = vpack.c.b16 %v713, %v709
    %v1174 = vpack.c.b16 %v718, %v714
    %v1175 = vpack.c.b16 %v719, %v715
    %v1176 = vpack.c.b16 %v720, %v716
    %v1177 = vpack.c.b16 %v721, %v717
    %v1178 = vpack.c.b16 %v726, %v722
    %v1179 = vpack.c.b16 %v727, %v723
    %v1180 = vpack.c.b16 %v728, %v724
    %v1181 = vpack.c.b16 %v729, %v725
    %v1182 = vpack.c.b16 %v734, %v730
    %v1183 = vpack.c.b16 %v735, %v731
    %v1184 = vpack.c.b16 %v736, %v732
    %v1185 = vpack.c.b16 %v737, %v733
    %v1186 = vpack.c.b16 %v742, %v738
    %v1187 = vpack.c.b16 %v743, %v739
    %v1188 = vpack.c.b16 %v744, %v740
    %v1189 = vpack.c.b16 %v745, %v741
    %v1190 = vpack.c.b16 %v750, %v746
    %v1191 = vpack.c.b16 %v751, %v747
    %v1192 = vpack.c.b16 %v752, %v748
    %v1193 = vpack.c.b16 %v753, %v749
    %v1194 = vpack.c.b16 %v758, %v754
    %v1195 = vpack.c.b16 %v759, %v755
    %v1196 = vpack.c.b16 %v760, %v756
    %v1197 = vpack.c.b16 %v761, %v757
    %v1198 = vpack.c.b16 %v766, %v762
    %v1199 = vpack.c.b16 %v767, %v763
    %v1200 = vpack.c.b16 %v768, %v764
    %v1201 = vpack.c.b16 %v769, %v765
    %v1202 = vpack.c.b16 %v774, %v770
    %v1203 = vpack.c.b16 %v775, %v771
    %v1204 = vpack.c.b16 %v776, %v772
    %v1205 = vpack.c.b16 %v777, %v773
    %v1206 = vpack.c.b16 %v782, %v778
    %v1207 = vpack.c.b16 %v783, %v779
    %v1208 = vpack.c.b16 %v784, %v780
    %v1209 = vpack.c.b16 %v785, %v781
    %v1210 = vpack.c.b16 %v790, %v786
    %v1211 = vpack.c.b16 %v791, %v787
    %v1212 = vpack.c.b16 %v792, %v788
    %v1213 = vpack.c.b16 %v793, %v789
    %v1214 = vpack.c.b16 %v798, %v794
    %v1215 = vpack.c.b16 %v799, %v795
    %v1216 = vpack.c.b16 %v800, %v796
    %v1217 = vpack.c.b16 %v801, %v797
    %v1218 = vpack.c.b16 %v806, %v802
    %v1219 = vpack.c.b16 %v807, %v803
    %v1220 = vpack.c.b16 %v808, %v804
    %v1221 = vpack.c.b16 %v809, %v805
    %v1222 = vpack.c.b16 %v814, %v810
    %v1223 = vpack.c.b16 %v815, %v811
    %v1224 = vpack.c.b16 %v816, %v812
    %v1225 = vpack.c.b16 %v817, %v813
    %v1226 = vpack.c.b16 %v822, %v818
    %v1227 = vpack.c.b16 %v823, %v819
    %v1228 = vpack.c.b16 %v824, %v820
    %v1229 = vpack.c.b16 %v825, %v821
    %v1230 = vpack.c.b16 %v830, %v826
    %v1231 = vpack.c.b16 %v831, %v827
    %v1232 = vpack.c.b16 %v832, %v828
    %v1233 = vpack.c.b16 %v833, %v829
    %v1234 = vpack.c.b16 %v838, %v834
    %v1235 = vpack.c.b16 %v839, %v835
    %v1236 = vpack.c.b16 %v840, %v836
    %v1237 = vpack.c.b16 %v841, %v837
    %v1238 = vpack.c.b16 %v846, %v842
    %v1239 = vpack.c.b16 %v847, %v843
    %v1240 = vpack.c.b16 %v848, %v844
    %v1241 = vpack.c.b16 %v849, %v845
    %v1242 = vpack.c.b16 %v854, %v850
    %v1243 = vpack.c.b16 %v855, %v851
    %v1244 = vpack.c.b16 %v856, %v852
    %v1245 = vpack.c.b16 %v857, %v853
    %v1246 = vpack.c.b16 %v862, %v858
    %v1247 = vpack.c.b16 %v863, %v859
    %v1248 = vpack.c.b16 %v864, %v860
    %v1249 = vpack.c.b16 %v865, %v861
    %v1250 = vpack.c.b16 %v870, %v866
    %v1251 = vpack.c.b16 %v871, %v867
    %v1252 = vpack.c.b16 %v872, %v868
    %v1253 = vpack.c.b16 %v873, %v869
    %v1254 = vpack.c.b16 %v878, %v874
    %v1255 = vpack.c.b16 %v879, %v875
    %v1256 = vpack.c.b16 %v880, %v876
    %v1257 = vpack.c.b16 %v881, %v877
    %v1258 = vpack.c.b16 %v886, %v882
    %v1259 = vpack.c.b16 %v887, %v883
    %v1260 = vpack.c.b16 %v888, %v884
    %v1261 = vpack.c.b16 %v889, %v885
    %v1262 = vpack.c.b16 %v894, %v890
    %v1263 = vpack.c.b16 %v895, %v891
    %v1264 = vpack.c.b16 %v896, %v892
    %v1265 = vpack.c.b16 %v897, %v893
    %v1266 = vpack.c.b16 %v902, %v898
    %v1267 = vpack.c.b16 %v903, %v899
    %v1268 = vpack.c.b16 %v904, %v900
    %v1269 = vpack.c.b16 %v905, %v901
    %v1270 = vpack.c.b16 %v910, %v906
    %v1271 = vpack.c.b16 %v911, %v907
    %v1272 = vpack.c.b16 %v912, %v908
    %v1273 = vpack.c.b16 %v913, %v909
    %v1274 = vpack.c.b16 %v918, %v914
    %v1275 = vpack.c.b16 %v919, %v915
    %v1276 = vpack.c.b16 %v920, %v916
    %v1277 = vpack.c.b16 %v921, %v917
    %v1278 = vpack.c.b16 %v926, %v922
    %v1279 = vpack.c.b16 %v927, %v923
    %v1280 = vpack.c.b16 %v928, %v924
    %v1281 = vpack.c.b16 %v929, %v925
    %v1282 = vpack.c.b16 %v934, %v930
    %v1283 = vpack.c.b16 %v935, %v931
    %v1284 = vpack.c.b16 %v936, %v932
    %v1285 = vpack.c.b16 %v937, %v933
    %v1286 = vpack.c.b16 %v942, %v938
    %v1287 = vpack.c.b16 %v943, %v939
    %v1288 = vpack.c.b16 %v944, %v940
    %v1289 = vpack.c.b16 %v945, %v941
    %v1290 = vpack.c.b16 %v950, %v946
    %v1291 = vpack.c.b16 %v951, %v947
    %v1292 = vpack.c.b16 %v952, %v948
    %v1293 = vpack.c.b16 %v953, %v949
    %v1294 = vpack.c.b16 %v958, %v954
    %v1295 = vpack.c.b16 %v959, %v955
    %v1296 = vpack.c.b16 %v960, %v956
    %v1297 = vpack.c.b16 %v961, %v957
    %v1298 = vpack.c.b16 %v966, %v962
    %v1299 = vpack.c.b16 %v967, %v963
    %v1300 = vpack.c.b16 %v968, %v964
    %v1301 = vpack.c.b16 %v969, %v965
    %v1302 = vpack.c.b16 %v974, %v970
    %v1303 = vpack.c.b16 %v975, %v971
    %v1304 = vpack.c.b16 %v976, %v972
    %v1305 = vpack.c.b16 %v977, %v973
    %v1306 = vpack.c.b16 %v982, %v978
    %v1307 = vpack.c.b16 %v983, %v979
    %v1308 = vpack.c.b16 %v984, %v980
    %v1309 = vpack.c.b16 %v985, %v981
    %v1310 = vpack.c.b16 %v990, %v986
    %v1311 = vpack.c.b16 %v991, %v987
    %v1312 = vpack.c.b16 %v992, %v988
    %v1313 = vpack.c.b16 %v993, %v989
    %v1314 = vpack.c.b16 %v998, %v994
    %v1315 = vpack.c.b16 %v999, %v995
    %v1316 = vpack.c.b16 %v1000, %v996
    %v1317 = vpack.c.b16 %v1001, %v997
    %v1318 = vpack.c.b16 %v1006, %v1002
    %v1319 = vpack.c.b16 %v1007, %v1003
    %v1320 = vpack.c.b16 %v1008, %v1004
    %v1321 = vpack.c.b16 %v1009, %v1005
    %v1322 = vpack.c.b16 %v1014, %v1010
    %v1323 = vpack.c.b16 %v1015, %v1011
    %v1324 = vpack.c.b16 %v1016, %v1012
    %v1325 = vpack.c.b16 %v1017, %v1013
    %v1326 = vpack.c.b16 %v1022, %v1018
    %v1327 = vpack.c.b16 %v1023, %v1019
    %v1328 = vpack.c.b16 %v1024, %v1020
    %v1329 = vpack.c.b16 %v1025, %v1021
    %v1330 = vpack.c.b16 %v1030, %v1026
    %v1331 = vpack.c.b16 %v1031, %v1027
    %v1332 = vpack.c.b16 %v1032, %v1028
    %v1333 = vpack.c.b16 %v1033, %v1029
    %v1334 = vpack.c.b16 %v1038, %v1034
    %v1335 = vpack.c.b16 %v1039, %v1035
    %v1336 = vpack.c.b16 %v1040, %v1036
    %v1337 = vpack.c.b16 %v1041, %v1037
    %v1338 = vpack.c.b16 %v1046, %v1042
    %v1339 = vpack.c.b16 %v1047, %v1043
    %v1340 = vpack.c.b16 %v1048, %v1044
    %v1341 = vpack.c.b16 %v1049, %v1045
    %v1342 = vpack.c.b16 %v1054, %v1050
    %v1343 = vpack.c.b16 %v1055, %v1051
    %v1344 = vpack.c.b16 %v1056, %v1052
    %v1345 = vpack.c.b16 %v1057, %v1053
    %v1346 = vpack.c.b16 %v1062, %v1058
    %v1347 = vpack.c.b16 %v1063, %v1059
    %v1348 = vpack.c.b16 %v1064, %v1060
    %v1349 = vpack.c.b16 %v1065, %v1061
    %v1350 = vpack.c.b16 %v1070, %v1066
    %v1351 = vpack.c.b16 %v1071, %v1067
    %v1352 = vpack.c.b16 %v1072, %v1068
    %v1353 = vpack.c.b16 %v1073, %v1069
    %v1354 = vpack.c.b16 %v1078, %v1074
    %v1355 = vpack.c.b16 %v1079, %v1075
    %v1356 = vpack.c.b16 %v1080, %v1076
    %v1357 = vpack.c.b16 %v1081, %v1077
    %v1358 = vpack.c.b16 %v1086, %v1082
    %v1359 = vpack.c.b16 %v1087, %v1083
    %v1360 = vpack.c.b16 %v1088, %v1084
    %v1361 = vpack.c.b16 %v1089, %v1085
    %v1362 = vpack.c.b16 %v1094, %v1090
    %v1363 = vpack.c.b16 %v1095, %v1091
    %v1364 = vpack.c.b16 %v1096, %v1092
    %v1365 = vpack.c.b16 %v1097, %v1093
    %v1366 = vpack.c.b16 %v1102, %v1098
    %v1367 = vpack.c.b16 %v1103, %v1099
    %v1368 = vpack.c.b16 %v1104, %v1100
    %v1369 = vpack.c.b16 %v1105, %v1101
    %v1370 = vpack.c.b16 %v1110, %v1106
    %v1371 = vpack.c.b16 %v1111, %v1107
    %v1372 = vpack.c.b16 %v1112, %v1108
    %v1373 = vpack.c.b16 %v1113, %v1109
    %v1374 = vpack.c.b16 %v1118, %v1114
    %v1375 = vpack.c.b16 %v1119, %v1115
    %v1376 = vpack.c.b16 %v1120, %v1116
    %v1377 = vpack.c.b16 %v1121, %v1117
    %1634 = vmatprep.subr.bf16.mxu0 %v1123
    %1635 = vmatpush1.bf16.msra.mxu0 %v1122
    %1636 = vmatprep.subr.bf16.mxu0 %v1127
    %1637 = vmatpush1.bf16.msra.mxu0 %v1126
    %1638 = vmatprep.subr.bf16.mxu0 %v1131
    %1639 = vmatpush1.bf16.msra.mxu0 %v1130
    %1640 = vmatprep.subr.bf16.mxu0 %v1135
    %1641 = vmatpush1.bf16.msra.mxu0 %v1134
    %1642 = vmatprep.subr.bf16.mxu0 %v1139
    %1643 = vmatpush1.bf16.msra.mxu0 %v1138
    %1644 = vmatprep.subr.bf16.mxu0 %v1143
    %1645 = vmatpush1.bf16.msra.mxu0 %v1142
    %1646 = vmatprep.subr.bf16.mxu0 %v1147
    %1647 = vmatpush1.bf16.msra.mxu0 %v1146
    %1648 = vmatprep.subr.bf16.mxu0 %v1151
    %1649 = vmatpush1.bf16.msra.mxu0 %v1150
    %1650 = vmatprep.subr.bf16.mxu0 %v1155
    %1651 = vmatpush1.bf16.msra.mxu0 %v1154
    %1652 = vmatprep.subr.bf16.mxu0 %v1159
    %1653 = vmatpush1.bf16.msra.mxu0 %v1158
    %1654 = vmatprep.subr.bf16.mxu0 %v1163
    %1655 = vmatpush1.bf16.msra.mxu0 %v1162
    %1656 = vmatprep.subr.bf16.mxu0 %v1167
    %1657 = vmatpush1.bf16.msra.mxu0 %v1166
    %1658 = vmatprep.subr.bf16.mxu0 %v1171
    %1659 = vmatpush1.bf16.msra.mxu0 %v1170
    %1660 = vmatprep.subr.bf16.mxu0 %v1175
    %1661 = vmatpush1.bf16.msra.mxu0 %v1174
    %1662 = vmatprep.subr.bf16.mxu0 %v1179
    %1663 = vmatpush1.bf16.msra.mxu0 %v1178
    %1664 = vmatprep.subr.bf16.mxu0 %v1183
    %1665 = vmatpush1.bf16.msra.mxu0 %v1182
    %1666 = vmatprep.mubr.bf16.mxu0 %v69
    %1667 = vmatmul.mubr.bf16.gmra.mrb[0].mxu0 %v68
    %v1668 = vpop.f32.mrb[0].mxu0
    %v1669 = vadd.f32 %v337, %v1668
    %v1670 = vpop.f32.mrb[0].mxu0
    %v1671 = vadd.f32 %v341, %v1670
    %v1672 = vpop.f32.mrb[0].mxu0
    %v1673 = vpop.f32.mrb[0].mxu0
    %1674 = vdwg.mxu0
    %1675 = vmatprep.subr.bf16.mxu0 %v1187
    %1676 = vmatpush1.bf16.msra.mxu0 %v1186
    %1677 = vmatprep.subr.bf16.mxu0 %v1191
    %1678 = vmatpush1.bf16.msra.mxu0 %v1190
    %1679 = vmatprep.subr.bf16.mxu0 %v1195
    %1680 = vmatpush1.bf16.msra.mxu0 %v1194
    %1681 = vmatprep.subr.bf16.mxu0 %v1199
    %1682 = vmatpush1.bf16.msra.mxu0 %v1198
    %1683 = vmatprep.subr.bf16.mxu0 %v1203
    %1684 = vmatpush1.bf16.msra.mxu0 %v1202
    %1685 = vmatprep.subr.bf16.mxu0 %v1207
    %1686 = vmatpush1.bf16.msra.mxu0 %v1206
    %1687 = vmatprep.subr.bf16.mxu0 %v1211
    %1688 = vmatpush1.bf16.msra.mxu0 %v1210
    %1689 = vmatprep.subr.bf16.mxu0 %v1215
    %1690 = vmatpush1.bf16.msra.mxu0 %v1214
    %1691 = vmatprep.subr.bf16.mxu0 %v1219
    %1692 = vmatpush1.bf16.msra.mxu0 %v1218
    %1693 = vmatprep.subr.bf16.mxu0 %v1223
    %1694 = vmatpush1.bf16.msra.mxu0 %v1222
    %1695 = vmatprep.subr.bf16.mxu0 %v1227
    %1696 = vmatpush1.bf16.msra.mxu0 %v1226
    %1697 = vmatprep.subr.bf16.mxu0 %v1231
    %1698 = vmatpush1.bf16.msra.mxu0 %v1230
    %1699 = vmatprep.subr.bf16.mxu0 %v1235
    %1700 = vmatpush1.bf16.msra.mxu0 %v1234
    %1701 = vmatprep.subr.bf16.mxu0 %v1239
    %1702 = vmatpush1.bf16.msra.mxu0 %v1238
    %1703 = vmatprep.subr.bf16.mxu0 %v1243
    %1704 = vmatpush1.bf16.msra.mxu0 %v1242
    %1705 = vmatprep.subr.bf16.mxu0 %v1247
    %1706 = vmatpush1.bf16.msra.mxu0 %v1246
    %1707 = vmatprep.mubr.bf16.mxu0 %v71
    %1708 = vmatmul.mubr.bf16.gmra.mrb[0].mxu0 %v70
    %v1709 = vpop.f32.mrb[0].mxu0
    %v1710 = vadd.f32 %v1669, %v1709
    %v1711 = vpop.f32.mrb[0].mxu0
    %v1712 = vadd.f32 %v1671, %v1711
    %v1713 = vpop.f32.mrb[0].mxu0
    %v1714 = vpop.f32.mrb[0].mxu0
    %1715 = vdwg.mxu0
    %1716 = vmatprep.subr.bf16.mxu0 %v1251
    %1717 = vmatpush1.bf16.msra.mxu0 %v1250
    %1718 = vmatprep.subr.bf16.mxu0 %v1255
    %1719 = vmatpush1.bf16.msra.mxu0 %v1254
    %1720 = vmatprep.subr.bf16.mxu0 %v1259
    %1721 = vmatpush1.bf16.msra.mxu0 %v1258
    %1722 = vmatprep.subr.bf16.mxu0 %v1263
    %1723 = vmatpush1.bf16.msra.mxu0 %v1262
    %1724 = vmatprep.subr.bf16.mxu0 %v1267
    %1725 = vmatpush1.bf16.msra.mxu0 %v1266
    %1726 = vmatprep.subr.bf16.mxu0 %v1271
    %1727 = vmatpush1.bf16.msra.mxu0 %v1270
    %1728 = vmatprep.subr.bf16.mxu0 %v1275
    %1729 = vmatpush1.bf16.msra.mxu0 %v1274
    %1730 = vmatprep.subr.bf16.mxu0 %v1279
    %1731 = vmatpush1.bf16.msra.mxu0 %v1278
    %1732 = vmatprep.subr.bf16.mxu0 %v1283
    %1733 = vmatpush1.bf16.msra.mxu0 %v1282
    %1734 = vmatprep.subr.bf16.mxu0 %v1287
    %1735 = vmatpush1.bf16.msra.mxu0 %v1286
    %1736 = vmatprep.subr.bf16.mxu0 %v1291
    %1737 = vmatpush1.bf16.msra.mxu0 %v1290
    %1738 = vmatprep.subr.bf16.mxu0 %v1295
    %1739 = vmatpush1.bf16.msra.mxu0 %v1294
    %1740 = vmatprep.subr.bf16.mxu0 %v1299
    %1741 = vmatpush1.bf16.msra.mxu0 %v1298
    %1742 = vmatprep.subr.bf16.mxu0 %v1303
    %1743 = vmatpush1.bf16.msra.mxu0 %v1302
    %1744 = vmatprep.subr.bf16.mxu0 %v1307
    %1745 = vmatpush1.bf16.msra.mxu0 %v1306
    %1746 = vmatprep.subr.bf16.mxu0 %v1311
    %1747 = vmatpush1.bf16.msra.mxu0 %v1310
    %1748 = vmatprep.mubr.bf16.mxu0 %v73
    %1749 = vmatmul.mubr.bf16.gmra.mrb[0].mxu0 %v72
    %v1750 = vpop.f32.mrb[0].mxu0
    %v1751 = vadd.f32 %v1710, %v1750
    %v1752 = vpop.f32.mrb[0].mxu0
    %v1753 = vadd.f32 %v1712, %v1752
    %v1754 = vpop.f32.mrb[0].mxu0
    %v1755 = vpop.f32.mrb[0].mxu0
    %1756 = vdwg.mxu0
    %1757 = vmatprep.subr.bf16.mxu0 %v1315
    %1758 = vmatpush1.bf16.msra.mxu0 %v1314
    %1759 = vmatprep.subr.bf16.mxu0 %v1319
    %1760 = vmatpush1.bf16.msra.mxu0 %v1318
    %1761 = vmatprep.subr.bf16.mxu0 %v1323
    %1762 = vmatpush1.bf16.msra.mxu0 %v1322
    %1763 = vmatprep.subr.bf16.mxu0 %v1327
    %1764 = vmatpush1.bf16.msra.mxu0 %v1326
    %1765 = vmatprep.subr.bf16.mxu0 %v1331
    %1766 = vmatpush1.bf16.msra.mxu0 %v1330
    %1767 = vmatprep.subr.bf16.mxu0 %v1335
    %1768 = vmatpush1.bf16.msra.mxu0 %v1334
    %1769 = vmatprep.subr.bf16.mxu0 %v1339
    %1770 = vmatpush1.bf16.msra.mxu0 %v1338
    %1771 = vmatprep.subr.bf16.mxu0 %v1343
    %1772 = vmatpush1.bf16.msra.mxu0 %v1342
    %1773 = vmatprep.subr.bf16.mxu0 %v1347
    %1774 = vmatpush1.bf16.msra.mxu0 %v1346
    %1775 = vmatprep.subr.bf16.mxu0 %v1351
    %1776 = vmatpush1.bf16.msra.mxu0 %v1350
    %1777 = vmatprep.subr.bf16.mxu0 %v1355
    %1778 = vmatpush1.bf16.msra.mxu0 %v1354
    %1779 = vmatprep.subr.bf16.mxu0 %v1359
    %1780 = vmatpush1.bf16.msra.mxu0 %v1358
    %1781 = vmatprep.subr.bf16.mxu0 %v1363
    %1782 = vmatpush1.bf16.msra.mxu0 %v1362
    %1783 = vmatprep.subr.bf16.mxu0 %v1367
    %1784 = vmatpush1.bf16.msra.mxu0 %v1366
    %1785 = vmatprep.subr.bf16.mxu0 %v1371
    %1786 = vmatpush1.bf16.msra.mxu0 %v1370
    %1787 = vmatprep.subr.bf16.mxu0 %v1375
    %1788 = vmatpush1.bf16.msra.mxu0 %v1374
    %1789 = vmatprep.mubr.bf16.mxu0 %v75
    %1790 = vmatmul.mubr.bf16.gmra.mrb[0].mxu0 %v74
    %v1791 = vpop.f32.mrb[0].mxu0
    %v1792 = vadd.f32 %v1751, %v1791
    %v1793 = vpop.f32.mrb[0].mxu0
    %v1794 = vadd.f32 %v1753, %v1793
    %v1795 = vpop.f32.mrb[0].mxu0
    %v1796 = vpop.f32.mrb[0].mxu0
    %1797 = vdwg.mxu0
    %1798 = vmatprep.subr.bf16.mxu0 %v1125
    %1799 = vmatpush1.bf16.msra.mxu0 %v1124
    %1800 = vmatprep.subr.bf16.mxu0 %v1129
    %1801 = vmatpush1.bf16.msra.mxu0 %v1128
    %1802 = vmatprep.subr.bf16.mxu0 %v1133
    %1803 = vmatpush1.bf16.msra.mxu0 %v1132
    %1804 = vmatprep.subr.bf16.mxu0 %v1137
    %1805 = vmatpush1.bf16.msra.mxu0 %v1136
    %1806 = vmatprep.subr.bf16.mxu0 %v1141
    %1807 = vmatpush1.bf16.msra.mxu0 %v1140
    %1808 = vmatprep.subr.bf16.mxu0 %v1145
    %1809 = vmatpush1.bf16.msra.mxu0 %v1144
    %1810 = vmatprep.subr.bf16.mxu0 %v1149
    %1811 = vmatpush1.bf16.msra.mxu0 %v1148
    %1812 = vmatprep.subr.bf16.mxu0 %v1153
    %1813 = vmatpush1.bf16.msra.mxu0 %v1152
    %1814 = vmatprep.subr.bf16.mxu0 %v1157
    %1815 = vmatpush1.bf16.msra.mxu0 %v1156
    %1816 = vmatprep.subr.bf16.mxu0 %v1161
    %1817 = vmatpush1.bf16.msra.mxu0 %v1160
    %1818 = vmatprep.subr.bf16.mxu0 %v1165
    %1819 = vmatpush1.bf16.msra.mxu0 %v1164
    %1820 = vmatprep.subr.bf16.mxu0 %v1169
    %1821 = vmatpush1.bf16.msra.mxu0 %v1168
    %1822 = vmatprep.subr.bf16.mxu0 %v1173
    %1823 = vmatpush1.bf16.msra.mxu0 %v1172
    %1824 = vmatprep.subr.bf16.mxu0 %v1177
    %1825 = vmatpush1.bf16.msra.mxu0 %v1176
    %1826 = vmatprep.subr.bf16.mxu0 %v1181
    %1827 = vmatpush1.bf16.msra.mxu0 %v1180
    %1828 = vmatprep.subr.bf16.mxu0 %v1185
    %1829 = vmatpush1.bf16.msra.mxu0 %v1184
    %1830 = vmatprep.mubr.bf16.mxu0 %v69
    %1831 = vmatmul.mubr.bf16.gmra.mrb[0].mxu0 %v68
    %v1832 = vpop.f32.mrb[0].mxu0
    %v1833 = vadd.f32 %v345, %v1832
    %v1834 = vpop.f32.mrb[0].mxu0
    %v1835 = vadd.f32 %v349, %v1834
    %v1836 = vpop.f32.mrb[0].mxu0
    %v1837 = vpop.f32.mrb[0].mxu0
    %1838 = vdwg.mxu0
    %1839 = vmatprep.subr.bf16.mxu0 %v1189
    %1840 = vmatpush1.bf16.msra.mxu0 %v1188
    %1841 = vmatprep.subr.bf16.mxu0 %v1193
    %1842 = vmatpush1.bf16.msra.mxu0 %v1192
    %1843 = vmatprep.subr.bf16.mxu0 %v1197
    %1844 = vmatpush1.bf16.msra.mxu0 %v1196
    %1845 = vmatprep.subr.bf16.mxu0 %v1201
    %1846 = vmatpush1.bf16.msra.mxu0 %v1200
    %1847 = vmatprep.subr.bf16.mxu0 %v1205
    %1848 = vmatpush1.bf16.msra.mxu0 %v1204
    %1849 = vmatprep.subr.bf16.mxu0 %v1209
    %1850 = vmatpush1.bf16.msra.mxu0 %v1208
    %1851 = vmatprep.subr.bf16.mxu0 %v1213
    %1852 = vmatpush1.bf16.msra.mxu0 %v1212
    %1853 = vmatprep.subr.bf16.mxu0 %v1217
    %1854 = vmatpush1.bf16.msra.mxu0 %v1216
    %1855 = vmatprep.subr.bf16.mxu0 %v1221
    %1856 = vmatpush1.bf16.msra.mxu0 %v1220
    %1857 = vmatprep.subr.bf16.mxu0 %v1225
    %1858 = vmatpush1.bf16.msra.mxu0 %v1224
    %1859 = vmatprep.subr.bf16.mxu0 %v1229
    %1860 = vmatpush1.bf16.msra.mxu0 %v1228
    %1861 = vmatprep.subr.bf16.mxu0 %v1233
    %1862 = vmatpush1.bf16.msra.mxu0 %v1232
    %1863 = vmatprep.subr.bf16.mxu0 %v1237
    %1864 = vmatpush1.bf16.msra.mxu0 %v1236
    %1865 = vmatprep.subr.bf16.mxu0 %v1241
    %1866 = vmatpush1.bf16.msra.mxu0 %v1240
    %1867 = vmatprep.subr.bf16.mxu0 %v1245
    %1868 = vmatpush1.bf16.msra.mxu0 %v1244
    %1869 = vmatprep.subr.bf16.mxu0 %v1249
    %1870 = vmatpush1.bf16.msra.mxu0 %v1248
    %1871 = vmatprep.mubr.bf16.mxu0 %v71
    %1872 = vmatmul.mubr.bf16.gmra.mrb[0].mxu0 %v70
    %v1873 = vpop.f32.mrb[0].mxu0
    %v1874 = vadd.f32 %v1833, %v1873
    %v1875 = vpop.f32.mrb[0].mxu0
    %v1876 = vadd.f32 %v1835, %v1875
    %v1877 = vpop.f32.mrb[0].mxu0
    %v1878 = vpop.f32.mrb[0].mxu0
    %1879 = vdwg.mxu0
    %1880 = vmatprep.subr.bf16.mxu0 %v1253
    %1881 = vmatpush1.bf16.msra.mxu0 %v1252
    %1882 = vmatprep.subr.bf16.mxu0 %v1257
    %1883 = vmatpush1.bf16.msra.mxu0 %v1256
    %1884 = vmatprep.subr.bf16.mxu0 %v1261
    %1885 = vmatpush1.bf16.msra.mxu0 %v1260
    %1886 = vmatprep.subr.bf16.mxu0 %v1265
    %1887 = vmatpush1.bf16.msra.mxu0 %v1264
    %1888 = vmatprep.subr.bf16.mxu0 %v1269
    %1889 = vmatpush1.bf16.msra.mxu0 %v1268
    %1890 = vmatprep.subr.bf16.mxu0 %v1273
    %1891 = vmatpush1.bf16.msra.mxu0 %v1272
    %1892 = vmatprep.subr.bf16.mxu0 %v1277
    %1893 = vmatpush1.bf16.msra.mxu0 %v1276
    %1894 = vmatprep.subr.bf16.mxu0 %v1281
    %1895 = vmatpush1.bf16.msra.mxu0 %v1280
    %1896 = vmatprep.subr.bf16.mxu0 %v1285
    %1897 = vmatpush1.bf16.msra.mxu0 %v1284
    %1898 = vmatprep.subr.bf16.mxu0 %v1289
    %1899 = vmatpush1.bf16.msra.mxu0 %v1288
    %1900 = vmatprep.subr.bf16.mxu0 %v1293
    %1901 = vmatpush1.bf16.msra.mxu0 %v1292
    %1902 = vmatprep.subr.bf16.mxu0 %v1297
    %1903 = vmatpush1.bf16.msra.mxu0 %v1296
    %1904 = vmatprep.subr.bf16.mxu0 %v1301
    %1905 = vmatpush1.bf16.msra.mxu0 %v1300
    %1906 = vmatprep.subr.bf16.mxu0 %v1305
    %1907 = vmatpush1.bf16.msra.mxu0 %v1304
    %1908 = vmatprep.subr.bf16.mxu0 %v1309
    %1909 = vmatpush1.bf16.msra.mxu0 %v1308
    %1910 = vmatprep.subr.bf16.mxu0 %v1313
    %1911 = vmatpush1.bf16.msra.mxu0 %v1312
    %1912 = vmatprep.mubr.bf16.mxu0 %v73
    %1913 = vmatmul.mubr.bf16.gmra.mrb[0].mxu0 %v72
    %v1914 = vpop.f32.mrb[0].mxu0
    %v1915 = vadd.f32 %v1874, %v1914
    %v1916 = vpop.f32.mrb[0].mxu0
    %v1917 = vadd.f32 %v1876, %v1916
    %v1918 = vpop.f32.mrb[0].mxu0
    %v1919 = vpop.f32.mrb[0].mxu0
    %1920 = vdwg.mxu0
    %1921 = vmatprep.subr.bf16.mxu0 %v1317
    %1922 = vmatpush1.bf16.msra.mxu0 %v1316
    %1923 = vmatprep.subr.bf16.mxu0 %v1321
    %1924 = vmatpush1.bf16.msra.mxu0 %v1320
    %1925 = vmatprep.subr.bf16.mxu0 %v1325
    %1926 = vmatpush1.bf16.msra.mxu0 %v1324
    %1927 = vmatprep.subr.bf16.mxu0 %v1329
    %1928 = vmatpush1.bf16.msra.mxu0 %v1328
    %1929 = vmatprep.subr.bf16.mxu0 %v1333
    %1930 = vmatpush1.bf16.msra.mxu0 %v1332
    %1931 = vmatprep.subr.bf16.mxu0 %v1337
    %1932 = vmatpush1.bf16.msra.mxu0 %v1336
    %1933 = vmatprep.subr.bf16.mxu0 %v1341
    %1934 = vmatpush1.bf16.msra.mxu0 %v1340
    %1935 = vmatprep.subr.bf16.mxu0 %v1345
    %1936 = vmatpush1.bf16.msra.mxu0 %v1344
    %1937 = vmatprep.subr.bf16.mxu0 %v1349
    %1938 = vmatpush1.bf16.msra.mxu0 %v1348
    %1939 = vmatprep.subr.bf16.mxu0 %v1353
    %1940 = vmatpush1.bf16.msra.mxu0 %v1352
    %1941 = vmatprep.subr.bf16.mxu0 %v1357
    %1942 = vmatpush1.bf16.msra.mxu0 %v1356
    %1943 = vmatprep.subr.bf16.mxu0 %v1361
    %1944 = vmatpush1.bf16.msra.mxu0 %v1360
    %1945 = vmatprep.subr.bf16.mxu0 %v1365
    %1946 = vmatpush1.bf16.msra.mxu0 %v1364
    %1947 = vmatprep.subr.bf16.mxu0 %v1369
    %1948 = vmatpush1.bf16.msra.mxu0 %v1368
    %1949 = vmatprep.subr.bf16.mxu0 %v1373
    %1950 = vmatpush1.bf16.msra.mxu0 %v1372
    %1951 = vmatprep.subr.bf16.mxu0 %v1377
    %1952 = vmatpush1.bf16.msra.mxu0 %v1376
    %1953 = vmatprep.mubr.bf16.mxu0 %v75
    %1954 = vmatmul.mubr.bf16.gmra.mrb[0].mxu0 %v74
    %v1955 = vpop.f32.mrb[0].mxu0
    %v1956 = vadd.f32 %v1915, %v1955
    %v1957 = vpop.f32.mrb[0].mxu0
    %v1958 = vadd.f32 %v1917, %v1957
    %v1959 = vpop.f32.mrb[0].mxu0
    %v1960 = vpop.f32.mrb[0].mxu0
    %1961 = vdwg.mxu0
    %v1962 = vmax.f32 %v1792, 0.0
    %v1963 = vmax.f32 %v1794, 0.0
    %v1964 = vmax.f32 %v1956, 0.0
    %v1965 = vmax.f32 %v1958, 0.0
    %v1966 = vpack.c.bf16 %v1962, %v1962
    %v1967 = vpack.c.bf16 %v1963, %v1963
    %v1968 = vpack.c.bf16 %v1964, %v1964
    %v1969 = vpack.c.bf16 %v1965, %v1965
    %v1970 = vld [vmem:[%s3] sm:$0xf]
    %v1971 = vld [vmem:[%s3 + $0x4] sm:$0xf]
    %v1972 = vld [vmem:[%s3 + $0x8] sm:$0xf]
    %v1973 = vld [vmem:[%s3 + $0xc] sm:$0xf]
    %v1974 = vld [vmem:[%s3 + $0x10] sm:$0xf]
    %v1975 = vld [vmem:[%s3 + $0x14] sm:$0xf]
    %v1976 = vld [vmem:[%s3 + $0x18] sm:$0xf]
    %v1977 = vld [vmem:[%s3 + $0x1c] sm:$0xf]
    %v1978 = vld [vmem:[%s3 + $0x20] sm:$0xf]
    %v1979 = vld [vmem:[%s3 + $0x24] sm:$0xf]
    %v1980 = vld [vmem:[%s3 + $0x28] sm:$0xf]
    %v1981 = vld [vmem:[%s3 + $0x2c] sm:$0xf]
    %v1982 = vld [vmem:[%s3 + $0x30] sm:$0xf]
    %v1983 = vld [vmem:[%s3 + $0x34] sm:$0xf]
    %v1984 = vld [vmem:[%s3 + $0x38] sm:$0xf]
    %v1985 = vld [vmem:[%s3 + $0x3c] sm:$0xf]
    %v1986 = vld [vmem:[%s3 + $0x40] sm:$0xf]
    %v1987 = vld [vmem:[%s3 + $0x44] sm:$0xf]
    %v1988 = vld [vmem:[%s3 + $0x48] sm:$0xf]
    %v1989 = vld [vmem:[%s3 + $0x4c] sm:$0xf]
    %v1990 = vld [vmem:[%s3 + $0x50] sm:$0xf]
    %v1991 = vld [vmem:[%s3 + $0x54] sm:$0xf]
    %v1992 = vld [vmem:[%s3 + $0x58] sm:$0xf]
    %v1993 = vld [vmem:[%s3 + $0x5c] sm:$0xf]
    %v1994 = vld [vmem:[%s3 + $0x60] sm:$0xf]
    %v1995 = vld [vmem:[%s3 + $0x64] sm:$0xf]
    %v1996 = vld [vmem:[%s3 + $0x68] sm:$0xf]
    %v1997 = vld [vmem:[%s3 + $0x6c] sm:$0xf]
    %v1998 = vld [vmem:[%s3 + $0x70] sm:$0xf]
    %v1999 = vld [vmem:[%s3 + $0x74] sm:$0xf]
    %v2000 = vld [vmem:[%s3 + $0x78] sm:$0xf]
    %v2001 = vld [vmem:[%s3 + $0x7c] sm:$0xf]
    %v2002 = vld [vmem:[%s3 + $0x80] sm:$0xf]
    %v2003 = vld [vmem:[%s3 + $0x84] sm:$0xf]
    %v2004 = vld [vmem:[%s3 + $0x88] sm:$0xf]
    %v2005 = vld [vmem:[%s3 + $0x8c] sm:$0xf]
    %v2006 = vld [vmem:[%s3 + $0x90] sm:$0xf]
    %v2007 = vld [vmem:[%s3 + $0x94] sm:$0xf]
    %v2008 = vld [vmem:[%s3 + $0x98] sm:$0xf]
    %v2009 = vld [vmem:[%s3 + $0x9c] sm:$0xf]
    %v2010 = vld [vmem:[%s3 + $0xa0] sm:$0xf]
    %v2011 = vld [vmem:[%s3 + $0xa4] sm:$0xf]
    %v2012 = vld [vmem:[%s3 + $0xa8] sm:$0xf]
    %v2013 = vld [vmem:[%s3 + $0xac] sm:$0xf]
    %v2014 = vld [vmem:[%s3 + $0xb0] sm:$0xf]
    %v2015 = vld [vmem:[%s3 + $0xb4] sm:$0xf]
    %v2016 = vld [vmem:[%s3 + $0xb8] sm:$0xf]
    %v2017 = vld [vmem:[%s3 + $0xbc] sm:$0xf]
    %v2018 = vld [vmem:[%s3 + $0xc0] sm:$0xf]
    %v2019 = vld [vmem:[%s3 + $0xc4] sm:$0xf]
    %v2020 = vld [vmem:[%s3 + $0xc8] sm:$0xf]
    %v2021 = vld [vmem:[%s3 + $0xcc] sm:$0xf]
    %v2022 = vld [vmem:[%s3 + $0xd0] sm:$0xf]
    %v2023 = vld [vmem:[%s3 + $0xd4] sm:$0xf]
    %v2024 = vld [vmem:[%s3 + $0xd8] sm:$0xf]
    %v2025 = vld [vmem:[%s3 + $0xdc] sm:$0xf]
    %v2026 = vld [vmem:[%s3 + $0xe0] sm:$0xf]
    %v2027 = vld [vmem:[%s3 + $0xe4] sm:$0xf]
    %v2028 = vld [vmem:[%s3 + $0xe8] sm:$0xf]
    %v2029 = vld [vmem:[%s3 + $0xec] sm:$0xf]
    %v2030 = vld [vmem:[%s3 + $0xf0] sm:$0xf]
    %v2031 = vld [vmem:[%s3 + $0xf4] sm:$0xf]
    %v2032 = vld [vmem:[%s3 + $0xf8] sm:$0x3]
    %v2033 = vld [vmem:[%s4] sm:$0x1]
    %v2035 = vlaneseq
    %v2036 = vshrl.u32 %v2035, 7
    %v2037 = vsub.s32 0, %v2036
    %v2038 = vrot.slane %v2033, %v2037
    %v2103 = vunpack.c.l.b16 %v1970
    %v2104 = vunpack.c.l.b16 %v1971
    %v2105 = vunpack.c.l.b16 %v1972
    %v2106 = vunpack.c.l.b16 %v1973
    %v2107 = vunpack.c.l.b16 %v1974
    %v2108 = vunpack.c.l.b16 %v1975
    %v2109 = vunpack.c.l.b16 %v1976
    %v2110 = vunpack.c.l.b16 %v1977
    %v2111 = vunpack.c.l.b16 %v1978
    %v2112 = vunpack.c.l.b16 %v1979
    %v2113 = vunpack.c.l.b16 %v1980
    %v2114 = vunpack.c.l.b16 %v1981
    %v2115 = vunpack.c.l.b16 %v1982
    %v2116 = vunpack.c.l.b16 %v1983
    %v2117 = vunpack.c.l.b16 %v1984
    %v2118 = vunpack.c.l.b16 %v1985
    %v2119 = vunpack.c.l.b16 %v1986
    %v2120 = vunpack.c.l.b16 %v1987
    %v2121 = vunpack.c.l.b16 %v1988
    %v2122 = vunpack.c.l.b16 %v1989
    %v2123 = vunpack.c.l.b16 %v1990
    %v2124 = vunpack.c.l.b16 %v1991
    %v2125 = vunpack.c.l.b16 %v1992
    %v2126 = vunpack.c.l.b16 %v1993
    %v2127 = vunpack.c.l.b16 %v1994
    %v2128 = vunpack.c.l.b16 %v1995
    %v2129 = vunpack.c.l.b16 %v1996
    %v2130 = vunpack.c.l.b16 %v1997
    %v2131 = vunpack.c.l.b16 %v1998
    %v2132 = vunpack.c.l.b16 %v1999
    %v2133 = vunpack.c.l.b16 %v2000
    %v2134 = vunpack.c.l.b16 %v2001
    %v2135 = vunpack.c.l.b16 %v2002
    %v2136 = vunpack.c.l.b16 %v2003
    %v2137 = vunpack.c.l.b16 %v2004
    %v2138 = vunpack.c.l.b16 %v2005
    %v2139 = vunpack.c.l.b16 %v2006
    %v2140 = vunpack.c.l.b16 %v2007
    %v2141 = vunpack.c.l.b16 %v2008
    %v2142 = vunpack.c.l.b16 %v2009
    %v2143 = vunpack.c.l.b16 %v2010
    %v2144 = vunpack.c.l.b16 %v2011
    %v2145 = vunpack.c.l.b16 %v2012
    %v2146 = vunpack.c.l.b16 %v2013
    %v2147 = vunpack.c.l.b16 %v2014
    %v2148 = vunpack.c.l.b16 %v2015
    %v2149 = vunpack.c.l.b16 %v2016
    %v2150 = vunpack.c.l.b16 %v2017
    %v2151 = vunpack.c.l.b16 %v2018
    %v2152 = vunpack.c.l.b16 %v2019
    %v2153 = vunpack.c.l.b16 %v2020
    %v2154 = vunpack.c.l.b16 %v2021
    %v2155 = vunpack.c.l.b16 %v2022
    %v2156 = vunpack.c.l.b16 %v2023
    %v2157 = vunpack.c.l.b16 %v2024
    %v2158 = vunpack.c.l.b16 %v2025
    %v2159 = vunpack.c.l.b16 %v2026
    %v2160 = vunpack.c.l.b16 %v2027
    %v2161 = vunpack.c.l.b16 %v2028
    %v2162 = vunpack.c.l.b16 %v2029
    %v2163 = vunpack.c.l.b16 %v2030
    %v2164 = vunpack.c.l.b16 %v2031
    %v2165 = vunpack.c.l.b16 %v2032
    %v2166 = vpack.c.b16 %v2104, %v2103
    %v2167 = vpack.c.b16 %v2106, %v2105
    %v2168 = vpack.c.b16 %v2108, %v2107
    %v2169 = vpack.c.b16 %v2110, %v2109
    %v2170 = vpack.c.b16 %v2112, %v2111
    %v2171 = vpack.c.b16 %v2114, %v2113
    %v2172 = vpack.c.b16 %v2116, %v2115
    %v2173 = vpack.c.b16 %v2118, %v2117
    %v2174 = vpack.c.b16 %v2120, %v2119
    %v2175 = vpack.c.b16 %v2122, %v2121
    %v2176 = vpack.c.b16 %v2124, %v2123
    %v2177 = vpack.c.b16 %v2126, %v2125
    %v2178 = vpack.c.b16 %v2128, %v2127
    %v2179 = vpack.c.b16 %v2130, %v2129
    %v2180 = vpack.c.b16 %v2132, %v2131
    %v2181 = vpack.c.b16 %v2134, %v2133
    %v2182 = vpack.c.b16 %v2136, %v2135
    %v2183 = vpack.c.b16 %v2138, %v2137
    %v2184 = vpack.c.b16 %v2140, %v2139
    %v2185 = vpack.c.b16 %v2142, %v2141
    %v2186 = vpack.c.b16 %v2144, %v2143
    %v2187 = vpack.c.b16 %v2146, %v2145
    %v2188 = vpack.c.b16 %v2148, %v2147
    %v2189 = vpack.c.b16 %v2150, %v2149
    %v2190 = vpack.c.b16 %v2152, %v2151
    %v2191 = vpack.c.b16 %v2154, %v2153
    %v2192 = vpack.c.b16 %v2156, %v2155
    %v2193 = vpack.c.b16 %v2158, %v2157
    %v2194 = vpack.c.b16 %v2160, %v2159
    %v2195 = vpack.c.b16 %v2162, %v2161
    %v2196 = vpack.c.b16 %v2164, %v2163
    %v2197 = vpack.c.b16 %v2165, %v2165
    %vm2229 = vcmask 949248
    %v2231 = vsel %vm2229, %v1969, 0
    %vm2233 = vcmask 1041408
    %v2235 = vsel %vm2233, %v2197, 0
    %2237 = vmatprep.subr.bf16.mxu0 0
    %2238 = vmatpush1.bf16.msra.mxu0 %v2166
    %2239 = vmatprep.subr.bf16.mxu0 0
    %2240 = vmatpush1.bf16.msra.mxu0 %v2167
    %2241 = vmatprep.subr.bf16.mxu0 0
    %2242 = vmatpush1.bf16.msra.mxu0 %v2168
    %2243 = vmatprep.subr.bf16.mxu0 0
    %2244 = vmatpush1.bf16.msra.mxu0 %v2169
    %2245 = vmatprep.subr.bf16.mxu0 0
    %2246 = vmatpush1.bf16.msra.mxu0 %v2170
    %2247 = vmatprep.subr.bf16.mxu0 0
    %2248 = vmatpush1.bf16.msra.mxu0 %v2171
    %2249 = vmatprep.subr.bf16.mxu0 0
    %2250 = vmatpush1.bf16.msra.mxu0 %v2172
    %2251 = vmatprep.subr.bf16.mxu0 0
    %2252 = vmatpush1.bf16.msra.mxu0 %v2173
    %2253 = vmatprep.subr.bf16.mxu0 0
    %2254 = vmatpush1.bf16.msra.mxu0 %v2174
    %2255 = vmatprep.subr.bf16.mxu0 0
    %2256 = vmatpush1.bf16.msra.mxu0 %v2175
    %2257 = vmatprep.subr.bf16.mxu0 0
    %2258 = vmatpush1.bf16.msra.mxu0 %v2176
    %2259 = vmatprep.subr.bf16.mxu0 0
    %2260 = vmatpush1.bf16.msra.mxu0 %v2177
    %2261 = vmatprep.subr.bf16.mxu0 0
    %2262 = vmatpush1.bf16.msra.mxu0 %v2178
    %2263 = vmatprep.subr.bf16.mxu0 0
    %2264 = vmatpush1.bf16.msra.mxu0 %v2179
    %2265 = vmatprep.subr.bf16.mxu0 0
    %2266 = vmatpush1.bf16.msra.mxu0 %v2180
    %2267 = vmatprep.subr.bf16.mxu0 0
    %2268 = vmatpush1.bf16.msra.mxu0 %v2181
    %2269 = vmatprep.mubr.bf16.mxu0 %v1967
    %2270 = vmatmul.mubr.bf16.gmra.mrb[0].mxu0 %v1966
    %v2271 = vpop.f32.mrb[0].mxu0
    %v2272 = vadd.f32 %v2038, %v2271
    %v2273 = vpop.f32.mrb[0].mxu0
    %v2274 = vpop.f32.mrb[0].mxu0
    %v2275 = vpop.f32.mrb[0].mxu0
    %2276 = vdwg.mxu0
    %2277 = vmatprep.subr.bf16.mxu0 0
    %2278 = vmatpush1.bf16.msra.mxu0 %v2182
    %2279 = vmatprep.subr.bf16.mxu0 0
    %2280 = vmatpush1.bf16.msra.mxu0 %v2183
    %2281 = vmatprep.subr.bf16.mxu0 0
    %2282 = vmatpush1.bf16.msra.mxu0 %v2184
    %2283 = vmatprep.subr.bf16.mxu0 0
    %2284 = vmatpush1.bf16.msra.mxu0 %v2185
    %2285 = vmatprep.subr.bf16.mxu0 0
    %2286 = vmatpush1.bf16.msra.mxu0 %v2186
    %2287 = vmatprep.subr.bf16.mxu0 0
    %2288 = vmatpush1.bf16.msra.mxu0 %v2187
    %2289 = vmatprep.subr.bf16.mxu0 0
    %2290 = vmatpush1.bf16.msra.mxu0 %v2188
    %2291 = vmatprep.subr.bf16.mxu0 0
    %2292 = vmatpush1.bf16.msra.mxu0 %v2189
    %2293 = vmatprep.subr.bf16.mxu0 0
    %2294 = vmatpush1.bf16.msra.mxu0 %v2190
    %2295 = vmatprep.subr.bf16.mxu0 0
    %2296 = vmatpush1.bf16.msra.mxu0 %v2191
    %2297 = vmatprep.subr.bf16.mxu0 0
    %2298 = vmatpush1.bf16.msra.mxu0 %v2192
    %2299 = vmatprep.subr.bf16.mxu0 0
    %2300 = vmatpush1.bf16.msra.mxu0 %v2193
    %2301 = vmatprep.subr.bf16.mxu0 0
    %2302 = vmatpush1.bf16.msra.mxu0 %v2194
    %2303 = vmatprep.subr.bf16.mxu0 0
    %2304 = vmatpush1.bf16.msra.mxu0 %v2195
    %2305 = vmatprep.subr.bf16.mxu0 0
    %2306 = vmatpush1.bf16.msra.mxu0 %v2196
    %2307 = vmatprep.subr.bf16.mxu0 0
    %2308 = vmatpush1.bf16.msra.mxu0 %v2235
    %2309 = vmatprep.mubr.bf16.mxu0 %v2231
    %2310 = vmatmul.mubr.bf16.gmra.mrb[0].mxu0 %v1968
    %v2311 = vpop.f32.mrb[0].mxu0
    %v2312 = vadd.f32 %v2272, %v2311
    %v2313 = vpop.f32.mrb[0].mxu0
    %v2314 = vpop.f32.mrb[0].mxu0
    %v2315 = vpop.f32.mrb[0].mxu0
    %2316 = vdwg.mxu0
    %vm2317 = vcmask 74752
    %2318 = vst.msk [vmem:[#allocation2] sm:$0x3] %vm2317, %v2312
    // Predicated region
    $region22: #{forward.3} parent=1 // pred_check
      _
    $region23: #{forward.3} parent=1 // pred_check_branch
      %2320 = sbr.rel (0) target = $region25
    $region24: #{forward.3} parent=1 // pred_region
      %s2322 = ssub.s32 32, 32
      %2323 = vsyncadd [#allocation3], %s2322
      %s2325 = sshll.u32 [#allocation2], 4
      %s2326 = int_to_ptr.vmem [resolvable:$true] %s2325
      %2328 = dma.vmem_to_hbm [thread:$0]  %s2326, 32, %s5, [#allocation3]
    $region25: #{forward.3} parent=1 // pred_fallthru
      _
    // Predicated region
    $region26: #{forward.3} parent=1 // pred_check
      _
    $region27: #{forward.3} parent=1 // pred_check_branch
      %2330 = sbr.rel (0) target = $region29
    $region28: #{forward.3} parent=1 // pred_region
      %2331 = dma.done [#allocation3], 32
    $region29: #{forward.3} parent=1 // pred_fallthru
      _
    %2332 = vsyncpa [#allocation3], 1

// kernel: forward.2
$region0: #{forward.2}
  #allocation0 [shape = 'u32[]', space=smem, size = 0x4, offset = 0x4, fixed_abs, tag = 'smem constant byte address 0x4 - core index']
  #allocation1 [shape = 'u32[144,128]{1,0:T(1,128)}', space=vmem, size = 0x12000, scoped, tag = 'internal scratch']
  %s0 = inlined_call_operand.vmem [shape: f32[2,4,7,28], index: 0, kind: input, shape index: {}]
  %s1 = inlined_call_operand.hbm [shape: bf16[5,28,512], index: 1, kind: input, shape index: {}]
  %s2 = inlined_call_operand.hbm [shape: f32[1,512], index: 2, kind: input, shape index: {}]
  %s3 = inlined_call_operand.hbm [shape: bf16[5,256,512], index: 3, kind: input, shape index: {}]
  %s4 = inlined_call_operand.hbm [shape: f32[1,512], index: 4, kind: input, shape index: {}]
  %s5 = inlined_call_operand.vmem [shape: f32[2,4,256], index: 5, kind: output, shape index: {}]
  %s6 = sld [smem:[#allocation0]]
  $region69: #{forward.2} parent=0
    _
  %s8 = ssub.s32 1, %s6
  %s9 = scalar_select 0, %s8, %s6
  $region1: #{forward.2} parent=0
    #allocation2 [shape = 'u8[163840]{0}', space=vmem, size = 0x28000, scoped, tag = 'input window, operand 1, single buffered']
    #allocation3 [shape = 's32[2]{0}', space=sflag, size = 0x8, scoped, tag = 'scoped memory for forward.2']
    #allocation4 [shape = 'u8[2048]{0}', space=vmem, size = 0x800, scoped, tag = 'input window, operand 2, single buffered']
    #allocation5 [shape = 's32[1]{0}', space=sflag, size = 0x4, scoped, tag = 'scoped memory for forward.2']
    #allocation6 [shape = 'u8[1310720]{0}', space=vmem, size = 0x140000, scoped, tag = 'input window, operand 3, single buffered']
    #allocation7 [shape = 'u8[2048]{0}', space=vmem, size = 0x800, scoped, tag = 'input window, operand 4, single buffered']
    #allocation8 [shape = 's32[1]{0}', space=sflag, size = 0x4, scoped, tag = 'scoped memory for forward.2']
    %10 = vsyncpa [#allocation3], 0
    %11 = vsyncpa [#allocation5], 0
    %12 = vsyncpa [#allocation8], 0
    loop: start=0, step=1, limit=4
    $region2: #{forward.2} parent=1 // loop_pre_header
      _
    $region3: #{forward.2} parent=1 // loop_header
      %s14 = sphi 0, %s18
      %p15 = scmp.ge.s32.totalorder %s14, 4
      %s24 = sphi 0, %s26
      %s27 = sphi 0, %s24
      %s28 = sphi 0, %s27
      %s44 = sphi 0, %s28
      %s48 = sphi 0, %s48
      %s50 = sphi 0, %s48
      %s51 = sphi 0, %s50
      %s65 = sphi 0, %s51
      %s69 = sphi 0, %s69
      %s71 = sphi 0, %s69
      %s72 = sphi 0, %s71
      %s86 = sphi 0, %s72
      %s90 = sphi 0, %s90
      %s92 = sphi 0, %s90
      %s93 = sphi 0, %s92
      %s107 = sphi 0, %s93
      %s111 = sphi 0, %s111
      %s113 = sphi 0, %s111
      %s114 = sphi 0, %s113
      %s128 = sphi 0, %s114
      %s134 = sphi 0, %s136
      %s137 = sphi 0, %s134
      %s138 = sphi 0, %s137
      %s154 = sphi 0, %s138
    $region4: #{forward.2} parent=1 // loop_header_branch
      %17 = sbr.rel (%p15) target = $region8
    $region5: #{forward.2} parent=1 // loop_body
      %s19 = ssub.s32 %s14, 1
      %s20 = ssub.s32 %s14, 2
      %s21 = sadd.s32 %s14, 1
      %s22 = ssub.s32 %s14, %s21
      %p23 = scmp.eq.s32.totalorder %s22, 0
      %s25 = sadd.s32 %s24, 1
      %s26 = scalar_select %p23, %s24, %s25
      %p29 = pneg %p23
      %p30 = scmp.eq.s32.totalorder %s14, 1
      %p31 = por %p29, %p30
      %p32 = scmp.ne.s32.totalorder %s24, %s27
      %p33 = scmp.eq.s32.totalorder %s14, 0
      %p34 = por %p32, %p33
      %p35 = scmp.ne.s32.totalorder %s24, %s27
      %p36 = scmp.eq.s32.totalorder %s19, 1
      %p37 = por %p35, %p36
      %p38 = scmp.ne.s32.totalorder %s27, %s28
      %p39 = scmp.eq.s32.totalorder %s19, 0
      %p40 = por %p38, %p39
      %p41 = scmp.ne.s32.totalorder %s27, %s28
      %p42 = scmp.eq.s32.totalorder %s20, 1
      %p43 = por %p41, %p42
      %p45 = scmp.ne.s32.totalorder %s28, %s44
      %p46 = scmp.eq.s32.totalorder %s20, 0
      %p47 = por %p45, %p46
      %s49 = sadd.s32 %s48, 1
      %p52 = scmp.eq.s32.totalorder %s14, 1
      %p53 = scmp.ne.s32.totalorder %s48, %s50
      %p54 = scmp.eq.s32.totalorder %s14, 0
      %p55 = por %p53, %p54
      %p56 = scmp.ne.s32.totalorder %s48, %s50
      %p57 = scmp.eq.s32.totalorder %s19, 1
      %p58 = por %p56, %p57
      %p59 = scmp.ne.s32.totalorder %s50, %s51
      %p60 = scmp.eq.s32.totalorder %s19, 0
      %p61 = por %p59, %p60
      %p62 = scmp.ne.s32.totalorder %s50, %s51
      %p63 = scmp.eq.s32.totalorder %s20, 1
      %p64 = por %p62, %p63
      %p66 = scmp.ne.s32.totalorder %s51, %s65
      %p67 = scmp.eq.s32.totalorder %s20, 0
      %p68 = por %p66, %p67
      %s70 = sadd.s32 %s69, 1
      %p73 = scmp.eq.s32.totalorder %s14, 1
      %p74 = scmp.ne.s32.totalorder %s69, %s71
      %p75 = scmp.eq.s32.totalorder %s14, 0
      %p76 = por %p74, %p75
      %p77 = scmp.ne.s32.totalorder %s69, %s71
      %p78 = scmp.eq.s32.totalorder %s19, 1
      %p79 = por %p77, %p78
      %p80 = scmp.ne.s32.totalorder %s71, %s72
      %p81 = scmp.eq.s32.totalorder %s19, 0
      %p82 = por %p80, %p81
      %p83 = scmp.ne.s32.totalorder %s71, %s72
      %p84 = scmp.eq.s32.totalorder %s20, 1
      %p85 = por %p83, %p84
      %p87 = scmp.ne.s32.totalorder %s72, %s86
      %p88 = scmp.eq.s32.totalorder %s20, 0
      %p89 = por %p87, %p88
      %s91 = sadd.s32 %s90, 1
      %p94 = scmp.eq.s32.totalorder %s14, 1
      %p95 = scmp.ne.s32.totalorder %s90, %s92
      %p96 = scmp.eq.s32.totalorder %s14, 0
      %p97 = por %p95, %p96
      %p98 = scmp.ne.s32.totalorder %s90, %s92
      %p99 = scmp.eq.s32.totalorder %s19, 1
      %p100 = por %p98, %p99
      %p101 = scmp.ne.s32.totalorder %s92, %s93
      %p102 = scmp.eq.s32.totalorder %s19, 0
      %p103 = por %p101, %p102
      %p104 = scmp.ne.s32.totalorder %s92, %s93
      %p105 = scmp.eq.s32.totalorder %s20, 1
      %p106 = por %p104, %p105
      %p108 = scmp.ne.s32.totalorder %s93, %s107
      %p109 = scmp.eq.s32.totalorder %s20, 0
      %p110 = por %p108, %p109
      %s112 = sadd.s32 %s111, 1
      %p115 = scmp.eq.s32.totalorder %s14, 1
      %p116 = scmp.ne.s32.totalorder %s111, %s113
      %p117 = scmp.eq.s32.totalorder %s14, 0
      %p118 = por %p116, %p117
      %p119 = scmp.ne.s32.totalorder %s111, %s113
      %p120 = scmp.eq.s32.totalorder %s19, 1
      %p121 = por %p119, %p120
      %p122 = scmp.ne.s32.totalorder %s113, %s114
      %p123 = scmp.eq.s32.totalorder %s19, 0
      %p124 = por %p122, %p123
      %p125 = scmp.ne.s32.totalorder %s113, %s114
      %p126 = scmp.eq.s32.totalorder %s20, 1
      %p127 = por %p125, %p126
      %p129 = scmp.ne.s32.totalorder %s114, %s128
      %p130 = scmp.eq.s32.totalorder %s20, 0
      %p131 = por %p129, %p130
      %s132 = ssub.s32 %s14, %s21
      %p133 = scmp.eq.s32.totalorder %s132, 0
      %s135 = sadd.s32 %s134, 1
      %s136 = scalar_select %p133, %s134, %s135
      %p139 = pneg %p133
      %p140 = scmp.eq.s32.totalorder %s14, 1
      %p141 = por %p139, %p140
      %p142 = scmp.ne.s32.totalorder %s134, %s137
      %p143 = scmp.eq.s32.totalorder %s14, 0
      %p144 = por %p142, %p143
      %p145 = scmp.ne.s32.totalorder %s134, %s137
      %p146 = scmp.eq.s32.totalorder %s19, 1
      %p147 = por %p145, %p146
      %p148 = scmp.ne.s32.totalorder %s137, %s138
      %p149 = scmp.eq.s32.totalorder %s19, 0
      %p150 = por %p148, %p149
      %p151 = scmp.ne.s32.totalorder %s137, %s138
      %p152 = scmp.eq.s32.totalorder %s20, 1
      %p153 = por %p151, %p152
      %p155 = scmp.ne.s32.totalorder %s138, %s154
      %p156 = scmp.eq.s32.totalorder %s20, 0
      %p157 = por %p155, %p156
      %p158 = scmp.le.s32.totalorder 1, %s14
      %p159 = scmp.lt.s32.totalorder %s14, 3
      %p160 = pnand %p158, %p159
      %p161 = pneg %p160
      // Predicated region
      $region9: #{forward.2} parent=5 // pred_check
        _
      $region10: #{forward.2} parent=5 // pred_check_branch
        %163 = sbr.rel (%p160) target = $region12
      $region11: #{forward.2} parent=5 // pred_region
        %s164 = ssub.s32 %s14, 1
        // Predicated region
        $region13: #{forward.2} parent=11 // pred_check
          %p165 = pneg %p61
        $region14: #{forward.2} parent=11 // pred_check_branch
          %167 = sbr.rel (%p165) target = $region16
        $region15: #{forward.2} parent=11 // pred_region
          %s169 = ssub.s32 5120, 5120
          %170 = vsyncadd [#allocation3], %s169
          %s171 = sshll.u32 [#allocation2], 4
          %s172 = int_to_ptr.vmem [resolvable:$true] %s171
          %177 = dma.hbm_to_vmem [thread:$0]  %s1, 5120, %s172, [#allocation3], 256, 256, 16
        $region16: #{forward.2} parent=11 // pred_fallthru
          _
        // Predicated region
        $region17: #{forward.2} parent=11 // pred_check
          %p178 = pneg %p82
        $region18: #{forward.2} parent=11 // pred_check_branch
          %180 = sbr.rel (%p178) target = $region20
        $region19: #{forward.2} parent=11 // pred_region
          %s182 = ssub.s32 64, 64
          %183 = vsyncadd [#allocation5], %s182
          %s185 = sshll.u32 [#allocation4], 4
          %s186 = int_to_ptr.vmem [resolvable:$true] %s185
          %188 = dma.hbm_to_vmem [thread:$0]  %s2, 64, %s186, [#allocation5]
        $region20: #{forward.2} parent=11 // pred_fallthru
          _
        // Predicated region
        $region21: #{forward.2} parent=11 // pred_check
          %p189 = pneg %p103
        $region22: #{forward.2} parent=11 // pred_check_branch
          %191 = sbr.rel (%p189) target = $region24
        $region23: #{forward.2} parent=11 // pred_region
          %s193 = ssub.s32 40960, 40960
          %194 = vsyncadd [#allocation5], %s193
          %s195 = sshll.u32 [#allocation6], 4
          %s196 = int_to_ptr.vmem [resolvable:$true] %s195
          %201 = dma.hbm_to_vmem [thread:$0]  %s3, 40960, %s196, [#allocation5], 256, 256, 16
        $region24: #{forward.2} parent=11 // pred_fallthru
          _
        // Predicated region
        $region25: #{forward.2} parent=11 // pred_check
          %p202 = pneg %p124
        $region26: #{forward.2} parent=11 // pred_check_branch
          %204 = sbr.rel (%p202) target = $region28
        $region27: #{forward.2} parent=11 // pred_region
          %s206 = ssub.s32 64, 64
          %207 = vsyncadd [#allocation8], %s206
          %s209 = sshll.u32 [#allocation7], 4
          %s210 = int_to_ptr.vmem [resolvable:$true] %s209
          %212 = dma.hbm_to_vmem [thread:$0]  %s4, 64, %s210, [#allocation8]
        $region28: #{forward.2} parent=11 // pred_fallthru
          _
      $region12: #{forward.2} parent=5 // pred_fallthru
        _
      %p213 = scmp.lt.s32.totalorder %s14, 2
      // Predicated region
      $region29: #{forward.2} parent=5 // pred_check
        %p214 = pneg %p213
      $region30: #{forward.2} parent=5 // pred_check_branch
        %216 = sbr.rel (%p214) target = $region32
      $region31: #{forward.2} parent=5 // pred_region
        // Predicated region
        $region33: #{forward.2} parent=31 // pred_check
          %p217 = pneg %p34
        $region34: #{forward.2} parent=31 // pred_check_branch
          %219 = sbr.rel (%p217) target = $region36
        $region35: #{forward.2} parent=31 // pred_region
          %p220 = scmp.lt.s32.totalorder %s14, 1
          %s221 = scalar_select %p220, %s14, 1
          %s222 = smul.addr %s221, 4
          %s223 = smul.addr %s222, 8
          %s224 = scalar_lea.vmem %s0, %s223
        $region36: #{forward.2} parent=31 // pred_fallthru
          _
      $region32: #{forward.2} parent=5 // pred_fallthru
        _
      %p225 = scmp.le.s32.totalorder 1, %s14
      %p226 = scmp.lt.s32.totalorder %s14, 3
      %p227 = pnand %p225, %p226
      %p228 = pneg %p227
      // Predicated region
      $region37: #{forward.2} parent=5 // pred_check
        _
      $region38: #{forward.2} parent=5 // pred_check_branch
        %230 = sbr.rel (%p227) target = $region40
      $region39: #{forward.2} parent=5 // pred_region
        %s231 = ssub.s32 %s14, 1
        // Predicated region
        $region41: #{forward.2} parent=39 // pred_check
          %p232 = pneg %p61
        $region42: #{forward.2} parent=39 // pred_check_branch
          %234 = sbr.rel (%p232) target = $region44
        $region43: #{forward.2} parent=39 // pred_region
          %235 = dma.done [#allocation3], 5120
        $region44: #{forward.2} parent=39 // pred_fallthru
          _
        // Predicated region
        $region45: #{forward.2} parent=39 // pred_check
          %p236 = pneg %p82
        $region46: #{forward.2} parent=39 // pred_check_branch
          %238 = sbr.rel (%p236) target = $region48
        $region47: #{forward.2} parent=39 // pred_region
          %239 = dma.done [#allocation5], 64
        $region48: #{forward.2} parent=39 // pred_fallthru
          _
        // Predicated region
        $region49: #{forward.2} parent=39 // pred_check
          %p240 = pneg %p103
        $region50: #{forward.2} parent=39 // pred_check_branch
          %242 = sbr.rel (%p240) target = $region52
        $region51: #{forward.2} parent=39 // pred_region
          %243 = dma.done [#allocation5], 40960
        $region52: #{forward.2} parent=39 // pred_fallthru
          _
        // Predicated region
        $region53: #{forward.2} parent=39 // pred_check
          %p244 = pneg %p124
        $region54: #{forward.2} parent=39 // pred_check_branch
          %246 = sbr.rel (%p244) target = $region56
        $region55: #{forward.2} parent=39 // pred_region
          %247 = dma.done [#allocation8], 64
        $region56: #{forward.2} parent=39 // pred_fallthru
          _
        %p248 = scmp.lt.s32.totalorder %s19, 1
        %s249 = scalar_select %p248, %s19, 1
        %s250 = smul.addr %s249, 4
        %s251 = smul.addr %s250, 8
        %s252 = scalar_lea.vmem %s0, %s251
        %p253 = pneg %p40
        %p254 = pneg %p37
        %p255 = pneg %p61
        %p256 = pneg %p58
        %p257 = pneg %p82
        %p258 = pneg %p79
        %p259 = pneg %p103
        %p260 = pneg %p100
        %p261 = pneg %p124
        %p262 = pneg %p121
        %p263 = pneg %p150
        %p264 = pneg %p147
        %p265 = scmp.lt.s32.totalorder %s19, 1
        %s266 = scalar_select %p265, %s19, 1
        %s267 = smul.addr %s266, 2
        %s268 = smul.addr %s267, 4
        %s269 = scalar_lea.vmem %s5, %s268
        %p270 = scmp.lt.s32.totalorder %s19, 1
        %s271 = scalar_select %p270, %s19, 1
        %s272 = smul.addr %s271, 4
        %s273 = smul.addr %s272, 8
        %s274 = scalar_lea.vmem %s0, %s273
        %p275 = scmp.lt.s32.totalorder %s19, 1
        %s276 = scalar_select %p275, %s19, 1
        %s277 = smul.addr %s276, 2
        %s278 = smul.addr %s277, 4
        %s279 = scalar_lea.vmem %s5, %s278
        %v281 = vld [vmem:[#allocation2] sm:$0xff]
        %v282 = vld [vmem:[#allocation2 + $0x8] sm:$0xff]
        %v283 = vld [vmem:[#allocation2 + $0x10] sm:$0xff]
        %v284 = vld [vmem:[#allocation2 + $0x18] sm:$0xff]
        %v285 = vld [vmem:[#allocation2 + $0x20] sm:$0xff]
        %v286 = vld [vmem:[#allocation2 + $0x28] sm:$0xff]
        %v287 = vld [vmem:[#allocation2 + $0x30] sm:$0x33]
        %v288 = vld [vmem:[#allocation2 + $0x38] sm:$0x33]
        %v289 = vld [vmem:[%s274] sm:$0x3f]
        %v290 = vpack.c.bf16 %v289, %v289
        %s291 = scalar_lea.vmem %s274, 8
        %v292 = vld [vmem:[%s291] sm:$0x3f]
        %v293 = vpack.c.bf16 %v292, %v292
        %s294 = scalar_lea.vmem %s274, 16
        %v295 = vld [vmem:[%s294] sm:$0x3f]
        %v296 = vpack.c.bf16 %v295, %v295
        %s297 = scalar_lea.vmem %s274, 24
        %v298 = vld [vmem:[%s297] sm:$0x3f]
        %v299 = vpack.c.bf16 %v298, %v298
        %s300 = scalar_lea.vmem [#allocation2], 64
        %v301 = vld [vmem:[%s300] sm:$0xff]
        %v302 = vld [vmem:[%s300 + $0x8] sm:$0xff]
        %v303 = vld [vmem:[%s300 + $0x10] sm:$0xff]
        %v304 = vld [vmem:[%s300 + $0x18] sm:$0xff]
        %v305 = vld [vmem:[%s300 + $0x20] sm:$0xff]
        %v306 = vld [vmem:[%s300 + $0x28] sm:$0xff]
        %v307 = vld [vmem:[%s300 + $0x30] sm:$0x33]
        %v308 = vld [vmem:[%s300 + $0x38] sm:$0x33]
        %v317 = vunpack.c.l.b16 %v301
        %v318 = vunpack.c.h.b16 %v301
        %v319 = vunpack.c.l.b16 %v302
        %v320 = vunpack.c.h.b16 %v302
        %v321 = vunpack.c.l.b16 %v303
        %v322 = vunpack.c.h.b16 %v303
        %v323 = vunpack.c.l.b16 %v304
        %v324 = vunpack.c.h.b16 %v304
        %v325 = vunpack.c.l.b16 %v305
        %v326 = vunpack.c.h.b16 %v305
        %v327 = vunpack.c.l.b16 %v306
        %v328 = vunpack.c.h.b16 %v306
        %v329 = vunpack.c.l.b16 %v307
        %v330 = vunpack.c.h.b16 %v307
        %v331 = vunpack.c.l.b16 %v308
        %v332 = vunpack.c.h.b16 %v308
        %v333 = vpack.c.b16 %v321, %v317
        %v334 = vpack.c.b16 %v322, %v318
        %v335 = vpack.c.b16 %v323, %v319
        %v336 = vpack.c.b16 %v324, %v320
        %v337 = vpack.c.b16 %v329, %v325
        %v338 = vpack.c.b16 %v330, %v326
        %v339 = vpack.c.b16 %v331, %v327
        %v340 = vpack.c.b16 %v332, %v328
        %vm345 = vcmask 228352
        %v347 = vsel %vm345, %v293, 0
        %vm349 = vcmask 1045504
        %v351 = vsel %vm349, %v337, 0
        %v354 = vsel %vm349, %v338, 0
        %v357 = vsel %vm349, %v339, 0
        %v360 = vsel %vm349, %v340, 0
        %362 = vmatprep.subr.bf16.mxu0 %v334
        %363 = vmatpush1.bf16.msra.mxu0 %v333
        %364 = vmatprep.subr.bf16.mxu0 %v354
        %365 = vmatpush1.bf16.msra.mxu0 %v351
        %366 = vmatprep.subr.bf16.mxu0 0
        %367 = vmatpush1.bf16.msra.mxu0 0
        %368 = vmatprep.subr.bf16.mxu0 0
        %369 = vmatpush1.bf16.msra.mxu0 0
        %370 = vmatprep.subr.bf16.mxu0 0
        %371 = vmatpush1.bf16.msra.mxu0 0
        %372 = vmatprep.subr.bf16.mxu0 0
        %373 = vmatpush1.bf16.msra.mxu0 0
        %374 = vmatprep.subr.bf16.mxu0 0
        %375 = vmatpush1.bf16.msra.mxu0 0
        %376 = vmatprep.subr.bf16.mxu0 0
        %377 = vmatpush1.bf16.msra.mxu0 0
        %378 = vmatprep.subr.bf16.mxu0 0
        %379 = vmatpush1.bf16.msra.mxu0 0
        %380 = vmatprep.subr.bf16.mxu0 0
        %381 = vmatpush1.bf16.msra.mxu0 0
        %382 = vmatprep.subr.bf16.mxu0 0
        %383 = vmatpush1.bf16.msra.mxu0 0
        %384 = vmatprep.subr.bf16.mxu0 0
        %385 = vmatpush1.bf16.msra.mxu0 0
        %386 = vmatprep.subr.bf16.mxu0 0
        %387 = vmatpush1.bf16.msra.mxu0 0
        %388 = vmatprep.subr.bf16.mxu0 0
        %389 = vmatpush1.bf16.msra.mxu0 0
        %390 = vmatprep.subr.bf16.mxu0 0
        %391 = vmatpush1.bf16.msra.mxu0 0
        %392 = vmatprep.subr.bf16.mxu0 0
        %393 = vmatpush1.bf16.msra.mxu0 0
        %394 = vmatprep.mubr.bf16.mxu0 0
        %395 = vmatmul.mubr.bf16.gmra.mrb[0].mxu0 %v347
        %v396 = vpop.f32.mrb[0].mxu0
        %v397 = vadd.f32 0.0, %v396
        %v398 = vpop.f32.mrb[0].mxu0
        %v399 = vadd.f32 0.0, %v398
        %v400 = vpop.f32.mrb[0].mxu0
        %v401 = vpop.f32.mrb[0].mxu0
        %402 = vdwg.mxu0
        %403 = vmatprep.subr.bf16.mxu0 %v336
        %404 = vmatpush1.bf16.msra.mxu0 %v335
        %405 = vmatprep.subr.bf16.mxu0 %v360
        %406 = vmatpush1.bf16.msra.mxu0 %v357
        %407 = vmatprep.subr.bf16.mxu0 0
        %408 = vmatpush1.bf16.msra.mxu0 0
        %409 = vmatprep.subr.bf16.mxu0 0
        %410 = vmatpush1.bf16.msra.mxu0 0
        %411 = vmatprep.subr.bf16.mxu0 0
        %412 = vmatpush1.bf16.msra.mxu0 0
        %413 = vmatprep.subr.bf16.mxu0 0
        %414 = vmatpush1.bf16.msra.mxu0 0
        %415 = vmatprep.subr.bf16.mxu0 0
        %416 = vmatpush1.bf16.msra.mxu0 0
        %417 = vmatprep.subr.bf16.mxu0 0
        %418 = vmatpush1.bf16.msra.mxu0 0
        %419 = vmatprep.subr.bf16.mxu0 0
        %420 = vmatpush1.bf16.msra.mxu0 0
        %421 = vmatprep.subr.bf16.mxu0 0
        %422 = vmatpush1.bf16.msra.mxu0 0
        %423 = vmatprep.subr.bf16.mxu0 0
        %424 = vmatpush1.bf16.msra.mxu0 0
        %425 = vmatprep.subr.bf16.mxu0 0
        %426 = vmatpush1.bf16.msra.mxu0 0
        %427 = vmatprep.subr.bf16.mxu0 0
        %428 = vmatpush1.bf16.msra.mxu0 0
        %429 = vmatprep.subr.bf16.mxu0 0
        %430 = vmatpush1.bf16.msra.mxu0 0
        %431 = vmatprep.subr.bf16.mxu0 0
        %432 = vmatpush1.bf16.msra.mxu0 0
        %433 = vmatprep.subr.bf16.mxu0 0
        %434 = vmatpush1.bf16.msra.mxu0 0
        %435 = vmatprep.mubr.bf16.mxu0 0
        %436 = vmatmul.mubr.bf16.gmra.mrb[0].mxu0 %v347
        %v437 = vpop.f32.mrb[0].mxu0
        %v438 = vadd.f32 0.0, %v437
        %v439 = vpop.f32.mrb[0].mxu0
        %v440 = vadd.f32 0.0, %v439
        %v441 = vpop.f32.mrb[0].mxu0
        %v442 = vpop.f32.mrb[0].mxu0
        %443 = vdwg.mxu0
        %v452 = vunpack.c.l.b16 %v281
        %v453 = vunpack.c.h.b16 %v281
        %v454 = vunpack.c.l.b16 %v282
        %v455 = vunpack.c.h.b16 %v282
        %v456 = vunpack.c.l.b16 %v283
        %v457 = vunpack.c.h.b16 %v283
        %v458 = vunpack.c.l.b16 %v284
        %v459 = vunpack.c.h.b16 %v284
        %v460 = vunpack.c.l.b16 %v285
        %v461 = vunpack.c.h.b16 %v285
        %v462 = vunpack.c.l.b16 %v286
        %v463 = vunpack.c.h.b16 %v286
        %v464 = vunpack.c.l.b16 %v287
        %v465 = vunpack.c.h.b16 %v287
        %v466 = vunpack.c.l.b16 %v288
        %v467 = vunpack.c.h.b16 %v288
        %v468 = vpack.c.b16 %v456, %v452
        %v469 = vpack.c.b16 %v457, %v453
        %v470 = vpack.c.b16 %v458, %v454
        %v471 = vpack.c.b16 %v459, %v455
        %v472 = vpack.c.b16 %v464, %v460
        %v473 = vpack.c.b16 %v465, %v461
        %v474 = vpack.c.b16 %v466, %v462
        %v475 = vpack.c.b16 %v467, %v463
        %v481 = vsel %vm345, %v290, 0
        %v484 = vsel %vm349, %v472, 0
        %v487 = vsel %vm349, %v473, 0
        %v490 = vsel %vm349, %v474, 0
        %v493 = vsel %vm349, %v475, 0
        %495 = vmatprep.subr.bf16.mxu0 %v469
        %496 = vmatpush1.bf16.msra.mxu0 %v468
        %497 = vmatprep.subr.bf16.mxu0 %v487
        %498 = vmatpush1.bf16.msra.mxu0 %v484
        %499 = vmatprep.subr.bf16.mxu0 0
        %500 = vmatpush1.bf16.msra.mxu0 0
        %501 = vmatprep.subr.bf16.mxu0 0
        %502 = vmatpush1.bf16.msra.mxu0 0
        %503 = vmatprep.subr.bf16.mxu0 0
        %504 = vmatpush1.bf16.msra.mxu0 0
        %505 = vmatprep.subr.bf16.mxu0 0
        %506 = vmatpush1.bf16.msra.mxu0 0
        %507 = vmatprep.subr.bf16.mxu0 0
        %508 = vmatpush1.bf16.msra.mxu0 0
        %509 = vmatprep.subr.bf16.mxu0 0
        %510 = vmatpush1.bf16.msra.mxu0 0
        %511 = vmatprep.subr.bf16.mxu0 0
        %512 = vmatpush1.bf16.msra.mxu0 0
        %513 = vmatprep.subr.bf16.mxu0 0
        %514 = vmatpush1.bf16.msra.mxu0 0
        %515 = vmatprep.subr.bf16.mxu0 0
        %516 = vmatpush1.bf16.msra.mxu0 0
        %517 = vmatprep.subr.bf16.mxu0 0
        %518 = vmatpush1.bf16.msra.mxu0 0
        %519 = vmatprep.subr.bf16.mxu0 0
        %520 = vmatpush1.bf16.msra.mxu0 0
        %521 = vmatprep.subr.bf16.mxu0 0
        %522 = vmatpush1.bf16.msra.mxu0 0
        %523 = vmatprep.subr.bf16.mxu0 0
        %524 = vmatpush1.bf16.msra.mxu0 0
        %525 = vmatprep.subr.bf16.mxu0 0
        %526 = vmatpush1.bf16.msra.mxu0 0
        %527 = vmatprep.mubr.bf16.mxu0 0
        %528 = vmatmul.mubr.bf16.gmra.mrb[0].mxu0 %v481
        %v529 = vpop.f32.mrb[0].mxu0
        %v530 = vadd.f32 %v397, %v529
        %v531 = vpop.f32.mrb[0].mxu0
        %v532 = vadd.f32 %v399, %v531
        %v533 = vpop.f32.mrb[0].mxu0
        %v534 = vpop.f32.mrb[0].mxu0
        %535 = vdwg.mxu0
        %536 = vmatprep.subr.bf16.mxu0 %v471
        %537 = vmatpush1.bf16.msra.mxu0 %v470
        %538 = vmatprep.subr.bf16.mxu0 %v493
        %539 = vmatpush1.bf16.msra.mxu0 %v490
        %540 = vmatprep.subr.bf16.mxu0 0
        %541 = vmatpush1.bf16.msra.mxu0 0
        %542 = vmatprep.subr.bf16.mxu0 0
        %543 = vmatpush1.bf16.msra.mxu0 0
        %544 = vmatprep.subr.bf16.mxu0 0
        %545 = vmatpush1.bf16.msra.mxu0 0
        %546 = vmatprep.subr.bf16.mxu0 0
        %547 = vmatpush1.bf16.msra.mxu0 0
        %548 = vmatprep.subr.bf16.mxu0 0
        %549 = vmatpush1.bf16.msra.mxu0 0
        %550 = vmatprep.subr.bf16.mxu0 0
        %551 = vmatpush1.bf16.msra.mxu0 0
        %552 = vmatprep.subr.bf16.mxu0 0
        %553 = vmatpush1.bf16.msra.mxu0 0
        %554 = vmatprep.subr.bf16.mxu0 0
        %555 = vmatpush1.bf16.msra.mxu0 0
        %556 = vmatprep.subr.bf16.mxu0 0
        %557 = vmatpush1.bf16.msra.mxu0 0
        %558 = vmatprep.subr.bf16.mxu0 0
        %559 = vmatpush1.bf16.msra.mxu0 0
        %560 = vmatprep.subr.bf16.mxu0 0
        %561 = vmatpush1.bf16.msra.mxu0 0
        %562 = vmatprep.subr.bf16.mxu0 0
        %563 = vmatpush1.bf16.msra.mxu0 0
        %564 = vmatprep.subr.bf16.mxu0 0
        %565 = vmatpush1.bf16.msra.mxu0 0
        %566 = vmatprep.subr.bf16.mxu0 0
        %567 = vmatpush1.bf16.msra.mxu0 0
        %568 = vmatprep.mubr.bf16.mxu0 0
        %569 = vmatmul.mubr.bf16.gmra.mrb[0].mxu0 %v481
        %v570 = vpop.f32.mrb[0].mxu0
        %v571 = vadd.f32 %v438, %v570
        %v572 = vpop.f32.mrb[0].mxu0
        %v573 = vadd.f32 %v440, %v572
        %v574 = vpop.f32.mrb[0].mxu0
        %v575 = vpop.f32.mrb[0].mxu0
        %576 = vdwg.mxu0
        %v578 = vsel %vm345, %v296, 0
        %580 = vmatprep.subr.bf16.mxu0 %v334
        %581 = vmatpush1.bf16.msra.mxu0 %v333
        %582 = vmatprep.subr.bf16.mxu0 %v354
        %583 = vmatpush1.bf16.msra.mxu0 %v351
        %584 = vmatprep.subr.bf16.mxu0 0
        %585 = vmatpush1.bf16.msra.mxu0 0
        %586 = vmatprep.subr.bf16.mxu0 0
        %587 = vmatpush1.bf16.msra.mxu0 0
        %588 = vmatprep.subr.bf16.mxu0 0
        %589 = vmatpush1.bf16.msra.mxu0 0
        %590 = vmatprep.subr.bf16.mxu0 0
        %591 = vmatpush1.bf16.msra.mxu0 0
        %592 = vmatprep.subr.bf16.mxu0 0
        %593 = vmatpush1.bf16.msra.mxu0 0
        %594 = vmatprep.subr.bf16.mxu0 0
        %595 = vmatpush1.bf16.msra.mxu0 0
        %596 = vmatprep.subr.bf16.mxu0 0
        %597 = vmatpush1.bf16.msra.mxu0 0
        %598 = vmatprep.subr.bf16.mxu0 0
        %599 = vmatpush1.bf16.msra.mxu0 0
        %600 = vmatprep.subr.bf16.mxu0 0
        %601 = vmatpush1.bf16.msra.mxu0 0
        %602 = vmatprep.subr.bf16.mxu0 0
        %603 = vmatpush1.bf16.msra.mxu0 0
        %604 = vmatprep.subr.bf16.mxu0 0
        %605 = vmatpush1.bf16.msra.mxu0 0
        %606 = vmatprep.subr.bf16.mxu0 0
        %607 = vmatpush1.bf16.msra.mxu0 0
        %608 = vmatprep.subr.bf16.mxu0 0
        %609 = vmatpush1.bf16.msra.mxu0 0
        %610 = vmatprep.subr.bf16.mxu0 0
        %611 = vmatpush1.bf16.msra.mxu0 0
        %612 = vmatprep.mubr.bf16.mxu0 0
        %613 = vmatmul.mubr.bf16.gmra.mrb[0].mxu0 %v578
        %v614 = vpop.f32.mrb[0].mxu0
        %v615 = vadd.f32 0.0, %v614
        %v616 = vpop.f32.mrb[0].mxu0
        %v617 = vadd.f32 0.0, %v616
        %v618 = vpop.f32.mrb[0].mxu0
        %v619 = vpop.f32.mrb[0].mxu0
        %620 = vdwg.mxu0
        %621 = vmatprep.subr.bf16.mxu0 %v336
        %622 = vmatpush1.bf16.msra.mxu0 %v335
        %623 = vmatprep.subr.bf16.mxu0 %v360
        %624 = vmatpush1.bf16.msra.mxu0 %v357
        %625 = vmatprep.subr.bf16.mxu0 0
        %626 = vmatpush1.bf16.msra.mxu0 0
        %627 = vmatprep.subr.bf16.mxu0 0
        %628 = vmatpush1.bf16.msra.mxu0 0
        %629 = vmatprep.subr.bf16.mxu0 0
        %630 = vmatpush1.bf16.msra.mxu0 0
        %631 = vmatprep.subr.bf16.mxu0 0
        %632 = vmatpush1.bf16.msra.mxu0 0
        %633 = vmatprep.subr.bf16.mxu0 0
        %634 = vmatpush1.bf16.msra.mxu0 0
        %635 = vmatprep.subr.bf16.mxu0 0
        %636 = vmatpush1.bf16.msra.mxu0 0
        %637 = vmatprep.subr.bf16.mxu0 0
        %638 = vmatpush1.bf16.msra.mxu0 0
        %639 = vmatprep.subr.bf16.mxu0 0
        %640 = vmatpush1.bf16.msra.mxu0 0
        %641 = vmatprep.subr.bf16.mxu0 0
        %642 = vmatpush1.bf16.msra.mxu0 0
        %643 = vmatprep.subr.bf16.mxu0 0
        %644 = vmatpush1.bf16.msra.mxu0 0
        %645 = vmatprep.subr.bf16.mxu0 0
        %646 = vmatpush1.bf16.msra.mxu0 0
        %647 = vmatprep.subr.bf16.mxu0 0
        %648 = vmatpush1.bf16.msra.mxu0 0
        %649 = vmatprep.subr.bf16.mxu0 0
        %650 = vmatpush1.bf16.msra.mxu0 0
        %651 = vmatprep.subr.bf16.mxu0 0
        %652 = vmatpush1.bf16.msra.mxu0 0
        %653 = vmatprep.mubr.bf16.mxu0 0
        %654 = vmatmul.mubr.bf16.gmra.mrb[0].mxu0 %v578
        %v655 = vpop.f32.mrb[0].mxu0
        %v656 = vadd.f32 0.0, %v655
        %v657 = vpop.f32.mrb[0].mxu0
        %v658 = vadd.f32 0.0, %v657
        %v659 = vpop.f32.mrb[0].mxu0
        %v660 = vpop.f32.mrb[0].mxu0
        %661 = vdwg.mxu0
        %662 = vmatprep.subr.bf16.mxu0 %v469
        %663 = vmatpush1.bf16.msra.mxu0 %v468
        %664 = vmatprep.subr.bf16.mxu0 %v487
        %665 = vmatpush1.bf16.msra.mxu0 %v484
        %666 = vmatprep.subr.bf16.mxu0 0
        %667 = vmatpush1.bf16.msra.mxu0 0
        %668 = vmatprep.subr.bf16.mxu0 0
        %669 = vmatpush1.bf16.msra.mxu0 0
        %670 = vmatprep.subr.bf16.mxu0 0
        %671 = vmatpush1.bf16.msra.mxu0 0
        %672 = vmatprep.subr.bf16.mxu0 0
        %673 = vmatpush1.bf16.msra.mxu0 0
        %674 = vmatprep.subr.bf16.mxu0 0
        %675 = vmatpush1.bf16.msra.mxu0 0
        %676 = vmatprep.subr.bf16.mxu0 0
        %677 = vmatpush1.bf16.msra.mxu0 0
        %678 = vmatprep.subr.bf16.mxu0 0
        %679 = vmatpush1.bf16.msra.mxu0 0
        %680 = vmatprep.subr.bf16.mxu0 0
        %681 = vmatpush1.bf16.msra.mxu0 0
        %682 = vmatprep.subr.bf16.mxu0 0
        %683 = vmatpush1.bf16.msra.mxu0 0
        %684 = vmatprep.subr.bf16.mxu0 0
        %685 = vmatpush1.bf16.msra.mxu0 0
        %686 = vmatprep.subr.bf16.mxu0 0
        %687 = vmatpush1.bf16.msra.mxu0 0
        %688 = vmatprep.subr.bf16.mxu0 0
        %689 = vmatpush1.bf16.msra.mxu0 0
        %690 = vmatprep.subr.bf16.mxu0 0
        %691 = vmatpush1.bf16.msra.mxu0 0
        %692 = vmatprep.subr.bf16.mxu0 0
        %693 = vmatpush1.bf16.msra.mxu0 0
        %694 = vmatprep.mubr.bf16.mxu0 0
        %695 = vmatmul.mubr.bf16.gmra.mrb[0].mxu0 %v347
        %v696 = vpop.f32.mrb[0].mxu0
        %v697 = vadd.f32 %v615, %v696
        %v698 = vpop.f32.mrb[0].mxu0
        %v699 = vadd.f32 %v617, %v698
        %v700 = vpop.f32.mrb[0].mxu0
        %v701 = vpop.f32.mrb[0].mxu0
        %702 = vdwg.mxu0
        %703 = vmatprep.subr.bf16.mxu0 %v471
        %704 = vmatpush1.bf16.msra.mxu0 %v470
        %705 = vmatprep.subr.bf16.mxu0 %v493
        %706 = vmatpush1.bf16.msra.mxu0 %v490
        %707 = vmatprep.subr.bf16.mxu0 0
        %708 = vmatpush1.bf16.msra.mxu0 0
        %709 = vmatprep.subr.bf16.mxu0 0
        %710 = vmatpush1.bf16.msra.mxu0 0
        %711 = vmatprep.subr.bf16.mxu0 0
        %712 = vmatpush1.bf16.msra.mxu0 0
        %713 = vmatprep.subr.bf16.mxu0 0
        %714 = vmatpush1.bf16.msra.mxu0 0
        %715 = vmatprep.subr.bf16.mxu0 0
        %716 = vmatpush1.bf16.msra.mxu0 0
        %717 = vmatprep.subr.bf16.mxu0 0
        %718 = vmatpush1.bf16.msra.mxu0 0
        %719 = vmatprep.subr.bf16.mxu0 0
        %720 = vmatpush1.bf16.msra.mxu0 0
        %721 = vmatprep.subr.bf16.mxu0 0
        %722 = vmatpush1.bf16.msra.mxu0 0
        %723 = vmatprep.subr.bf16.mxu0 0
        %724 = vmatpush1.bf16.msra.mxu0 0
        %725 = vmatprep.subr.bf16.mxu0 0
        %726 = vmatpush1.bf16.msra.mxu0 0
        %727 = vmatprep.subr.bf16.mxu0 0
        %728 = vmatpush1.bf16.msra.mxu0 0
        %729 = vmatprep.subr.bf16.mxu0 0
        %730 = vmatpush1.bf16.msra.mxu0 0
        %731 = vmatprep.subr.bf16.mxu0 0
        %732 = vmatpush1.bf16.msra.mxu0 0
        %733 = vmatprep.subr.bf16.mxu0 0
        %734 = vmatpush1.bf16.msra.mxu0 0
        %735 = vmatprep.mubr.bf16.mxu0 0
        %736 = vmatmul.mubr.bf16.gmra.mrb[0].mxu0 %v347
        %v737 = vpop.f32.mrb[0].mxu0
        %v738 = vadd.f32 %v656, %v737
        %v739 = vpop.f32.mrb[0].mxu0
        %v740 = vadd.f32 %v658, %v739
        %v741 = vpop.f32.mrb[0].mxu0
        %v742 = vpop.f32.mrb[0].mxu0
        %743 = vdwg.mxu0
        %v745 = vsel %vm345, %v299, 0
        %747 = vmatprep.subr.bf16.mxu0 %v334
        %748 = vmatpush1.bf16.msra.mxu0 %v333
        %749 = vmatprep.subr.bf16.mxu0 %v354
        %750 = vmatpush1.bf16.msra.mxu0 %v351
        %751 = vmatprep.subr.bf16.mxu0 0
        %752 = vmatpush1.bf16.msra.mxu0 0
        %753 = vmatprep.subr.bf16.mxu0 0
        %754 = vmatpush1.bf16.msra.mxu0 0
        %755 = vmatprep.subr.bf16.mxu0 0
        %756 = vmatpush1.bf16.msra.mxu0 0
        %757 = vmatprep.subr.bf16.mxu0 0
        %758 = vmatpush1.bf16.msra.mxu0 0
        %759 = vmatprep.subr.bf16.mxu0 0
        %760 = vmatpush1.bf16.msra.mxu0 0
        %761 = vmatprep.subr.bf16.mxu0 0
        %762 = vmatpush1.bf16.msra.mxu0 0
        %763 = vmatprep.subr.bf16.mxu0 0
        %764 = vmatpush1.bf16.msra.mxu0 0
        %765 = vmatprep.subr.bf16.mxu0 0
        %766 = vmatpush1.bf16.msra.mxu0 0
        %767 = vmatprep.subr.bf16.mxu0 0
        %768 = vmatpush1.bf16.msra.mxu0 0
        %769 = vmatprep.subr.bf16.mxu0 0
        %770 = vmatpush1.bf16.msra.mxu0 0
        %771 = vmatprep.subr.bf16.mxu0 0
        %772 = vmatpush1.bf16.msra.mxu0 0
        %773 = vmatprep.subr.bf16.mxu0 0
        %774 = vmatpush1.bf16.msra.mxu0 0
        %775 = vmatprep.subr.bf16.mxu0 0
        %776 = vmatpush1.bf16.msra.mxu0 0
        %777 = vmatprep.subr.bf16.mxu0 0
        %778 = vmatpush1.bf16.msra.mxu0 0
        %779 = vmatprep.mubr.bf16.mxu0 0
        %780 = vmatmul.mubr.bf16.gmra.mrb[0].mxu0 %v745
        %v781 = vpop.f32.mrb[0].mxu0
        %v782 = vadd.f32 0.0, %v781
        %v783 = vpop.f32.mrb[0].mxu0
        %v784 = vadd.f32 0.0, %v783
        %v785 = vpop.f32.mrb[0].mxu0
        %v786 = vpop.f32.mrb[0].mxu0
        %787 = vdwg.mxu0
        %788 = vmatprep.subr.bf16.mxu0 %v336
        %789 = vmatpush1.bf16.msra.mxu0 %v335
        %790 = vmatprep.subr.bf16.mxu0 %v360
        %791 = vmatpush1.bf16.msra.mxu0 %v357
        %792 = vmatprep.subr.bf16.mxu0 0
        %793 = vmatpush1.bf16.msra.mxu0 0
        %794 = vmatprep.subr.bf16.mxu0 0
        %795 = vmatpush1.bf16.msra.mxu0 0
        %796 = vmatprep.subr.bf16.mxu0 0
        %797 = vmatpush1.bf16.msra.mxu0 0
        %798 = vmatprep.subr.bf16.mxu0 0
        %799 = vmatpush1.bf16.msra.mxu0 0
        %800 = vmatprep.subr.bf16.mxu0 0
        %801 = vmatpush1.bf16.msra.mxu0 0
        %802 = vmatprep.subr.bf16.mxu0 0
        %803 = vmatpush1.bf16.msra.mxu0 0
        %804 = vmatprep.subr.bf16.mxu0 0
        %805 = vmatpush1.bf16.msra.mxu0 0
        %806 = vmatprep.subr.bf16.mxu0 0
        %807 = vmatpush1.bf16.msra.mxu0 0
        %808 = vmatprep.subr.bf16.mxu0 0
        %809 = vmatpush1.bf16.msra.mxu0 0
        %810 = vmatprep.subr.bf16.mxu0 0
        %811 = vmatpush1.bf16.msra.mxu0 0
        %812 = vmatprep.subr.bf16.mxu0 0
        %813 = vmatpush1.bf16.msra.mxu0 0
        %814 = vmatprep.subr.bf16.mxu0 0
        %815 = vmatpush1.bf16.msra.mxu0 0
        %816 = vmatprep.subr.bf16.mxu0 0
        %817 = vmatpush1.bf16.msra.mxu0 0
        %818 = vmatprep.subr.bf16.mxu0 0
        %819 = vmatpush1.bf16.msra.mxu0 0
        %820 = vmatprep.mubr.bf16.mxu0 0
        %821 = vmatmul.mubr.bf16.gmra.mrb[0].mxu0 %v745
        %v822 = vpop.f32.mrb[0].mxu0
        %v823 = vadd.f32 0.0, %v822
        %v824 = vpop.f32.mrb[0].mxu0
        %v825 = vadd.f32 0.0, %v824
        %v826 = vpop.f32.mrb[0].mxu0
        %v827 = vpop.f32.mrb[0].mxu0
        %828 = vdwg.mxu0
        %829 = vmatprep.subr.bf16.mxu0 %v469
        %830 = vmatpush1.bf16.msra.mxu0 %v468
        %831 = vmatprep.subr.bf16.mxu0 %v487
        %832 = vmatpush1.bf16.msra.mxu0 %v484
        %833 = vmatprep.subr.bf16.mxu0 0
        %834 = vmatpush1.bf16.msra.mxu0 0
        %835 = vmatprep.subr.bf16.mxu0 0
        %836 = vmatpush1.bf16.msra.mxu0 0
        %837 = vmatprep.subr.bf16.mxu0 0
        %838 = vmatpush1.bf16.msra.mxu0 0
        %839 = vmatprep.subr.bf16.mxu0 0
        %840 = vmatpush1.bf16.msra.mxu0 0
        %841 = vmatprep.subr.bf16.mxu0 0
        %842 = vmatpush1.bf16.msra.mxu0 0
        %843 = vmatprep.subr.bf16.mxu0 0
        %844 = vmatpush1.bf16.msra.mxu0 0
        %845 = vmatprep.subr.bf16.mxu0 0
        %846 = vmatpush1.bf16.msra.mxu0 0
        %847 = vmatprep.subr.bf16.mxu0 0
        %848 = vmatpush1.bf16.msra.mxu0 0
        %849 = vmatprep.subr.bf16.mxu0 0
        %850 = vmatpush1.bf16.msra.mxu0 0
        %851 = vmatprep.subr.bf16.mxu0 0
        %852 = vmatpush1.bf16.msra.mxu0 0
        %853 = vmatprep.subr.bf16.mxu0 0
        %854 = vmatpush1.bf16.msra.mxu0 0
        %855 = vmatprep.subr.bf16.mxu0 0
        %856 = vmatpush1.bf16.msra.mxu0 0
        %857 = vmatprep.subr.bf16.mxu0 0
        %858 = vmatpush1.bf16.msra.mxu0 0
        %859 = vmatprep.subr.bf16.mxu0 0
        %860 = vmatpush1.bf16.msra.mxu0 0
        %861 = vmatprep.mubr.bf16.mxu0 0
        %862 = vmatmul.mubr.bf16.gmra.mrb[0].mxu0 %v578
        %v863 = vpop.f32.mrb[0].mxu0
        %v864 = vadd.f32 %v782, %v863
        %v865 = vpop.f32.mrb[0].mxu0
        %v866 = vadd.f32 %v784, %v865
        %v867 = vpop.f32.mrb[0].mxu0
        %v868 = vpop.f32.mrb[0].mxu0
        %869 = vdwg.mxu0
        %870 = vmatprep.subr.bf16.mxu0 %v471
        %871 = vmatpush1.bf16.msra.mxu0 %v470
        %872 = vmatprep.subr.bf16.mxu0 %v493
        %873 = vmatpush1.bf16.msra.mxu0 %v490
        %874 = vmatprep.subr.bf16.mxu0 0
        %875 = vmatpush1.bf16.msra.mxu0 0
        %876 = vmatprep.subr.bf16.mxu0 0
        %877 = vmatpush1.bf16.msra.mxu0 0
        %878 = vmatprep.subr.bf16.mxu0 0
        %879 = vmatpush1.bf16.msra.mxu0 0
        %880 = vmatprep.subr.bf16.mxu0 0
        %881 = vmatpush1.bf16.msra.mxu0 0
        %882 = vmatprep.subr.bf16.mxu0 0
        %883 = vmatpush1.bf16.msra.mxu0 0
        %884 = vmatprep.subr.bf16.mxu0 0
        %885 = vmatpush1.bf16.msra.mxu0 0
        %886 = vmatprep.subr.bf16.mxu0 0
        %887 = vmatpush1.bf16.msra.mxu0 0
        %888 = vmatprep.subr.bf16.mxu0 0
        %889 = vmatpush1.bf16.msra.mxu0 0
        %890 = vmatprep.subr.bf16.mxu0 0
        %891 = vmatpush1.bf16.msra.mxu0 0
        %892 = vmatprep.subr.bf16.mxu0 0
        %893 = vmatpush1.bf16.msra.mxu0 0
        %894 = vmatprep.subr.bf16.mxu0 0
        %895 = vmatpush1.bf16.msra.mxu0 0
        %896 = vmatprep.subr.bf16.mxu0 0
        %897 = vmatpush1.bf16.msra.mxu0 0
        %898 = vmatprep.subr.bf16.mxu0 0
        %899 = vmatpush1.bf16.msra.mxu0 0
        %900 = vmatprep.subr.bf16.mxu0 0
        %901 = vmatpush1.bf16.msra.mxu0 0
        %902 = vmatprep.mubr.bf16.mxu0 0
        %903 = vmatmul.mubr.bf16.gmra.mrb[0].mxu0 %v578
        %v904 = vpop.f32.mrb[0].mxu0
        %v905 = vadd.f32 %v823, %v904
        %v906 = vpop.f32.mrb[0].mxu0
        %v907 = vadd.f32 %v825, %v906
        %v908 = vpop.f32.mrb[0].mxu0
        %v909 = vpop.f32.mrb[0].mxu0
        %910 = vdwg.mxu0
        %v911 = vld [vmem:[%s274 + $0x1] sm:$0x3f]
        %v912 = vpack.c.bf16 %v911, %v911
        %v914 = vsel %vm345, %v912, 0
        %916 = vmatprep.subr.bf16.mxu0 %v334
        %917 = vmatpush1.bf16.msra.mxu0 %v333
        %918 = vmatprep.subr.bf16.mxu0 %v354
        %919 = vmatpush1.bf16.msra.mxu0 %v351
        %920 = vmatprep.subr.bf16.mxu0 0
        %921 = vmatpush1.bf16.msra.mxu0 0
        %922 = vmatprep.subr.bf16.mxu0 0
        %923 = vmatpush1.bf16.msra.mxu0 0
        %924 = vmatprep.subr.bf16.mxu0 0
        %925 = vmatpush1.bf16.msra.mxu0 0
        %926 = vmatprep.subr.bf16.mxu0 0
        %927 = vmatpush1.bf16.msra.mxu0 0
        %928 = vmatprep.subr.bf16.mxu0 0
        %929 = vmatpush1.bf16.msra.mxu0 0
        %930 = vmatprep.subr.bf16.mxu0 0
        %931 = vmatpush1.bf16.msra.mxu0 0
        %932 = vmatprep.subr.bf16.mxu0 0
        %933 = vmatpush1.bf16.msra.mxu0 0
        %934 = vmatprep.subr.bf16.mxu0 0
        %935 = vmatpush1.bf16.msra.mxu0 0
        %936 = vmatprep.subr.bf16.mxu0 0
        %937 = vmatpush1.bf16.msra.mxu0 0
        %938 = vmatprep.subr.bf16.mxu0 0
        %939 = vmatpush1.bf16.msra.mxu0 0
        %940 = vmatprep.subr.bf16.mxu0 0
        %941 = vmatpush1.bf16.msra.mxu0 0
        %942 = vmatprep.subr.bf16.mxu0 0
        %943 = vmatpush1.bf16.msra.mxu0 0
        %944 = vmatprep.subr.bf16.mxu0 0
        %945 = vmatpush1.bf16.msra.mxu0 0
        %946 = vmatprep.subr.bf16.mxu0 0
        %947 = vmatpush1.bf16.msra.mxu0 0
        %948 = vmatprep.mubr.bf16.mxu0 0
        %949 = vmatmul.mubr.bf16.gmra.mrb[0].mxu0 %v914
        %v950 = vpop.f32.mrb[0].mxu0
        %v951 = vadd.f32 0.0, %v950
        %v952 = vpop.f32.mrb[0].mxu0
        %v953 = vadd.f32 0.0, %v952
        %v954 = vpop.f32.mrb[0].mxu0
        %v955 = vpop.f32.mrb[0].mxu0
        %956 = vdwg.mxu0
        %957 = vmatprep.subr.bf16.mxu0 %v336
        %958 = vmatpush1.bf16.msra.mxu0 %v335
        %959 = vmatprep.subr.bf16.mxu0 %v360
        %960 = vmatpush1.bf16.msra.mxu0 %v357
        %961 = vmatprep.subr.bf16.mxu0 0
        %962 = vmatpush1.bf16.msra.mxu0 0
        %963 = vmatprep.subr.bf16.mxu0 0
        %964 = vmatpush1.bf16.msra.mxu0 0
        %965 = vmatprep.subr.bf16.mxu0 0
        %966 = vmatpush1.bf16.msra.mxu0 0
        %967 = vmatprep.subr.bf16.mxu0 0
        %968 = vmatpush1.bf16.msra.mxu0 0
        %969 = vmatprep.subr.bf16.mxu0 0
        %970 = vmatpush1.bf16.msra.mxu0 0
        %971 = vmatprep.subr.bf16.mxu0 0
        %972 = vmatpush1.bf16.msra.mxu0 0
        %973 = vmatprep.subr.bf16.mxu0 0
        %974 = vmatpush1.bf16.msra.mxu0 0
        %975 = vmatprep.subr.bf16.mxu0 0
        %976 = vmatpush1.bf16.msra.mxu0 0
        %977 = vmatprep.subr.bf16.mxu0 0
        %978 = vmatpush1.bf16.msra.mxu0 0
        %979 = vmatprep.subr.bf16.mxu0 0
        %980 = vmatpush1.bf16.msra.mxu0 0
        %981 = vmatprep.subr.bf16.mxu0 0
        %982 = vmatpush1.bf16.msra.mxu0 0
        %983 = vmatprep.subr.bf16.mxu0 0
        %984 = vmatpush1.bf16.msra.mxu0 0
        %985 = vmatprep.subr.bf16.mxu0 0
        %986 = vmatpush1.bf16.msra.mxu0 0
        %987 = vmatprep.subr.bf16.mxu0 0
        %988 = vmatpush1.bf16.msra.mxu0 0
        %989 = vmatprep.mubr.bf16.mxu0 0
        %990 = vmatmul.mubr.bf16.gmra.mrb[0].mxu0 %v914
        %v991 = vpop.f32.mrb[0].mxu0
        %v992 = vadd.f32 0.0, %v991
        %v993 = vpop.f32.mrb[0].mxu0
        %v994 = vadd.f32 0.0, %v993
        %v995 = vpop.f32.mrb[0].mxu0
        %v996 = vpop.f32.mrb[0].mxu0
        %997 = vdwg.mxu0
        %998 = vmatprep.subr.bf16.mxu0 %v469
        %999 = vmatpush1.bf16.msra.mxu0 %v468
        %1000 = vmatprep.subr.bf16.mxu0 %v487
        %1001 = vmatpush1.bf16.msra.mxu0 %v484
        %1002 = vmatprep.subr.bf16.mxu0 0
        %1003 = vmatpush1.bf16.msra.mxu0 0
        %1004 = vmatprep.subr.bf16.mxu0 0
        %1005 = vmatpush1.bf16.msra.mxu0 0
        %1006 = vmatprep.subr.bf16.mxu0 0
        %1007 = vmatpush1.bf16.msra.mxu0 0
        %1008 = vmatprep.subr.bf16.mxu0 0
        %1009 = vmatpush1.bf16.msra.mxu0 0
        %1010 = vmatprep.subr.bf16.mxu0 0
        %1011 = vmatpush1.bf16.msra.mxu0 0
        %1012 = vmatprep.subr.bf16.mxu0 0
        %1013 = vmatpush1.bf16.msra.mxu0 0
        %1014 = vmatprep.subr.bf16.mxu0 0
        %1015 = vmatpush1.bf16.msra.mxu0 0
        %1016 = vmatprep.subr.bf16.mxu0 0
        %1017 = vmatpush1.bf16.msra.mxu0 0
        %1018 = vmatprep.subr.bf16.mxu0 0
        %1019 = vmatpush1.bf16.msra.mxu0 0
        %1020 = vmatprep.subr.bf16.mxu0 0
        %1021 = vmatpush1.bf16.msra.mxu0 0
        %1022 = vmatprep.subr.bf16.mxu0 0
        %1023 = vmatpush1.bf16.msra.mxu0 0
        %1024 = vmatprep.subr.bf16.mxu0 0
        %1025 = vmatpush1.bf16.msra.mxu0 0
        %1026 = vmatprep.subr.bf16.mxu0 0
        %1027 = vmatpush1.bf16.msra.mxu0 0
        %1028 = vmatprep.subr.bf16.mxu0 0
        %1029 = vmatpush1.bf16.msra.mxu0 0
        %1030 = vmatprep.mubr.bf16.mxu0 0
        %1031 = vmatmul.mubr.bf16.gmra.mrb[0].mxu0 %v745
        %v1032 = vpop.f32.mrb[0].mxu0
        %v1033 = vadd.f32 %v951, %v1032
        %v1034 = vpop.f32.mrb[0].mxu0
        %v1035 = vadd.f32 %v953, %v1034
        %v1036 = vpop.f32.mrb[0].mxu0
        %v1037 = vpop.f32.mrb[0].mxu0
        %1038 = vdwg.mxu0
        %1039 = vmatprep.subr.bf16.mxu0 %v471
        %1040 = vmatpush1.bf16.msra.mxu0 %v470
        %1041 = vmatprep.subr.bf16.mxu0 %v493
        %1042 = vmatpush1.bf16.msra.mxu0 %v490
        %1043 = vmatprep.subr.bf16.mxu0 0
        %1044 = vmatpush1.bf16.msra.mxu0 0
        %1045 = vmatprep.subr.bf16.mxu0 0
        %1046 = vmatpush1.bf16.msra.mxu0 0
        %1047 = vmatprep.subr.bf16.mxu0 0
        %1048 = vmatpush1.bf16.msra.mxu0 0
        %1049 = vmatprep.subr.bf16.mxu0 0
        %1050 = vmatpush1.bf16.msra.mxu0 0
        %1051 = vmatprep.subr.bf16.mxu0 0
        %1052 = vmatpush1.bf16.msra.mxu0 0
        %1053 = vmatprep.subr.bf16.mxu0 0
        %1054 = vmatpush1.bf16.msra.mxu0 0
        %1055 = vmatprep.subr.bf16.mxu0 0
        %1056 = vmatpush1.bf16.msra.mxu0 0
        %1057 = vmatprep.subr.bf16.mxu0 0
        %1058 = vmatpush1.bf16.msra.mxu0 0
        %1059 = vmatprep.subr.bf16.mxu0 0
        %1060 = vmatpush1.bf16.msra.mxu0 0
        %1061 = vmatprep.subr.bf16.mxu0 0
        %1062 = vmatpush1.bf16.msra.mxu0 0
        %1063 = vmatprep.subr.bf16.mxu0 0
        %1064 = vmatpush1.bf16.msra.mxu0 0
        %1065 = vmatprep.subr.bf16.mxu0 0
        %1066 = vmatpush1.bf16.msra.mxu0 0
        %1067 = vmatprep.subr.bf16.mxu0 0
        %1068 = vmatpush1.bf16.msra.mxu0 0
        %1069 = vmatprep.subr.bf16.mxu0 0
        %1070 = vmatpush1.bf16.msra.mxu0 0
        %1071 = vmatprep.mubr.bf16.mxu0 0
        %1072 = vmatmul.mubr.bf16.gmra.mrb[0].mxu0 %v745
        %v1073 = vpop.f32.mrb[0].mxu0
        %v1074 = vadd.f32 %v992, %v1073
        %v1075 = vpop.f32.mrb[0].mxu0
        %v1076 = vadd.f32 %v994, %v1075
        %v1077 = vpop.f32.mrb[0].mxu0
        %v1078 = vpop.f32.mrb[0].mxu0
        %1079 = vdwg.mxu0
        %s1080 = scalar_lea.vmem [#allocation2], 128
        %v1081 = vld [vmem:[%s1080] sm:$0xff]
        %v1082 = vld [vmem:[%s1080 + $0x8] sm:$0xff]
        %v1083 = vld [vmem:[%s1080 + $0x10] sm:$0xff]
        %v1084 = vld [vmem:[%s1080 + $0x18] sm:$0xff]
        %v1085 = vld [vmem:[%s1080 + $0x20] sm:$0xff]
        %v1086 = vld [vmem:[%s1080 + $0x28] sm:$0xff]
        %v1087 = vld [vmem:[%s1080 + $0x30] sm:$0x33]
        %v1088 = vld [vmem:[%s1080 + $0x38] sm:$0x33]
        %v1097 = vunpack.c.l.b16 %v1081
        %v1098 = vunpack.c.h.b16 %v1081
        %v1099 = vunpack.c.l.b16 %v1082
        %v1100 = vunpack.c.h.b16 %v1082
        %v1101 = vunpack.c.l.b16 %v1083
        %v1102 = vunpack.c.h.b16 %v1083
        %v1103 = vunpack.c.l.b16 %v1084
        %v1104 = vunpack.c.h.b16 %v1084
        %v1105 = vunpack.c.l.b16 %v1085
        %v1106 = vunpack.c.h.b16 %v1085
        %v1107 = vunpack.c.l.b16 %v1086
        %v1108 = vunpack.c.h.b16 %v1086
        %v1109 = vunpack.c.l.b16 %v1087
        %v1110 = vunpack.c.h.b16 %v1087
        %v1111 = vunpack.c.l.b16 %v1088
        %v1112 = vunpack.c.h.b16 %v1088
        %v1113 = vpack.c.b16 %v1101, %v1097
        %v1114 = vpack.c.b16 %v1102, %v1098
        %v1115 = vpack.c.b16 %v1103, %v1099
        %v1116 = vpack.c.b16 %v1104, %v1100
        %v1117 = vpack.c.b16 %v1109, %v1105
        %v1118 = vpack.c.b16 %v1110, %v1106
        %v1119 = vpack.c.b16 %v1111, %v1107
        %v1120 = vpack.c.b16 %v1112, %v1108
        %v1126 = vsel %vm349, %v1117, 0
        %v1129 = vsel %vm349, %v1118, 0
        %v1132 = vsel %vm349, %v1119, 0
        %v1135 = vsel %vm349, %v1120, 0
        %1137 = vmatprep.subr.bf16.mxu0 %v1114
        %1138 = vmatpush1.bf16.msra.mxu0 %v1113
        %1139 = vmatprep.subr.bf16.mxu0 %v1129
        %1140 = vmatpush1.bf16.msra.mxu0 %v1126
        %1141 = vmatprep.subr.bf16.mxu0 0
        %1142 = vmatpush1.bf16.msra.mxu0 0
        %1143 = vmatprep.subr.bf16.mxu0 0
        %1144 = vmatpush1.bf16.msra.mxu0 0
        %1145 = vmatprep.subr.bf16.mxu0 0
        %1146 = vmatpush1.bf16.msra.mxu0 0
        %1147 = vmatprep.subr.bf16.mxu0 0
        %1148 = vmatpush1.bf16.msra.mxu0 0
        %1149 = vmatprep.subr.bf16.mxu0 0
        %1150 = vmatpush1.bf16.msra.mxu0 0
        %1151 = vmatprep.subr.bf16.mxu0 0
        %1152 = vmatpush1.bf16.msra.mxu0 0
        %1153 = vmatprep.subr.bf16.mxu0 0
        %1154 = vmatpush1.bf16.msra.mxu0 0
        %1155 = vmatprep.subr.bf16.mxu0 0
        %1156 = vmatpush1.bf16.msra.mxu0 0
        %1157 = vmatprep.subr.bf16.mxu0 0
        %1158 = vmatpush1.bf16.msra.mxu0 0
        %1159 = vmatprep.subr.bf16.mxu0 0
        %1160 = vmatpush1.bf16.msra.mxu0 0
        %1161 = vmatprep.subr.bf16.mxu0 0
        %1162 = vmatpush1.bf16.msra.mxu0 0
        %1163 = vmatprep.subr.bf16.mxu0 0
        %1164 = vmatpush1.bf16.msra.mxu0 0
        %1165 = vmatprep.subr.bf16.mxu0 0
        %1166 = vmatpush1.bf16.msra.mxu0 0
        %1167 = vmatprep.subr.bf16.mxu0 0
        %1168 = vmatpush1.bf16.msra.mxu0 0
        %1169 = vmatprep.mubr.bf16.mxu0 0
        %1170 = vmatmul.mubr.bf16.gmra.mrb[0].mxu0 %v578
        %v1171 = vpop.f32.mrb[0].mxu0
        %v1172 = vadd.f32 0.0, %v1171
        %v1173 = vpop.f32.mrb[0].mxu0
        %v1174 = vadd.f32 0.0, %v1173
        %v1175 = vpop.f32.mrb[0].mxu0
        %v1176 = vpop.f32.mrb[0].mxu0
        %1177 = vdwg.mxu0
        %1178 = vmatprep.subr.bf16.mxu0 %v1116
        %1179 = vmatpush1.bf16.msra.mxu0 %v1115
        %1180 = vmatprep.subr.bf16.mxu0 %v1135
        %1181 = vmatpush1.bf16.msra.mxu0 %v1132
        %1182 = vmatprep.subr.bf16.mxu0 0
        %1183 = vmatpush1.bf16.msra.mxu0 0
        %1184 = vmatprep.subr.bf16.mxu0 0
        %1185 = vmatpush1.bf16.msra.mxu0 0
        %1186 = vmatprep.subr.bf16.mxu0 0
        %1187 = vmatpush1.bf16.msra.mxu0 0
        %1188 = vmatprep.subr.bf16.mxu0 0
        %1189 = vmatpush1.bf16.msra.mxu0 0
        %1190 = vmatprep.subr.bf16.mxu0 0
        %1191 = vmatpush1.bf16.msra.mxu0 0
        %1192 = vmatprep.subr.bf16.mxu0 0
        %1193 = vmatpush1.bf16.msra.mxu0 0
        %1194 = vmatprep.subr.bf16.mxu0 0
        %1195 = vmatpush1.bf16.msra.mxu0 0
        %1196 = vmatprep.subr.bf16.mxu0 0
        %1197 = vmatpush1.bf16.msra.mxu0 0
        %1198 = vmatprep.subr.bf16.mxu0 0
        %1199 = vmatpush1.bf16.msra.mxu0 0
        %1200 = vmatprep.subr.bf16.mxu0 0
        %1201 = vmatpush1.bf16.msra.mxu0 0
        %1202 = vmatprep.subr.bf16.mxu0 0
        %1203 = vmatpush1.bf16.msra.mxu0 0
        %1204 = vmatprep.subr.bf16.mxu0 0
        %1205 = vmatpush1.bf16.msra.mxu0 0
        %1206 = vmatprep.subr.bf16.mxu0 0
        %1207 = vmatpush1.bf16.msra.mxu0 0
        %1208 = vmatprep.subr.bf16.mxu0 0
        %1209 = vmatpush1.bf16.msra.mxu0 0
        %1210 = vmatprep.mubr.bf16.mxu0 0
        %1211 = vmatmul.mubr.bf16.gmra.mrb[0].mxu0 %v578
        %v1212 = vpop.f32.mrb[0].mxu0
        %v1213 = vadd.f32 0.0, %v1212
        %v1214 = vpop.f32.mrb[0].mxu0
        %v1215 = vadd.f32 0.0, %v1214
        %v1216 = vpop.f32.mrb[0].mxu0
        %v1217 = vpop.f32.mrb[0].mxu0
        %1218 = vdwg.mxu0
        %v1219 = vadd.f32 %v530, %v1172
        %v1220 = vadd.f32 %v532, %v1174
        %v1221 = vadd.f32 %v571, %v1213
        %v1222 = vadd.f32 %v573, %v1215
        %1223 = vmatprep.subr.bf16.mxu0 %v1114
        %1224 = vmatpush1.bf16.msra.mxu0 %v1113
        %1225 = vmatprep.subr.bf16.mxu0 %v1129
        %1226 = vmatpush1.bf16.msra.mxu0 %v1126
        %1227 = vmatprep.subr.bf16.mxu0 0
        %1228 = vmatpush1.bf16.msra.mxu0 0
        %1229 = vmatprep.subr.bf16.mxu0 0
        %1230 = vmatpush1.bf16.msra.mxu0 0
        %1231 = vmatprep.subr.bf16.mxu0 0
        %1232 = vmatpush1.bf16.msra.mxu0 0
        %1233 = vmatprep.subr.bf16.mxu0 0
        %1234 = vmatpush1.bf16.msra.mxu0 0
        %1235 = vmatprep.subr.bf16.mxu0 0
        %1236 = vmatpush1.bf16.msra.mxu0 0
        %1237 = vmatprep.subr.bf16.mxu0 0
        %1238 = vmatpush1.bf16.msra.mxu0 0
        %1239 = vmatprep.subr.bf16.mxu0 0
        %1240 = vmatpush1.bf16.msra.mxu0 0
        %1241 = vmatprep.subr.bf16.mxu0 0
        %1242 = vmatpush1.bf16.msra.mxu0 0
        %1243 = vmatprep.subr.bf16.mxu0 0
        %1244 = vmatpush1.bf16.msra.mxu0 0
        %1245 = vmatprep.subr.bf16.mxu0 0
        %1246 = vmatpush1.bf16.msra.mxu0 0
        %1247 = vmatprep.subr.bf16.mxu0 0
        %1248 = vmatpush1.bf16.msra.mxu0 0
        %1249 = vmatprep.subr.bf16.mxu0 0
        %1250 = vmatpush1.bf16.msra.mxu0 0
        %1251 = vmatprep.subr.bf16.mxu0 0
        %1252 = vmatpush1.bf16.msra.mxu0 0
        %1253 = vmatprep.subr.bf16.mxu0 0
        %1254 = vmatpush1.bf16.msra.mxu0 0
        %1255 = vmatprep.mubr.bf16.mxu0 0
        %1256 = vmatmul.mubr.bf16.gmra.mrb[0].mxu0 %v745
        %v1257 = vpop.f32.mrb[0].mxu0
        %v1258 = vadd.f32 0.0, %v1257
        %v1259 = vpop.f32.mrb[0].mxu0
        %v1260 = vadd.f32 0.0, %v1259
        %v1261 = vpop.f32.mrb[0].mxu0
        %v1262 = vpop.f32.mrb[0].mxu0
        %1263 = vdwg.mxu0
        %1264 = vmatprep.subr.bf16.mxu0 %v1116
        %1265 = vmatpush1.bf16.msra.mxu0 %v1115
        %1266 = vmatprep.subr.bf16.mxu0 %v1135
        %1267 = vmatpush1.bf16.msra.mxu0 %v1132
        %1268 = vmatprep.subr.bf16.mxu0 0
        %1269 = vmatpush1.bf16.msra.mxu0 0
        %1270 = vmatprep.subr.bf16.mxu0 0
        %1271 = vmatpush1.bf16.msra.mxu0 0
        %1272 = vmatprep.subr.bf16.mxu0 0
        %1273 = vmatpush1.bf16.msra.mxu0 0
        %1274 = vmatprep.subr.bf16.mxu0 0
        %1275 = vmatpush1.bf16.msra.mxu0 0
        %1276 = vmatprep.subr.bf16.mxu0 0
        %1277 = vmatpush1.bf16.msra.mxu0 0
        %1278 = vmatprep.subr.bf16.mxu0 0
        %1279 = vmatpush1.bf16.msra.mxu0 0
        %1280 = vmatprep.subr.bf16.mxu0 0
        %1281 = vmatpush1.bf16.msra.mxu0 0
        %1282 = vmatprep.subr.bf16.mxu0 0
        %1283 = vmatpush1.bf16.msra.mxu0 0
        %1284 = vmatprep.subr.bf16.mxu0 0
        %1285 = vmatpush1.bf16.msra.mxu0 0
        %1286 = vmatprep.subr.bf16.mxu0 0
        %1287 = vmatpush1.bf16.msra.mxu0 0
        %1288 = vmatprep.subr.bf16.mxu0 0
        %1289 = vmatpush1.bf16.msra.mxu0 0
        %1290 = vmatprep.subr.bf16.mxu0 0
        %1291 = vmatpush1.bf16.msra.mxu0 0
        %1292 = vmatprep.subr.bf16.mxu0 0
        %1293 = vmatpush1.bf16.msra.mxu0 0
        %1294 = vmatprep.subr.bf16.mxu0 0
        %1295 = vmatpush1.bf16.msra.mxu0 0
        %1296 = vmatprep.mubr.bf16.mxu0 0
        %1297 = vmatmul.mubr.bf16.gmra.mrb[0].mxu0 %v745
        %v1298 = vpop.f32.mrb[0].mxu0
        %v1299 = vadd.f32 0.0, %v1298
        %v1300 = vpop.f32.mrb[0].mxu0
        %v1301 = vadd.f32 0.0, %v1300
        %v1302 = vpop.f32.mrb[0].mxu0
        %v1303 = vpop.f32.mrb[0].mxu0
        %1304 = vdwg.mxu0
        %v1305 = vadd.f32 %v697, %v1258
        %v1306 = vadd.f32 %v699, %v1260
        %v1307 = vadd.f32 %v738, %v1299
        %v1308 = vadd.f32 %v740, %v1301
        %1309 = vmatprep.subr.bf16.mxu0 %v1114
        %1310 = vmatpush1.bf16.msra.mxu0 %v1113
        %1311 = vmatprep.subr.bf16.mxu0 %v1129
        %1312 = vmatpush1.bf16.msra.mxu0 %v1126
        %1313 = vmatprep.subr.bf16.mxu0 0
        %1314 = vmatpush1.bf16.msra.mxu0 0
        %1315 = vmatprep.subr.bf16.mxu0 0
        %1316 = vmatpush1.bf16.msra.mxu0 0
        %1317 = vmatprep.subr.bf16.mxu0 0
        %1318 = vmatpush1.bf16.msra.mxu0 0
        %1319 = vmatprep.subr.bf16.mxu0 0
        %1320 = vmatpush1.bf16.msra.mxu0 0
        %1321 = vmatprep.subr.bf16.mxu0 0
        %1322 = vmatpush1.bf16.msra.mxu0 0
        %1323 = vmatprep.subr.bf16.mxu0 0
        %1324 = vmatpush1.bf16.msra.mxu0 0
        %1325 = vmatprep.subr.bf16.mxu0 0
        %1326 = vmatpush1.bf16.msra.mxu0 0
        %1327 = vmatprep.subr.bf16.mxu0 0
        %1328 = vmatpush1.bf16.msra.mxu0 0
        %1329 = vmatprep.subr.bf16.mxu0 0
        %1330 = vmatpush1.bf16.msra.mxu0 0
        %1331 = vmatprep.subr.bf16.mxu0 0
        %1332 = vmatpush1.bf16.msra.mxu0 0
        %1333 = vmatprep.subr.bf16.mxu0 0
        %1334 = vmatpush1.bf16.msra.mxu0 0
        %1335 = vmatprep.subr.bf16.mxu0 0
        %1336 = vmatpush1.bf16.msra.mxu0 0
        %1337 = vmatprep.subr.bf16.mxu0 0
        %1338 = vmatpush1.bf16.msra.mxu0 0
        %1339 = vmatprep.subr.bf16.mxu0 0
        %1340 = vmatpush1.bf16.msra.mxu0 0
        %1341 = vmatprep.mubr.bf16.mxu0 0
        %1342 = vmatmul.mubr.bf16.gmra.mrb[0].mxu0 %v914
        %v1343 = vpop.f32.mrb[0].mxu0
        %v1344 = vadd.f32 0.0, %v1343
        %v1345 = vpop.f32.mrb[0].mxu0
        %v1346 = vadd.f32 0.0, %v1345
        %v1347 = vpop.f32.mrb[0].mxu0
        %v1348 = vpop.f32.mrb[0].mxu0
        %1349 = vdwg.mxu0
        %1350 = vmatprep.subr.bf16.mxu0 %v1116
        %1351 = vmatpush1.bf16.msra.mxu0 %v1115
        %1352 = vmatprep.subr.bf16.mxu0 %v1135
        %1353 = vmatpush1.bf16.msra.mxu0 %v1132
        %1354 = vmatprep.subr.bf16.mxu0 0
        %1355 = vmatpush1.bf16.msra.mxu0 0
        %1356 = vmatprep.subr.bf16.mxu0 0
        %1357 = vmatpush1.bf16.msra.mxu0 0
        %1358 = vmatprep.subr.bf16.mxu0 0
        %1359 = vmatpush1.bf16.msra.mxu0 0
        %1360 = vmatprep.subr.bf16.mxu0 0
        %1361 = vmatpush1.bf16.msra.mxu0 0
        %1362 = vmatprep.subr.bf16.mxu0 0
        %1363 = vmatpush1.bf16.msra.mxu0 0
        %1364 = vmatprep.subr.bf16.mxu0 0
        %1365 = vmatpush1.bf16.msra.mxu0 0
        %1366 = vmatprep.subr.bf16.mxu0 0
        %1367 = vmatpush1.bf16.msra.mxu0 0
        %1368 = vmatprep.subr.bf16.mxu0 0
        %1369 = vmatpush1.bf16.msra.mxu0 0
        %1370 = vmatprep.subr.bf16.mxu0 0
        %1371 = vmatpush1.bf16.msra.mxu0 0
        %1372 = vmatprep.subr.bf16.mxu0 0
        %1373 = vmatpush1.bf16.msra.mxu0 0
        %1374 = vmatprep.subr.bf16.mxu0 0
        %1375 = vmatpush1.bf16.msra.mxu0 0
        %1376 = vmatprep.subr.bf16.mxu0 0
        %1377 = vmatpush1.bf16.msra.mxu0 0
        %1378 = vmatprep.subr.bf16.mxu0 0
        %1379 = vmatpush1.bf16.msra.mxu0 0
        %1380 = vmatprep.subr.bf16.mxu0 0
        %1381 = vmatpush1.bf16.msra.mxu0 0
        %1382 = vmatprep.mubr.bf16.mxu0 0
        %1383 = vmatmul.mubr.bf16.gmra.mrb[0].mxu0 %v914
        %v1384 = vpop.f32.mrb[0].mxu0
        %v1385 = vadd.f32 0.0, %v1384
        %v1386 = vpop.f32.mrb[0].mxu0
        %v1387 = vadd.f32 0.0, %v1386
        %v1388 = vpop.f32.mrb[0].mxu0
        %v1389 = vpop.f32.mrb[0].mxu0
        %1390 = vdwg.mxu0
        %v1391 = vadd.f32 %v864, %v1344
        %v1392 = vadd.f32 %v866, %v1346
        %v1393 = vadd.f32 %v905, %v1385
        %v1394 = vadd.f32 %v907, %v1387
        %v1395 = vld [vmem:[%s291 + $0x1] sm:$0x3f]
        %v1396 = vpack.c.bf16 %v1395, %v1395
        %v1398 = vsel %vm345, %v1396, 0
        %1400 = vmatprep.subr.bf16.mxu0 %v1114
        %1401 = vmatpush1.bf16.msra.mxu0 %v1113
        %1402 = vmatprep.subr.bf16.mxu0 %v1129
        %1403 = vmatpush1.bf16.msra.mxu0 %v1126
        %1404 = vmatprep.subr.bf16.mxu0 0
        %1405 = vmatpush1.bf16.msra.mxu0 0
        %1406 = vmatprep.subr.bf16.mxu0 0
        %1407 = vmatpush1.bf16.msra.mxu0 0
        %1408 = vmatprep.subr.bf16.mxu0 0
        %1409 = vmatpush1.bf16.msra.mxu0 0
        %1410 = vmatprep.subr.bf16.mxu0 0
        %1411 = vmatpush1.bf16.msra.mxu0 0
        %1412 = vmatprep.subr.bf16.mxu0 0
        %1413 = vmatpush1.bf16.msra.mxu0 0
        %1414 = vmatprep.subr.bf16.mxu0 0
        %1415 = vmatpush1.bf16.msra.mxu0 0
        %1416 = vmatprep.subr.bf16.mxu0 0
        %1417 = vmatpush1.bf16.msra.mxu0 0
        %1418 = vmatprep.subr.bf16.mxu0 0
        %1419 = vmatpush1.bf16.msra.mxu0 0
        %1420 = vmatprep.subr.bf16.mxu0 0
        %1421 = vmatpush1.bf16.msra.mxu0 0
        %1422 = vmatprep.subr.bf16.mxu0 0
        %1423 = vmatpush1.bf16.msra.mxu0 0
        %1424 = vmatprep.subr.bf16.mxu0 0
        %1425 = vmatpush1.bf16.msra.mxu0 0
        %1426 = vmatprep.subr.bf16.mxu0 0
        %1427 = vmatpush1.bf16.msra.mxu0 0
        %1428 = vmatprep.subr.bf16.mxu0 0
        %1429 = vmatpush1.bf16.msra.mxu0 0
        %1430 = vmatprep.subr.bf16.mxu0 0
        %1431 = vmatpush1.bf16.msra.mxu0 0
        %1432 = vmatprep.mubr.bf16.mxu0 0
        %1433 = vmatmul.mubr.bf16.gmra.mrb[0].mxu0 %v1398
        %v1434 = vpop.f32.mrb[0].mxu0
        %v1435 = vadd.f32 0.0, %v1434
        %v1436 = vpop.f32.mrb[0].mxu0
        %v1437 = vadd.f32 0.0, %v1436
        %v1438 = vpop.f32.mrb[0].mxu0
        %v1439 = vpop.f32.mrb[0].mxu0
        %1440 = vdwg.mxu0
        %1441 = vmatprep.subr.bf16.mxu0 %v1116
        %1442 = vmatpush1.bf16.msra.mxu0 %v1115
        %1443 = vmatprep.subr.bf16.mxu0 %v1135
        %1444 = vmatpush1.bf16.msra.mxu0 %v1132
        %1445 = vmatprep.subr.bf16.mxu0 0
        %1446 = vmatpush1.bf16.msra.mxu0 0
        %1447 = vmatprep.subr.bf16.mxu0 0
        %1448 = vmatpush1.bf16.msra.mxu0 0
        %1449 = vmatprep.subr.bf16.mxu0 0
        %1450 = vmatpush1.bf16.msra.mxu0 0
        %1451 = vmatprep.subr.bf16.mxu0 0
        %1452 = vmatpush1.bf16.msra.mxu0 0
        %1453 = vmatprep.subr.bf16.mxu0 0
        %1454 = vmatpush1.bf16.msra.mxu0 0
        %1455 = vmatprep.subr.bf16.mxu0 0
        %1456 = vmatpush1.bf16.msra.mxu0 0
        %1457 = vmatprep.subr.bf16.mxu0 0
        %1458 = vmatpush1.bf16.msra.mxu0 0
        %1459 = vmatprep.subr.bf16.mxu0 0
        %1460 = vmatpush1.bf16.msra.mxu0 0
        %1461 = vmatprep.subr.bf16.mxu0 0
        %1462 = vmatpush1.bf16.msra.mxu0 0
        %1463 = vmatprep.subr.bf16.mxu0 0
        %1464 = vmatpush1.bf16.msra.mxu0 0
        %1465 = vmatprep.subr.bf16.mxu0 0
        %1466 = vmatpush1.bf16.msra.mxu0 0
        %1467 = vmatprep.subr.bf16.mxu0 0
        %1468 = vmatpush1.bf16.msra.mxu0 0
        %1469 = vmatprep.subr.bf16.mxu0 0
        %1470 = vmatpush1.bf16.msra.mxu0 0
        %1471 = vmatprep.subr.bf16.mxu0 0
        %1472 = vmatpush1.bf16.msra.mxu0 0
        %1473 = vmatprep.mubr.bf16.mxu0 0
        %1474 = vmatmul.mubr.bf16.gmra.mrb[0].mxu0 %v1398
        %v1475 = vpop.f32.mrb[0].mxu0
        %v1476 = vadd.f32 0.0, %v1475
        %v1477 = vpop.f32.mrb[0].mxu0
        %v1478 = vadd.f32 0.0, %v1477
        %v1479 = vpop.f32.mrb[0].mxu0
        %v1480 = vpop.f32.mrb[0].mxu0
        %1481 = vdwg.mxu0
        %v1482 = vadd.f32 %v1033, %v1435
        %v1483 = vadd.f32 %v1035, %v1437
        %v1484 = vadd.f32 %v1074, %v1476
        %v1485 = vadd.f32 %v1076, %v1478
        %s1486 = scalar_lea.vmem [#allocation2], 192
        %v1487 = vld [vmem:[%s1486] sm:$0xff]
        %v1488 = vld [vmem:[%s1486 + $0x8] sm:$0xff]
        %v1489 = vld [vmem:[%s1486 + $0x10] sm:$0xff]
        %v1490 = vld [vmem:[%s1486 + $0x18] sm:$0xff]
        %v1491 = vld [vmem:[%s1486 + $0x20] sm:$0xff]
        %v1492 = vld [vmem:[%s1486 + $0x28] sm:$0xff]
        %v1493 = vld [vmem:[%s1486 + $0x30] sm:$0x33]
        %v1494 = vld [vmem:[%s1486 + $0x38] sm:$0x33]
        %v1503 = vunpack.c.l.b16 %v1487
        %v1504 = vunpack.c.h.b16 %v1487
        %v1505 = vunpack.c.l.b16 %v1488
        %v1506 = vunpack.c.h.b16 %v1488
        %v1507 = vunpack.c.l.b16 %v1489
        %v1508 = vunpack.c.h.b16 %v1489
        %v1509 = vunpack.c.l.b16 %v1490
        %v1510 = vunpack.c.h.b16 %v1490
        %v1511 = vunpack.c.l.b16 %v1491
        %v1512 = vunpack.c.h.b16 %v1491
        %v1513 = vunpack.c.l.b16 %v1492
        %v1514 = vunpack.c.h.b16 %v1492
        %v1515 = vunpack.c.l.b16 %v1493
        %v1516 = vunpack.c.h.b16 %v1493
        %v1517 = vunpack.c.l.b16 %v1494
        %v1518 = vunpack.c.h.b16 %v1494
        %v1519 = vpack.c.b16 %v1507, %v1503
        %v1520 = vpack.c.b16 %v1508, %v1504
        %v1521 = vpack.c.b16 %v1509, %v1505
        %v1522 = vpack.c.b16 %v1510, %v1506
        %v1523 = vpack.c.b16 %v1515, %v1511
        %v1524 = vpack.c.b16 %v1516, %v1512
        %v1525 = vpack.c.b16 %v1517, %v1513
        %v1526 = vpack.c.b16 %v1518, %v1514
        %v1532 = vsel %vm349, %v1523, 0
        %v1535 = vsel %vm349, %v1524, 0
        %v1538 = vsel %vm349, %v1525, 0
        %v1541 = vsel %vm349, %v1526, 0
        %1543 = vmatprep.subr.bf16.mxu0 %v1520
        %1544 = vmatpush1.bf16.msra.mxu0 %v1519
        %1545 = vmatprep.subr.bf16.mxu0 %v1535
        %1546 = vmatpush1.bf16.msra.mxu0 %v1532
        %1547 = vmatprep.subr.bf16.mxu0 0
        %1548 = vmatpush1.bf16.msra.mxu0 0
        %1549 = vmatprep.subr.bf16.mxu0 0
        %1550 = vmatpush1.bf16.msra.mxu0 0
        %1551 = vmatprep.subr.bf16.mxu0 0
        %1552 = vmatpush1.bf16.msra.mxu0 0
        %1553 = vmatprep.subr.bf16.mxu0 0
        %1554 = vmatpush1.bf16.msra.mxu0 0
        %1555 = vmatprep.subr.bf16.mxu0 0
        %1556 = vmatpush1.bf16.msra.mxu0 0
        %1557 = vmatprep.subr.bf16.mxu0 0
        %1558 = vmatpush1.bf16.msra.mxu0 0
        %1559 = vmatprep.subr.bf16.mxu0 0
        %1560 = vmatpush1.bf16.msra.mxu0 0
        %1561 = vmatprep.subr.bf16.mxu0 0
        %1562 = vmatpush1.bf16.msra.mxu0 0
        %1563 = vmatprep.subr.bf16.mxu0 0
        %1564 = vmatpush1.bf16.msra.mxu0 0
        %1565 = vmatprep.subr.bf16.mxu0 0
        %1566 = vmatpush1.bf16.msra.mxu0 0
        %1567 = vmatprep.subr.bf16.mxu0 0
        %1568 = vmatpush1.bf16.msra.mxu0 0
        %1569 = vmatprep.subr.bf16.mxu0 0
        %1570 = vmatpush1.bf16.msra.mxu0 0
        %1571 = vmatprep.subr.bf16.mxu0 0
        %1572 = vmatpush1.bf16.msra.mxu0 0
        %1573 = vmatprep.subr.bf16.mxu0 0
        %1574 = vmatpush1.bf16.msra.mxu0 0
        %1575 = vmatprep.mubr.bf16.mxu0 0
        %1576 = vmatmul.mubr.bf16.gmra.mrb[0].mxu0 %v745
        %v1577 = vpop.f32.mrb[0].mxu0
        %v1578 = vadd.f32 0.0, %v1577
        %v1579 = vpop.f32.mrb[0].mxu0
        %v1580 = vadd.f32 0.0, %v1579
        %v1581 = vpop.f32.mrb[0].mxu0
        %v1582 = vpop.f32.mrb[0].mxu0
        %1583 = vdwg.mxu0
        %1584 = vmatprep.subr.bf16.mxu0 %v1522
        %1585 = vmatpush1.bf16.msra.mxu0 %v1521
        %1586 = vmatprep.subr.bf16.mxu0 %v1541
        %1587 = vmatpush1.bf16.msra.mxu0 %v1538
        %1588 = vmatprep.subr.bf16.mxu0 0
        %1589 = vmatpush1.bf16.msra.mxu0 0
        %1590 = vmatprep.subr.bf16.mxu0 0
        %1591 = vmatpush1.bf16.msra.mxu0 0
        %1592 = vmatprep.subr.bf16.mxu0 0
        %1593 = vmatpush1.bf16.msra.mxu0 0
        %1594 = vmatprep.subr.bf16.mxu0 0
        %1595 = vmatpush1.bf16.msra.mxu0 0
        %1596 = vmatprep.subr.bf16.mxu0 0
        %1597 = vmatpush1.bf16.msra.mxu0 0
        %1598 = vmatprep.subr.bf16.mxu0 0
        %1599 = vmatpush1.bf16.msra.mxu0 0
        %1600 = vmatprep.subr.bf16.mxu0 0
        %1601 = vmatpush1.bf16.msra.mxu0 0
        %1602 = vmatprep.subr.bf16.mxu0 0
        %1603 = vmatpush1.bf16.msra.mxu0 0
        %1604 = vmatprep.subr.bf16.mxu0 0
        %1605 = vmatpush1.bf16.msra.mxu0 0
        %1606 = vmatprep.subr.bf16.mxu0 0
        %1607 = vmatpush1.bf16.msra.mxu0 0
        %1608 = vmatprep.subr.bf16.mxu0 0
        %1609 = vmatpush1.bf16.msra.mxu0 0
        %1610 = vmatprep.subr.bf16.mxu0 0
        %1611 = vmatpush1.bf16.msra.mxu0 0
        %1612 = vmatprep.subr.bf16.mxu0 0
        %1613 = vmatpush1.bf16.msra.mxu0 0
        %1614 = vmatprep.subr.bf16.mxu0 0
        %1615 = vmatpush1.bf16.msra.mxu0 0
        %1616 = vmatprep.mubr.bf16.mxu0 0
        %1617 = vmatmul.mubr.bf16.gmra.mrb[0].mxu0 %v745
        %v1618 = vpop.f32.mrb[0].mxu0
        %v1619 = vadd.f32 0.0, %v1618
        %v1620 = vpop.f32.mrb[0].mxu0
        %v1621 = vadd.f32 0.0, %v1620
        %v1622 = vpop.f32.mrb[0].mxu0
        %v1623 = vpop.f32.mrb[0].mxu0
        %1624 = vdwg.mxu0
        %v1625 = vadd.f32 %v1219, %v1578
        %v1626 = vadd.f32 %v1220, %v1580
        %v1627 = vadd.f32 %v1221, %v1619
        %v1628 = vadd.f32 %v1222, %v1621
        %1629 = vmatprep.subr.bf16.mxu0 %v1520
        %1630 = vmatpush1.bf16.msra.mxu0 %v1519
        %1631 = vmatprep.subr.bf16.mxu0 %v1535
        %1632 = vmatpush1.bf16.msra.mxu0 %v1532
        %1633 = vmatprep.subr.bf16.mxu0 0
        %1634 = vmatpush1.bf16.msra.mxu0 0
        %1635 = vmatprep.subr.bf16.mxu0 0
        %1636 = vmatpush1.bf16.msra.mxu0 0
        %1637 = vmatprep.subr.bf16.mxu0 0
        %1638 = vmatpush1.bf16.msra.mxu0 0
        %1639 = vmatprep.subr.bf16.mxu0 0
        %1640 = vmatpush1.bf16.msra.mxu0 0
        %1641 = vmatprep.subr.bf16.mxu0 0
        %1642 = vmatpush1.bf16.msra.mxu0 0
        %1643 = vmatprep.subr.bf16.mxu0 0
        %1644 = vmatpush1.bf16.msra.mxu0 0
        %1645 = vmatprep.subr.bf16.mxu0 0
        %1646 = vmatpush1.bf16.msra.mxu0 0
        %1647 = vmatprep.subr.bf16.mxu0 0
        %1648 = vmatpush1.bf16.msra.mxu0 0
        %1649 = vmatprep.subr.bf16.mxu0 0
        %1650 = vmatpush1.bf16.msra.mxu0 0
        %1651 = vmatprep.subr.bf16.mxu0 0
        %1652 = vmatpush1.bf16.msra.mxu0 0
        %1653 = vmatprep.subr.bf16.mxu0 0
        %1654 = vmatpush1.bf16.msra.mxu0 0
        %1655 = vmatprep.subr.bf16.mxu0 0
        %1656 = vmatpush1.bf16.msra.mxu0 0
        %1657 = vmatprep.subr.bf16.mxu0 0
        %1658 = vmatpush1.bf16.msra.mxu0 0
        %1659 = vmatprep.subr.bf16.mxu0 0
        %1660 = vmatpush1.bf16.msra.mxu0 0
        %1661 = vmatprep.mubr.bf16.mxu0 0
        %1662 = vmatmul.mubr.bf16.gmra.mrb[0].mxu0 %v914
        %v1663 = vpop.f32.mrb[0].mxu0
        %v1664 = vadd.f32 0.0, %v1663
        %v1665 = vpop.f32.mrb[0].mxu0
        %v1666 = vadd.f32 0.0, %v1665
        %v1667 = vpop.f32.mrb[0].mxu0
        %v1668 = vpop.f32.mrb[0].mxu0
        %1669 = vdwg.mxu0
        %1670 = vmatprep.subr.bf16.mxu0 %v1522
        %1671 = vmatpush1.bf16.msra.mxu0 %v1521
        %1672 = vmatprep.subr.bf16.mxu0 %v1541
        %1673 = vmatpush1.bf16.msra.mxu0 %v1538
        %1674 = vmatprep.subr.bf16.mxu0 0
        %1675 = vmatpush1.bf16.msra.mxu0 0
        %1676 = vmatprep.subr.bf16.mxu0 0
        %1677 = vmatpush1.bf16.msra.mxu0 0
        %1678 = vmatprep.subr.bf16.mxu0 0
        %1679 = vmatpush1.bf16.msra.mxu0 0
        %1680 = vmatprep.subr.bf16.mxu0 0
        %1681 = vmatpush1.bf16.msra.mxu0 0
        %1682 = vmatprep.subr.bf16.mxu0 0
        %1683 = vmatpush1.bf16.msra.mxu0 0
        %1684 = vmatprep.subr.bf16.mxu0 0
        %1685 = vmatpush1.bf16.msra.mxu0 0
        %1686 = vmatprep.subr.bf16.mxu0 0
        %1687 = vmatpush1.bf16.msra.mxu0 0
        %1688 = vmatprep.subr.bf16.mxu0 0
        %1689 = vmatpush1.bf16.msra.mxu0 0
        %1690 = vmatprep.subr.bf16.mxu0 0
        %1691 = vmatpush1.bf16.msra.mxu0 0
        %1692 = vmatprep.subr.bf16.mxu0 0
        %1693 = vmatpush1.bf16.msra.mxu0 0
        %1694 = vmatprep.subr.bf16.mxu0 0
        %1695 = vmatpush1.bf16.msra.mxu0 0
        %1696 = vmatprep.subr.bf16.mxu0 0
        %1697 = vmatpush1.bf16.msra.mxu0 0
        %1698 = vmatprep.subr.bf16.mxu0 0
        %1699 = vmatpush1.bf16.msra.mxu0 0
        %1700 = vmatprep.subr.bf16.mxu0 0
        %1701 = vmatpush1.bf16.msra.mxu0 0
        %1702 = vmatprep.mubr.bf16.mxu0 0
        %1703 = vmatmul.mubr.bf16.gmra.mrb[0].mxu0 %v914
        %v1704 = vpop.f32.mrb[0].mxu0
        %v1705 = vadd.f32 0.0, %v1704
        %v1706 = vpop.f32.mrb[0].mxu0
        %v1707 = vadd.f32 0.0, %v1706
        %v1708 = vpop.f32.mrb[0].mxu0
        %v1709 = vpop.f32.mrb[0].mxu0
        %1710 = vdwg.mxu0
        %v1711 = vadd.f32 %v1305, %v1664
        %v1712 = vadd.f32 %v1306, %v1666
        %v1713 = vadd.f32 %v1307, %v1705
        %v1714 = vadd.f32 %v1308, %v1707
        %1715 = vmatprep.subr.bf16.mxu0 %v1520
        %1716 = vmatpush1.bf16.msra.mxu0 %v1519
        %1717 = vmatprep.subr.bf16.mxu0 %v1535
        %1718 = vmatpush1.bf16.msra.mxu0 %v1532
        %1719 = vmatprep.subr.bf16.mxu0 0
        %1720 = vmatpush1.bf16.msra.mxu0 0
        %1721 = vmatprep.subr.bf16.mxu0 0
        %1722 = vmatpush1.bf16.msra.mxu0 0
        %1723 = vmatprep.subr.bf16.mxu0 0
        %1724 = vmatpush1.bf16.msra.mxu0 0
        %1725 = vmatprep.subr.bf16.mxu0 0
        %1726 = vmatpush1.bf16.msra.mxu0 0
        %1727 = vmatprep.subr.bf16.mxu0 0
        %1728 = vmatpush1.bf16.msra.mxu0 0
        %1729 = vmatprep.subr.bf16.mxu0 0
        %1730 = vmatpush1.bf16.msra.mxu0 0
        %1731 = vmatprep.subr.bf16.mxu0 0
        %1732 = vmatpush1.bf16.msra.mxu0 0
        %1733 = vmatprep.subr.bf16.mxu0 0
        %1734 = vmatpush1.bf16.msra.mxu0 0
        %1735 = vmatprep.subr.bf16.mxu0 0
        %1736 = vmatpush1.bf16.msra.mxu0 0
        %1737 = vmatprep.subr.bf16.mxu0 0
        %1738 = vmatpush1.bf16.msra.mxu0 0
        %1739 = vmatprep.subr.bf16.mxu0 0
        %1740 = vmatpush1.bf16.msra.mxu0 0
        %1741 = vmatprep.subr.bf16.mxu0 0
        %1742 = vmatpush1.bf16.msra.mxu0 0
        %1743 = vmatprep.subr.bf16.mxu0 0
        %1744 = vmatpush1.bf16.msra.mxu0 0
        %1745 = vmatprep.subr.bf16.mxu0 0
        %1746 = vmatpush1.bf16.msra.mxu0 0
        %1747 = vmatprep.mubr.bf16.mxu0 0
        %1748 = vmatmul.mubr.bf16.gmra.mrb[0].mxu0 %v1398
        %v1749 = vpop.f32.mrb[0].mxu0
        %v1750 = vadd.f32 0.0, %v1749
        %v1751 = vpop.f32.mrb[0].mxu0
        %v1752 = vadd.f32 0.0, %v1751
        %v1753 = vpop.f32.mrb[0].mxu0
        %v1754 = vpop.f32.mrb[0].mxu0
        %1755 = vdwg.mxu0
        %1756 = vmatprep.subr.bf16.mxu0 %v1522
        %1757 = vmatpush1.bf16.msra.mxu0 %v1521
        %1758 = vmatprep.subr.bf16.mxu0 %v1541
        %1759 = vmatpush1.bf16.msra.mxu0 %v1538
        %1760 = vmatprep.subr.bf16.mxu0 0
        %1761 = vmatpush1.bf16.msra.mxu0 0
        %1762 = vmatprep.subr.bf16.mxu0 0
        %1763 = vmatpush1.bf16.msra.mxu0 0
        %1764 = vmatprep.subr.bf16.mxu0 0
        %1765 = vmatpush1.bf16.msra.mxu0 0
        %1766 = vmatprep.subr.bf16.mxu0 0
        %1767 = vmatpush1.bf16.msra.mxu0 0
        %1768 = vmatprep.subr.bf16.mxu0 0
        %1769 = vmatpush1.bf16.msra.mxu0 0
        %1770 = vmatprep.subr.bf16.mxu0 0
        %1771 = vmatpush1.bf16.msra.mxu0 0
        %1772 = vmatprep.subr.bf16.mxu0 0
        %1773 = vmatpush1.bf16.msra.mxu0 0
        %1774 = vmatprep.subr.bf16.mxu0 0
        %1775 = vmatpush1.bf16.msra.mxu0 0
        %1776 = vmatprep.subr.bf16.mxu0 0
        %1777 = vmatpush1.bf16.msra.mxu0 0
        %1778 = vmatprep.subr.bf16.mxu0 0
        %1779 = vmatpush1.bf16.msra.mxu0 0
        %1780 = vmatprep.subr.bf16.mxu0 0
        %1781 = vmatpush1.bf16.msra.mxu0 0
        %1782 = vmatprep.subr.bf16.mxu0 0
        %1783 = vmatpush1.bf16.msra.mxu0 0
        %1784 = vmatprep.subr.bf16.mxu0 0
        %1785 = vmatpush1.bf16.msra.mxu0 0
        %1786 = vmatprep.subr.bf16.mxu0 0
        %1787 = vmatpush1.bf16.msra.mxu0 0
        %1788 = vmatprep.mubr.bf16.mxu0 0
        %1789 = vmatmul.mubr.bf16.gmra.mrb[0].mxu0 %v1398
        %v1790 = vpop.f32.mrb[0].mxu0
        %v1791 = vadd.f32 0.0, %v1790
        %v1792 = vpop.f32.mrb[0].mxu0
        %v1793 = vadd.f32 0.0, %v1792
        %v1794 = vpop.f32.mrb[0].mxu0
        %v1795 = vpop.f32.mrb[0].mxu0
        %1796 = vdwg.mxu0
        %v1797 = vadd.f32 %v1391, %v1750
        %v1798 = vadd.f32 %v1392, %v1752
        %v1799 = vadd.f32 %v1393, %v1791
        %v1800 = vadd.f32 %v1394, %v1793
        %v1801 = vld [vmem:[%s294 + $0x1] sm:$0x3f]
        %v1802 = vpack.c.bf16 %v1801, %v1801
        %v1804 = vsel %vm345, %v1802, 0
        %1806 = vmatprep.subr.bf16.mxu0 %v1520
        %1807 = vmatpush1.bf16.msra.mxu0 %v1519
        %1808 = vmatprep.subr.bf16.mxu0 %v1535
        %1809 = vmatpush1.bf16.msra.mxu0 %v1532
        %1810 = vmatprep.subr.bf16.mxu0 0
        %1811 = vmatpush1.bf16.msra.mxu0 0
        %1812 = vmatprep.subr.bf16.mxu0 0
        %1813 = vmatpush1.bf16.msra.mxu0 0
        %1814 = vmatprep.subr.bf16.mxu0 0
        %1815 = vmatpush1.bf16.msra.mxu0 0
        %1816 = vmatprep.subr.bf16.mxu0 0
        %1817 = vmatpush1.bf16.msra.mxu0 0
        %1818 = vmatprep.subr.bf16.mxu0 0
        %1819 = vmatpush1.bf16.msra.mxu0 0
        %1820 = vmatprep.subr.bf16.mxu0 0
        %1821 = vmatpush1.bf16.msra.mxu0 0
        %1822 = vmatprep.subr.bf16.mxu0 0
        %1823 = vmatpush1.bf16.msra.mxu0 0
        %1824 = vmatprep.subr.bf16.mxu0 0
        %1825 = vmatpush1.bf16.msra.mxu0 0
        %1826 = vmatprep.subr.bf16.mxu0 0
        %1827 = vmatpush1.bf16.msra.mxu0 0
        %1828 = vmatprep.subr.bf16.mxu0 0
        %1829 = vmatpush1.bf16.msra.mxu0 0
        %1830 = vmatprep.subr.bf16.mxu0 0
        %1831 = vmatpush1.bf16.msra.mxu0 0
        %1832 = vmatprep.subr.bf16.mxu0 0
        %1833 = vmatpush1.bf16.msra.mxu0 0
        %1834 = vmatprep.subr.bf16.mxu0 0
        %1835 = vmatpush1.bf16.msra.mxu0 0
        %1836 = vmatprep.subr.bf16.mxu0 0
        %1837 = vmatpush1.bf16.msra.mxu0 0
        %1838 = vmatprep.mubr.bf16.mxu0 0
        %1839 = vmatmul.mubr.bf16.gmra.mrb[0].mxu0 %v1804
        %v1840 = vpop.f32.mrb[0].mxu0
        %v1841 = vadd.f32 0.0, %v1840
        %v1842 = vpop.f32.mrb[0].mxu0
        %v1843 = vadd.f32 0.0, %v1842
        %v1844 = vpop.f32.mrb[0].mxu0
        %v1845 = vpop.f32.mrb[0].mxu0
        %1846 = vdwg.mxu0
        %1847 = vmatprep.subr.bf16.mxu0 %v1522
        %1848 = vmatpush1.bf16.msra.mxu0 %v1521
        %1849 = vmatprep.subr.bf16.mxu0 %v1541
        %1850 = vmatpush1.bf16.msra.mxu0 %v1538
        %1851 = vmatprep.subr.bf16.mxu0 0
        %1852 = vmatpush1.bf16.msra.mxu0 0
        %1853 = vmatprep.subr.bf16.mxu0 0
        %1854 = vmatpush1.bf16.msra.mxu0 0
        %1855 = vmatprep.subr.bf16.mxu0 0
        %1856 = vmatpush1.bf16.msra.mxu0 0
        %1857 = vmatprep.subr.bf16.mxu0 0
        %1858 = vmatpush1.bf16.msra.mxu0 0
        %1859 = vmatprep.subr.bf16.mxu0 0
        %1860 = vmatpush1.bf16.msra.mxu0 0
        %1861 = vmatprep.subr.bf16.mxu0 0
        %1862 = vmatpush1.bf16.msra.mxu0 0
        %1863 = vmatprep.subr.bf16.mxu0 0
        %1864 = vmatpush1.bf16.msra.mxu0 0
        %1865 = vmatprep.subr.bf16.mxu0 0
        %1866 = vmatpush1.bf16.msra.mxu0 0
        %1867 = vmatprep.subr.bf16.mxu0 0
        %1868 = vmatpush1.bf16.msra.mxu0 0
        %1869 = vmatprep.subr.bf16.mxu0 0
        %1870 = vmatpush1.bf16.msra.mxu0 0
        %1871 = vmatprep.subr.bf16.mxu0 0
        %1872 = vmatpush1.bf16.msra.mxu0 0
        %1873 = vmatprep.subr.bf16.mxu0 0
        %1874 = vmatpush1.bf16.msra.mxu0 0
        %1875 = vmatprep.subr.bf16.mxu0 0
        %1876 = vmatpush1.bf16.msra.mxu0 0
        %1877 = vmatprep.subr.bf16.mxu0 0
        %1878 = vmatpush1.bf16.msra.mxu0 0
        %1879 = vmatprep.mubr.bf16.mxu0 0
        %1880 = vmatmul.mubr.bf16.gmra.mrb[0].mxu0 %v1804
        %v1881 = vpop.f32.mrb[0].mxu0
        %v1882 = vadd.f32 0.0, %v1881
        %v1883 = vpop.f32.mrb[0].mxu0
        %v1884 = vadd.f32 0.0, %v1883
        %v1885 = vpop.f32.mrb[0].mxu0
        %v1886 = vpop.f32.mrb[0].mxu0
        %1887 = vdwg.mxu0
        %v1888 = vadd.f32 %v1482, %v1841
        %v1889 = vadd.f32 %v1483, %v1843
        %v1890 = vadd.f32 %v1484, %v1882
        %v1891 = vadd.f32 %v1485, %v1884
        %s1892 = scalar_lea.vmem [#allocation2], 256
        %v1893 = vld [vmem:[%s1892] sm:$0xff]
        %v1894 = vld [vmem:[%s1892 + $0x8] sm:$0xff]
        %v1895 = vld [vmem:[%s1892 + $0x10] sm:$0xff]
        %v1896 = vld [vmem:[%s1892 + $0x18] sm:$0xff]
        %v1897 = vld [vmem:[%s1892 + $0x20] sm:$0xff]
        %v1898 = vld [vmem:[%s1892 + $0x28] sm:$0xff]
        %v1899 = vld [vmem:[%s1892 + $0x30] sm:$0x33]
        %v1900 = vld [vmem:[%s1892 + $0x38] sm:$0x33]
        %v1909 = vunpack.c.l.b16 %v1893
        %v1910 = vunpack.c.h.b16 %v1893
        %v1911 = vunpack.c.l.b16 %v1894
        %v1912 = vunpack.c.h.b16 %v1894
        %v1913 = vunpack.c.l.b16 %v1895
        %v1914 = vunpack.c.h.b16 %v1895
        %v1915 = vunpack.c.l.b16 %v1896
        %v1916 = vunpack.c.h.b16 %v1896
        %v1917 = vunpack.c.l.b16 %v1897
        %v1918 = vunpack.c.h.b16 %v1897
        %v1919 = vunpack.c.l.b16 %v1898
        %v1920 = vunpack.c.h.b16 %v1898
        %v1921 = vunpack.c.l.b16 %v1899
        %v1922 = vunpack.c.h.b16 %v1899
        %v1923 = vunpack.c.l.b16 %v1900
        %v1924 = vunpack.c.h.b16 %v1900
        %v1925 = vpack.c.b16 %v1913, %v1909
        %v1926 = vpack.c.b16 %v1914, %v1910
        %v1927 = vpack.c.b16 %v1915, %v1911
        %v1928 = vpack.c.b16 %v1916, %v1912
        %v1929 = vpack.c.b16 %v1921, %v1917
        %v1930 = vpack.c.b16 %v1922, %v1918
        %v1931 = vpack.c.b16 %v1923, %v1919
        %v1932 = vpack.c.b16 %v1924, %v1920
        %v1938 = vsel %vm349, %v1929, 0
        %v1941 = vsel %vm349, %v1930, 0
        %v1944 = vsel %vm349, %v1931, 0
        %v1947 = vsel %vm349, %v1932, 0
        %1949 = vmatprep.subr.bf16.mxu0 %v1926
        %1950 = vmatpush1.bf16.msra.mxu0 %v1925
        %1951 = vmatprep.subr.bf16.mxu0 %v1941
        %1952 = vmatpush1.bf16.msra.mxu0 %v1938
        %1953 = vmatprep.subr.bf16.mxu0 0
        %1954 = vmatpush1.bf16.msra.mxu0 0
        %1955 = vmatprep.subr.bf16.mxu0 0
        %1956 = vmatpush1.bf16.msra.mxu0 0
        %1957 = vmatprep.subr.bf16.mxu0 0
        %1958 = vmatpush1.bf16.msra.mxu0 0
        %1959 = vmatprep.subr.bf16.mxu0 0
        %1960 = vmatpush1.bf16.msra.mxu0 0
        %1961 = vmatprep.subr.bf16.mxu0 0
        %1962 = vmatpush1.bf16.msra.mxu0 0
        %1963 = vmatprep.subr.bf16.mxu0 0
        %1964 = vmatpush1.bf16.msra.mxu0 0
        %1965 = vmatprep.subr.bf16.mxu0 0
        %1966 = vmatpush1.bf16.msra.mxu0 0
        %1967 = vmatprep.subr.bf16.mxu0 0
        %1968 = vmatpush1.bf16.msra.mxu0 0
        %1969 = vmatprep.subr.bf16.mxu0 0
        %1970 = vmatpush1.bf16.msra.mxu0 0
        %1971 = vmatprep.subr.bf16.mxu0 0
        %1972 = vmatpush1.bf16.msra.mxu0 0
        %1973 = vmatprep.subr.bf16.mxu0 0
        %1974 = vmatpush1.bf16.msra.mxu0 0
        %1975 = vmatprep.subr.bf16.mxu0 0
        %1976 = vmatpush1.bf16.msra.mxu0 0
        %1977 = vmatprep.subr.bf16.mxu0 0
        %1978 = vmatpush1.bf16.msra.mxu0 0
        %1979 = vmatprep.subr.bf16.mxu0 0
        %1980 = vmatpush1.bf16.msra.mxu0 0
        %1981 = vmatprep.mubr.bf16.mxu0 0
        %1982 = vmatmul.mubr.bf16.gmra.mrb[0].mxu0 %v914
        %v1983 = vpop.f32.mrb[0].mxu0
        %v1984 = vadd.f32 0.0, %v1983
        %v1985 = vpop.f32.mrb[0].mxu0
        %v1986 = vadd.f32 0.0, %v1985
        %v1987 = vpop.f32.mrb[0].mxu0
        %v1988 = vpop.f32.mrb[0].mxu0
        %1989 = vdwg.mxu0
        %1990 = vmatprep.subr.bf16.mxu0 %v1928
        %1991 = vmatpush1.bf16.msra.mxu0 %v1927
        %1992 = vmatprep.subr.bf16.mxu0 %v1947
        %1993 = vmatpush1.bf16.msra.mxu0 %v1944
        %1994 = vmatprep.subr.bf16.mxu0 0
        %1995 = vmatpush1.bf16.msra.mxu0 0
        %1996 = vmatprep.subr.bf16.mxu0 0
        %1997 = vmatpush1.bf16.msra.mxu0 0
        %1998 = vmatprep.subr.bf16.mxu0 0
        %1999 = vmatpush1.bf16.msra.mxu0 0
        %2000 = vmatprep.subr.bf16.mxu0 0
        %2001 = vmatpush1.bf16.msra.mxu0 0
        %2002 = vmatprep.subr.bf16.mxu0 0
        %2003 = vmatpush1.bf16.msra.mxu0 0
        %2004 = vmatprep.subr.bf16.mxu0 0
        %2005 = vmatpush1.bf16.msra.mxu0 0
        %2006 = vmatprep.subr.bf16.mxu0 0
        %2007 = vmatpush1.bf16.msra.mxu0 0
        %2008 = vmatprep.subr.bf16.mxu0 0
        %2009 = vmatpush1.bf16.msra.mxu0 0
        %2010 = vmatprep.subr.bf16.mxu0 0
        %2011 = vmatpush1.bf16.msra.mxu0 0
        %2012 = vmatprep.subr.bf16.mxu0 0
        %2013 = vmatpush1.bf16.msra.mxu0 0
        %2014 = vmatprep.subr.bf16.mxu0 0
        %2015 = vmatpush1.bf16.msra.mxu0 0
        %2016 = vmatprep.subr.bf16.mxu0 0
        %2017 = vmatpush1.bf16.msra.mxu0 0
        %2018 = vmatprep.subr.bf16.mxu0 0
        %2019 = vmatpush1.bf16.msra.mxu0 0
        %2020 = vmatprep.subr.bf16.mxu0 0
        %2021 = vmatpush1.bf16.msra.mxu0 0
        %2022 = vmatprep.mubr.bf16.mxu0 0
        %2023 = vmatmul.mubr.bf16.gmra.mrb[0].mxu0 %v914
        %v2024 = vpop.f32.mrb[0].mxu0
        %v2025 = vadd.f32 0.0, %v2024
        %v2026 = vpop.f32.mrb[0].mxu0
        %v2027 = vadd.f32 0.0, %v2026
        %v2028 = vpop.f32.mrb[0].mxu0
        %v2029 = vpop.f32.mrb[0].mxu0
        %2030 = vdwg.mxu0
        %v2031 = vadd.f32 %v1625, %v1984
        %v2032 = vadd.f32 %v1626, %v1986
        %v2033 = vadd.f32 %v1627, %v2025
        %v2034 = vadd.f32 %v1628, %v2027
        %2035 = vmatprep.subr.bf16.mxu0 %v1926
        %2036 = vmatpush1.bf16.msra.mxu0 %v1925
        %2037 = vmatprep.subr.bf16.mxu0 %v1941
        %2038 = vmatpush1.bf16.msra.mxu0 %v1938
        %2039 = vmatprep.subr.bf16.mxu0 0
        %2040 = vmatpush1.bf16.msra.mxu0 0
        %2041 = vmatprep.subr.bf16.mxu0 0
        %2042 = vmatpush1.bf16.msra.mxu0 0
        %2043 = vmatprep.subr.bf16.mxu0 0
        %2044 = vmatpush1.bf16.msra.mxu0 0
        %2045 = vmatprep.subr.bf16.mxu0 0
        %2046 = vmatpush1.bf16.msra.mxu0 0
        %2047 = vmatprep.subr.bf16.mxu0 0
        %2048 = vmatpush1.bf16.msra.mxu0 0
        %2049 = vmatprep.subr.bf16.mxu0 0
        %2050 = vmatpush1.bf16.msra.mxu0 0
        %2051 = vmatprep.subr.bf16.mxu0 0
        %2052 = vmatpush1.bf16.msra.mxu0 0
        %2053 = vmatprep.subr.bf16.mxu0 0
        %2054 = vmatpush1.bf16.msra.mxu0 0
        %2055 = vmatprep.subr.bf16.mxu0 0
        %2056 = vmatpush1.bf16.msra.mxu0 0
        %2057 = vmatprep.subr.bf16.mxu0 0
        %2058 = vmatpush1.bf16.msra.mxu0 0
        %2059 = vmatprep.subr.bf16.mxu0 0
        %2060 = vmatpush1.bf16.msra.mxu0 0
        %2061 = vmatprep.subr.bf16.mxu0 0
        %2062 = vmatpush1.bf16.msra.mxu0 0
        %2063 = vmatprep.subr.bf16.mxu0 0
        %2064 = vmatpush1.bf16.msra.mxu0 0
        %2065 = vmatprep.subr.bf16.mxu0 0
        %2066 = vmatpush1.bf16.msra.mxu0 0
        %2067 = vmatprep.mubr.bf16.mxu0 0
        %2068 = vmatmul.mubr.bf16.gmra.mrb[0].mxu0 %v1398
        %v2069 = vpop.f32.mrb[0].mxu0
        %v2070 = vadd.f32 0.0, %v2069
        %v2071 = vpop.f32.mrb[0].mxu0
        %v2072 = vadd.f32 0.0, %v2071
        %v2073 = vpop.f32.mrb[0].mxu0
        %v2074 = vpop.f32.mrb[0].mxu0
        %2075 = vdwg.mxu0
        %2076 = vmatprep.subr.bf16.mxu0 %v1928
        %2077 = vmatpush1.bf16.msra.mxu0 %v1927
        %2078 = vmatprep.subr.bf16.mxu0 %v1947
        %2079 = vmatpush1.bf16.msra.mxu0 %v1944
        %2080 = vmatprep.subr.bf16.mxu0 0
        %2081 = vmatpush1.bf16.msra.mxu0 0
        %2082 = vmatprep.subr.bf16.mxu0 0
        %2083 = vmatpush1.bf16.msra.mxu0 0
        %2084 = vmatprep.subr.bf16.mxu0 0
        %2085 = vmatpush1.bf16.msra.mxu0 0
        %2086 = vmatprep.subr.bf16.mxu0 0
        %2087 = vmatpush1.bf16.msra.mxu0 0
        %2088 = vmatprep.subr.bf16.mxu0 0
        %2089 = vmatpush1.bf16.msra.mxu0 0
        %2090 = vmatprep.subr.bf16.mxu0 0
        %2091 = vmatpush1.bf16.msra.mxu0 0
        %2092 = vmatprep.subr.bf16.mxu0 0
        %2093 = vmatpush1.bf16.msra.mxu0 0
        %2094 = vmatprep.subr.bf16.mxu0 0
        %2095 = vmatpush1.bf16.msra.mxu0 0
        %2096 = vmatprep.subr.bf16.mxu0 0
        %2097 = vmatpush1.bf16.msra.mxu0 0
        %2098 = vmatprep.subr.bf16.mxu0 0
        %2099 = vmatpush1.bf16.msra.mxu0 0
        %2100 = vmatprep.subr.bf16.mxu0 0
        %2101 = vmatpush1.bf16.msra.mxu0 0
        %2102 = vmatprep.subr.bf16.mxu0 0
        %2103 = vmatpush1.bf16.msra.mxu0 0
        %2104 = vmatprep.subr.bf16.mxu0 0
        %2105 = vmatpush1.bf16.msra.mxu0 0
        %2106 = vmatprep.subr.bf16.mxu0 0
        %2107 = vmatpush1.bf16.msra.mxu0 0
        %2108 = vmatprep.mubr.bf16.mxu0 0
        %2109 = vmatmul.mubr.bf16.gmra.mrb[0].mxu0 %v1398
        %v2110 = vpop.f32.mrb[0].mxu0
        %v2111 = vadd.f32 0.0, %v2110
        %v2112 = vpop.f32.mrb[0].mxu0
        %v2113 = vadd.f32 0.0, %v2112
        %v2114 = vpop.f32.mrb[0].mxu0
        %v2115 = vpop.f32.mrb[0].mxu0
        %2116 = vdwg.mxu0
        %v2117 = vadd.f32 %v1711, %v2070
        %v2118 = vadd.f32 %v1712, %v2072
        %v2119 = vadd.f32 %v1713, %v2111
        %v2120 = vadd.f32 %v1714, %v2113
        %2121 = vmatprep.subr.bf16.mxu0 %v1926
        %2122 = vmatpush1.bf16.msra.mxu0 %v1925
        %2123 = vmatprep.subr.bf16.mxu0 %v1941
        %2124 = vmatpush1.bf16.msra.mxu0 %v1938
        %2125 = vmatprep.subr.bf16.mxu0 0
        %2126 = vmatpush1.bf16.msra.mxu0 0
        %2127 = vmatprep.subr.bf16.mxu0 0
        %2128 = vmatpush1.bf16.msra.mxu0 0
        %2129 = vmatprep.subr.bf16.mxu0 0
        %2130 = vmatpush1.bf16.msra.mxu0 0
        %2131 = vmatprep.subr.bf16.mxu0 0
        %2132 = vmatpush1.bf16.msra.mxu0 0
        %2133 = vmatprep.subr.bf16.mxu0 0
        %2134 = vmatpush1.bf16.msra.mxu0 0
        %2135 = vmatprep.subr.bf16.mxu0 0
        %2136 = vmatpush1.bf16.msra.mxu0 0
        %2137 = vmatprep.subr.bf16.mxu0 0
        %2138 = vmatpush1.bf16.msra.mxu0 0
        %2139 = vmatprep.subr.bf16.mxu0 0
        %2140 = vmatpush1.bf16.msra.mxu0 0
        %2141 = vmatprep.subr.bf16.mxu0 0
        %2142 = vmatpush1.bf16.msra.mxu0 0
        %2143 = vmatprep.subr.bf16.mxu0 0
        %2144 = vmatpush1.bf16.msra.mxu0 0
        %2145 = vmatprep.subr.bf16.mxu0 0
        %2146 = vmatpush1.bf16.msra.mxu0 0
        %2147 = vmatprep.subr.bf16.mxu0 0
        %2148 = vmatpush1.bf16.msra.mxu0 0
        %2149 = vmatprep.subr.bf16.mxu0 0
        %2150 = vmatpush1.bf16.msra.mxu0 0
        %2151 = vmatprep.subr.bf16.mxu0 0
        %2152 = vmatpush1.bf16.msra.mxu0 0
        %2153 = vmatprep.mubr.bf16.mxu0 0
        %2154 = vmatmul.mubr.bf16.gmra.mrb[0].mxu0 %v1804
        %v2155 = vpop.f32.mrb[0].mxu0
        %v2156 = vadd.f32 0.0, %v2155
        %v2157 = vpop.f32.mrb[0].mxu0
        %v2158 = vadd.f32 0.0, %v2157
        %v2159 = vpop.f32.mrb[0].mxu0
        %v2160 = vpop.f32.mrb[0].mxu0
        %2161 = vdwg.mxu0
        %2162 = vmatprep.subr.bf16.mxu0 %v1928
        %2163 = vmatpush1.bf16.msra.mxu0 %v1927
        %2164 = vmatprep.subr.bf16.mxu0 %v1947
        %2165 = vmatpush1.bf16.msra.mxu0 %v1944
        %2166 = vmatprep.subr.bf16.mxu0 0
        %2167 = vmatpush1.bf16.msra.mxu0 0
        %2168 = vmatprep.subr.bf16.mxu0 0
        %2169 = vmatpush1.bf16.msra.mxu0 0
        %2170 = vmatprep.subr.bf16.mxu0 0
        %2171 = vmatpush1.bf16.msra.mxu0 0
        %2172 = vmatprep.subr.bf16.mxu0 0
        %2173 = vmatpush1.bf16.msra.mxu0 0
        %2174 = vmatprep.subr.bf16.mxu0 0
        %2175 = vmatpush1.bf16.msra.mxu0 0
        %2176 = vmatprep.subr.bf16.mxu0 0
        %2177 = vmatpush1.bf16.msra.mxu0 0
        %2178 = vmatprep.subr.bf16.mxu0 0
        %2179 = vmatpush1.bf16.msra.mxu0 0
        %2180 = vmatprep.subr.bf16.mxu0 0
        %2181 = vmatpush1.bf16.msra.mxu0 0
        %2182 = vmatprep.subr.bf16.mxu0 0
        %2183 = vmatpush1.bf16.msra.mxu0 0
        %2184 = vmatprep.subr.bf16.mxu0 0
        %2185 = vmatpush1.bf16.msra.mxu0 0
        %2186 = vmatprep.subr.bf16.mxu0 0
        %2187 = vmatpush1.bf16.msra.mxu0 0
        %2188 = vmatprep.subr.bf16.mxu0 0
        %2189 = vmatpush1.bf16.msra.mxu0 0
        %2190 = vmatprep.subr.bf16.mxu0 0
        %2191 = vmatpush1.bf16.msra.mxu0 0
        %2192 = vmatprep.subr.bf16.mxu0 0
        %2193 = vmatpush1.bf16.msra.mxu0 0
        %2194 = vmatprep.mubr.bf16.mxu0 0
        %2195 = vmatmul.mubr.bf16.gmra.mrb[0].mxu0 %v1804
        %v2196 = vpop.f32.mrb[0].mxu0
        %v2197 = vadd.f32 0.0, %v2196
        %v2198 = vpop.f32.mrb[0].mxu0
        %v2199 = vadd.f32 0.0, %v2198
        %v2200 = vpop.f32.mrb[0].mxu0
        %v2201 = vpop.f32.mrb[0].mxu0
        %2202 = vdwg.mxu0
        %v2203 = vadd.f32 %v1797, %v2156
        %v2204 = vadd.f32 %v1798, %v2158
        %v2205 = vadd.f32 %v1799, %v2197
        %v2206 = vadd.f32 %v1800, %v2199
        %v2207 = vld [vmem:[%s297 + $0x1] sm:$0x3f]
        %v2208 = vpack.c.bf16 %v2207, %v2207
        %v2210 = vsel %vm345, %v2208, 0
        %2212 = vmatprep.subr.bf16.mxu0 %v1926
        %2213 = vmatpush1.bf16.msra.mxu0 %v1925
        %2214 = vmatprep.subr.bf16.mxu0 %v1941
        %2215 = vmatpush1.bf16.msra.mxu0 %v1938
        %2216 = vmatprep.subr.bf16.mxu0 0
        %2217 = vmatpush1.bf16.msra.mxu0 0
        %2218 = vmatprep.subr.bf16.mxu0 0
        %2219 = vmatpush1.bf16.msra.mxu0 0
        %2220 = vmatprep.subr.bf16.mxu0 0
        %2221 = vmatpush1.bf16.msra.mxu0 0
        %2222 = vmatprep.subr.bf16.mxu0 0
        %2223 = vmatpush1.bf16.msra.mxu0 0
        %2224 = vmatprep.subr.bf16.mxu0 0
        %2225 = vmatpush1.bf16.msra.mxu0 0
        %2226 = vmatprep.subr.bf16.mxu0 0
        %2227 = vmatpush1.bf16.msra.mxu0 0
        %2228 = vmatprep.subr.bf16.mxu0 0
        %2229 = vmatpush1.bf16.msra.mxu0 0
        %2230 = vmatprep.subr.bf16.mxu0 0
        %2231 = vmatpush1.bf16.msra.mxu0 0
        %2232 = vmatprep.subr.bf16.mxu0 0
        %2233 = vmatpush1.bf16.msra.mxu0 0
        %2234 = vmatprep.subr.bf16.mxu0 0
        %2235 = vmatpush1.bf16.msra.mxu0 0
        %2236 = vmatprep.subr.bf16.mxu0 0
        %2237 = vmatpush1.bf16.msra.mxu0 0
        %2238 = vmatprep.subr.bf16.mxu0 0
        %2239 = vmatpush1.bf16.msra.mxu0 0
        %2240 = vmatprep.subr.bf16.mxu0 0
        %2241 = vmatpush1.bf16.msra.mxu0 0
        %2242 = vmatprep.subr.bf16.mxu0 0
        %2243 = vmatpush1.bf16.msra.mxu0 0
        %2244 = vmatprep.mubr.bf16.mxu0 0
        %2245 = vmatmul.mubr.bf16.gmra.mrb[0].mxu0 %v2210
        %v2246 = vpop.f32.mrb[0].mxu0
        %v2247 = vadd.f32 0.0, %v2246
        %v2248 = vpop.f32.mrb[0].mxu0
        %v2249 = vadd.f32 0.0, %v2248
        %v2250 = vpop.f32.mrb[0].mxu0
        %v2251 = vpop.f32.mrb[0].mxu0
        %2252 = vdwg.mxu0
        %2253 = vmatprep.subr.bf16.mxu0 %v1928
        %2254 = vmatpush1.bf16.msra.mxu0 %v1927
        %2255 = vmatprep.subr.bf16.mxu0 %v1947
        %2256 = vmatpush1.bf16.msra.mxu0 %v1944
        %2257 = vmatprep.subr.bf16.mxu0 0
        %2258 = vmatpush1.bf16.msra.mxu0 0
        %2259 = vmatprep.subr.bf16.mxu0 0
        %2260 = vmatpush1.bf16.msra.mxu0 0
        %2261 = vmatprep.subr.bf16.mxu0 0
        %2262 = vmatpush1.bf16.msra.mxu0 0
        %2263 = vmatprep.subr.bf16.mxu0 0
        %2264 = vmatpush1.bf16.msra.mxu0 0
        %2265 = vmatprep.subr.bf16.mxu0 0
        %2266 = vmatpush1.bf16.msra.mxu0 0
        %2267 = vmatprep.subr.bf16.mxu0 0
        %2268 = vmatpush1.bf16.msra.mxu0 0
        %2269 = vmatprep.subr.bf16.mxu0 0
        %2270 = vmatpush1.bf16.msra.mxu0 0
        %2271 = vmatprep.subr.bf16.mxu0 0
        %2272 = vmatpush1.bf16.msra.mxu0 0
        %2273 = vmatprep.subr.bf16.mxu0 0
        %2274 = vmatpush1.bf16.msra.mxu0 0
        %2275 = vmatprep.subr.bf16.mxu0 0
        %2276 = vmatpush1.bf16.msra.mxu0 0
        %2277 = vmatprep.subr.bf16.mxu0 0
        %2278 = vmatpush1.bf16.msra.mxu0 0
        %2279 = vmatprep.subr.bf16.mxu0 0
        %2280 = vmatpush1.bf16.msra.mxu0 0
        %2281 = vmatprep.subr.bf16.mxu0 0
        %2282 = vmatpush1.bf16.msra.mxu0 0
        %2283 = vmatprep.subr.bf16.mxu0 0
        %2284 = vmatpush1.bf16.msra.mxu0 0
        %2285 = vmatprep.mubr.bf16.mxu0 0
        %2286 = vmatmul.mubr.bf16.gmra.mrb[0].mxu0 %v2210
        %v2287 = vpop.f32.mrb[0].mxu0
        %v2288 = vadd.f32 0.0, %v2287
        %v2289 = vpop.f32.mrb[0].mxu0
        %v2290 = vadd.f32 0.0, %v2289
        %v2291 = vpop.f32.mrb[0].mxu0
        %v2292 = vpop.f32.mrb[0].mxu0
        %2293 = vdwg.mxu0
        %v2294 = vadd.f32 %v1888, %v2247
        %v2295 = vadd.f32 %v1889, %v2249
        %v2296 = vadd.f32 %v1890, %v2288
        %v2297 = vadd.f32 %v1891, %v2290
        %v2298 = vld [vmem:[#allocation4] sm:$0xf]
        %v2300 = vlaneseq
        %v2301 = vshrl.u32 %v2300, 7
        %v2302 = vsub.s32 0, %v2301
        %v2303 = vrot.slane %v2298, %v2302
        %v2304 = vlaneseq
        %v2305 = vshrl.u32 %v2304, 7
        %v2306 = vsub.s32 1, %v2305
        %v2307 = vrot.slane %v2298, %v2306
        %v2308 = vlaneseq
        %v2309 = vshrl.u32 %v2308, 7
        %v2310 = vsub.s32 2, %v2309
        %v2311 = vrot.slane %v2298, %v2310
        %v2312 = vlaneseq
        %v2313 = vshrl.u32 %v2312, 7
        %v2314 = vsub.s32 3, %v2313
        %v2315 = vrot.slane %v2298, %v2314
        %v2320 = vadd.f32 %v2031, %v2303
        %v2321 = vadd.f32 %v2032, %v2307
        %v2322 = vadd.f32 %v2033, %v2311
        %v2323 = vadd.f32 %v2034, %v2315
        %v2324 = vmax.f32 %v2320, 0.0
        %v2325 = vmax.f32 %v2321, 0.0
        %v2326 = vmax.f32 %v2322, 0.0
        %v2327 = vmax.f32 %v2323, 0.0
        %v2328 = vadd.f32 %v2117, %v2303
        %v2329 = vadd.f32 %v2118, %v2307
        %v2330 = vadd.f32 %v2119, %v2311
        %v2331 = vadd.f32 %v2120, %v2315
        %v2332 = vmax.f32 %v2328, 0.0
        %v2333 = vmax.f32 %v2329, 0.0
        %v2334 = vmax.f32 %v2330, 0.0
        %v2335 = vmax.f32 %v2331, 0.0
        %v2336 = vadd.f32 %v2203, %v2303
        %v2337 = vadd.f32 %v2204, %v2307
        %v2338 = vadd.f32 %v2205, %v2311
        %v2339 = vadd.f32 %v2206, %v2315
        %v2340 = vmax.f32 %v2336, 0.0
        %v2341 = vmax.f32 %v2337, 0.0
        %v2342 = vmax.f32 %v2338, 0.0
        %v2343 = vmax.f32 %v2339, 0.0
        %v2344 = vadd.f32 %v2294, %v2303
        %v2345 = vadd.f32 %v2295, %v2307
        %v2346 = vadd.f32 %v2296, %v2311
        %v2347 = vadd.f32 %v2297, %v2315
        %v2348 = vmax.f32 %v2344, 0.0
        %v2349 = vmax.f32 %v2345, 0.0
        %v2350 = vmax.f32 %v2346, 0.0
        %v2351 = vmax.f32 %v2347, 0.0
        %v2352 = vmax.f32 %v2324, %v2326
        %v2353 = vmax.f32 %v2325, %v2327
        %v2354 = vmax.f32 %v2332, %v2334
        %v2355 = vmax.f32 %v2333, %v2335
        %v2356 = vmax.f32 %v2340, %v2342
        %v2357 = vmax.f32 %v2341, %v2343
        %v2358 = vmax.f32 %v2348, %v2350
        %v2359 = vmax.f32 %v2349, %v2351
        %v2360 = vmax.f32 %v2352, %v2354
        %v2361 = vmax.f32 %v2353, %v2355
        %v2362 = vmax.f32 %v2356, %v2358
        %v2363 = vmax.f32 %v2357, %v2359
        %v2364 = vld [vmem:[#allocation6] sm:$0xff]
        %v2365 = vld [vmem:[#allocation6 + $0x8] sm:$0xff]
        %v2366 = vld [vmem:[#allocation6 + $0x10] sm:$0xff]
        %v2367 = vld [vmem:[#allocation6 + $0x18] sm:$0xff]
        %v2368 = vld [vmem:[#allocation6 + $0x20] sm:$0xff]
        %v2369 = vld [vmem:[#allocation6 + $0x28] sm:$0xff]
        %v2370 = vld [vmem:[#allocation6 + $0x30] sm:$0xff]
        %v2371 = vld [vmem:[#allocation6 + $0x38] sm:$0xff]
        %v2372 = vld [vmem:[#allocation6 + $0x40] sm:$0xff]
        %v2373 = vld [vmem:[#allocation6 + $0x48] sm:$0xff]
        %v2374 = vld [vmem:[#allocation6 + $0x50] sm:$0xff]
        %v2375 = vld [vmem:[#allocation6 + $0x58] sm:$0xff]
        %v2376 = vld [vmem:[#allocation6 + $0x60] sm:$0xff]
        %v2377 = vld [vmem:[#allocation6 + $0x68] sm:$0xff]
        %v2378 = vld [vmem:[#allocation6 + $0x70] sm:$0xff]
        %v2379 = vld [vmem:[#allocation6 + $0x78] sm:$0xff]
        %v2380 = vld [vmem:[#allocation6 + $0x80] sm:$0xff]
        %v2381 = vld [vmem:[#allocation6 + $0x88] sm:$0xff]
        %v2382 = vld [vmem:[#allocation6 + $0x90] sm:$0xff]
        %v2383 = vld [vmem:[#allocation6 + $0x98] sm:$0xff]
        %v2384 = vld [vmem:[#allocation6 + $0xa0] sm:$0xff]
        %v2385 = vld [vmem:[#allocation6 + $0xa8] sm:$0xff]
        %v2386 = vld [vmem:[#allocation6 + $0xb0] sm:$0xff]
        %v2387 = vld [vmem:[#allocation6 + $0xb8] sm:$0xff]
        %v2388 = vld [vmem:[#allocation6 + $0xc0] sm:$0xff]
        %v2389 = vld [vmem:[#allocation6 + $0xc8] sm:$0xff]
        %v2390 = vld [vmem:[#allocation6 + $0xd0] sm:$0xff]
        %v2391 = vld [vmem:[#allocation6 + $0xd8] sm:$0xff]
        %v2392 = vld [vmem:[#allocation6 + $0xe0] sm:$0xff]
        %v2393 = vld [vmem:[#allocation6 + $0xe8] sm:$0xff]
        %v2394 = vld [vmem:[#allocation6 + $0xf0] sm:$0xff]
        %v2395 = vld [vmem:[#allocation6 + $0xf8] sm:$0xff]
        %v2396 = vld [vmem:[#allocation6 + $0x100] sm:$0xff]
        %v2397 = vld [vmem:[#allocation6 + $0x108] sm:$0xff]
        %v2398 = vld [vmem:[#allocation6 + $0x110] sm:$0xff]
        %v2399 = vld [vmem:[#allocation6 + $0x118] sm:$0xff]
        %v2400 = vld [vmem:[#allocation6 + $0x120] sm:$0xff]
        %v2401 = vld [vmem:[#allocation6 + $0x128] sm:$0xff]
        %v2402 = vld [vmem:[#allocation6 + $0x130] sm:$0xff]
        %v2403 = vld [vmem:[#allocation6 + $0x138] sm:$0xff]
        %v2404 = vld [vmem:[#allocation6 + $0x140] sm:$0xff]
        %v2405 = vld [vmem:[#allocation6 + $0x148] sm:$0xff]
        %v2406 = vld [vmem:[#allocation6 + $0x150] sm:$0xff]
        %v2407 = vld [vmem:[#allocation6 + $0x158] sm:$0xff]
        %v2408 = vld [vmem:[#allocation6 + $0x160] sm:$0xff]
        %v2409 = vld [vmem:[#allocation6 + $0x168] sm:$0xff]
        %v2410 = vld [vmem:[#allocation6 + $0x170] sm:$0xff]
        %v2411 = vld [vmem:[#allocation6 + $0x178] sm:$0xff]
        %v2412 = vld [vmem:[#allocation6 + $0x180] sm:$0xff]
        %v2413 = vld [vmem:[#allocation6 + $0x188] sm:$0xff]
        %v2414 = vld [vmem:[#allocation6 + $0x190] sm:$0xff]
        %v2415 = vld [vmem:[#allocation6 + $0x198] sm:$0xff]
        %v2416 = vld [vmem:[#allocation6 + $0x1a0] sm:$0xff]
        %v2417 = vld [vmem:[#allocation6 + $0x1a8] sm:$0xff]
        %v2418 = vld [vmem:[#allocation6 + $0x1b0] sm:$0xff]
        %v2419 = vld [vmem:[#allocation6 + $0x1b8] sm:$0xff]
        %v2420 = vld [vmem:[#allocation6 + $0x1c0] sm:$0xff]
        %v2421 = vld [vmem:[#allocation6 + $0x1c8] sm:$0xff]
        %v2422 = vld [vmem:[#allocation6 + $0x1d0] sm:$0xff]
        %v2423 = vld [vmem:[#allocation6 + $0x1d8] sm:$0xff]
        %v2424 = vld [vmem:[#allocation6 + $0x1e0] sm:$0xff]
        %v2425 = vld [vmem:[#allocation6 + $0x1e8] sm:$0xff]
        %v2426 = vld [vmem:[#allocation6 + $0x1f0] sm:$0xff]
        %v2427 = vld [vmem:[#allocation6 + $0x1f8] sm:$0xff]
        %v2428 = vpack.c.bf16 %v2360, %v2360
        %v2429 = vpack.c.bf16 %v2361, %v2361
        %v2430 = vpack.c.bf16 %v2362, %v2362
        %v2431 = vpack.c.bf16 %v2363, %v2363
        %s2432 = scalar_lea.vmem [#allocation6], 512
        %v2433 = vld [vmem:[%s2432] sm:$0xff]
        %v2434 = vld [vmem:[%s2432 + $0x8] sm:$0xff]
        %v2435 = vld [vmem:[%s2432 + $0x10] sm:$0xff]
        %v2436 = vld [vmem:[%s2432 + $0x18] sm:$0xff]
        %v2437 = vld [vmem:[%s2432 + $0x20] sm:$0xff]
        %v2438 = vld [vmem:[%s2432 + $0x28] sm:$0xff]
        %v2439 = vld [vmem:[%s2432 + $0x30] sm:$0xff]
        %v2440 = vld [vmem:[%s2432 + $0x38] sm:$0xff]
        %v2441 = vld [vmem:[%s2432 + $0x40] sm:$0xff]
        %v2442 = vld [vmem:[%s2432 + $0x48] sm:$0xff]
        %v2443 = vld [vmem:[%s2432 + $0x50] sm:$0xff]
        %v2444 = vld [vmem:[%s2432 + $0x58] sm:$0xff]
        %v2445 = vld [vmem:[%s2432 + $0x60] sm:$0xff]
        %v2446 = vld [vmem:[%s2432 + $0x68] sm:$0xff]
        %v2447 = vld [vmem:[%s2432 + $0x70] sm:$0xff]
        %v2448 = vld [vmem:[%s2432 + $0x78] sm:$0xff]
        %v2449 = vld [vmem:[%s2432 + $0x80] sm:$0xff]
        %v2450 = vld [vmem:[%s2432 + $0x88] sm:$0xff]
        %v2451 = vld [vmem:[%s2432 + $0x90] sm:$0xff]
        %v2452 = vld [vmem:[%s2432 + $0x98] sm:$0xff]
        %v2453 = vld [vmem:[%s2432 + $0xa0] sm:$0xff]
        %v2454 = vld [vmem:[%s2432 + $0xa8] sm:$0xff]
        %v2455 = vld [vmem:[%s2432 + $0xb0] sm:$0xff]
        %v2456 = vld [vmem:[%s2432 + $0xb8] sm:$0xff]
        %v2457 = vld [vmem:[%s2432 + $0xc0] sm:$0xff]
        %v2458 = vld [vmem:[%s2432 + $0xc8] sm:$0xff]
        %v2459 = vld [vmem:[%s2432 + $0xd0] sm:$0xff]
        %v2460 = vld [vmem:[%s2432 + $0xd8] sm:$0xff]
        %v2461 = vld [vmem:[%s2432 + $0xe0] sm:$0xff]
        %v2462 = vld [vmem:[%s2432 + $0xe8] sm:$0xff]
        %v2463 = vld [vmem:[%s2432 + $0xf0] sm:$0xff]
        %v2464 = vld [vmem:[%s2432 + $0xf8] sm:$0xff]
        %v2465 = vld [vmem:[%s2432 + $0x100] sm:$0xff]
        %v2466 = vld [vmem:[%s2432 + $0x108] sm:$0xff]
        %v2467 = vld [vmem:[%s2432 + $0x110] sm:$0xff]
        %v2468 = vld [vmem:[%s2432 + $0x118] sm:$0xff]
        %v2469 = vld [vmem:[%s2432 + $0x120] sm:$0xff]
        %v2470 = vld [vmem:[%s2432 + $0x128] sm:$0xff]
        %v2471 = vld [vmem:[%s2432 + $0x130] sm:$0xff]
        %v2472 = vld [vmem:[%s2432 + $0x138] sm:$0xff]
        %v2473 = vld [vmem:[%s2432 + $0x140] sm:$0xff]
        %v2474 = vld [vmem:[%s2432 + $0x148] sm:$0xff]
        %v2475 = vld [vmem:[%s2432 + $0x150] sm:$0xff]
        %v2476 = vld [vmem:[%s2432 + $0x158] sm:$0xff]
        %v2477 = vld [vmem:[%s2432 + $0x160] sm:$0xff]
        %v2478 = vld [vmem:[%s2432 + $0x168] sm:$0xff]
        %v2479 = vld [vmem:[%s2432 + $0x170] sm:$0xff]
        %v2480 = vld [vmem:[%s2432 + $0x178] sm:$0xff]
        %v2481 = vld [vmem:[%s2432 + $0x180] sm:$0xff]
        %v2482 = vld [vmem:[%s2432 + $0x188] sm:$0xff]
        %v2483 = vld [vmem:[%s2432 + $0x190] sm:$0xff]
        %v2484 = vld [vmem:[%s2432 + $0x198] sm:$0xff]
        %v2485 = vld [vmem:[%s2432 + $0x1a0] sm:$0xff]
        %v2486 = vld [vmem:[%s2432 + $0x1a8] sm:$0xff]
        %v2487 = vld [vmem:[%s2432 + $0x1b0] sm:$0xff]
        %v2488 = vld [vmem:[%s2432 + $0x1b8] sm:$0xff]
        %v2489 = vld [vmem:[%s2432 + $0x1c0] sm:$0xff]
        %v2490 = vld [vmem:[%s2432 + $0x1c8] sm:$0xff]
        %v2491 = vld [vmem:[%s2432 + $0x1d0] sm:$0xff]
        %v2492 = vld [vmem:[%s2432 + $0x1d8] sm:$0xff]
        %v2493 = vld [vmem:[%s2432 + $0x1e0] sm:$0xff]
        %v2494 = vld [vmem:[%s2432 + $0x1e8] sm:$0xff]
        %v2495 = vld [vmem:[%s2432 + $0x1f0] sm:$0xff]
        %v2496 = vld [vmem:[%s2432 + $0x1f8] sm:$0xff]
        %v2561 = vunpack.c.l.b16 %v2433
        %v2562 = vunpack.c.h.b16 %v2433
        %v2563 = vunpack.c.l.b16 %v2434
        %v2564 = vunpack.c.h.b16 %v2434
        %v2565 = vunpack.c.l.b16 %v2435
        %v2566 = vunpack.c.h.b16 %v2435
        %v2567 = vunpack.c.l.b16 %v2436
        %v2568 = vunpack.c.h.b16 %v2436
        %v2569 = vunpack.c.l.b16 %v2437
        %v2570 = vunpack.c.h.b16 %v2437
        %v2571 = vunpack.c.l.b16 %v2438
        %v2572 = vunpack.c.h.b16 %v2438
        %v2573 = vunpack.c.l.b16 %v2439
        %v2574 = vunpack.c.h.b16 %v2439
        %v2575 = vunpack.c.l.b16 %v2440
        %v2576 = vunpack.c.h.b16 %v2440
        %v2577 = vunpack.c.l.b16 %v2441
        %v2578 = vunpack.c.h.b16 %v2441
        %v2579 = vunpack.c.l.b16 %v2442
        %v2580 = vunpack.c.h.b16 %v2442
        %v2581 = vunpack.c.l.b16 %v2443
        %v2582 = vunpack.c.h.b16 %v2443
        %v2583 = vunpack.c.l.b16 %v2444
        %v2584 = vunpack.c.h.b16 %v2444
        %v2585 = vunpack.c.l.b16 %v2445
        %v2586 = vunpack.c.h.b16 %v2445
        %v2587 = vunpack.c.l.b16 %v2446
        %v2588 = vunpack.c.h.b16 %v2446
        %v2589 = vunpack.c.l.b16 %v2447
        %v2590 = vunpack.c.h.b16 %v2447
        %v2591 = vunpack.c.l.b16 %v2448
        %v2592 = vunpack.c.h.b16 %v2448
        %v2593 = vunpack.c.l.b16 %v2449
        %v2594 = vunpack.c.h.b16 %v2449
        %v2595 = vunpack.c.l.b16 %v2450
        %v2596 = vunpack.c.h.b16 %v2450
        %v2597 = vunpack.c.l.b16 %v2451
        %v2598 = vunpack.c.h.b16 %v2451
        %v2599 = vunpack.c.l.b16 %v2452
        %v2600 = vunpack.c.h.b16 %v2452
        %v2601 = vunpack.c.l.b16 %v2453
        %v2602 = vunpack.c.h.b16 %v2453
        %v2603 = vunpack.c.l.b16 %v2454
        %v2604 = vunpack.c.h.b16 %v2454
        %v2605 = vunpack.c.l.b16 %v2455
        %v2606 = vunpack.c.h.b16 %v2455
        %v2607 = vunpack.c.l.b16 %v2456
        %v2608 = vunpack.c.h.b16 %v2456
        %v2609 = vunpack.c.l.b16 %v2457
        %v2610 = vunpack.c.h.b16 %v2457
        %v2611 = vunpack.c.l.b16 %v2458
        %v2612 = vunpack.c.h.b16 %v2458
        %v2613 = vunpack.c.l.b16 %v2459
        %v2614 = vunpack.c.h.b16 %v2459
        %v2615 = vunpack.c.l.b16 %v2460
        %v2616 = vunpack.c.h.b16 %v2460
        %v2617 = vunpack.c.l.b16 %v2461
        %v2618 = vunpack.c.h.b16 %v2461
        %v2619 = vunpack.c.l.b16 %v2462
        %v2620 = vunpack.c.h.b16 %v2462
        %v2621 = vunpack.c.l.b16 %v2463
        %v2622 = vunpack.c.h.b16 %v2463
        %v2623 = vunpack.c.l.b16 %v2464
        %v2624 = vunpack.c.h.b16 %v2464
        %v2625 = vunpack.c.l.b16 %v2465
        %v2626 = vunpack.c.h.b16 %v2465
        %v2627 = vunpack.c.l.b16 %v2466
        %v2628 = vunpack.c.h.b16 %v2466
        %v2629 = vunpack.c.l.b16 %v2467
        %v2630 = vunpack.c.h.b16 %v2467
        %v2631 = vunpack.c.l.b16 %v2468
        %v2632 = vunpack.c.h.b16 %v2468
        %v2633 = vunpack.c.l.b16 %v2469
        %v2634 = vunpack.c.h.b16 %v2469
        %v2635 = vunpack.c.l.b16 %v2470
        %v2636 = vunpack.c.h.b16 %v2470
        %v2637 = vunpack.c.l.b16 %v2471
        %v2638 = vunpack.c.h.b16 %v2471
        %v2639 = vunpack.c.l.b16 %v2472
        %v2640 = vunpack.c.h.b16 %v2472
        %v2641 = vunpack.c.l.b16 %v2473
        %v2642 = vunpack.c.h.b16 %v2473
        %v2643 = vunpack.c.l.b16 %v2474
        %v2644 = vunpack.c.h.b16 %v2474
        %v2645 = vunpack.c.l.b16 %v2475
        %v2646 = vunpack.c.h.b16 %v2475
        %v2647 = vunpack.c.l.b16 %v2476
        %v2648 = vunpack.c.h.b16 %v2476
        %v2649 = vunpack.c.l.b16 %v2477
        %v2650 = vunpack.c.h.b16 %v2477
        %v2651 = vunpack.c.l.b16 %v2478
        %v2652 = vunpack.c.h.b16 %v2478
        %v2653 = vunpack.c.l.b16 %v2479
        %v2654 = vunpack.c.h.b16 %v2479
        %v2655 = vunpack.c.l.b16 %v2480
        %v2656 = vunpack.c.h.b16 %v2480
        %v2657 = vunpack.c.l.b16 %v2481
        %v2658 = vunpack.c.h.b16 %v2481
        %v2659 = vunpack.c.l.b16 %v2482
        %v2660 = vunpack.c.h.b16 %v2482
        %v2661 = vunpack.c.l.b16 %v2483
        %v2662 = vunpack.c.h.b16 %v2483
        %v2663 = vunpack.c.l.b16 %v2484
        %v2664 = vunpack.c.h.b16 %v2484
        %v2665 = vunpack.c.l.b16 %v2485
        %v2666 = vunpack.c.h.b16 %v2485
        %v2667 = vunpack.c.l.b16 %v2486
        %v2668 = vunpack.c.h.b16 %v2486
        %v2669 = vunpack.c.l.b16 %v2487
        %v2670 = vunpack.c.h.b16 %v2487
        %v2671 = vunpack.c.l.b16 %v2488
        %v2672 = vunpack.c.h.b16 %v2488
        %v2673 = vunpack.c.l.b16 %v2489
        %v2674 = vunpack.c.h.b16 %v2489
        %v2675 = vunpack.c.l.b16 %v2490
        %v2676 = vunpack.c.h.b16 %v2490
        %v2677 = vunpack.c.l.b16 %v2491
        %v2678 = vunpack.c.h.b16 %v2491
        %v2679 = vunpack.c.l.b16 %v2492
        %v2680 = vunpack.c.h.b16 %v2492
        %v2681 = vunpack.c.l.b16 %v2493
        %v2682 = vunpack.c.h.b16 %v2493
        %v2683 = vunpack.c.l.b16 %v2494
        %v2684 = vunpack.c.h.b16 %v2494
        %v2685 = vunpack.c.l.b16 %v2495
        %v2686 = vunpack.c.h.b16 %v2495
        %v2687 = vunpack.c.l.b16 %v2496
        %v2688 = vunpack.c.h.b16 %v2496
        %v2689 = vpack.c.b16 %v2565, %v2561
        %v2690 = vpack.c.b16 %v2566, %v2562
        %v2691 = vpack.c.b16 %v2567, %v2563
        %v2692 = vpack.c.b16 %v2568, %v2564
        %v2693 = vpack.c.b16 %v2573, %v2569
        %v2694 = vpack.c.b16 %v2574, %v2570
        %v2695 = vpack.c.b16 %v2575, %v2571
        %v2696 = vpack.c.b16 %v2576, %v2572
        %v2697 = vpack.c.b16 %v2581, %v2577
        %v2698 = vpack.c.b16 %v2582, %v2578
        %v2699 = vpack.c.b16 %v2583, %v2579
        %v2700 = vpack.c.b16 %v2584, %v2580
        %v2701 = vpack.c.b16 %v2589, %v2585
        %v2702 = vpack.c.b16 %v2590, %v2586
        %v2703 = vpack.c.b16 %v2591, %v2587
        %v2704 = vpack.c.b16 %v2592, %v2588
        %v2705 = vpack.c.b16 %v2597, %v2593
        %v2706 = vpack.c.b16 %v2598, %v2594
        %v2707 = vpack.c.b16 %v2599, %v2595
        %v2708 = vpack.c.b16 %v2600, %v2596
        %v2709 = vpack.c.b16 %v2605, %v2601
        %v2710 = vpack.c.b16 %v2606, %v2602
        %v2711 = vpack.c.b16 %v2607, %v2603
        %v2712 = vpack.c.b16 %v2608, %v2604
        %v2713 = vpack.c.b16 %v2613, %v2609
        %v2714 = vpack.c.b16 %v2614, %v2610
        %v2715 = vpack.c.b16 %v2615, %v2611
        %v2716 = vpack.c.b16 %v2616, %v2612
        %v2717 = vpack.c.b16 %v2621, %v2617
        %v2718 = vpack.c.b16 %v2622, %v2618
        %v2719 = vpack.c.b16 %v2623, %v2619
        %v2720 = vpack.c.b16 %v2624, %v2620
        %v2721 = vpack.c.b16 %v2629, %v2625
        %v2722 = vpack.c.b16 %v2630, %v2626
        %v2723 = vpack.c.b16 %v2631, %v2627
        %v2724 = vpack.c.b16 %v2632, %v2628
        %v2725 = vpack.c.b16 %v2637, %v2633
        %v2726 = vpack.c.b16 %v2638, %v2634
        %v2727 = vpack.c.b16 %v2639, %v2635
        %v2728 = vpack.c.b16 %v2640, %v2636
        %v2729 = vpack.c.b16 %v2645, %v2641
        %v2730 = vpack.c.b16 %v2646, %v2642
        %v2731 = vpack.c.b16 %v2647, %v2643
        %v2732 = vpack.c.b16 %v2648, %v2644
        %v2733 = vpack.c.b16 %v2653, %v2649
        %v2734 = vpack.c.b16 %v2654, %v2650
        %v2735 = vpack.c.b16 %v2655, %v2651
        %v2736 = vpack.c.b16 %v2656, %v2652
        %v2737 = vpack.c.b16 %v2661, %v2657
        %v2738 = vpack.c.b16 %v2662, %v2658
        %v2739 = vpack.c.b16 %v2663, %v2659
        %v2740 = vpack.c.b16 %v2664, %v2660
        %v2741 = vpack.c.b16 %v2669, %v2665
        %v2742 = vpack.c.b16 %v2670, %v2666
        %v2743 = vpack.c.b16 %v2671, %v2667
        %v2744 = vpack.c.b16 %v2672, %v2668
        %v2745 = vpack.c.b16 %v2677, %v2673
        %v2746 = vpack.c.b16 %v2678, %v2674
        %v2747 = vpack.c.b16 %v2679, %v2675
        %v2748 = vpack.c.b16 %v2680, %v2676
        %v2749 = vpack.c.b16 %v2685, %v2681
        %v2750 = vpack.c.b16 %v2686, %v2682
        %v2751 = vpack.c.b16 %v2687, %v2683
        %v2752 = vpack.c.b16 %v2688, %v2684
        %2817 = vmatprep.subr.bf16.mxu0 %v2690
        %2818 = vmatpush1.bf16.msra.mxu0 %v2689
        %2819 = vmatprep.subr.bf16.mxu0 %v2694
        %2820 = vmatpush1.bf16.msra.mxu0 %v2693
        %2821 = vmatprep.subr.bf16.mxu0 %v2698
        %2822 = vmatpush1.bf16.msra.mxu0 %v2697
        %2823 = vmatprep.subr.bf16.mxu0 %v2702
        %2824 = vmatpush1.bf16.msra.mxu0 %v2701
        %2825 = vmatprep.subr.bf16.mxu0 %v2706
        %2826 = vmatpush1.bf16.msra.mxu0 %v2705
        %2827 = vmatprep.subr.bf16.mxu0 %v2710
        %2828 = vmatpush1.bf16.msra.mxu0 %v2709
        %2829 = vmatprep.subr.bf16.mxu0 %v2714
        %2830 = vmatpush1.bf16.msra.mxu0 %v2713
        %2831 = vmatprep.subr.bf16.mxu0 %v2718
        %2832 = vmatpush1.bf16.msra.mxu0 %v2717
        %2833 = vmatprep.subr.bf16.mxu0 %v2722
        %2834 = vmatpush1.bf16.msra.mxu0 %v2721
        %2835 = vmatprep.subr.bf16.mxu0 %v2726
        %2836 = vmatpush1.bf16.msra.mxu0 %v2725
        %2837 = vmatprep.subr.bf16.mxu0 %v2730
        %2838 = vmatpush1.bf16.msra.mxu0 %v2729
        %2839 = vmatprep.subr.bf16.mxu0 %v2734
        %2840 = vmatpush1.bf16.msra.mxu0 %v2733
        %2841 = vmatprep.subr.bf16.mxu0 %v2738
        %2842 = vmatpush1.bf16.msra.mxu0 %v2737
        %2843 = vmatprep.subr.bf16.mxu0 %v2742
        %2844 = vmatpush1.bf16.msra.mxu0 %v2741
        %2845 = vmatprep.subr.bf16.mxu0 %v2746
        %2846 = vmatpush1.bf16.msra.mxu0 %v2745
        %2847 = vmatprep.subr.bf16.mxu0 %v2750
        %2848 = vmatpush1.bf16.msra.mxu0 %v2749
        %2849 = vmatprep.mubr.bf16.mxu0 %v2431
        %2850 = vmatmul.mubr.bf16.gmra.mrb[0].mxu0 %v2430
        %v2851 = vpop.f32.mrb[0].mxu0
        %v2852 = vadd.f32 0.0, %v2851
        %v2853 = vpop.f32.mrb[0].mxu0
        %v2854 = vadd.f32 0.0, %v2853
        %v2855 = vpop.f32.mrb[0].mxu0
        %v2856 = vpop.f32.mrb[0].mxu0
        %2857 = vdwg.mxu0
        %2858 = vmatprep.subr.bf16.mxu0 %v2692
        %2859 = vmatpush1.bf16.msra.mxu0 %v2691
        %2860 = vmatprep.subr.bf16.mxu0 %v2696
        %2861 = vmatpush1.bf16.msra.mxu0 %v2695
        %2862 = vmatprep.subr.bf16.mxu0 %v2700
        %2863 = vmatpush1.bf16.msra.mxu0 %v2699
        %2864 = vmatprep.subr.bf16.mxu0 %v2704
        %2865 = vmatpush1.bf16.msra.mxu0 %v2703
        %2866 = vmatprep.subr.bf16.mxu0 %v2708
        %2867 = vmatpush1.bf16.msra.mxu0 %v2707
        %2868 = vmatprep.subr.bf16.mxu0 %v2712
        %2869 = vmatpush1.bf16.msra.mxu0 %v2711
        %2870 = vmatprep.subr.bf16.mxu0 %v2716
        %2871 = vmatpush1.bf16.msra.mxu0 %v2715
        %2872 = vmatprep.subr.bf16.mxu0 %v2720
        %2873 = vmatpush1.bf16.msra.mxu0 %v2719
        %2874 = vmatprep.subr.bf16.mxu0 %v2724
        %2875 = vmatpush1.bf16.msra.mxu0 %v2723
        %2876 = vmatprep.subr.bf16.mxu0 %v2728
        %2877 = vmatpush1.bf16.msra.mxu0 %v2727
        %2878 = vmatprep.subr.bf16.mxu0 %v2732
        %2879 = vmatpush1.bf16.msra.mxu0 %v2731
        %2880 = vmatprep.subr.bf16.mxu0 %v2736
        %2881 = vmatpush1.bf16.msra.mxu0 %v2735
        %2882 = vmatprep.subr.bf16.mxu0 %v2740
        %2883 = vmatpush1.bf16.msra.mxu0 %v2739
        %2884 = vmatprep.subr.bf16.mxu0 %v2744
        %2885 = vmatpush1.bf16.msra.mxu0 %v2743
        %2886 = vmatprep.subr.bf16.mxu0 %v2748
        %2887 = vmatpush1.bf16.msra.mxu0 %v2747
        %2888 = vmatprep.subr.bf16.mxu0 %v2752
        %2889 = vmatpush1.bf16.msra.mxu0 %v2751
        %2890 = vmatprep.mubr.bf16.mxu0 %v2431
        %2891 = vmatmul.mubr.bf16.gmra.mrb[0].mxu0 %v2430
        %v2892 = vpop.f32.mrb[0].mxu0
        %v2893 = vadd.f32 0.0, %v2892
        %v2894 = vpop.f32.mrb[0].mxu0
        %v2895 = vadd.f32 0.0, %v2894
        %v2896 = vpop.f32.mrb[0].mxu0
        %v2897 = vpop.f32.mrb[0].mxu0
        %2898 = vdwg.mxu0
        %v2963 = vunpack.c.l.b16 %v2364
        %v2964 = vunpack.c.h.b16 %v2364
        %v2965 = vunpack.c.l.b16 %v2365
        %v2966 = vunpack.c.h.b16 %v2365
        %v2967 = vunpack.c.l.b16 %v2366
        %v2968 = vunpack.c.h.b16 %v2366
        %v2969 = vunpack.c.l.b16 %v2367
        %v2970 = vunpack.c.h.b16 %v2367
        %v2971 = vunpack.c.l.b16 %v2368
        %v2972 = vunpack.c.h.b16 %v2368
        %v2973 = vunpack.c.l.b16 %v2369
        %v2974 = vunpack.c.h.b16 %v2369
        %v2975 = vunpack.c.l.b16 %v2370
        %v2976 = vunpack.c.h.b16 %v2370
        %v2977 = vunpack.c.l.b16 %v2371
        %v2978 = vunpack.c.h.b16 %v2371
        %v2979 = vunpack.c.l.b16 %v2372
        %v2980 = vunpack.c.h.b16 %v2372
        %v2981 = vunpack.c.l.b16 %v2373
        %v2982 = vunpack.c.h.b16 %v2373
        %v2983 = vunpack.c.l.b16 %v2374
        %v2984 = vunpack.c.h.b16 %v2374
        %v2985 = vunpack.c.l.b16 %v2375
        %v2986 = vunpack.c.h.b16 %v2375
        %v2987 = vunpack.c.l.b16 %v2376
        %v2988 = vunpack.c.h.b16 %v2376
        %v2989 = vunpack.c.l.b16 %v2377
        %v2990 = vunpack.c.h.b16 %v2377
        %v2991 = vunpack.c.l.b16 %v2378
        %v2992 = vunpack.c.h.b16 %v2378
        %v2993 = vunpack.c.l.b16 %v2379
        %v2994 = vunpack.c.h.b16 %v2379
        %v2995 = vunpack.c.l.b16 %v2380
        %v2996 = vunpack.c.h.b16 %v2380
        %v2997 = vunpack.c.l.b16 %v2381
        %v2998 = vunpack.c.h.b16 %v2381
        %v2999 = vunpack.c.l.b16 %v2382
        %v3000 = vunpack.c.h.b16 %v2382
        %v3001 = vunpack.c.l.b16 %v2383
        %v3002 = vunpack.c.h.b16 %v2383
        %v3003 = vunpack.c.l.b16 %v2384
        %v3004 = vunpack.c.h.b16 %v2384
        %v3005 = vunpack.c.l.b16 %v2385
        %v3006 = vunpack.c.h.b16 %v2385
        %v3007 = vunpack.c.l.b16 %v2386
        %v3008 = vunpack.c.h.b16 %v2386
        %v3009 = vunpack.c.l.b16 %v2387
        %v3010 = vunpack.c.h.b16 %v2387
        %v3011 = vunpack.c.l.b16 %v2388
        %v3012 = vunpack.c.h.b16 %v2388
        %v3013 = vunpack.c.l.b16 %v2389
        %v3014 = vunpack.c.h.b16 %v2389
        %v3015 = vunpack.c.l.b16 %v2390
        %v3016 = vunpack.c.h.b16 %v2390
        %v3017 = vunpack.c.l.b16 %v2391
        %v3018 = vunpack.c.h.b16 %v2391
        %v3019 = vunpack.c.l.b16 %v2392
        %v3020 = vunpack.c.h.b16 %v2392
        %v3021 = vunpack.c.l.b16 %v2393
        %v3022 = vunpack.c.h.b16 %v2393
        %v3023 = vunpack.c.l.b16 %v2394
        %v3024 = vunpack.c.h.b16 %v2394
        %v3025 = vunpack.c.l.b16 %v2395
        %v3026 = vunpack.c.h.b16 %v2395
        %v3027 = vunpack.c.l.b16 %v2396
        %v3028 = vunpack.c.h.b16 %v2396
        %v3029 = vunpack.c.l.b16 %v2397
        %v3030 = vunpack.c.h.b16 %v2397
        %v3031 = vunpack.c.l.b16 %v2398
        %v3032 = vunpack.c.h.b16 %v2398
        %v3033 = vunpack.c.l.b16 %v2399
        %v3034 = vunpack.c.h.b16 %v2399
        %v3035 = vunpack.c.l.b16 %v2400
        %v3036 = vunpack.c.h.b16 %v2400
        %v3037 = vunpack.c.l.b16 %v2401
        %v3038 = vunpack.c.h.b16 %v2401
        %v3039 = vunpack.c.l.b16 %v2402
        %v3040 = vunpack.c.h.b16 %v2402
        %v3041 = vunpack.c.l.b16 %v2403
        %v3042 = vunpack.c.h.b16 %v2403
        %v3043 = vunpack.c.l.b16 %v2404
        %v3044 = vunpack.c.h.b16 %v2404
        %v3045 = vunpack.c.l.b16 %v2405
        %v3046 = vunpack.c.h.b16 %v2405
        %v3047 = vunpack.c.l.b16 %v2406
        %v3048 = vunpack.c.h.b16 %v2406
        %v3049 = vunpack.c.l.b16 %v2407
        %v3050 = vunpack.c.h.b16 %v2407
        %v3051 = vunpack.c.l.b16 %v2408
        %v3052 = vunpack.c.h.b16 %v2408
        %v3053 = vunpack.c.l.b16 %v2409
        %v3054 = vunpack.c.h.b16 %v2409
        %v3055 = vunpack.c.l.b16 %v2410
        %v3056 = vunpack.c.h.b16 %v2410
        %v3057 = vunpack.c.l.b16 %v2411
        %v3058 = vunpack.c.h.b16 %v2411
        %v3059 = vunpack.c.l.b16 %v2412
        %v3060 = vunpack.c.h.b16 %v2412
        %v3061 = vunpack.c.l.b16 %v2413
        %v3062 = vunpack.c.h.b16 %v2413
        %v3063 = vunpack.c.l.b16 %v2414
        %v3064 = vunpack.c.h.b16 %v2414
        %v3065 = vunpack.c.l.b16 %v2415
        %v3066 = vunpack.c.h.b16 %v2415
        %v3067 = vunpack.c.l.b16 %v2416
        %v3068 = vunpack.c.h.b16 %v2416
        %v3069 = vunpack.c.l.b16 %v2417
        %v3070 = vunpack.c.h.b16 %v2417
        %v3071 = vunpack.c.l.b16 %v2418
        %v3072 = vunpack.c.h.b16 %v2418
        %v3073 = vunpack.c.l.b16 %v2419
        %v3074 = vunpack.c.h.b16 %v2419
        %v3075 = vunpack.c.l.b16 %v2420
        %v3076 = vunpack.c.h.b16 %v2420
        %v3077 = vunpack.c.l.b16 %v2421
        %v3078 = vunpack.c.h.b16 %v2421
        %v3079 = vunpack.c.l.b16 %v2422
        %v3080 = vunpack.c.h.b16 %v2422
        %v3081 = vunpack.c.l.b16 %v2423
        %v3082 = vunpack.c.h.b16 %v2423
        %v3083 = vunpack.c.l.b16 %v2424
        %v3084 = vunpack.c.h.b16 %v2424
        %v3085 = vunpack.c.l.b16 %v2425
        %v3086 = vunpack.c.h.b16 %v2425
        %v3087 = vunpack.c.l.b16 %v2426
        %v3088 = vunpack.c.h.b16 %v2426
        %v3089 = vunpack.c.l.b16 %v2427
        %v3090 = vunpack.c.h.b16 %v2427
        %v3091 = vpack.c.b16 %v2967, %v2963
        %v3092 = vpack.c.b16 %v2968, %v2964
        %v3093 = vpack.c.b16 %v2969, %v2965
        %v3094 = vpack.c.b16 %v2970, %v2966
        %v3095 = vpack.c.b16 %v2975, %v2971
        %v3096 = vpack.c.b16 %v2976, %v2972
        %v3097 = vpack.c.b16 %v2977, %v2973
        %v3098 = vpack.c.b16 %v2978, %v2974
        %v3099 = vpack.c.b16 %v2983, %v2979
        %v3100 = vpack.c.b16 %v2984, %v2980
        %v3101 = vpack.c.b16 %v2985, %v2981
        %v3102 = vpack.c.b16 %v2986, %v2982
        %v3103 = vpack.c.b16 %v2991, %v2987
        %v3104 = vpack.c.b16 %v2992, %v2988
        %v3105 = vpack.c.b16 %v2993, %v2989
        %v3106 = vpack.c.b16 %v2994, %v2990
        %v3107 = vpack.c.b16 %v2999, %v2995
        %v3108 = vpack.c.b16 %v3000, %v2996
        %v3109 = vpack.c.b16 %v3001, %v2997
        %v3110 = vpack.c.b16 %v3002, %v2998
        %v3111 = vpack.c.b16 %v3007, %v3003
        %v3112 = vpack.c.b16 %v3008, %v3004
        %v3113 = vpack.c.b16 %v3009, %v3005
        %v3114 = vpack.c.b16 %v3010, %v3006
        %v3115 = vpack.c.b16 %v3015, %v3011
        %v3116 = vpack.c.b16 %v3016, %v3012
        %v3117 = vpack.c.b16 %v3017, %v3013
        %v3118 = vpack.c.b16 %v3018, %v3014
        %v3119 = vpack.c.b16 %v3023, %v3019
        %v3120 = vpack.c.b16 %v3024, %v3020
        %v3121 = vpack.c.b16 %v3025, %v3021
        %v3122 = vpack.c.b16 %v3026, %v3022
        %v3123 = vpack.c.b16 %v3031, %v3027
        %v3124 = vpack.c.b16 %v3032, %v3028
        %v3125 = vpack.c.b16 %v3033, %v3029
        %v3126 = vpack.c.b16 %v3034, %v3030
        %v3127 = vpack.c.b16 %v3039, %v3035
        %v3128 = vpack.c.b16 %v3040, %v3036
        %v3129 = vpack.c.b16 %v3041, %v3037
        %v3130 = vpack.c.b16 %v3042, %v3038
        %v3131 = vpack.c.b16 %v3047, %v3043
        %v3132 = vpack.c.b16 %v3048, %v3044
        %v3133 = vpack.c.b16 %v3049, %v3045
        %v3134 = vpack.c.b16 %v3050, %v3046
        %v3135 = vpack.c.b16 %v3055, %v3051
        %v3136 = vpack.c.b16 %v3056, %v3052
        %v3137 = vpack.c.b16 %v3057, %v3053
        %v3138 = vpack.c.b16 %v3058, %v3054
        %v3139 = vpack.c.b16 %v3063, %v3059
        %v3140 = vpack.c.b16 %v3064, %v3060
        %v3141 = vpack.c.b16 %v3065, %v3061
        %v3142 = vpack.c.b16 %v3066, %v3062
        %v3143 = vpack.c.b16 %v3071, %v3067
        %v3144 = vpack.c.b16 %v3072, %v3068
        %v3145 = vpack.c.b16 %v3073, %v3069
        %v3146 = vpack.c.b16 %v3074, %v3070
        %v3147 = vpack.c.b16 %v3079, %v3075
        %v3148 = vpack.c.b16 %v3080, %v3076
        %v3149 = vpack.c.b16 %v3081, %v3077
        %v3150 = vpack.c.b16 %v3082, %v3078
        %v3151 = vpack.c.b16 %v3087, %v3083
        %v3152 = vpack.c.b16 %v3088, %v3084
        %v3153 = vpack.c.b16 %v3089, %v3085
        %v3154 = vpack.c.b16 %v3090, %v3086
        %3219 = vmatprep.subr.bf16.mxu0 %v3092
        %3220 = vmatpush1.bf16.msra.mxu0 %v3091
        %3221 = vmatprep.subr.bf16.mxu0 %v3096
        %3222 = vmatpush1.bf16.msra.mxu0 %v3095
        %3223 = vmatprep.subr.bf16.mxu0 %v3100
        %3224 = vmatpush1.bf16.msra.mxu0 %v3099
        %3225 = vmatprep.subr.bf16.mxu0 %v3104
        %3226 = vmatpush1.bf16.msra.mxu0 %v3103
        %3227 = vmatprep.subr.bf16.mxu0 %v3108
        %3228 = vmatpush1.bf16.msra.mxu0 %v3107
        %3229 = vmatprep.subr.bf16.mxu0 %v3112
        %3230 = vmatpush1.bf16.msra.mxu0 %v3111
        %3231 = vmatprep.subr.bf16.mxu0 %v3116
        %3232 = vmatpush1.bf16.msra.mxu0 %v3115
        %3233 = vmatprep.subr.bf16.mxu0 %v3120
        %3234 = vmatpush1.bf16.msra.mxu0 %v3119
        %3235 = vmatprep.subr.bf16.mxu0 %v3124
        %3236 = vmatpush1.bf16.msra.mxu0 %v3123
        %3237 = vmatprep.subr.bf16.mxu0 %v3128
        %3238 = vmatpush1.bf16.msra.mxu0 %v3127
        %3239 = vmatprep.subr.bf16.mxu0 %v3132
        %3240 = vmatpush1.bf16.msra.mxu0 %v3131
        %3241 = vmatprep.subr.bf16.mxu0 %v3136
        %3242 = vmatpush1.bf16.msra.mxu0 %v3135
        %3243 = vmatprep.subr.bf16.mxu0 %v3140
        %3244 = vmatpush1.bf16.msra.mxu0 %v3139
        %3245 = vmatprep.subr.bf16.mxu0 %v3144
        %3246 = vmatpush1.bf16.msra.mxu0 %v3143
        %3247 = vmatprep.subr.bf16.mxu0 %v3148
        %3248 = vmatpush1.bf16.msra.mxu0 %v3147
        %3249 = vmatprep.subr.bf16.mxu0 %v3152
        %3250 = vmatpush1.bf16.msra.mxu0 %v3151
        %3251 = vmatprep.mubr.bf16.mxu0 %v2429
        %3252 = vmatmul.mubr.bf16.gmra.mrb[0].mxu0 %v2428
        %v3253 = vpop.f32.mrb[0].mxu0
        %v3254 = vadd.f32 %v2852, %v3253
        %v3255 = vpop.f32.mrb[0].mxu0
        %v3256 = vadd.f32 %v2854, %v3255
        %v3257 = vpop.f32.mrb[0].mxu0
        %v3258 = vpop.f32.mrb[0].mxu0
        %3259 = vdwg.mxu0
        %3260 = vmatprep.subr.bf16.mxu0 %v3094
        %3261 = vmatpush1.bf16.msra.mxu0 %v3093
        %3262 = vmatprep.subr.bf16.mxu0 %v3098
        %3263 = vmatpush1.bf16.msra.mxu0 %v3097
        %3264 = vmatprep.subr.bf16.mxu0 %v3102
        %3265 = vmatpush1.bf16.msra.mxu0 %v3101
        %3266 = vmatprep.subr.bf16.mxu0 %v3106
        %3267 = vmatpush1.bf16.msra.mxu0 %v3105
        %3268 = vmatprep.subr.bf16.mxu0 %v3110
        %3269 = vmatpush1.bf16.msra.mxu0 %v3109
        %3270 = vmatprep.subr.bf16.mxu0 %v3114
        %3271 = vmatpush1.bf16.msra.mxu0 %v3113
        %3272 = vmatprep.subr.bf16.mxu0 %v3118
        %3273 = vmatpush1.bf16.msra.mxu0 %v3117
        %3274 = vmatprep.subr.bf16.mxu0 %v3122
        %3275 = vmatpush1.bf16.msra.mxu0 %v3121
        %3276 = vmatprep.subr.bf16.mxu0 %v3126
        %3277 = vmatpush1.bf16.msra.mxu0 %v3125
        %3278 = vmatprep.subr.bf16.mxu0 %v3130
        %3279 = vmatpush1.bf16.msra.mxu0 %v3129
        %3280 = vmatprep.subr.bf16.mxu0 %v3134
        %3281 = vmatpush1.bf16.msra.mxu0 %v3133
        %3282 = vmatprep.subr.bf16.mxu0 %v3138
        %3283 = vmatpush1.bf16.msra.mxu0 %v3137
        %3284 = vmatprep.subr.bf16.mxu0 %v3142
        %3285 = vmatpush1.bf16.msra.mxu0 %v3141
        %3286 = vmatprep.subr.bf16.mxu0 %v3146
        %3287 = vmatpush1.bf16.msra.mxu0 %v3145
        %3288 = vmatprep.subr.bf16.mxu0 %v3150
        %3289 = vmatpush1.bf16.msra.mxu0 %v3149
        %3290 = vmatprep.subr.bf16.mxu0 %v3154
        %3291 = vmatpush1.bf16.msra.mxu0 %v3153
        %3292 = vmatprep.mubr.bf16.mxu0 %v2429
        %3293 = vmatmul.mubr.bf16.gmra.mrb[0].mxu0 %v2428
        %v3294 = vpop.f32.mrb[0].mxu0
        %v3295 = vadd.f32 %v2893, %v3294
        %v3296 = vpop.f32.mrb[0].mxu0
        %v3297 = vadd.f32 %v2895, %v3296
        %v3298 = vpop.f32.mrb[0].mxu0
        %v3299 = vpop.f32.mrb[0].mxu0
        %3300 = vdwg.mxu0
        %v3302 = vshrl.u32 %v2428, 16
        %v3304 = vshll.u32 %v2428, 16
        %v3306 = vrot.slane %v3304, 1
        %v3307 = vor.u32 %v3302, %v3306
        %v3309 = vshrl.u32 %v2429, 16
        %v3311 = vshll.u32 %v2429, 16
        %v3313 = vrot.slane %v3311, 1
        %v3314 = vor.u32 %v3309, %v3313
        %3317 = vmatprep.subr.bf16.mxu0 %v2690
        %3318 = vmatpush1.bf16.msra.mxu0 %v2689
        %3319 = vmatprep.subr.bf16.mxu0 %v2694
        %3320 = vmatpush1.bf16.msra.mxu0 %v2693
        %3321 = vmatprep.subr.bf16.mxu0 %v2698
        %3322 = vmatpush1.bf16.msra.mxu0 %v2697
        %3323 = vmatprep.subr.bf16.mxu0 %v2702
        %3324 = vmatpush1.bf16.msra.mxu0 %v2701
        %3325 = vmatprep.subr.bf16.mxu0 %v2706
        %3326 = vmatpush1.bf16.msra.mxu0 %v2705
        %3327 = vmatprep.subr.bf16.mxu0 %v2710
        %3328 = vmatpush1.bf16.msra.mxu0 %v2709
        %3329 = vmatprep.subr.bf16.mxu0 %v2714
        %3330 = vmatpush1.bf16.msra.mxu0 %v2713
        %3331 = vmatprep.subr.bf16.mxu0 %v2718
        %3332 = vmatpush1.bf16.msra.mxu0 %v2717
        %3333 = vmatprep.subr.bf16.mxu0 %v2722
        %3334 = vmatpush1.bf16.msra.mxu0 %v2721
        %3335 = vmatprep.subr.bf16.mxu0 %v2726
        %3336 = vmatpush1.bf16.msra.mxu0 %v2725
        %3337 = vmatprep.subr.bf16.mxu0 %v2730
        %3338 = vmatpush1.bf16.msra.mxu0 %v2729
        %3339 = vmatprep.subr.bf16.mxu0 %v2734
        %3340 = vmatpush1.bf16.msra.mxu0 %v2733
        %3341 = vmatprep.subr.bf16.mxu0 %v2738
        %3342 = vmatpush1.bf16.msra.mxu0 %v2737
        %3343 = vmatprep.subr.bf16.mxu0 %v2742
        %3344 = vmatpush1.bf16.msra.mxu0 %v2741
        %3345 = vmatprep.subr.bf16.mxu0 %v2746
        %3346 = vmatpush1.bf16.msra.mxu0 %v2745
        %3347 = vmatprep.subr.bf16.mxu0 %v2750
        %3348 = vmatpush1.bf16.msra.mxu0 %v2749
        %3349 = vmatprep.mubr.bf16.mxu0 %v3314
        %3350 = vmatmul.mubr.bf16.gmra.mrb[0].mxu0 %v3307
        %v3351 = vpop.f32.mrb[0].mxu0
        %v3352 = vadd.f32 0.0, %v3351
        %v3353 = vpop.f32.mrb[0].mxu0
        %v3354 = vadd.f32 0.0, %v3353
        %v3355 = vpop.f32.mrb[0].mxu0
        %v3356 = vpop.f32.mrb[0].mxu0
        %3357 = vdwg.mxu0
        %3358 = vmatprep.subr.bf16.mxu0 %v2692
        %3359 = vmatpush1.bf16.msra.mxu0 %v2691
        %3360 = vmatprep.subr.bf16.mxu0 %v2696
        %3361 = vmatpush1.bf16.msra.mxu0 %v2695
        %3362 = vmatprep.subr.bf16.mxu0 %v2700
        %3363 = vmatpush1.bf16.msra.mxu0 %v2699
        %3364 = vmatprep.subr.bf16.mxu0 %v2704
        %3365 = vmatpush1.bf16.msra.mxu0 %v2703
        %3366 = vmatprep.subr.bf16.mxu0 %v2708
        %3367 = vmatpush1.bf16.msra.mxu0 %v2707
        %3368 = vmatprep.subr.bf16.mxu0 %v2712
        %3369 = vmatpush1.bf16.msra.mxu0 %v2711
        %3370 = vmatprep.subr.bf16.mxu0 %v2716
        %3371 = vmatpush1.bf16.msra.mxu0 %v2715
        %3372 = vmatprep.subr.bf16.mxu0 %v2720
        %3373 = vmatpush1.bf16.msra.mxu0 %v2719
        %3374 = vmatprep.subr.bf16.mxu0 %v2724
        %3375 = vmatpush1.bf16.msra.mxu0 %v2723
        %3376 = vmatprep.subr.bf16.mxu0 %v2728
        %3377 = vmatpush1.bf16.msra.mxu0 %v2727
        %3378 = vmatprep.subr.bf16.mxu0 %v2732
        %3379 = vmatpush1.bf16.msra.mxu0 %v2731
        %3380 = vmatprep.subr.bf16.mxu0 %v2736
        %3381 = vmatpush1.bf16.msra.mxu0 %v2735
        %3382 = vmatprep.subr.bf16.mxu0 %v2740
        %3383 = vmatpush1.bf16.msra.mxu0 %v2739
        %3384 = vmatprep.subr.bf16.mxu0 %v2744
        %3385 = vmatpush1.bf16.msra.mxu0 %v2743
        %3386 = vmatprep.subr.bf16.mxu0 %v2748
        %3387 = vmatpush1.bf16.msra.mxu0 %v2747
        %3388 = vmatprep.subr.bf16.mxu0 %v2752
        %3389 = vmatpush1.bf16.msra.mxu0 %v2751
        %3390 = vmatprep.mubr.bf16.mxu0 %v3314
        %3391 = vmatmul.mubr.bf16.gmra.mrb[0].mxu0 %v3307
        %v3392 = vpop.f32.mrb[0].mxu0
        %v3393 = vadd.f32 0.0, %v3392
        %v3394 = vpop.f32.mrb[0].mxu0
        %v3395 = vadd.f32 0.0, %v3394
        %v3396 = vpop.f32.mrb[0].mxu0
        %v3397 = vpop.f32.mrb[0].mxu0
        %3398 = vdwg.mxu0
        %3399 = vmatprep.subr.bf16.mxu0 %v3092
        %3400 = vmatpush1.bf16.msra.mxu0 %v3091
        %3401 = vmatprep.subr.bf16.mxu0 %v3096
        %3402 = vmatpush1.bf16.msra.mxu0 %v3095
        %3403 = vmatprep.subr.bf16.mxu0 %v3100
        %3404 = vmatpush1.bf16.msra.mxu0 %v3099
        %3405 = vmatprep.subr.bf16.mxu0 %v3104
        %3406 = vmatpush1.bf16.msra.mxu0 %v3103
        %3407 = vmatprep.subr.bf16.mxu0 %v3108
        %3408 = vmatpush1.bf16.msra.mxu0 %v3107
        %3409 = vmatprep.subr.bf16.mxu0 %v3112
        %3410 = vmatpush1.bf16.msra.mxu0 %v3111
        %3411 = vmatprep.subr.bf16.mxu0 %v3116
        %3412 = vmatpush1.bf16.msra.mxu0 %v3115
        %3413 = vmatprep.subr.bf16.mxu0 %v3120
        %3414 = vmatpush1.bf16.msra.mxu0 %v3119
        %3415 = vmatprep.subr.bf16.mxu0 %v3124
        %3416 = vmatpush1.bf16.msra.mxu0 %v3123
        %3417 = vmatprep.subr.bf16.mxu0 %v3128
        %3418 = vmatpush1.bf16.msra.mxu0 %v3127
        %3419 = vmatprep.subr.bf16.mxu0 %v3132
        %3420 = vmatpush1.bf16.msra.mxu0 %v3131
        %3421 = vmatprep.subr.bf16.mxu0 %v3136
        %3422 = vmatpush1.bf16.msra.mxu0 %v3135
        %3423 = vmatprep.subr.bf16.mxu0 %v3140
        %3424 = vmatpush1.bf16.msra.mxu0 %v3139
        %3425 = vmatprep.subr.bf16.mxu0 %v3144
        %3426 = vmatpush1.bf16.msra.mxu0 %v3143
        %3427 = vmatprep.subr.bf16.mxu0 %v3148
        %3428 = vmatpush1.bf16.msra.mxu0 %v3147
        %3429 = vmatprep.subr.bf16.mxu0 %v3152
        %3430 = vmatpush1.bf16.msra.mxu0 %v3151
        %3431 = vmatprep.mubr.bf16.mxu0 %v2431
        %3432 = vmatmul.mubr.bf16.gmra.mrb[0].mxu0 %v2430
        %v3433 = vpop.f32.mrb[0].mxu0
        %v3434 = vadd.f32 %v3352, %v3433
        %v3435 = vpop.f32.mrb[0].mxu0
        %v3436 = vadd.f32 %v3354, %v3435
        %v3437 = vpop.f32.mrb[0].mxu0
        %v3438 = vpop.f32.mrb[0].mxu0
        %3439 = vdwg.mxu0
        %3440 = vmatprep.subr.bf16.mxu0 %v3094
        %3441 = vmatpush1.bf16.msra.mxu0 %v3093
        %3442 = vmatprep.subr.bf16.mxu0 %v3098
        %3443 = vmatpush1.bf16.msra.mxu0 %v3097
        %3444 = vmatprep.subr.bf16.mxu0 %v3102
        %3445 = vmatpush1.bf16.msra.mxu0 %v3101
        %3446 = vmatprep.subr.bf16.mxu0 %v3106
        %3447 = vmatpush1.bf16.msra.mxu0 %v3105
        %3448 = vmatprep.subr.bf16.mxu0 %v3110
        %3449 = vmatpush1.bf16.msra.mxu0 %v3109
        %3450 = vmatprep.subr.bf16.mxu0 %v3114
        %3451 = vmatpush1.bf16.msra.mxu0 %v3113
        %3452 = vmatprep.subr.bf16.mxu0 %v3118
        %3453 = vmatpush1.bf16.msra.mxu0 %v3117
        %3454 = vmatprep.subr.bf16.mxu0 %v3122
        %3455 = vmatpush1.bf16.msra.mxu0 %v3121
        %3456 = vmatprep.subr.bf16.mxu0 %v3126
        %3457 = vmatpush1.bf16.msra.mxu0 %v3125
        %3458 = vmatprep.subr.bf16.mxu0 %v3130
        %3459 = vmatpush1.bf16.msra.mxu0 %v3129
        %3460 = vmatprep.subr.bf16.mxu0 %v3134
        %3461 = vmatpush1.bf16.msra.mxu0 %v3133
        %3462 = vmatprep.subr.bf16.mxu0 %v3138
        %3463 = vmatpush1.bf16.msra.mxu0 %v3137
        %3464 = vmatprep.subr.bf16.mxu0 %v3142
        %3465 = vmatpush1.bf16.msra.mxu0 %v3141
        %3466 = vmatprep.subr.bf16.mxu0 %v3146
        %3467 = vmatpush1.bf16.msra.mxu0 %v3145
        %3468 = vmatprep.subr.bf16.mxu0 %v3150
        %3469 = vmatpush1.bf16.msra.mxu0 %v3149
        %3470 = vmatprep.subr.bf16.mxu0 %v3154
        %3471 = vmatpush1.bf16.msra.mxu0 %v3153
        %3472 = vmatprep.mubr.bf16.mxu0 %v2431
        %3473 = vmatmul.mubr.bf16.gmra.mrb[0].mxu0 %v2430
        %v3474 = vpop.f32.mrb[0].mxu0
        %v3475 = vadd.f32 %v3393, %v3474
        %v3476 = vpop.f32.mrb[0].mxu0
        %v3477 = vadd.f32 %v3395, %v3476
        %v3478 = vpop.f32.mrb[0].mxu0
        %v3479 = vpop.f32.mrb[0].mxu0
        %3480 = vdwg.mxu0
        %s3481 = scalar_lea.vmem [#allocation6], 1024
        %v3482 = vld [vmem:[%s3481] sm:$0xff]
        %v3483 = vld [vmem:[%s3481 + $0x8] sm:$0xff]
        %v3484 = vld [vmem:[%s3481 + $0x10] sm:$0xff]
        %v3485 = vld [vmem:[%s3481 + $0x18] sm:$0xff]
        %v3486 = vld [vmem:[%s3481 + $0x20] sm:$0xff]
        %v3487 = vld [vmem:[%s3481 + $0x28] sm:$0xff]
        %v3488 = vld [vmem:[%s3481 + $0x30] sm:$0xff]
        %v3489 = vld [vmem:[%s3481 + $0x38] sm:$0xff]
        %v3490 = vld [vmem:[%s3481 + $0x40] sm:$0xff]
        %v3491 = vld [vmem:[%s3481 + $0x48] sm:$0xff]
        %v3492 = vld [vmem:[%s3481 + $0x50] sm:$0xff]
        %v3493 = vld [vmem:[%s3481 + $0x58] sm:$0xff]
        %v3494 = vld [vmem:[%s3481 + $0x60] sm:$0xff]
        %v3495 = vld [vmem:[%s3481 + $0x68] sm:$0xff]
        %v3496 = vld [vmem:[%s3481 + $0x70] sm:$0xff]
        %v3497 = vld [vmem:[%s3481 + $0x78] sm:$0xff]
        %v3498 = vld [vmem:[%s3481 + $0x80] sm:$0xff]
        %v3499 = vld [vmem:[%s3481 + $0x88] sm:$0xff]
        %v3500 = vld [vmem:[%s3481 + $0x90] sm:$0xff]
        %v3501 = vld [vmem:[%s3481 + $0x98] sm:$0xff]
        %v3502 = vld [vmem:[%s3481 + $0xa0] sm:$0xff]
        %v3503 = vld [vmem:[%s3481 + $0xa8] sm:$0xff]
        %v3504 = vld [vmem:[%s3481 + $0xb0] sm:$0xff]
        %v3505 = vld [vmem:[%s3481 + $0xb8] sm:$0xff]
        %v3506 = vld [vmem:[%s3481 + $0xc0] sm:$0xff]
        %v3507 = vld [vmem:[%s3481 + $0xc8] sm:$0xff]
        %v3508 = vld [vmem:[%s3481 + $0xd0] sm:$0xff]
        %v3509 = vld [vmem:[%s3481 + $0xd8] sm:$0xff]
        %v3510 = vld [vmem:[%s3481 + $0xe0] sm:$0xff]
        %v3511 = vld [vmem:[%s3481 + $0xe8] sm:$0xff]
        %v3512 = vld [vmem:[%s3481 + $0xf0] sm:$0xff]
        %v3513 = vld [vmem:[%s3481 + $0xf8] sm:$0xff]
        %v3514 = vld [vmem:[%s3481 + $0x100] sm:$0xff]
        %v3515 = vld [vmem:[%s3481 + $0x108] sm:$0xff]
        %v3516 = vld [vmem:[%s3481 + $0x110] sm:$0xff]
        %v3517 = vld [vmem:[%s3481 + $0x118] sm:$0xff]
        %v3518 = vld [vmem:[%s3481 + $0x120] sm:$0xff]
        %v3519 = vld [vmem:[%s3481 + $0x128] sm:$0xff]
        %v3520 = vld [vmem:[%s3481 + $0x130] sm:$0xff]
        %v3521 = vld [vmem:[%s3481 + $0x138] sm:$0xff]
        %v3522 = vld [vmem:[%s3481 + $0x140] sm:$0xff]
        %v3523 = vld [vmem:[%s3481 + $0x148] sm:$0xff]
        %v3524 = vld [vmem:[%s3481 + $0x150] sm:$0xff]
        %v3525 = vld [vmem:[%s3481 + $0x158] sm:$0xff]
        %v3526 = vld [vmem:[%s3481 + $0x160] sm:$0xff]
        %v3527 = vld [vmem:[%s3481 + $0x168] sm:$0xff]
        %v3528 = vld [vmem:[%s3481 + $0x170] sm:$0xff]
        %v3529 = vld [vmem:[%s3481 + $0x178] sm:$0xff]
        %v3530 = vld [vmem:[%s3481 + $0x180] sm:$0xff]
        %v3531 = vld [vmem:[%s3481 + $0x188] sm:$0xff]
        %v3532 = vld [vmem:[%s3481 + $0x190] sm:$0xff]
        %v3533 = vld [vmem:[%s3481 + $0x198] sm:$0xff]
        %v3534 = vld [vmem:[%s3481 + $0x1a0] sm:$0xff]
        %v3535 = vld [vmem:[%s3481 + $0x1a8] sm:$0xff]
        %v3536 = vld [vmem:[%s3481 + $0x1b0] sm:$0xff]
        %v3537 = vld [vmem:[%s3481 + $0x1b8] sm:$0xff]
        %v3538 = vld [vmem:[%s3481 + $0x1c0] sm:$0xff]
        %v3539 = vld [vmem:[%s3481 + $0x1c8] sm:$0xff]
        %v3540 = vld [vmem:[%s3481 + $0x1d0] sm:$0xff]
        %v3541 = vld [vmem:[%s3481 + $0x1d8] sm:$0xff]
        %v3542 = vld [vmem:[%s3481 + $0x1e0] sm:$0xff]
        %v3543 = vld [vmem:[%s3481 + $0x1e8] sm:$0xff]
        %v3544 = vld [vmem:[%s3481 + $0x1f0] sm:$0xff]
        %v3545 = vld [vmem:[%s3481 + $0x1f8] sm:$0xff]
        %v3610 = vunpack.c.l.b16 %v3482
        %v3611 = vunpack.c.h.b16 %v3482
        %v3612 = vunpack.c.l.b16 %v3483
        %v3613 = vunpack.c.h.b16 %v3483
        %v3614 = vunpack.c.l.b16 %v3484
        %v3615 = vunpack.c.h.b16 %v3484
        %v3616 = vunpack.c.l.b16 %v3485
        %v3617 = vunpack.c.h.b16 %v3485
        %v3618 = vunpack.c.l.b16 %v3486
        %v3619 = vunpack.c.h.b16 %v3486
        %v3620 = vunpack.c.l.b16 %v3487
        %v3621 = vunpack.c.h.b16 %v3487
        %v3622 = vunpack.c.l.b16 %v3488
        %v3623 = vunpack.c.h.b16 %v3488
        %v3624 = vunpack.c.l.b16 %v3489
        %v3625 = vunpack.c.h.b16 %v3489
        %v3626 = vunpack.c.l.b16 %v3490
        %v3627 = vunpack.c.h.b16 %v3490
        %v3628 = vunpack.c.l.b16 %v3491
        %v3629 = vunpack.c.h.b16 %v3491
        %v3630 = vunpack.c.l.b16 %v3492
        %v3631 = vunpack.c.h.b16 %v3492
        %v3632 = vunpack.c.l.b16 %v3493
        %v3633 = vunpack.c.h.b16 %v3493
        %v3634 = vunpack.c.l.b16 %v3494
        %v3635 = vunpack.c.h.b16 %v3494
        %v3636 = vunpack.c.l.b16 %v3495
        %v3637 = vunpack.c.h.b16 %v3495
        %v3638 = vunpack.c.l.b16 %v3496
        %v3639 = vunpack.c.h.b16 %v3496
        %v3640 = vunpack.c.l.b16 %v3497
        %v3641 = vunpack.c.h.b16 %v3497
        %v3642 = vunpack.c.l.b16 %v3498
        %v3643 = vunpack.c.h.b16 %v3498
        %v3644 = vunpack.c.l.b16 %v3499
        %v3645 = vunpack.c.h.b16 %v3499
        %v3646 = vunpack.c.l.b16 %v3500
        %v3647 = vunpack.c.h.b16 %v3500
        %v3648 = vunpack.c.l.b16 %v3501
        %v3649 = vunpack.c.h.b16 %v3501
        %v3650 = vunpack.c.l.b16 %v3502
        %v3651 = vunpack.c.h.b16 %v3502
        %v3652 = vunpack.c.l.b16 %v3503
        %v3653 = vunpack.c.h.b16 %v3503
        %v3654 = vunpack.c.l.b16 %v3504
        %v3655 = vunpack.c.h.b16 %v3504
        %v3656 = vunpack.c.l.b16 %v3505
        %v3657 = vunpack.c.h.b16 %v3505
        %v3658 = vunpack.c.l.b16 %v3506
        %v3659 = vunpack.c.h.b16 %v3506
        %v3660 = vunpack.c.l.b16 %v3507
        %v3661 = vunpack.c.h.b16 %v3507
        %v3662 = vunpack.c.l.b16 %v3508
        %v3663 = vunpack.c.h.b16 %v3508
        %v3664 = vunpack.c.l.b16 %v3509
        %v3665 = vunpack.c.h.b16 %v3509
        %v3666 = vunpack.c.l.b16 %v3510
        %v3667 = vunpack.c.h.b16 %v3510
        %v3668 = vunpack.c.l.b16 %v3511
        %v3669 = vunpack.c.h.b16 %v3511
        %v3670 = vunpack.c.l.b16 %v3512
        %v3671 = vunpack.c.h.b16 %v3512
        %v3672 = vunpack.c.l.b16 %v3513
        %v3673 = vunpack.c.h.b16 %v3513
        %v3674 = vunpack.c.l.b16 %v3514
        %v3675 = vunpack.c.h.b16 %v3514
        %v3676 = vunpack.c.l.b16 %v3515
        %v3677 = vunpack.c.h.b16 %v3515
        %v3678 = vunpack.c.l.b16 %v3516
        %v3679 = vunpack.c.h.b16 %v3516
        %v3680 = vunpack.c.l.b16 %v3517
        %v3681 = vunpack.c.h.b16 %v3517
        %v3682 = vunpack.c.l.b16 %v3518
        %v3683 = vunpack.c.h.b16 %v3518
        %v3684 = vunpack.c.l.b16 %v3519
        %v3685 = vunpack.c.h.b16 %v3519
        %v3686 = vunpack.c.l.b16 %v3520
        %v3687 = vunpack.c.h.b16 %v3520
        %v3688 = vunpack.c.l.b16 %v3521
        %v3689 = vunpack.c.h.b16 %v3521
        %v3690 = vunpack.c.l.b16 %v3522
        %v3691 = vunpack.c.h.b16 %v3522
        %v3692 = vunpack.c.l.b16 %v3523
        %v3693 = vunpack.c.h.b16 %v3523
        %v3694 = vunpack.c.l.b16 %v3524
        %v3695 = vunpack.c.h.b16 %v3524
        %v3696 = vunpack.c.l.b16 %v3525
        %v3697 = vunpack.c.h.b16 %v3525
        %v3698 = vunpack.c.l.b16 %v3526
        %v3699 = vunpack.c.h.b16 %v3526
        %v3700 = vunpack.c.l.b16 %v3527
        %v3701 = vunpack.c.h.b16 %v3527
        %v3702 = vunpack.c.l.b16 %v3528
        %v3703 = vunpack.c.h.b16 %v3528
        %v3704 = vunpack.c.l.b16 %v3529
        %v3705 = vunpack.c.h.b16 %v3529
        %v3706 = vunpack.c.l.b16 %v3530
        %v3707 = vunpack.c.h.b16 %v3530
        %v3708 = vunpack.c.l.b16 %v3531
        %v3709 = vunpack.c.h.b16 %v3531
        %v3710 = vunpack.c.l.b16 %v3532
        %v3711 = vunpack.c.h.b16 %v3532
        %v3712 = vunpack.c.l.b16 %v3533
        %v3713 = vunpack.c.h.b16 %v3533
        %v3714 = vunpack.c.l.b16 %v3534
        %v3715 = vunpack.c.h.b16 %v3534
        %v3716 = vunpack.c.l.b16 %v3535
        %v3717 = vunpack.c.h.b16 %v3535
        %v3718 = vunpack.c.l.b16 %v3536
        %v3719 = vunpack.c.h.b16 %v3536
        %v3720 = vunpack.c.l.b16 %v3537
        %v3721 = vunpack.c.h.b16 %v3537
        %v3722 = vunpack.c.l.b16 %v3538
        %v3723 = vunpack.c.h.b16 %v3538
        %v3724 = vunpack.c.l.b16 %v3539
        %v3725 = vunpack.c.h.b16 %v3539
        %v3726 = vunpack.c.l.b16 %v3540
        %v3727 = vunpack.c.h.b16 %v3540
        %v3728 = vunpack.c.l.b16 %v3541
        %v3729 = vunpack.c.h.b16 %v3541
        %v3730 = vunpack.c.l.b16 %v3542
        %v3731 = vunpack.c.h.b16 %v3542
        %v3732 = vunpack.c.l.b16 %v3543
        %v3733 = vunpack.c.h.b16 %v3543
        %v3734 = vunpack.c.l.b16 %v3544
        %v3735 = vunpack.c.h.b16 %v3544
        %v3736 = vunpack.c.l.b16 %v3545
        %v3737 = vunpack.c.h.b16 %v3545
        %v3738 = vpack.c.b16 %v3614, %v3610
        %v3739 = vpack.c.b16 %v3615, %v3611
        %v3740 = vpack.c.b16 %v3616, %v3612
        %v3741 = vpack.c.b16 %v3617, %v3613
        %v3742 = vpack.c.b16 %v3622, %v3618
        %v3743 = vpack.c.b16 %v3623, %v3619
        %v3744 = vpack.c.b16 %v3624, %v3620
        %v3745 = vpack.c.b16 %v3625, %v3621
        %v3746 = vpack.c.b16 %v3630, %v3626
        %v3747 = vpack.c.b16 %v3631, %v3627
        %v3748 = vpack.c.b16 %v3632, %v3628
        %v3749 = vpack.c.b16 %v3633, %v3629
        %v3750 = vpack.c.b16 %v3638, %v3634
        %v3751 = vpack.c.b16 %v3639, %v3635
        %v3752 = vpack.c.b16 %v3640, %v3636
        %v3753 = vpack.c.b16 %v3641, %v3637
        %v3754 = vpack.c.b16 %v3646, %v3642
        %v3755 = vpack.c.b16 %v3647, %v3643
        %v3756 = vpack.c.b16 %v3648, %v3644
        %v3757 = vpack.c.b16 %v3649, %v3645
        %v3758 = vpack.c.b16 %v3654, %v3650
        %v3759 = vpack.c.b16 %v3655, %v3651
        %v3760 = vpack.c.b16 %v3656, %v3652
        %v3761 = vpack.c.b16 %v3657, %v3653
        %v3762 = vpack.c.b16 %v3662, %v3658
        %v3763 = vpack.c.b16 %v3663, %v3659
        %v3764 = vpack.c.b16 %v3664, %v3660
        %v3765 = vpack.c.b16 %v3665, %v3661
        %v3766 = vpack.c.b16 %v3670, %v3666
        %v3767 = vpack.c.b16 %v3671, %v3667
        %v3768 = vpack.c.b16 %v3672, %v3668
        %v3769 = vpack.c.b16 %v3673, %v3669
        %v3770 = vpack.c.b16 %v3678, %v3674
        %v3771 = vpack.c.b16 %v3679, %v3675
        %v3772 = vpack.c.b16 %v3680, %v3676
        %v3773 = vpack.c.b16 %v3681, %v3677
        %v3774 = vpack.c.b16 %v3686, %v3682
        %v3775 = vpack.c.b16 %v3687, %v3683
        %v3776 = vpack.c.b16 %v3688, %v3684
        %v3777 = vpack.c.b16 %v3689, %v3685
        %v3778 = vpack.c.b16 %v3694, %v3690
        %v3779 = vpack.c.b16 %v3695, %v3691
        %v3780 = vpack.c.b16 %v3696, %v3692
        %v3781 = vpack.c.b16 %v3697, %v3693
        %v3782 = vpack.c.b16 %v3702, %v3698
        %v3783 = vpack.c.b16 %v3703, %v3699
        %v3784 = vpack.c.b16 %v3704, %v3700
        %v3785 = vpack.c.b16 %v3705, %v3701
        %v3786 = vpack.c.b16 %v3710, %v3706
        %v3787 = vpack.c.b16 %v3711, %v3707
        %v3788 = vpack.c.b16 %v3712, %v3708
        %v3789 = vpack.c.b16 %v3713, %v3709
        %v3790 = vpack.c.b16 %v3718, %v3714
        %v3791 = vpack.c.b16 %v3719, %v3715
        %v3792 = vpack.c.b16 %v3720, %v3716
        %v3793 = vpack.c.b16 %v3721, %v3717
        %v3794 = vpack.c.b16 %v3726, %v3722
        %v3795 = vpack.c.b16 %v3727, %v3723
        %v3796 = vpack.c.b16 %v3728, %v3724
        %v3797 = vpack.c.b16 %v3729, %v3725
        %v3798 = vpack.c.b16 %v3734, %v3730
        %v3799 = vpack.c.b16 %v3735, %v3731
        %v3800 = vpack.c.b16 %v3736, %v3732
        %v3801 = vpack.c.b16 %v3737, %v3733
        %3866 = vmatprep.subr.bf16.mxu0 %v3739
        %3867 = vmatpush1.bf16.msra.mxu0 %v3738
        %3868 = vmatprep.subr.bf16.mxu0 %v3743
        %3869 = vmatpush1.bf16.msra.mxu0 %v3742
        %3870 = vmatprep.subr.bf16.mxu0 %v3747
        %3871 = vmatpush1.bf16.msra.mxu0 %v3746
        %3872 = vmatprep.subr.bf16.mxu0 %v3751
        %3873 = vmatpush1.bf16.msra.mxu0 %v3750
        %3874 = vmatprep.subr.bf16.mxu0 %v3755
        %3875 = vmatpush1.bf16.msra.mxu0 %v3754
        %3876 = vmatprep.subr.bf16.mxu0 %v3759
        %3877 = vmatpush1.bf16.msra.mxu0 %v3758
        %3878 = vmatprep.subr.bf16.mxu0 %v3763
        %3879 = vmatpush1.bf16.msra.mxu0 %v3762
        %3880 = vmatprep.subr.bf16.mxu0 %v3767
        %3881 = vmatpush1.bf16.msra.mxu0 %v3766
        %3882 = vmatprep.subr.bf16.mxu0 %v3771
        %3883 = vmatpush1.bf16.msra.mxu0 %v3770
        %3884 = vmatprep.subr.bf16.mxu0 %v3775
        %3885 = vmatpush1.bf16.msra.mxu0 %v3774
        %3886 = vmatprep.subr.bf16.mxu0 %v3779
        %3887 = vmatpush1.bf16.msra.mxu0 %v3778
        %3888 = vmatprep.subr.bf16.mxu0 %v3783
        %3889 = vmatpush1.bf16.msra.mxu0 %v3782
        %3890 = vmatprep.subr.bf16.mxu0 %v3787
        %3891 = vmatpush1.bf16.msra.mxu0 %v3786
        %3892 = vmatprep.subr.bf16.mxu0 %v3791
        %3893 = vmatpush1.bf16.msra.mxu0 %v3790
        %3894 = vmatprep.subr.bf16.mxu0 %v3795
        %3895 = vmatpush1.bf16.msra.mxu0 %v3794
        %3896 = vmatprep.subr.bf16.mxu0 %v3799
        %3897 = vmatpush1.bf16.msra.mxu0 %v3798
        %3898 = vmatprep.mubr.bf16.mxu0 %v3314
        %3899 = vmatmul.mubr.bf16.gmra.mrb[0].mxu0 %v3307
        %v3900 = vpop.f32.mrb[0].mxu0
        %v3901 = vadd.f32 0.0, %v3900
        %v3902 = vpop.f32.mrb[0].mxu0
        %v3903 = vadd.f32 0.0, %v3902
        %v3904 = vpop.f32.mrb[0].mxu0
        %v3905 = vpop.f32.mrb[0].mxu0
        %3906 = vdwg.mxu0
        %3907 = vmatprep.subr.bf16.mxu0 %v3741
        %3908 = vmatpush1.bf16.msra.mxu0 %v3740
        %3909 = vmatprep.subr.bf16.mxu0 %v3745
        %3910 = vmatpush1.bf16.msra.mxu0 %v3744
        %3911 = vmatprep.subr.bf16.mxu0 %v3749
        %3912 = vmatpush1.bf16.msra.mxu0 %v3748
        %3913 = vmatprep.subr.bf16.mxu0 %v3753
        %3914 = vmatpush1.bf16.msra.mxu0 %v3752
        %3915 = vmatprep.subr.bf16.mxu0 %v3757
        %3916 = vmatpush1.bf16.msra.mxu0 %v3756
        %3917 = vmatprep.subr.bf16.mxu0 %v3761
        %3918 = vmatpush1.bf16.msra.mxu0 %v3760
        %3919 = vmatprep.subr.bf16.mxu0 %v3765
        %3920 = vmatpush1.bf16.msra.mxu0 %v3764
        %3921 = vmatprep.subr.bf16.mxu0 %v3769
        %3922 = vmatpush1.bf16.msra.mxu0 %v3768
        %3923 = vmatprep.subr.bf16.mxu0 %v3773
        %3924 = vmatpush1.bf16.msra.mxu0 %v3772
        %3925 = vmatprep.subr.bf16.mxu0 %v3777
        %3926 = vmatpush1.bf16.msra.mxu0 %v3776
        %3927 = vmatprep.subr.bf16.mxu0 %v3781
        %3928 = vmatpush1.bf16.msra.mxu0 %v3780
        %3929 = vmatprep.subr.bf16.mxu0 %v3785
        %3930 = vmatpush1.bf16.msra.mxu0 %v3784
        %3931 = vmatprep.subr.bf16.mxu0 %v3789
        %3932 = vmatpush1.bf16.msra.mxu0 %v3788
        %3933 = vmatprep.subr.bf16.mxu0 %v3793
        %3934 = vmatpush1.bf16.msra.mxu0 %v3792
        %3935 = vmatprep.subr.bf16.mxu0 %v3797
        %3936 = vmatpush1.bf16.msra.mxu0 %v3796
        %3937 = vmatprep.subr.bf16.mxu0 %v3801
        %3938 = vmatpush1.bf16.msra.mxu0 %v3800
        %3939 = vmatprep.mubr.bf16.mxu0 %v3314
        %3940 = vmatmul.mubr.bf16.gmra.mrb[0].mxu0 %v3307
        %v3941 = vpop.f32.mrb[0].mxu0
        %v3942 = vadd.f32 0.0, %v3941
        %v3943 = vpop.f32.mrb[0].mxu0
        %v3944 = vadd.f32 0.0, %v3943
        %v3945 = vpop.f32.mrb[0].mxu0
        %v3946 = vpop.f32.mrb[0].mxu0
        %3947 = vdwg.mxu0
        %v3948 = vadd.f32 %v3254, %v3901
        %v3949 = vadd.f32 %v3256, %v3903
        %v3950 = vadd.f32 %v3295, %v3942
        %v3951 = vadd.f32 %v3297, %v3944
        %v3953 = vshrl.u32 %v2430, 16
        %v3955 = vshll.u32 %v2430, 16
        %v3957 = vrot.slane %v3955, 1
        %v3958 = vor.u32 %v3953, %v3957
        %v3960 = vshrl.u32 %v2431, 16
        %v3962 = vshll.u32 %v2431, 16
        %v3964 = vrot.slane %v3962, 1
        %v3965 = vor.u32 %v3960, %v3964
        %3968 = vmatprep.subr.bf16.mxu0 %v3739
        %3969 = vmatpush1.bf16.msra.mxu0 %v3738
        %3970 = vmatprep.subr.bf16.mxu0 %v3743
        %3971 = vmatpush1.bf16.msra.mxu0 %v3742
        %3972 = vmatprep.subr.bf16.mxu0 %v3747
        %3973 = vmatpush1.bf16.msra.mxu0 %v3746
        %3974 = vmatprep.subr.bf16.mxu0 %v3751
        %3975 = vmatpush1.bf16.msra.mxu0 %v3750
        %3976 = vmatprep.subr.bf16.mxu0 %v3755
        %3977 = vmatpush1.bf16.msra.mxu0 %v3754
        %3978 = vmatprep.subr.bf16.mxu0 %v3759
        %3979 = vmatpush1.bf16.msra.mxu0 %v3758
        %3980 = vmatprep.subr.bf16.mxu0 %v3763
        %3981 = vmatpush1.bf16.msra.mxu0 %v3762
        %3982 = vmatprep.subr.bf16.mxu0 %v3767
        %3983 = vmatpush1.bf16.msra.mxu0 %v3766
        %3984 = vmatprep.subr.bf16.mxu0 %v3771
        %3985 = vmatpush1.bf16.msra.mxu0 %v3770
        %3986 = vmatprep.subr.bf16.mxu0 %v3775
        %3987 = vmatpush1.bf16.msra.mxu0 %v3774
        %3988 = vmatprep.subr.bf16.mxu0 %v3779
        %3989 = vmatpush1.bf16.msra.mxu0 %v3778
        %3990 = vmatprep.subr.bf16.mxu0 %v3783
        %3991 = vmatpush1.bf16.msra.mxu0 %v3782
        %3992 = vmatprep.subr.bf16.mxu0 %v3787
        %3993 = vmatpush1.bf16.msra.mxu0 %v3786
        %3994 = vmatprep.subr.bf16.mxu0 %v3791
        %3995 = vmatpush1.bf16.msra.mxu0 %v3790
        %3996 = vmatprep.subr.bf16.mxu0 %v3795
        %3997 = vmatpush1.bf16.msra.mxu0 %v3794
        %3998 = vmatprep.subr.bf16.mxu0 %v3799
        %3999 = vmatpush1.bf16.msra.mxu0 %v3798
        %4000 = vmatprep.mubr.bf16.mxu0 %v3965
        %4001 = vmatmul.mubr.bf16.gmra.mrb[0].mxu0 %v3958
        %v4002 = vpop.f32.mrb[0].mxu0
        %v4003 = vadd.f32 0.0, %v4002
        %v4004 = vpop.f32.mrb[0].mxu0
        %v4005 = vadd.f32 0.0, %v4004
        %v4006 = vpop.f32.mrb[0].mxu0
        %v4007 = vpop.f32.mrb[0].mxu0
        %4008 = vdwg.mxu0
        %4009 = vmatprep.subr.bf16.mxu0 %v3741
        %4010 = vmatpush1.bf16.msra.mxu0 %v3740
        %4011 = vmatprep.subr.bf16.mxu0 %v3745
        %4012 = vmatpush1.bf16.msra.mxu0 %v3744
        %4013 = vmatprep.subr.bf16.mxu0 %v3749
        %4014 = vmatpush1.bf16.msra.mxu0 %v3748
        %4015 = vmatprep.subr.bf16.mxu0 %v3753
        %4016 = vmatpush1.bf16.msra.mxu0 %v3752
        %4017 = vmatprep.subr.bf16.mxu0 %v3757
        %4018 = vmatpush1.bf16.msra.mxu0 %v3756
        %4019 = vmatprep.subr.bf16.mxu0 %v3761
        %4020 = vmatpush1.bf16.msra.mxu0 %v3760
        %4021 = vmatprep.subr.bf16.mxu0 %v3765
        %4022 = vmatpush1.bf16.msra.mxu0 %v3764
        %4023 = vmatprep.subr.bf16.mxu0 %v3769
        %4024 = vmatpush1.bf16.msra.mxu0 %v3768
        %4025 = vmatprep.subr.bf16.mxu0 %v3773
        %4026 = vmatpush1.bf16.msra.mxu0 %v3772
        %4027 = vmatprep.subr.bf16.mxu0 %v3777
        %4028 = vmatpush1.bf16.msra.mxu0 %v3776
        %4029 = vmatprep.subr.bf16.mxu0 %v3781
        %4030 = vmatpush1.bf16.msra.mxu0 %v3780
        %4031 = vmatprep.subr.bf16.mxu0 %v3785
        %4032 = vmatpush1.bf16.msra.mxu0 %v3784
        %4033 = vmatprep.subr.bf16.mxu0 %v3789
        %4034 = vmatpush1.bf16.msra.mxu0 %v3788
        %4035 = vmatprep.subr.bf16.mxu0 %v3793
        %4036 = vmatpush1.bf16.msra.mxu0 %v3792
        %4037 = vmatprep.subr.bf16.mxu0 %v3797
        %4038 = vmatpush1.bf16.msra.mxu0 %v3796
        %4039 = vmatprep.subr.bf16.mxu0 %v3801
        %4040 = vmatpush1.bf16.msra.mxu0 %v3800
        %4041 = vmatprep.mubr.bf16.mxu0 %v3965
        %4042 = vmatmul.mubr.bf16.gmra.mrb[0].mxu0 %v3958
        %v4043 = vpop.f32.mrb[0].mxu0
        %v4044 = vadd.f32 0.0, %v4043
        %v4045 = vpop.f32.mrb[0].mxu0
        %v4046 = vadd.f32 0.0, %v4045
        %v4047 = vpop.f32.mrb[0].mxu0
        %v4048 = vpop.f32.mrb[0].mxu0
        %4049 = vdwg.mxu0
        %v4050 = vadd.f32 %v3434, %v4003
        %v4051 = vadd.f32 %v3436, %v4005
        %v4052 = vadd.f32 %v3475, %v4044
        %v4053 = vadd.f32 %v3477, %v4046
        %s4054 = scalar_lea.vmem [#allocation6], 1536
        %v4055 = vld [vmem:[%s4054] sm:$0xff]
        %v4056 = vld [vmem:[%s4054 + $0x8] sm:$0xff]
        %v4057 = vld [vmem:[%s4054 + $0x10] sm:$0xff]
        %v4058 = vld [vmem:[%s4054 + $0x18] sm:$0xff]
        %v4059 = vld [vmem:[%s4054 + $0x20] sm:$0xff]
        %v4060 = vld [vmem:[%s4054 + $0x28] sm:$0xff]
        %v4061 = vld [vmem:[%s4054 + $0x30] sm:$0xff]
        %v4062 = vld [vmem:[%s4054 + $0x38] sm:$0xff]
        %v4063 = vld [vmem:[%s4054 + $0x40] sm:$0xff]
        %v4064 = vld [vmem:[%s4054 + $0x48] sm:$0xff]
        %v4065 = vld [vmem:[%s4054 + $0x50] sm:$0xff]
        %v4066 = vld [vmem:[%s4054 + $0x58] sm:$0xff]
        %v4067 = vld [vmem:[%s4054 + $0x60] sm:$0xff]
        %v4068 = vld [vmem:[%s4054 + $0x68] sm:$0xff]
        %v4069 = vld [vmem:[%s4054 + $0x70] sm:$0xff]
        %v4070 = vld [vmem:[%s4054 + $0x78] sm:$0xff]
        %v4071 = vld [vmem:[%s4054 + $0x80] sm:$0xff]
        %v4072 = vld [vmem:[%s4054 + $0x88] sm:$0xff]
        %v4073 = vld [vmem:[%s4054 + $0x90] sm:$0xff]
        %v4074 = vld [vmem:[%s4054 + $0x98] sm:$0xff]
        %v4075 = vld [vmem:[%s4054 + $0xa0] sm:$0xff]
        %v4076 = vld [vmem:[%s4054 + $0xa8] sm:$0xff]
        %v4077 = vld [vmem:[%s4054 + $0xb0] sm:$0xff]
        %v4078 = vld [vmem:[%s4054 + $0xb8] sm:$0xff]
        %v4079 = vld [vmem:[%s4054 + $0xc0] sm:$0xff]
        %v4080 = vld [vmem:[%s4054 + $0xc8] sm:$0xff]
        %v4081 = vld [vmem:[%s4054 + $0xd0] sm:$0xff]
        %v4082 = vld [vmem:[%s4054 + $0xd8] sm:$0xff]
        %v4083 = vld [vmem:[%s4054 + $0xe0] sm:$0xff]
        %v4084 = vld [vmem:[%s4054 + $0xe8] sm:$0xff]
        %v4085 = vld [vmem:[%s4054 + $0xf0] sm:$0xff]
        %v4086 = vld [vmem:[%s4054 + $0xf8] sm:$0xff]
        %v4087 = vld [vmem:[%s4054 + $0x100] sm:$0xff]
        %v4088 = vld [vmem:[%s4054 + $0x108] sm:$0xff]
        %v4089 = vld [vmem:[%s4054 + $0x110] sm:$0xff]
        %v4090 = vld [vmem:[%s4054 + $0x118] sm:$0xff]
        %v4091 = vld [vmem:[%s4054 + $0x120] sm:$0xff]
        %v4092 = vld [vmem:[%s4054 + $0x128] sm:$0xff]
        %v4093 = vld [vmem:[%s4054 + $0x130] sm:$0xff]
        %v4094 = vld [vmem:[%s4054 + $0x138] sm:$0xff]
        %v4095 = vld [vmem:[%s4054 + $0x140] sm:$0xff]
        %v4096 = vld [vmem:[%s4054 + $0x148] sm:$0xff]
        %v4097 = vld [vmem:[%s4054 + $0x150] sm:$0xff]
        %v4098 = vld [vmem:[%s4054 + $0x158] sm:$0xff]
        %v4099 = vld [vmem:[%s4054 + $0x160] sm:$0xff]
        %v4100 = vld [vmem:[%s4054 + $0x168] sm:$0xff]
        %v4101 = vld [vmem:[%s4054 + $0x170] sm:$0xff]
        %v4102 = vld [vmem:[%s4054 + $0x178] sm:$0xff]
        %v4103 = vld [vmem:[%s4054 + $0x180] sm:$0xff]
        %v4104 = vld [vmem:[%s4054 + $0x188] sm:$0xff]
        %v4105 = vld [vmem:[%s4054 + $0x190] sm:$0xff]
        %v4106 = vld [vmem:[%s4054 + $0x198] sm:$0xff]
        %v4107 = vld [vmem:[%s4054 + $0x1a0] sm:$0xff]
        %v4108 = vld [vmem:[%s4054 + $0x1a8] sm:$0xff]
        %v4109 = vld [vmem:[%s4054 + $0x1b0] sm:$0xff]
        %v4110 = vld [vmem:[%s4054 + $0x1b8] sm:$0xff]
        %v4111 = vld [vmem:[%s4054 + $0x1c0] sm:$0xff]
        %v4112 = vld [vmem:[%s4054 + $0x1c8] sm:$0xff]
        %v4113 = vld [vmem:[%s4054 + $0x1d0] sm:$0xff]
        %v4114 = vld [vmem:[%s4054 + $0x1d8] sm:$0xff]
        %v4115 = vld [vmem:[%s4054 + $0x1e0] sm:$0xff]
        %v4116 = vld [vmem:[%s4054 + $0x1e8] sm:$0xff]
        %v4117 = vld [vmem:[%s4054 + $0x1f0] sm:$0xff]
        %v4118 = vld [vmem:[%s4054 + $0x1f8] sm:$0xff]
        %v4183 = vunpack.c.l.b16 %v4055
        %v4184 = vunpack.c.h.b16 %v4055
        %v4185 = vunpack.c.l.b16 %v4056
        %v4186 = vunpack.c.h.b16 %v4056
        %v4187 = vunpack.c.l.b16 %v4057
        %v4188 = vunpack.c.h.b16 %v4057
        %v4189 = vunpack.c.l.b16 %v4058
        %v4190 = vunpack.c.h.b16 %v4058
        %v4191 = vunpack.c.l.b16 %v4059
        %v4192 = vunpack.c.h.b16 %v4059
        %v4193 = vunpack.c.l.b16 %v4060
        %v4194 = vunpack.c.h.b16 %v4060
        %v4195 = vunpack.c.l.b16 %v4061
        %v4196 = vunpack.c.h.b16 %v4061
        %v4197 = vunpack.c.l.b16 %v4062
        %v4198 = vunpack.c.h.b16 %v4062
        %v4199 = vunpack.c.l.b16 %v4063
        %v4200 = vunpack.c.h.b16 %v4063
        %v4201 = vunpack.c.l.b16 %v4064
        %v4202 = vunpack.c.h.b16 %v4064
        %v4203 = vunpack.c.l.b16 %v4065
        %v4204 = vunpack.c.h.b16 %v4065
        %v4205 = vunpack.c.l.b16 %v4066
        %v4206 = vunpack.c.h.b16 %v4066
        %v4207 = vunpack.c.l.b16 %v4067
        %v4208 = vunpack.c.h.b16 %v4067
        %v4209 = vunpack.c.l.b16 %v4068
        %v4210 = vunpack.c.h.b16 %v4068
        %v4211 = vunpack.c.l.b16 %v4069
        %v4212 = vunpack.c.h.b16 %v4069
        %v4213 = vunpack.c.l.b16 %v4070
        %v4214 = vunpack.c.h.b16 %v4070
        %v4215 = vunpack.c.l.b16 %v4071
        %v4216 = vunpack.c.h.b16 %v4071
        %v4217 = vunpack.c.l.b16 %v4072
        %v4218 = vunpack.c.h.b16 %v4072
        %v4219 = vunpack.c.l.b16 %v4073
        %v4220 = vunpack.c.h.b16 %v4073
        %v4221 = vunpack.c.l.b16 %v4074
        %v4222 = vunpack.c.h.b16 %v4074
        %v4223 = vunpack.c.l.b16 %v4075
        %v4224 = vunpack.c.h.b16 %v4075
        %v4225 = vunpack.c.l.b16 %v4076
        %v4226 = vunpack.c.h.b16 %v4076
        %v4227 = vunpack.c.l.b16 %v4077
        %v4228 = vunpack.c.h.b16 %v4077
        %v4229 = vunpack.c.l.b16 %v4078
        %v4230 = vunpack.c.h.b16 %v4078
        %v4231 = vunpack.c.l.b16 %v4079
        %v4232 = vunpack.c.h.b16 %v4079
        %v4233 = vunpack.c.l.b16 %v4080
        %v4234 = vunpack.c.h.b16 %v4080
        %v4235 = vunpack.c.l.b16 %v4081
        %v4236 = vunpack.c.h.b16 %v4081
        %v4237 = vunpack.c.l.b16 %v4082
        %v4238 = vunpack.c.h.b16 %v4082
        %v4239 = vunpack.c.l.b16 %v4083
        %v4240 = vunpack.c.h.b16 %v4083
        %v4241 = vunpack.c.l.b16 %v4084
        %v4242 = vunpack.c.h.b16 %v4084
        %v4243 = vunpack.c.l.b16 %v4085
        %v4244 = vunpack.c.h.b16 %v4085
        %v4245 = vunpack.c.l.b16 %v4086
        %v4246 = vunpack.c.h.b16 %v4086
        %v4247 = vunpack.c.l.b16 %v4087
        %v4248 = vunpack.c.h.b16 %v4087
        %v4249 = vunpack.c.l.b16 %v4088
        %v4250 = vunpack.c.h.b16 %v4088
        %v4251 = vunpack.c.l.b16 %v4089
        %v4252 = vunpack.c.h.b16 %v4089
        %v4253 = vunpack.c.l.b16 %v4090
        %v4254 = vunpack.c.h.b16 %v4090
        %v4255 = vunpack.c.l.b16 %v4091
        %v4256 = vunpack.c.h.b16 %v4091
        %v4257 = vunpack.c.l.b16 %v4092
        %v4258 = vunpack.c.h.b16 %v4092
        %v4259 = vunpack.c.l.b16 %v4093
        %v4260 = vunpack.c.h.b16 %v4093
        %v4261 = vunpack.c.l.b16 %v4094
        %v4262 = vunpack.c.h.b16 %v4094
        %v4263 = vunpack.c.l.b16 %v4095
        %v4264 = vunpack.c.h.b16 %v4095
        %v4265 = vunpack.c.l.b16 %v4096
        %v4266 = vunpack.c.h.b16 %v4096
        %v4267 = vunpack.c.l.b16 %v4097
        %v4268 = vunpack.c.h.b16 %v4097
        %v4269 = vunpack.c.l.b16 %v4098
        %v4270 = vunpack.c.h.b16 %v4098
        %v4271 = vunpack.c.l.b16 %v4099
        %v4272 = vunpack.c.h.b16 %v4099
        %v4273 = vunpack.c.l.b16 %v4100
        %v4274 = vunpack.c.h.b16 %v4100
        %v4275 = vunpack.c.l.b16 %v4101
        %v4276 = vunpack.c.h.b16 %v4101
        %v4277 = vunpack.c.l.b16 %v4102
        %v4278 = vunpack.c.h.b16 %v4102
        %v4279 = vunpack.c.l.b16 %v4103
        %v4280 = vunpack.c.h.b16 %v4103
        %v4281 = vunpack.c.l.b16 %v4104
        %v4282 = vunpack.c.h.b16 %v4104
        %v4283 = vunpack.c.l.b16 %v4105
        %v4284 = vunpack.c.h.b16 %v4105
        %v4285 = vunpack.c.l.b16 %v4106
        %v4286 = vunpack.c.h.b16 %v4106
        %v4287 = vunpack.c.l.b16 %v4107
        %v4288 = vunpack.c.h.b16 %v4107
        %v4289 = vunpack.c.l.b16 %v4108
        %v4290 = vunpack.c.h.b16 %v4108
        %v4291 = vunpack.c.l.b16 %v4109
        %v4292 = vunpack.c.h.b16 %v4109
        %v4293 = vunpack.c.l.b16 %v4110
        %v4294 = vunpack.c.h.b16 %v4110
        %v4295 = vunpack.c.l.b16 %v4111
        %v4296 = vunpack.c.h.b16 %v4111
        %v4297 = vunpack.c.l.b16 %v4112
        %v4298 = vunpack.c.h.b16 %v4112
        %v4299 = vunpack.c.l.b16 %v4113
        %v4300 = vunpack.c.h.b16 %v4113
        %v4301 = vunpack.c.l.b16 %v4114
        %v4302 = vunpack.c.h.b16 %v4114
        %v4303 = vunpack.c.l.b16 %v4115
        %v4304 = vunpack.c.h.b16 %v4115
        %v4305 = vunpack.c.l.b16 %v4116
        %v4306 = vunpack.c.h.b16 %v4116
        %v4307 = vunpack.c.l.b16 %v4117
        %v4308 = vunpack.c.h.b16 %v4117
        %v4309 = vunpack.c.l.b16 %v4118
        %v4310 = vunpack.c.h.b16 %v4118
        %v4311 = vpack.c.b16 %v4187, %v4183
        %v4312 = vpack.c.b16 %v4188, %v4184
        %v4313 = vpack.c.b16 %v4189, %v4185
        %v4314 = vpack.c.b16 %v4190, %v4186
        %v4315 = vpack.c.b16 %v4195, %v4191
        %v4316 = vpack.c.b16 %v4196, %v4192
        %v4317 = vpack.c.b16 %v4197, %v4193
        %v4318 = vpack.c.b16 %v4198, %v4194
        %v4319 = vpack.c.b16 %v4203, %v4199
        %v4320 = vpack.c.b16 %v4204, %v4200
        %v4321 = vpack.c.b16 %v4205, %v4201
        %v4322 = vpack.c.b16 %v4206, %v4202
        %v4323 = vpack.c.b16 %v4211, %v4207
        %v4324 = vpack.c.b16 %v4212, %v4208
        %v4325 = vpack.c.b16 %v4213, %v4209
        %v4326 = vpack.c.b16 %v4214, %v4210
        %v4327 = vpack.c.b16 %v4219, %v4215
        %v4328 = vpack.c.b16 %v4220, %v4216
        %v4329 = vpack.c.b16 %v4221, %v4217
        %v4330 = vpack.c.b16 %v4222, %v4218
        %v4331 = vpack.c.b16 %v4227, %v4223
        %v4332 = vpack.c.b16 %v4228, %v4224
        %v4333 = vpack.c.b16 %v4229, %v4225
        %v4334 = vpack.c.b16 %v4230, %v4226
        %v4335 = vpack.c.b16 %v4235, %v4231
        %v4336 = vpack.c.b16 %v4236, %v4232
        %v4337 = vpack.c.b16 %v4237, %v4233
        %v4338 = vpack.c.b16 %v4238, %v4234
        %v4339 = vpack.c.b16 %v4243, %v4239
        %v4340 = vpack.c.b16 %v4244, %v4240
        %v4341 = vpack.c.b16 %v4245, %v4241
        %v4342 = vpack.c.b16 %v4246, %v4242
        %v4343 = vpack.c.b16 %v4251, %v4247
        %v4344 = vpack.c.b16 %v4252, %v4248
        %v4345 = vpack.c.b16 %v4253, %v4249
        %v4346 = vpack.c.b16 %v4254, %v4250
        %v4347 = vpack.c.b16 %v4259, %v4255
        %v4348 = vpack.c.b16 %v4260, %v4256
        %v4349 = vpack.c.b16 %v4261, %v4257
        %v4350 = vpack.c.b16 %v4262, %v4258
        %v4351 = vpack.c.b16 %v4267, %v4263
        %v4352 = vpack.c.b16 %v4268, %v4264
        %v4353 = vpack.c.b16 %v4269, %v4265
        %v4354 = vpack.c.b16 %v4270, %v4266
        %v4355 = vpack.c.b16 %v4275, %v4271
        %v4356 = vpack.c.b16 %v4276, %v4272
        %v4357 = vpack.c.b16 %v4277, %v4273
        %v4358 = vpack.c.b16 %v4278, %v4274
        %v4359 = vpack.c.b16 %v4283, %v4279
        %v4360 = vpack.c.b16 %v4284, %v4280
        %v4361 = vpack.c.b16 %v4285, %v4281
        %v4362 = vpack.c.b16 %v4286, %v4282
        %v4363 = vpack.c.b16 %v4291, %v4287
        %v4364 = vpack.c.b16 %v4292, %v4288
        %v4365 = vpack.c.b16 %v4293, %v4289
        %v4366 = vpack.c.b16 %v4294, %v4290
        %v4367 = vpack.c.b16 %v4299, %v4295
        %v4368 = vpack.c.b16 %v4300, %v4296
        %v4369 = vpack.c.b16 %v4301, %v4297
        %v4370 = vpack.c.b16 %v4302, %v4298
        %v4371 = vpack.c.b16 %v4307, %v4303
        %v4372 = vpack.c.b16 %v4308, %v4304
        %v4373 = vpack.c.b16 %v4309, %v4305
        %v4374 = vpack.c.b16 %v4310, %v4306
        %4439 = vmatprep.subr.bf16.mxu0 %v4312
        %4440 = vmatpush1.bf16.msra.mxu0 %v4311
        %4441 = vmatprep.subr.bf16.mxu0 %v4316
        %4442 = vmatpush1.bf16.msra.mxu0 %v4315
        %4443 = vmatprep.subr.bf16.mxu0 %v4320
        %4444 = vmatpush1.bf16.msra.mxu0 %v4319
        %4445 = vmatprep.subr.bf16.mxu0 %v4324
        %4446 = vmatpush1.bf16.msra.mxu0 %v4323
        %4447 = vmatprep.subr.bf16.mxu0 %v4328
        %4448 = vmatpush1.bf16.msra.mxu0 %v4327
        %4449 = vmatprep.subr.bf16.mxu0 %v4332
        %4450 = vmatpush1.bf16.msra.mxu0 %v4331
        %4451 = vmatprep.subr.bf16.mxu0 %v4336
        %4452 = vmatpush1.bf16.msra.mxu0 %v4335
        %4453 = vmatprep.subr.bf16.mxu0 %v4340
        %4454 = vmatpush1.bf16.msra.mxu0 %v4339
        %4455 = vmatprep.subr.bf16.mxu0 %v4344
        %4456 = vmatpush1.bf16.msra.mxu0 %v4343
        %4457 = vmatprep.subr.bf16.mxu0 %v4348
        %4458 = vmatpush1.bf16.msra.mxu0 %v4347
        %4459 = vmatprep.subr.bf16.mxu0 %v4352
        %4460 = vmatpush1.bf16.msra.mxu0 %v4351
        %4461 = vmatprep.subr.bf16.mxu0 %v4356
        %4462 = vmatpush1.bf16.msra.mxu0 %v4355
        %4463 = vmatprep.subr.bf16.mxu0 %v4360
        %4464 = vmatpush1.bf16.msra.mxu0 %v4359
        %4465 = vmatprep.subr.bf16.mxu0 %v4364
        %4466 = vmatpush1.bf16.msra.mxu0 %v4363
        %4467 = vmatprep.subr.bf16.mxu0 %v4368
        %4468 = vmatpush1.bf16.msra.mxu0 %v4367
        %4469 = vmatprep.subr.bf16.mxu0 %v4372
        %4470 = vmatpush1.bf16.msra.mxu0 %v4371
        %4471 = vmatprep.mubr.bf16.mxu0 %v3965
        %4472 = vmatmul.mubr.bf16.gmra.mrb[0].mxu0 %v3958
        %v4473 = vpop.f32.mrb[0].mxu0
        %v4474 = vadd.f32 0.0, %v4473
        %v4475 = vpop.f32.mrb[0].mxu0
        %v4476 = vadd.f32 0.0, %v4475
        %v4477 = vpop.f32.mrb[0].mxu0
        %v4478 = vpop.f32.mrb[0].mxu0
        %4479 = vdwg.mxu0
        %4480 = vmatprep.subr.bf16.mxu0 %v4314
        %4481 = vmatpush1.bf16.msra.mxu0 %v4313
        %4482 = vmatprep.subr.bf16.mxu0 %v4318
        %4483 = vmatpush1.bf16.msra.mxu0 %v4317
        %4484 = vmatprep.subr.bf16.mxu0 %v4322
        %4485 = vmatpush1.bf16.msra.mxu0 %v4321
        %4486 = vmatprep.subr.bf16.mxu0 %v4326
        %4487 = vmatpush1.bf16.msra.mxu0 %v4325
        %4488 = vmatprep.subr.bf16.mxu0 %v4330
        %4489 = vmatpush1.bf16.msra.mxu0 %v4329
        %4490 = vmatprep.subr.bf16.mxu0 %v4334
        %4491 = vmatpush1.bf16.msra.mxu0 %v4333
        %4492 = vmatprep.subr.bf16.mxu0 %v4338
        %4493 = vmatpush1.bf16.msra.mxu0 %v4337
        %4494 = vmatprep.subr.bf16.mxu0 %v4342
        %4495 = vmatpush1.bf16.msra.mxu0 %v4341
        %4496 = vmatprep.subr.bf16.mxu0 %v4346
        %4497 = vmatpush1.bf16.msra.mxu0 %v4345
        %4498 = vmatprep.subr.bf16.mxu0 %v4350
        %4499 = vmatpush1.bf16.msra.mxu0 %v4349
        %4500 = vmatprep.subr.bf16.mxu0 %v4354
        %4501 = vmatpush1.bf16.msra.mxu0 %v4353
        %4502 = vmatprep.subr.bf16.mxu0 %v4358
        %4503 = vmatpush1.bf16.msra.mxu0 %v4357
        %4504 = vmatprep.subr.bf16.mxu0 %v4362
        %4505 = vmatpush1.bf16.msra.mxu0 %v4361
        %4506 = vmatprep.subr.bf16.mxu0 %v4366
        %4507 = vmatpush1.bf16.msra.mxu0 %v4365
        %4508 = vmatprep.subr.bf16.mxu0 %v4370
        %4509 = vmatpush1.bf16.msra.mxu0 %v4369
        %4510 = vmatprep.subr.bf16.mxu0 %v4374
        %4511 = vmatpush1.bf16.msra.mxu0 %v4373
        %4512 = vmatprep.mubr.bf16.mxu0 %v3965
        %4513 = vmatmul.mubr.bf16.gmra.mrb[0].mxu0 %v3958
        %v4514 = vpop.f32.mrb[0].mxu0
        %v4515 = vadd.f32 0.0, %v4514
        %v4516 = vpop.f32.mrb[0].mxu0
        %v4517 = vadd.f32 0.0, %v4516
        %v4518 = vpop.f32.mrb[0].mxu0
        %v4519 = vpop.f32.mrb[0].mxu0
        %4520 = vdwg.mxu0
        %v4521 = vadd.f32 %v3948, %v4474
        %v4522 = vadd.f32 %v3949, %v4476
        %v4523 = vadd.f32 %v3950, %v4515
        %v4524 = vadd.f32 %v3951, %v4517
        %v4527 = vrot.slane %v2428, 1
        %v4528 = vrot.slane %v2429, 1
        %4531 = vmatprep.subr.bf16.mxu0 %v4312
        %4532 = vmatpush1.bf16.msra.mxu0 %v4311
        %4533 = vmatprep.subr.bf16.mxu0 %v4316
        %4534 = vmatpush1.bf16.msra.mxu0 %v4315
        %4535 = vmatprep.subr.bf16.mxu0 %v4320
        %4536 = vmatpush1.bf16.msra.mxu0 %v4319
        %4537 = vmatprep.subr.bf16.mxu0 %v4324
        %4538 = vmatpush1.bf16.msra.mxu0 %v4323
        %4539 = vmatprep.subr.bf16.mxu0 %v4328
        %4540 = vmatpush1.bf16.msra.mxu0 %v4327
        %4541 = vmatprep.subr.bf16.mxu0 %v4332
        %4542 = vmatpush1.bf16.msra.mxu0 %v4331
        %4543 = vmatprep.subr.bf16.mxu0 %v4336
        %4544 = vmatpush1.bf16.msra.mxu0 %v4335
        %4545 = vmatprep.subr.bf16.mxu0 %v4340
        %4546 = vmatpush1.bf16.msra.mxu0 %v4339
        %4547 = vmatprep.subr.bf16.mxu0 %v4344
        %4548 = vmatpush1.bf16.msra.mxu0 %v4343
        %4549 = vmatprep.subr.bf16.mxu0 %v4348
        %4550 = vmatpush1.bf16.msra.mxu0 %v4347
        %4551 = vmatprep.subr.bf16.mxu0 %v4352
        %4552 = vmatpush1.bf16.msra.mxu0 %v4351
        %4553 = vmatprep.subr.bf16.mxu0 %v4356
        %4554 = vmatpush1.bf16.msra.mxu0 %v4355
        %4555 = vmatprep.subr.bf16.mxu0 %v4360
        %4556 = vmatpush1.bf16.msra.mxu0 %v4359
        %4557 = vmatprep.subr.bf16.mxu0 %v4364
        %4558 = vmatpush1.bf16.msra.mxu0 %v4363
        %4559 = vmatprep.subr.bf16.mxu0 %v4368
        %4560 = vmatpush1.bf16.msra.mxu0 %v4367
        %4561 = vmatprep.subr.bf16.mxu0 %v4372
        %4562 = vmatpush1.bf16.msra.mxu0 %v4371
        %4563 = vmatprep.mubr.bf16.mxu0 %v4528
        %4564 = vmatmul.mubr.bf16.gmra.mrb[0].mxu0 %v4527
        %v4565 = vpop.f32.mrb[0].mxu0
        %v4566 = vadd.f32 0.0, %v4565
        %v4567 = vpop.f32.mrb[0].mxu0
        %v4568 = vadd.f32 0.0, %v4567
        %v4569 = vpop.f32.mrb[0].mxu0
        %v4570 = vpop.f32.mrb[0].mxu0
        %4571 = vdwg.mxu0
        %4572 = vmatprep.subr.bf16.mxu0 %v4314
        %4573 = vmatpush1.bf16.msra.mxu0 %v4313
        %4574 = vmatprep.subr.bf16.mxu0 %v4318
        %4575 = vmatpush1.bf16.msra.mxu0 %v4317
        %4576 = vmatprep.subr.bf16.mxu0 %v4322
        %4577 = vmatpush1.bf16.msra.mxu0 %v4321
        %4578 = vmatprep.subr.bf16.mxu0 %v4326
        %4579 = vmatpush1.bf16.msra.mxu0 %v4325
        %4580 = vmatprep.subr.bf16.mxu0 %v4330
        %4581 = vmatpush1.bf16.msra.mxu0 %v4329
        %4582 = vmatprep.subr.bf16.mxu0 %v4334
        %4583 = vmatpush1.bf16.msra.mxu0 %v4333
        %4584 = vmatprep.subr.bf16.mxu0 %v4338
        %4585 = vmatpush1.bf16.msra.mxu0 %v4337
        %4586 = vmatprep.subr.bf16.mxu0 %v4342
        %4587 = vmatpush1.bf16.msra.mxu0 %v4341
        %4588 = vmatprep.subr.bf16.mxu0 %v4346
        %4589 = vmatpush1.bf16.msra.mxu0 %v4345
        %4590 = vmatprep.subr.bf16.mxu0 %v4350
        %4591 = vmatpush1.bf16.msra.mxu0 %v4349
        %4592 = vmatprep.subr.bf16.mxu0 %v4354
        %4593 = vmatpush1.bf16.msra.mxu0 %v4353
        %4594 = vmatprep.subr.bf16.mxu0 %v4358
        %4595 = vmatpush1.bf16.msra.mxu0 %v4357
        %4596 = vmatprep.subr.bf16.mxu0 %v4362
        %4597 = vmatpush1.bf16.msra.mxu0 %v4361
        %4598 = vmatprep.subr.bf16.mxu0 %v4366
        %4599 = vmatpush1.bf16.msra.mxu0 %v4365
        %4600 = vmatprep.subr.bf16.mxu0 %v4370
        %4601 = vmatpush1.bf16.msra.mxu0 %v4369
        %4602 = vmatprep.subr.bf16.mxu0 %v4374
        %4603 = vmatpush1.bf16.msra.mxu0 %v4373
        %4604 = vmatprep.mubr.bf16.mxu0 %v4528
        %4605 = vmatmul.mubr.bf16.gmra.mrb[0].mxu0 %v4527
        %v4606 = vpop.f32.mrb[0].mxu0
        %v4607 = vadd.f32 0.0, %v4606
        %v4608 = vpop.f32.mrb[0].mxu0
        %v4609 = vadd.f32 0.0, %v4608
        %v4610 = vpop.f32.mrb[0].mxu0
        %v4611 = vpop.f32.mrb[0].mxu0
        %4612 = vdwg.mxu0
        %v4613 = vadd.f32 %v4050, %v4566
        %v4614 = vadd.f32 %v4051, %v4568
        %v4615 = vadd.f32 %v4052, %v4607
        %v4616 = vadd.f32 %v4053, %v4609
        %s4617 = scalar_lea.vmem [#allocation6], 2048
        %v4618 = vld [vmem:[%s4617] sm:$0xff]
        %v4619 = vld [vmem:[%s4617 + $0x8] sm:$0xff]
        %v4620 = vld [vmem:[%s4617 + $0x10] sm:$0xff]
        %v4621 = vld [vmem:[%s4617 + $0x18] sm:$0xff]
        %v4622 = vld [vmem:[%s4617 + $0x20] sm:$0xff]
        %v4623 = vld [vmem:[%s4617 + $0x28] sm:$0xff]
        %v4624 = vld [vmem:[%s4617 + $0x30] sm:$0xff]
        %v4625 = vld [vmem:[%s4617 + $0x38] sm:$0xff]
        %v4626 = vld [vmem:[%s4617 + $0x40] sm:$0xff]
        %v4627 = vld [vmem:[%s4617 + $0x48] sm:$0xff]
        %v4628 = vld [vmem:[%s4617 + $0x50] sm:$0xff]
        %v4629 = vld [vmem:[%s4617 + $0x58] sm:$0xff]
        %v4630 = vld [vmem:[%s4617 + $0x60] sm:$0xff]
        %v4631 = vld [vmem:[%s4617 + $0x68] sm:$0xff]
        %v4632 = vld [vmem:[%s4617 + $0x70] sm:$0xff]
        %v4633 = vld [vmem:[%s4617 + $0x78] sm:$0xff]
        %v4634 = vld [vmem:[%s4617 + $0x80] sm:$0xff]
        %v4635 = vld [vmem:[%s4617 + $0x88] sm:$0xff]
        %v4636 = vld [vmem:[%s4617 + $0x90] sm:$0xff]
        %v4637 = vld [vmem:[%s4617 + $0x98] sm:$0xff]
        %v4638 = vld [vmem:[%s4617 + $0xa0] sm:$0xff]
        %v4639 = vld [vmem:[%s4617 + $0xa8] sm:$0xff]
        %v4640 = vld [vmem:[%s4617 + $0xb0] sm:$0xff]
        %v4641 = vld [vmem:[%s4617 + $0xb8] sm:$0xff]
        %v4642 = vld [vmem:[%s4617 + $0xc0] sm:$0xff]
        %v4643 = vld [vmem:[%s4617 + $0xc8] sm:$0xff]
        %v4644 = vld [vmem:[%s4617 + $0xd0] sm:$0xff]
        %v4645 = vld [vmem:[%s4617 + $0xd8] sm:$0xff]
        %v4646 = vld [vmem:[%s4617 + $0xe0] sm:$0xff]
        %v4647 = vld [vmem:[%s4617 + $0xe8] sm:$0xff]
        %v4648 = vld [vmem:[%s4617 + $0xf0] sm:$0xff]
        %v4649 = vld [vmem:[%s4617 + $0xf8] sm:$0xff]
        %v4650 = vld [vmem:[%s4617 + $0x100] sm:$0xff]
        %v4651 = vld [vmem:[%s4617 + $0x108] sm:$0xff]
        %v4652 = vld [vmem:[%s4617 + $0x110] sm:$0xff]
        %v4653 = vld [vmem:[%s4617 + $0x118] sm:$0xff]
        %v4654 = vld [vmem:[%s4617 + $0x120] sm:$0xff]
        %v4655 = vld [vmem:[%s4617 + $0x128] sm:$0xff]
        %v4656 = vld [vmem:[%s4617 + $0x130] sm:$0xff]
        %v4657 = vld [vmem:[%s4617 + $0x138] sm:$0xff]
        %v4658 = vld [vmem:[%s4617 + $0x140] sm:$0xff]
        %v4659 = vld [vmem:[%s4617 + $0x148] sm:$0xff]
        %v4660 = vld [vmem:[%s4617 + $0x150] sm:$0xff]
        %v4661 = vld [vmem:[%s4617 + $0x158] sm:$0xff]
        %v4662 = vld [vmem:[%s4617 + $0x160] sm:$0xff]
        %v4663 = vld [vmem:[%s4617 + $0x168] sm:$0xff]
        %v4664 = vld [vmem:[%s4617 + $0x170] sm:$0xff]
        %v4665 = vld [vmem:[%s4617 + $0x178] sm:$0xff]
        %v4666 = vld [vmem:[%s4617 + $0x180] sm:$0xff]
        %v4667 = vld [vmem:[%s4617 + $0x188] sm:$0xff]
        %v4668 = vld [vmem:[%s4617 + $0x190] sm:$0xff]
        %v4669 = vld [vmem:[%s4617 + $0x198] sm:$0xff]
        %v4670 = vld [vmem:[%s4617 + $0x1a0] sm:$0xff]
        %v4671 = vld [vmem:[%s4617 + $0x1a8] sm:$0xff]
        %v4672 = vld [vmem:[%s4617 + $0x1b0] sm:$0xff]
        %v4673 = vld [vmem:[%s4617 + $0x1b8] sm:$0xff]
        %v4674 = vld [vmem:[%s4617 + $0x1c0] sm:$0xff]
        %v4675 = vld [vmem:[%s4617 + $0x1c8] sm:$0xff]
        %v4676 = vld [vmem:[%s4617 + $0x1d0] sm:$0xff]
        %v4677 = vld [vmem:[%s4617 + $0x1d8] sm:$0xff]
        %v4678 = vld [vmem:[%s4617 + $0x1e0] sm:$0xff]
        %v4679 = vld [vmem:[%s4617 + $0x1e8] sm:$0xff]
        %v4680 = vld [vmem:[%s4617 + $0x1f0] sm:$0xff]
        %v4681 = vld [vmem:[%s4617 + $0x1f8] sm:$0xff]
        %v4746 = vunpack.c.l.b16 %v4618
        %v4747 = vunpack.c.h.b16 %v4618
        %v4748 = vunpack.c.l.b16 %v4619
        %v4749 = vunpack.c.h.b16 %v4619
        %v4750 = vunpack.c.l.b16 %v4620
        %v4751 = vunpack.c.h.b16 %v4620
        %v4752 = vunpack.c.l.b16 %v4621
        %v4753 = vunpack.c.h.b16 %v4621
        %v4754 = vunpack.c.l.b16 %v4622
        %v4755 = vunpack.c.h.b16 %v4622
        %v4756 = vunpack.c.l.b16 %v4623
        %v4757 = vunpack.c.h.b16 %v4623
        %v4758 = vunpack.c.l.b16 %v4624
        %v4759 = vunpack.c.h.b16 %v4624
        %v4760 = vunpack.c.l.b16 %v4625
        %v4761 = vunpack.c.h.b16 %v4625
        %v4762 = vunpack.c.l.b16 %v4626
        %v4763 = vunpack.c.h.b16 %v4626
        %v4764 = vunpack.c.l.b16 %v4627
        %v4765 = vunpack.c.h.b16 %v4627
        %v4766 = vunpack.c.l.b16 %v4628
        %v4767 = vunpack.c.h.b16 %v4628
        %v4768 = vunpack.c.l.b16 %v4629
        %v4769 = vunpack.c.h.b16 %v4629
        %v4770 = vunpack.c.l.b16 %v4630
        %v4771 = vunpack.c.h.b16 %v4630
        %v4772 = vunpack.c.l.b16 %v4631
        %v4773 = vunpack.c.h.b16 %v4631
        %v4774 = vunpack.c.l.b16 %v4632
        %v4775 = vunpack.c.h.b16 %v4632
        %v4776 = vunpack.c.l.b16 %v4633
        %v4777 = vunpack.c.h.b16 %v4633
        %v4778 = vunpack.c.l.b16 %v4634
        %v4779 = vunpack.c.h.b16 %v4634
        %v4780 = vunpack.c.l.b16 %v4635
        %v4781 = vunpack.c.h.b16 %v4635
        %v4782 = vunpack.c.l.b16 %v4636
        %v4783 = vunpack.c.h.b16 %v4636
        %v4784 = vunpack.c.l.b16 %v4637
        %v4785 = vunpack.c.h.b16 %v4637
        %v4786 = vunpack.c.l.b16 %v4638
        %v4787 = vunpack.c.h.b16 %v4638
        %v4788 = vunpack.c.l.b16 %v4639
        %v4789 = vunpack.c.h.b16 %v4639
        %v4790 = vunpack.c.l.b16 %v4640
        %v4791 = vunpack.c.h.b16 %v4640
        %v4792 = vunpack.c.l.b16 %v4641
        %v4793 = vunpack.c.h.b16 %v4641
        %v4794 = vunpack.c.l.b16 %v4642
        %v4795 = vunpack.c.h.b16 %v4642
        %v4796 = vunpack.c.l.b16 %v4643
        %v4797 = vunpack.c.h.b16 %v4643
        %v4798 = vunpack.c.l.b16 %v4644
        %v4799 = vunpack.c.h.b16 %v4644
        %v4800 = vunpack.c.l.b16 %v4645
        %v4801 = vunpack.c.h.b16 %v4645
        %v4802 = vunpack.c.l.b16 %v4646
        %v4803 = vunpack.c.h.b16 %v4646
        %v4804 = vunpack.c.l.b16 %v4647
        %v4805 = vunpack.c.h.b16 %v4647
        %v4806 = vunpack.c.l.b16 %v4648
        %v4807 = vunpack.c.h.b16 %v4648
        %v4808 = vunpack.c.l.b16 %v4649
        %v4809 = vunpack.c.h.b16 %v4649
        %v4810 = vunpack.c.l.b16 %v4650
        %v4811 = vunpack.c.h.b16 %v4650
        %v4812 = vunpack.c.l.b16 %v4651
        %v4813 = vunpack.c.h.b16 %v4651
        %v4814 = vunpack.c.l.b16 %v4652
        %v4815 = vunpack.c.h.b16 %v4652
        %v4816 = vunpack.c.l.b16 %v4653
        %v4817 = vunpack.c.h.b16 %v4653
        %v4818 = vunpack.c.l.b16 %v4654
        %v4819 = vunpack.c.h.b16 %v4654
        %v4820 = vunpack.c.l.b16 %v4655
        %v4821 = vunpack.c.h.b16 %v4655
        %v4822 = vunpack.c.l.b16 %v4656
        %v4823 = vunpack.c.h.b16 %v4656
        %v4824 = vunpack.c.l.b16 %v4657
        %v4825 = vunpack.c.h.b16 %v4657
        %v4826 = vunpack.c.l.b16 %v4658
        %v4827 = vunpack.c.h.b16 %v4658
        %v4828 = vunpack.c.l.b16 %v4659
        %v4829 = vunpack.c.h.b16 %v4659
        %v4830 = vunpack.c.l.b16 %v4660
        %v4831 = vunpack.c.h.b16 %v4660
        %v4832 = vunpack.c.l.b16 %v4661
        %v4833 = vunpack.c.h.b16 %v4661
        %v4834 = vunpack.c.l.b16 %v4662
        %v4835 = vunpack.c.h.b16 %v4662
        %v4836 = vunpack.c.l.b16 %v4663
        %v4837 = vunpack.c.h.b16 %v4663
        %v4838 = vunpack.c.l.b16 %v4664
        %v4839 = vunpack.c.h.b16 %v4664
        %v4840 = vunpack.c.l.b16 %v4665
        %v4841 = vunpack.c.h.b16 %v4665
        %v4842 = vunpack.c.l.b16 %v4666
        %v4843 = vunpack.c.h.b16 %v4666
        %v4844 = vunpack.c.l.b16 %v4667
        %v4845 = vunpack.c.h.b16 %v4667
        %v4846 = vunpack.c.l.b16 %v4668
        %v4847 = vunpack.c.h.b16 %v4668
        %v4848 = vunpack.c.l.b16 %v4669
        %v4849 = vunpack.c.h.b16 %v4669
        %v4850 = vunpack.c.l.b16 %v4670
        %v4851 = vunpack.c.h.b16 %v4670
        %v4852 = vunpack.c.l.b16 %v4671
        %v4853 = vunpack.c.h.b16 %v4671
        %v4854 = vunpack.c.l.b16 %v4672
        %v4855 = vunpack.c.h.b16 %v4672
        %v4856 = vunpack.c.l.b16 %v4673
        %v4857 = vunpack.c.h.b16 %v4673
        %v4858 = vunpack.c.l.b16 %v4674
        %v4859 = vunpack.c.h.b16 %v4674
        %v4860 = vunpack.c.l.b16 %v4675
        %v4861 = vunpack.c.h.b16 %v4675
        %v4862 = vunpack.c.l.b16 %v4676
        %v4863 = vunpack.c.h.b16 %v4676
        %v4864 = vunpack.c.l.b16 %v4677
        %v4865 = vunpack.c.h.b16 %v4677
        %v4866 = vunpack.c.l.b16 %v4678
        %v4867 = vunpack.c.h.b16 %v4678
        %v4868 = vunpack.c.l.b16 %v4679
        %v4869 = vunpack.c.h.b16 %v4679
        %v4870 = vunpack.c.l.b16 %v4680
        %v4871 = vunpack.c.h.b16 %v4680
        %v4872 = vunpack.c.l.b16 %v4681
        %v4873 = vunpack.c.h.b16 %v4681
        %v4874 = vpack.c.b16 %v4750, %v4746
        %v4875 = vpack.c.b16 %v4751, %v4747
        %v4876 = vpack.c.b16 %v4752, %v4748
        %v4877 = vpack.c.b16 %v4753, %v4749
        %v4878 = vpack.c.b16 %v4758, %v4754
        %v4879 = vpack.c.b16 %v4759, %v4755
        %v4880 = vpack.c.b16 %v4760, %v4756
        %v4881 = vpack.c.b16 %v4761, %v4757
        %v4882 = vpack.c.b16 %v4766, %v4762
        %v4883 = vpack.c.b16 %v4767, %v4763
        %v4884 = vpack.c.b16 %v4768, %v4764
        %v4885 = vpack.c.b16 %v4769, %v4765
        %v4886 = vpack.c.b16 %v4774, %v4770
        %v4887 = vpack.c.b16 %v4775, %v4771
        %v4888 = vpack.c.b16 %v4776, %v4772
        %v4889 = vpack.c.b16 %v4777, %v4773
        %v4890 = vpack.c.b16 %v4782, %v4778
        %v4891 = vpack.c.b16 %v4783, %v4779
        %v4892 = vpack.c.b16 %v4784, %v4780
        %v4893 = vpack.c.b16 %v4785, %v4781
        %v4894 = vpack.c.b16 %v4790, %v4786
        %v4895 = vpack.c.b16 %v4791, %v4787
        %v4896 = vpack.c.b16 %v4792, %v4788
        %v4897 = vpack.c.b16 %v4793, %v4789
        %v4898 = vpack.c.b16 %v4798, %v4794
        %v4899 = vpack.c.b16 %v4799, %v4795
        %v4900 = vpack.c.b16 %v4800, %v4796
        %v4901 = vpack.c.b16 %v4801, %v4797
        %v4902 = vpack.c.b16 %v4806, %v4802
        %v4903 = vpack.c.b16 %v4807, %v4803
        %v4904 = vpack.c.b16 %v4808, %v4804
        %v4905 = vpack.c.b16 %v4809, %v4805
        %v4906 = vpack.c.b16 %v4814, %v4810
        %v4907 = vpack.c.b16 %v4815, %v4811
        %v4908 = vpack.c.b16 %v4816, %v4812
        %v4909 = vpack.c.b16 %v4817, %v4813
        %v4910 = vpack.c.b16 %v4822, %v4818
        %v4911 = vpack.c.b16 %v4823, %v4819
        %v4912 = vpack.c.b16 %v4824, %v4820
        %v4913 = vpack.c.b16 %v4825, %v4821
        %v4914 = vpack.c.b16 %v4830, %v4826
        %v4915 = vpack.c.b16 %v4831, %v4827
        %v4916 = vpack.c.b16 %v4832, %v4828
        %v4917 = vpack.c.b16 %v4833, %v4829
        %v4918 = vpack.c.b16 %v4838, %v4834
        %v4919 = vpack.c.b16 %v4839, %v4835
        %v4920 = vpack.c.b16 %v4840, %v4836
        %v4921 = vpack.c.b16 %v4841, %v4837
        %v4922 = vpack.c.b16 %v4846, %v4842
        %v4923 = vpack.c.b16 %v4847, %v4843
        %v4924 = vpack.c.b16 %v4848, %v4844
        %v4925 = vpack.c.b16 %v4849, %v4845
        %v4926 = vpack.c.b16 %v4854, %v4850
        %v4927 = vpack.c.b16 %v4855, %v4851
        %v4928 = vpack.c.b16 %v4856, %v4852
        %v4929 = vpack.c.b16 %v4857, %v4853
        %v4930 = vpack.c.b16 %v4862, %v4858
        %v4931 = vpack.c.b16 %v4863, %v4859
        %v4932 = vpack.c.b16 %v4864, %v4860
        %v4933 = vpack.c.b16 %v4865, %v4861
        %v4934 = vpack.c.b16 %v4870, %v4866
        %v4935 = vpack.c.b16 %v4871, %v4867
        %v4936 = vpack.c.b16 %v4872, %v4868
        %v4937 = vpack.c.b16 %v4873, %v4869
        %5002 = vmatprep.subr.bf16.mxu0 %v4875
        %5003 = vmatpush1.bf16.msra.mxu0 %v4874
        %5004 = vmatprep.subr.bf16.mxu0 %v4879
        %5005 = vmatpush1.bf16.msra.mxu0 %v4878
        %5006 = vmatprep.subr.bf16.mxu0 %v4883
        %5007 = vmatpush1.bf16.msra.mxu0 %v4882
        %5008 = vmatprep.subr.bf16.mxu0 %v4887
        %5009 = vmatpush1.bf16.msra.mxu0 %v4886
        %5010 = vmatprep.subr.bf16.mxu0 %v4891
        %5011 = vmatpush1.bf16.msra.mxu0 %v4890
        %5012 = vmatprep.subr.bf16.mxu0 %v4895
        %5013 = vmatpush1.bf16.msra.mxu0 %v4894
        %5014 = vmatprep.subr.bf16.mxu0 %v4899
        %5015 = vmatpush1.bf16.msra.mxu0 %v4898
        %5016 = vmatprep.subr.bf16.mxu0 %v4903
        %5017 = vmatpush1.bf16.msra.mxu0 %v4902
        %5018 = vmatprep.subr.bf16.mxu0 %v4907
        %5019 = vmatpush1.bf16.msra.mxu0 %v4906
        %5020 = vmatprep.subr.bf16.mxu0 %v4911
        %5021 = vmatpush1.bf16.msra.mxu0 %v4910
        %5022 = vmatprep.subr.bf16.mxu0 %v4915
        %5023 = vmatpush1.bf16.msra.mxu0 %v4914
        %5024 = vmatprep.subr.bf16.mxu0 %v4919
        %5025 = vmatpush1.bf16.msra.mxu0 %v4918
        %5026 = vmatprep.subr.bf16.mxu0 %v4923
        %5027 = vmatpush1.bf16.msra.mxu0 %v4922
        %5028 = vmatprep.subr.bf16.mxu0 %v4927
        %5029 = vmatpush1.bf16.msra.mxu0 %v4926
        %5030 = vmatprep.subr.bf16.mxu0 %v4931
        %5031 = vmatpush1.bf16.msra.mxu0 %v4930
        %5032 = vmatprep.subr.bf16.mxu0 %v4935
        %5033 = vmatpush1.bf16.msra.mxu0 %v4934
        %5034 = vmatprep.mubr.bf16.mxu0 %v4528
        %5035 = vmatmul.mubr.bf16.gmra.mrb[0].mxu0 %v4527
        %v5036 = vpop.f32.mrb[0].mxu0
        %v5037 = vadd.f32 0.0, %v5036
        %v5038 = vpop.f32.mrb[0].mxu0
        %v5039 = vadd.f32 0.0, %v5038
        %v5040 = vpop.f32.mrb[0].mxu0
        %v5041 = vpop.f32.mrb[0].mxu0
        %5042 = vdwg.mxu0
        %5043 = vmatprep.subr.bf16.mxu0 %v4877
        %5044 = vmatpush1.bf16.msra.mxu0 %v4876
        %5045 = vmatprep.subr.bf16.mxu0 %v4881
        %5046 = vmatpush1.bf16.msra.mxu0 %v4880
        %5047 = vmatprep.subr.bf16.mxu0 %v4885
        %5048 = vmatpush1.bf16.msra.mxu0 %v4884
        %5049 = vmatprep.subr.bf16.mxu0 %v4889
        %5050 = vmatpush1.bf16.msra.mxu0 %v4888
        %5051 = vmatprep.subr.bf16.mxu0 %v4893
        %5052 = vmatpush1.bf16.msra.mxu0 %v4892
        %5053 = vmatprep.subr.bf16.mxu0 %v4897
        %5054 = vmatpush1.bf16.msra.mxu0 %v4896
        %5055 = vmatprep.subr.bf16.mxu0 %v4901
        %5056 = vmatpush1.bf16.msra.mxu0 %v4900
        %5057 = vmatprep.subr.bf16.mxu0 %v4905
        %5058 = vmatpush1.bf16.msra.mxu0 %v4904
        %5059 = vmatprep.subr.bf16.mxu0 %v4909
        %5060 = vmatpush1.bf16.msra.mxu0 %v4908
        %5061 = vmatprep.subr.bf16.mxu0 %v4913
        %5062 = vmatpush1.bf16.msra.mxu0 %v4912
        %5063 = vmatprep.subr.bf16.mxu0 %v4917
        %5064 = vmatpush1.bf16.msra.mxu0 %v4916
        %5065 = vmatprep.subr.bf16.mxu0 %v4921
        %5066 = vmatpush1.bf16.msra.mxu0 %v4920
        %5067 = vmatprep.subr.bf16.mxu0 %v4925
        %5068 = vmatpush1.bf16.msra.mxu0 %v4924
        %5069 = vmatprep.subr.bf16.mxu0 %v4929
        %5070 = vmatpush1.bf16.msra.mxu0 %v4928
        %5071 = vmatprep.subr.bf16.mxu0 %v4933
        %5072 = vmatpush1.bf16.msra.mxu0 %v4932
        %5073 = vmatprep.subr.bf16.mxu0 %v4937
        %5074 = vmatpush1.bf16.msra.mxu0 %v4936
        %5075 = vmatprep.mubr.bf16.mxu0 %v4528
        %5076 = vmatmul.mubr.bf16.gmra.mrb[0].mxu0 %v4527
        %v5077 = vpop.f32.mrb[0].mxu0
        %v5078 = vadd.f32 0.0, %v5077
        %v5079 = vpop.f32.mrb[0].mxu0
        %v5080 = vadd.f32 0.0, %v5079
        %v5081 = vpop.f32.mrb[0].mxu0
        %v5082 = vpop.f32.mrb[0].mxu0
        %5083 = vdwg.mxu0
        %v5084 = vadd.f32 %v4521, %v5037
        %v5085 = vadd.f32 %v4522, %v5039
        %v5086 = vadd.f32 %v4523, %v5078
        %v5087 = vadd.f32 %v4524, %v5080
        %v5090 = vrot.slane %v2430, 1
        %v5091 = vrot.slane %v2431, 1
        %5094 = vmatprep.subr.bf16.mxu0 %v4875
        %5095 = vmatpush1.bf16.msra.mxu0 %v4874
        %5096 = vmatprep.subr.bf16.mxu0 %v4879
        %5097 = vmatpush1.bf16.msra.mxu0 %v4878
        %5098 = vmatprep.subr.bf16.mxu0 %v4883
        %5099 = vmatpush1.bf16.msra.mxu0 %v4882
        %5100 = vmatprep.subr.bf16.mxu0 %v4887
        %5101 = vmatpush1.bf16.msra.mxu0 %v4886
        %5102 = vmatprep.subr.bf16.mxu0 %v4891
        %5103 = vmatpush1.bf16.msra.mxu0 %v4890
        %5104 = vmatprep.subr.bf16.mxu0 %v4895
        %5105 = vmatpush1.bf16.msra.mxu0 %v4894
        %5106 = vmatprep.subr.bf16.mxu0 %v4899
        %5107 = vmatpush1.bf16.msra.mxu0 %v4898
        %5108 = vmatprep.subr.bf16.mxu0 %v4903
        %5109 = vmatpush1.bf16.msra.mxu0 %v4902
        %5110 = vmatprep.subr.bf16.mxu0 %v4907
        %5111 = vmatpush1.bf16.msra.mxu0 %v4906
        %5112 = vmatprep.subr.bf16.mxu0 %v4911
        %5113 = vmatpush1.bf16.msra.mxu0 %v4910
        %5114 = vmatprep.subr.bf16.mxu0 %v4915
        %5115 = vmatpush1.bf16.msra.mxu0 %v4914
        %5116 = vmatprep.subr.bf16.mxu0 %v4919
        %5117 = vmatpush1.bf16.msra.mxu0 %v4918
        %5118 = vmatprep.subr.bf16.mxu0 %v4923
        %5119 = vmatpush1.bf16.msra.mxu0 %v4922
        %5120 = vmatprep.subr.bf16.mxu0 %v4927
        %5121 = vmatpush1.bf16.msra.mxu0 %v4926
        %5122 = vmatprep.subr.bf16.mxu0 %v4931
        %5123 = vmatpush1.bf16.msra.mxu0 %v4930
        %5124 = vmatprep.subr.bf16.mxu0 %v4935
        %5125 = vmatpush1.bf16.msra.mxu0 %v4934
        %5126 = vmatprep.mubr.bf16.mxu0 %v5091
        %5127 = vmatmul.mubr.bf16.gmra.mrb[0].mxu0 %v5090
        %v5128 = vpop.f32.mrb[0].mxu0
        %v5129 = vadd.f32 0.0, %v5128
        %v5130 = vpop.f32.mrb[0].mxu0
        %v5131 = vadd.f32 0.0, %v5130
        %v5132 = vpop.f32.mrb[0].mxu0
        %v5133 = vpop.f32.mrb[0].mxu0
        %5134 = vdwg.mxu0
        %5135 = vmatprep.subr.bf16.mxu0 %v4877
        %5136 = vmatpush1.bf16.msra.mxu0 %v4876
        %5137 = vmatprep.subr.bf16.mxu0 %v4881
        %5138 = vmatpush1.bf16.msra.mxu0 %v4880
        %5139 = vmatprep.subr.bf16.mxu0 %v4885
        %5140 = vmatpush1.bf16.msra.mxu0 %v4884
        %5141 = vmatprep.subr.bf16.mxu0 %v4889
        %5142 = vmatpush1.bf16.msra.mxu0 %v4888
        %5143 = vmatprep.subr.bf16.mxu0 %v4893
        %5144 = vmatpush1.bf16.msra.mxu0 %v4892
        %5145 = vmatprep.subr.bf16.mxu0 %v4897
        %5146 = vmatpush1.bf16.msra.mxu0 %v4896
        %5147 = vmatprep.subr.bf16.mxu0 %v4901
        %5148 = vmatpush1.bf16.msra.mxu0 %v4900
        %5149 = vmatprep.subr.bf16.mxu0 %v4905
        %5150 = vmatpush1.bf16.msra.mxu0 %v4904
        %5151 = vmatprep.subr.bf16.mxu0 %v4909
        %5152 = vmatpush1.bf16.msra.mxu0 %v4908
        %5153 = vmatprep.subr.bf16.mxu0 %v4913
        %5154 = vmatpush1.bf16.msra.mxu0 %v4912
        %5155 = vmatprep.subr.bf16.mxu0 %v4917
        %5156 = vmatpush1.bf16.msra.mxu0 %v4916
        %5157 = vmatprep.subr.bf16.mxu0 %v4921
        %5158 = vmatpush1.bf16.msra.mxu0 %v4920
        %5159 = vmatprep.subr.bf16.mxu0 %v4925
        %5160 = vmatpush1.bf16.msra.mxu0 %v4924
        %5161 = vmatprep.subr.bf16.mxu0 %v4929
        %5162 = vmatpush1.bf16.msra.mxu0 %v4928
        %5163 = vmatprep.subr.bf16.mxu0 %v4933
        %5164 = vmatpush1.bf16.msra.mxu0 %v4932
        %5165 = vmatprep.subr.bf16.mxu0 %v4937
        %5166 = vmatpush1.bf16.msra.mxu0 %v4936
        %5167 = vmatprep.mubr.bf16.mxu0 %v5091
        %5168 = vmatmul.mubr.bf16.gmra.mrb[0].mxu0 %v5090
        %v5169 = vpop.f32.mrb[0].mxu0
        %v5170 = vadd.f32 0.0, %v5169
        %v5171 = vpop.f32.mrb[0].mxu0
        %v5172 = vadd.f32 0.0, %v5171
        %v5173 = vpop.f32.mrb[0].mxu0
        %v5174 = vpop.f32.mrb[0].mxu0
        %5175 = vdwg.mxu0
        %v5176 = vadd.f32 %v4613, %v5129
        %v5177 = vadd.f32 %v4614, %v5131
        %v5178 = vadd.f32 %v4615, %v5170
        %v5179 = vadd.f32 %v4616, %v5172
        %v5180 = vld [vmem:[#allocation7] sm:$0xf]
        %v5182 = vlaneseq
        %v5183 = vshrl.u32 %v5182, 7
        %v5184 = vsub.s32 0, %v5183
        %v5185 = vrot.slane %v5180, %v5184
        %v5186 = vlaneseq
        %v5187 = vshrl.u32 %v5186, 7
        %v5188 = vsub.s32 1, %v5187
        %v5189 = vrot.slane %v5180, %v5188
        %v5190 = vlaneseq
        %v5191 = vshrl.u32 %v5190, 7
        %v5192 = vsub.s32 2, %v5191
        %v5193 = vrot.slane %v5180, %v5192
        %v5194 = vlaneseq
        %v5195 = vshrl.u32 %v5194, 7
        %v5196 = vsub.s32 3, %v5195
        %v5197 = vrot.slane %v5180, %v5196
        %v5202 = vadd.f32 %v5084, %v5185
        %v5203 = vadd.f32 %v5085, %v5189
        %v5204 = vadd.f32 %v5086, %v5193
        %v5205 = vadd.f32 %v5087, %v5197
        %v5206 = vmax.f32 %v5202, 0.0
        %v5207 = vmax.f32 %v5203, 0.0
        %v5208 = vmax.f32 %v5204, 0.0
        %v5209 = vmax.f32 %v5205, 0.0
        %v5210 = vadd.f32 %v5176, %v5185
        %v5211 = vadd.f32 %v5177, %v5189
        %v5212 = vadd.f32 %v5178, %v5193
        %v5213 = vadd.f32 %v5179, %v5197
        %v5214 = vmax.f32 %v5210, 0.0
        %v5215 = vmax.f32 %v5211, 0.0
        %v5216 = vmax.f32 %v5212, 0.0
        %v5217 = vmax.f32 %v5213, 0.0
        %v5218 = vmax.f32 %v5206, %v5208
        %v5219 = vmax.f32 %v5207, %v5209
        %v5220 = vmax.f32 %v5214, %v5216
        %v5221 = vmax.f32 %v5215, %v5217
        %v5222 = vmax.f32 %v5218, %v5220
        %v5223 = vmax.f32 %v5219, %v5221
        %v5226 = vcombine.low %v5222, %v5223
        %5228 = vst [vmem:[%s279] sm:$0xff] %v5226
        %p5229 = scmp.lt.s32.totalorder %s19, 1
        %s5230 = scalar_select %p5229, %s19, 1
        %s5231 = smul.addr %s5230, 2
        %s5232 = smul.addr %s5231, 4
        %s5233 = scalar_lea.vmem %s5, %s5232
        // Predicated region
        $region57: #{forward.2} parent=39 // pred_check
          %p5234 = pneg %p147
        $region58: #{forward.2} parent=39 // pred_check_branch
          %5236 = sbr.rel (%p5234) target = $region60
        $region59: #{forward.2} parent=39 // pred_region
          _
        $region60: #{forward.2} parent=39 // pred_fallthru
          _
      $region40: #{forward.2} parent=5 // pred_fallthru
        _
      %p5237 = scmp.le.s32.totalorder 2, %s14
      // Predicated region
      $region61: #{forward.2} parent=5 // pred_check
        %p5238 = pneg %p5237
      $region62: #{forward.2} parent=5 // pred_check_branch
        %5240 = sbr.rel (%p5238) target = $region64
      $region63: #{forward.2} parent=5 // pred_region
        %s5241 = ssub.s32 %s14, 2
        // Predicated region
        $region65: #{forward.2} parent=63 // pred_check
          %p5242 = pneg %p153
        $region66: #{forward.2} parent=63 // pred_check_branch
          %5244 = sbr.rel (%p5242) target = $region68
        $region67: #{forward.2} parent=63 // pred_region
          %p5245 = scmp.lt.s32.totalorder %s20, 1
          %s5246 = scalar_select %p5245, %s20, 1
          %s5247 = smul.addr %s5246, 2
          %s5248 = smul.addr %s5247, 4
          %s5249 = scalar_lea.vmem %s5, %s5248
        $region68: #{forward.2} parent=63 // pred_fallthru
          _
      $region64: #{forward.2} parent=5 // pred_fallthru
        _
    $region6: #{forward.2} parent=1 // loop_footer
      %s18 = sadd.s32 1, %s14
    $region7: #{forward.2} parent=1 // loop_footer_branch
      %13 = sbr.rel target = $region3
    $region8: #{forward.2} parent=1 // loop_exit
      _
    %5250 = vsyncpa [#allocation3], 1
    %s5251 = scalar_lea.sflag [#allocation3], 1
    %5252 = vsyncpa %s5251, 1
    %5253 = vsyncpa [#allocation5], 1
    %5254 = vsyncpa [#allocation8], 1

</llo_original>
